<compile_context>
chip_gen: v7x
topology: tpu7x:2x2x1
jax: 0.10.0
libtpu: 0.0.40
codegen_flags: <defaults>
</compile_context>

<pallas_src>
import functools
import math

import jax
import jax.numpy as jnp
from jax.experimental import pallas as pl
from jax.experimental.pallas import tpu as pltpu


def _layernorm(x, gamma, beta, eps=1e-5):
    # x: (rows, D), gamma/beta: (1, D); stats in f32
    mean = jnp.mean(x, axis=-1, keepdims=True)
    var = jnp.mean((x - mean) ** 2, axis=-1, keepdims=True)
    inv = jax.lax.rsqrt(var + eps)
    return (x - mean) * inv * gamma + beta


def encoder_block_kernel(
    x_ref,
    wqkv_ref, bqkv_ref, wo3_ref, bo_ref,
    g1_ref, be1_ref,
    w1_ref, b1_ref, w2_ref, b2_ref,
    g2_ref, be2_ref,
    o_ref,
    *, n_heads, q_block, ff_block,
):
    x = x_ref[...]                       # (S, D) -- leading batch dim squeezed away
    S, D = x.shape
    H = n_heads
    dh = D // H
    d_ff = w1_ref.shape[1]
    scale = 1.0 / math.sqrt(dh)

    # ---- Fused QKV projection: one lane-dense (S,D)@(D,3D) MXU pass + one bias add.
    qkv = jnp.dot(x, wqkv_ref[...], preferred_element_type=jnp.float32) + bqkv_ref[...]

    # Head relayout (S, 3D) -> (3H, S, dh): explicit leading-axis stack of static lane
    # slices (cheap, guaranteed-lowering relayout).  All heavy math below is
    # head-BATCHED: no per-head matmul/softmax, no lane-dim concatenate, no k.T.
    qkv_h = jnp.stack([qkv[:, i * dh:(i + 1) * dh] for i in range(3 * H)], axis=0)
    q_all = qkv_h[:H]                    # (H, S, dh)
    k_all = qkv_h[H:2 * H]               # (H, S, dh)
    v_all = qkv_h[2 * H:]                # (H, S, dh)

    wo3 = wo3_ref[...]                   # (H, dh, D)
    bo = bo_ref[...]
    g1, be1 = g1_ref[...], be1_ref[...]
    g2, be2 = g2_ref[...], be2_ref[...]
    b2 = b2_ref[...]

    # ---- Query-tile loop: only an (H, q_block, S) score slab is live per iteration,
    # and the residual + LayerNorm + FFN are row-wise so they tile with the queries.
    for qi in range(S // q_block):
        r0 = qi * q_block
        q_t = q_all[:, r0:r0 + q_block, :]                        # (H, tq, dh)
        x_t = x[r0:r0 + q_block, :]                               # (tq, D)

        # Batched attention; contraction on the last dims of both operands.
        s = jnp.einsum('hqd,hkd->hqk', q_t, k_all,
                       preferred_element_type=jnp.float32) * scale          # (H, tq, S)
        s = s - jnp.max(s, axis=-1, keepdims=True)
        p = jnp.exp(s)
        # Softmax divide on the EUP (frees the VALU slot).
        p = p * pl.reciprocal(jnp.sum(p, axis=-1, keepdims=True), approx=True)
        ctx = jnp.einsum('hqk,hkd->hqd', p, v_all,
                         preferred_element_type=jnp.float32)                # (H, tq, dh)

        # Output projection folded per head and reduced over heads:
        #   concat_h(ctx_h) @ Wo == sum_h ctx_h @ Wo[h*dh:(h+1)*dh, :]
        attn = jnp.sum(jnp.einsum('hqd,hde->hqe', ctx, wo3,
                                  preferred_element_type=jnp.float32), axis=0) + bo

        # ---- AddNorm #1 (dropout = identity in eval mode)
        y = _layernorm(x_t.astype(jnp.float32) + attn, g1, be1)

        # ---- Position-wise FFN, tiled over d_ff (hidden slab never fully resident)
        ffn = jnp.zeros((q_block, D), jnp.float32)
        for c in range(d_ff // ff_block):
            c0 = c * ff_block
            h = jnp.dot(y, w1_ref[:, c0:c0 + ff_block],
                        preferred_element_type=jnp.float32) + b1_ref[:, c0:c0 + ff_block]
            h = jnp.maximum(h, 0.0)
            ffn = ffn + jnp.dot(h, w2_ref[c0:c0 + ff_block, :],
                                preferred_element_type=jnp.float32)
        ffn = ffn + b2

        # ---- AddNorm #2
        out_t = _layernorm(y + ffn, g2, be2)
        o_ref[r0:r0 + q_block, :] = out_t.astype(o_ref.dtype)


# --------------------------------------------------------------------------------------
# Wrapper
# --------------------------------------------------------------------------------------

_PARAM_ORDER = ("wqkv", "bqkv", "wo3", "bo", "g1", "be1",
                "w1", "b1", "w2", "b2", "g2", "be2")


def _pack_params(params, n_heads):
    """Pack module-style params into the fused layout the kernel consumes."""
    D = params["wq"].shape[0]
    dh = D // n_heads
    wqkv = jnp.concatenate([params["wq"], params["wk"], params["wv"]], axis=1)   # (D, 3D)
    bqkv = jnp.concatenate([params["bq"], params["bk"], params["bv"]], axis=1)   # (1, 3D)
    wo3 = params["wo"].reshape(n_heads, dh, D)                                   # (H, dh, D)
    return dict(wqkv=wqkv, bqkv=bqkv, wo3=wo3, bo=params["bo"],
                g1=params["g1"], be1=params["be1"],
                w1=params["w1"], b1=params["b1"],
                w2=params["w2"], b2=params["b2"],
                g2=params["g2"], be2=params["be2"])


def _run(x, packed, n_heads, q_block, ff_block, single_buffer_params):
    B, S, D = x.shape
    d_ff = packed["w1"].shape[1]

    def param_spec(p):
        kwargs = {}
        if single_buffer_params:
            # Resident (constant-index) weights: no double-buffering -> halves their
            # VMEM footprint (matters for realistic D/d_ff, esp. on v7x's 64 MiB VMEM).
            kwargs["pipeline_mode"] = pl.Buffered(1)
        return pl.BlockSpec(p.shape, lambda b, nd=p.ndim: (0,) * nd, **kwargs)

    in_specs = [pl.BlockSpec((pl.Squeezed(), S, D), lambda b: (b, 0, 0))]
    args = [x]
    for name in _PARAM_ORDER:
        p = packed[name]
        in_specs.append(param_spec(p))
        args.append(p)
    out_specs = pl.BlockSpec((pl.Squeezed(), S, D), lambda b: (b, 0, 0))

    # Scoped-VMEM budget sized to actual residency (weights + activations), clamped to
    # stay safely under physical VMEM on all generations (v7x has 64 MiB per core).
    param_bytes = sum(p.size * p.dtype.itemsize for p in packed.values())
    act_bytes = 4 * (6 * S * D +                       # x, qkv, per-tile y/ffn/out
                     3 * S * D +                       # head-batched q/k/v
                     n_heads * q_block * S +           # score slab
                     q_block * d_ff)                   # one FFN hidden chunk bound
    vmem_limit = int(min(max(3 * (param_bytes + act_bytes), 16 * 2**20), 64 * 2**20))

    kernel = functools.partial(encoder_block_kernel, n_heads=n_heads,
                               q_block=q_block, ff_block=ff_block)
    fn = pl.pallas_call(
        kernel,
        out_shape=jax.ShapeDtypeStruct((B, S, D), x.dtype),
        grid=(B,),
        in_specs=in_specs,
        out_specs=out_specs,
        compiler_params=pltpu.CompilerParams(
            dimension_semantics=("parallel",),
            vmem_limit_bytes=vmem_limit),
    )
    return fn(*args)


def encoder_block(x, params, n_heads, q_block=None, ff_block=None):
    B, S, D = x.shape
    assert D % n_heads == 0, "d_model must be divisible by n_heads"
    d_ff = params["w1"].shape[1]
    if q_block is None:
        q_block = min(S, 128)
    if ff_block is None:
        ff_block = min(d_ff, 512)
    assert S % q_block == 0 and d_ff % ff_block == 0
    packed = _pack_params(params, n_heads)
    try:
        out = _run(x, packed, n_heads, q_block, ff_block, single_buffer_params=True)
        return jax.block_until_ready(out)
    except Exception:
        # Portability fallback: if this JAX build rejects pl.Buffered(1) on resident
        # inputs, rerun with default double-buffering (same numerics).
        return _run(x, packed, n_heads, q_block, ff_block, single_buffer_params=False)


# --------------------------------------------------------------------------------------
# Params + pure-JAX reference
# --------------------------------------------------------------------------------------

def init_params(key, d_model, d_ff):
    ks = jax.random.split(key, 8)

    def lin(k, fan_in, fan_out):
        w = jax.random.normal(k, (fan_in, fan_out), jnp.float32) * (1.0 / math.sqrt(fan_in))
        b = jnp.zeros((1, fan_out), jnp.float32)
        return w, b

    wq, bq = lin(ks[0], d_model, d_model)
    wk, bk = lin(ks[1], d_model, d_model)
    wv, bv = lin(ks[2], d_model, d_model)
    wo, bo = lin(ks[3], d_model, d_model)
    w1, b1 = lin(ks[4], d_model, d_ff)
    w2, b2 = lin(ks[5], d_ff, d_model)
    g1 = jnp.ones((1, d_model), jnp.float32)
    be1 = jnp.zeros((1, d_model), jnp.float32)
    g2 = jnp.ones((1, d_model), jnp.float32)
    be2 = jnp.zeros((1, d_model), jnp.float32)
    return dict(wq=wq, bq=bq, wk=wk, bk=bk, wv=wv, bv=bv, wo=wo, bo=bo,
                g1=g1, be1=be1, w1=w1, b1=b1, w2=w2, b2=b2, g2=g2, be2=be2)


def encoder_block_ref(x, p, n_heads):
    """Pure-JAX reference (eval mode, mask=None)."""
    B, S, D = x.shape
    dh = D // n_heads
    q = x @ p["wq"] + p["bq"]
    k = x @ p["wk"] + p["bk"]
    v = x @ p["wv"] + p["bv"]
    qh = q.reshape(B, S, n_heads, dh).transpose(0, 2, 1, 3)
    kh = k.reshape(B, S, n_heads, dh).transpose(0, 2, 1, 3)
    vh = v.reshape(B, S, n_heads, dh).transpose(0, 2, 1, 3)
    scores = jnp.einsum("bhqd,bhkd->bhqk", qh, kh) / math.sqrt(dh)
    a = jax.nn.softmax(scores, axis=-1)
    o = jnp.einsum("bhqk,bhkd->bhqd", a, vh).transpose(0, 2, 1, 3).reshape(B, S, D)
    o = o @ p["wo"] + p["bo"]

    def ln(z, g, b, eps=1e-5):
        m = jnp.mean(z, -1, keepdims=True)
        var = jnp.mean((z - m) ** 2, -1, keepdims=True)
        return (z - m) * jax.lax.rsqrt(var + eps) * g + b

    y = ln(x + o, p["g1"], p["be1"])
    f = jnp.maximum(y @ p["w1"] + p["b1"], 0.0) @ p["w2"] + p["b2"]
    return ln(y + f, p["g2"], p["be2"])


if __name__ == "__main__":
    # Small deterministic shapes: exercise the batch grid (2 steps), the query-tile
    # loop (2 tiles of 8) and the d_ff-chunked FFN (2 chunks of 32).
    B, S, d_model, d_ff, n_heads = 2, 16, 32, 64, 4
    key = jax.random.PRNGKey(0)
    kx, kp = jax.random.split(key)
    x = jax.random.normal(kx, (B, S, d_model), jnp.float32)
    params = init_params(kp, d_model, d_ff)

    out = encoder_block(x, params, n_heads, q_block=8, ff_block=32)
    out = jax.block_until_ready(out)

    ref = encoder_block_ref(x, params, n_heads)
    assert out.shape == (B, S, d_model)
    err = float(jnp.max(jnp.abs(out - ref)))
    # Tolerance accounts for the EUP approx-reciprocal softmax denominator.
    assert jnp.allclose(out, ref, atol=5e-3, rtol=5e-3), f"mismatch vs reference, max|err|={err}"
    print("KERNEL_OK")
</pallas_src>

<mosaic_0001>
module attributes {stable_mosaic.version = 11 : i64} {
  func.func @encoder_block_kernel(%arg0: i32, %arg1: memref<1x16x32xf32, #tpu.memory_space<vmem>>, %arg2: memref<32x96xf32, #tpu.memory_space<vmem>>, %arg3: memref<1x96xf32, #tpu.memory_space<vmem>>, %arg4: memref<4x8x32xf32, #tpu.memory_space<vmem>>, %arg5: memref<1x32xf32, #tpu.memory_space<vmem>>, %arg6: memref<1x32xf32, #tpu.memory_space<vmem>>, %arg7: memref<1x32xf32, #tpu.memory_space<vmem>>, %arg8: memref<32x64xf32, #tpu.memory_space<vmem>>, %arg9: memref<1x64xf32, #tpu.memory_space<vmem>>, %arg10: memref<64x32xf32, #tpu.memory_space<vmem>>, %arg11: memref<1x32xf32, #tpu.memory_space<vmem>>, %arg12: memref<1x32xf32, #tpu.memory_space<vmem>>, %arg13: memref<1x32xf32, #tpu.memory_space<vmem>>, %arg14: memref<1x16x32xf32, #tpu.memory_space<vmem>>) attributes {dimension_semantics = [#tpu.dimension_semantics<parallel>], iteration_bounds = array<i64: 2>, scalar_prefetch = 0 : i64, scratch_operands = 0 : i64, tpu.core_type = #tpu.core_type<tc>, window_params = [{transform_indices = @transform_0, window_bounds = array<i64: 1, 16, 32>}, {pipeline_mode = #tpu.pipeline_mode<synchronous>, transform_indices = @transform_1, window_bounds = array<i64: 32, 96>}, {pipeline_mode = #tpu.pipeline_mode<synchronous>, transform_indices = @transform_2, window_bounds = array<i64: 1, 96>}, {pipeline_mode = #tpu.pipeline_mode<synchronous>, transform_indices = @transform_3, window_bounds = array<i64: 4, 8, 32>}, {pipeline_mode = #tpu.pipeline_mode<synchronous>, transform_indices = @transform_4, window_bounds = array<i64: 1, 32>}, {pipeline_mode = #tpu.pipeline_mode<synchronous>, transform_indices = @transform_5, window_bounds = array<i64: 1, 32>}, {pipeline_mode = #tpu.pipeline_mode<synchronous>, transform_indices = @transform_6, window_bounds = array<i64: 1, 32>}, {pipeline_mode = #tpu.pipeline_mode<synchronous>, transform_indices = @transform_7, window_bounds = array<i64: 32, 64>}, {pipeline_mode = #tpu.pipeline_mode<synchronous>, transform_indices = @transform_8, window_bounds = array<i64: 1, 64>}, {pipeline_mode = #tpu.pipeline_mode<synchronous>, transform_indices = @transform_9, window_bounds = array<i64: 64, 32>}, {pipeline_mode = #tpu.pipeline_mode<synchronous>, transform_indices = @transform_10, window_bounds = array<i64: 1, 32>}, {pipeline_mode = #tpu.pipeline_mode<synchronous>, transform_indices = @transform_11, window_bounds = array<i64: 1, 32>}, {pipeline_mode = #tpu.pipeline_mode<synchronous>, transform_indices = @transform_12, window_bounds = array<i64: 1, 32>}, {transform_indices = @transform_13, window_bounds = array<i64: 1, 16, 32>}]} {
    %c0 = arith.constant 0 : index
    %c0_0 = arith.constant 0 : index
    %c0_1 = arith.constant 0 : index
    %0 = vector.load %arg1[%c0, %c0_0, %c0_1] : memref<1x16x32xf32, #tpu.memory_space<vmem>>, vector<1x16x32xf32>
    %1 = vector.shape_cast %0 : vector<1x16x32xf32> to vector<16x32xf32>
    %c0_2 = arith.constant 0 : index
    %c0_3 = arith.constant 0 : index
    %2 = vector.load %arg2[%c0_2, %c0_3] : memref<32x96xf32, #tpu.memory_space<vmem>>, vector<32x96xf32>
    %cst = arith.constant dense<0.000000e+00> : vector<16x96xf32>
    %3 = tpu.matmul %1, %2, %cst {dimension_numbers = #tpu.dot_dimension_numbers<[1], [0], [0], [1], [0, 0, 1, 1], [], []>} : vector<16x32xf32>, vector<32x96xf32>, vector<16x96xf32> -> vector<16x96xf32>
    %c0_4 = arith.constant 0 : index
    %c0_5 = arith.constant 0 : index
    %4 = vector.load %arg3[%c0_4, %c0_5] : memref<1x96xf32, #tpu.memory_space<vmem>>, vector<1x96xf32>
    %5 = vector.broadcast %4 : vector<1x96xf32> to vector<16x96xf32>
    %6 = arith.addf %3, %5 : vector<16x96xf32>
    %7 = vector.extract_strided_slice %6 {offsets = [0, 0], sizes = [16, 8], strides = [1, 1]} : vector<16x96xf32> to vector<16x8xf32>
    %8 = vector.extract_strided_slice %6 {offsets = [0, 8], sizes = [16, 8], strides = [1, 1]} : vector<16x96xf32> to vector<16x8xf32>
    %9 = vector.extract_strided_slice %6 {offsets = [0, 16], sizes = [16, 8], strides = [1, 1]} : vector<16x96xf32> to vector<16x8xf32>
    %10 = vector.extract_strided_slice %6 {offsets = [0, 24], sizes = [16, 8], strides = [1, 1]} : vector<16x96xf32> to vector<16x8xf32>
    %11 = vector.extract_strided_slice %6 {offsets = [0, 32], sizes = [16, 8], strides = [1, 1]} : vector<16x96xf32> to vector<16x8xf32>
    %12 = vector.extract_strided_slice %6 {offsets = [0, 40], sizes = [16, 8], strides = [1, 1]} : vector<16x96xf32> to vector<16x8xf32>
    %13 = vector.extract_strided_slice %6 {offsets = [0, 48], sizes = [16, 8], strides = [1, 1]} : vector<16x96xf32> to vector<16x8xf32>
    %14 = vector.extract_strided_slice %6 {offsets = [0, 56], sizes = [16, 8], strides = [1, 1]} : vector<16x96xf32> to vector<16x8xf32>
    %15 = vector.extract_strided_slice %6 {offsets = [0, 64], sizes = [16, 8], strides = [1, 1]} : vector<16x96xf32> to vector<16x8xf32>
    %16 = vector.extract_strided_slice %6 {offsets = [0, 72], sizes = [16, 8], strides = [1, 1]} : vector<16x96xf32> to vector<16x8xf32>
    %17 = vector.extract_strided_slice %6 {offsets = [0, 80], sizes = [16, 8], strides = [1, 1]} : vector<16x96xf32> to vector<16x8xf32>
    %18 = vector.extract_strided_slice %6 {offsets = [0, 88], sizes = [16, 8], strides = [1, 1]} : vector<16x96xf32> to vector<16x8xf32>
    %19 = vector.shape_cast %7 : vector<16x8xf32> to vector<1x16x8xf32>
    %20 = vector.shape_cast %8 : vector<16x8xf32> to vector<1x16x8xf32>
    %21 = vector.shape_cast %9 : vector<16x8xf32> to vector<1x16x8xf32>
    %22 = vector.shape_cast %10 : vector<16x8xf32> to vector<1x16x8xf32>
    %23 = vector.shape_cast %11 : vector<16x8xf32> to vector<1x16x8xf32>
    %24 = vector.shape_cast %12 : vector<16x8xf32> to vector<1x16x8xf32>
    %25 = vector.shape_cast %13 : vector<16x8xf32> to vector<1x16x8xf32>
    %26 = vector.shape_cast %14 : vector<16x8xf32> to vector<1x16x8xf32>
    %27 = vector.shape_cast %15 : vector<16x8xf32> to vector<1x16x8xf32>
    %28 = vector.shape_cast %16 : vector<16x8xf32> to vector<1x16x8xf32>
    %29 = vector.shape_cast %17 : vector<16x8xf32> to vector<1x16x8xf32>
    %30 = vector.shape_cast %18 : vector<16x8xf32> to vector<1x16x8xf32>
    %31 = tpu.concatenate %19, %20, %21, %22, %23, %24, %25, %26, %27, %28, %29, %30 in 0 : vector<1x16x8xf32>, vector<1x16x8xf32>, vector<1x16x8xf32>, vector<1x16x8xf32>, vector<1x16x8xf32>, vector<1x16x8xf32>, vector<1x16x8xf32>, vector<1x16x8xf32>, vector<1x16x8xf32>, vector<1x16x8xf32>, vector<1x16x8xf32>, vector<1x16x8xf32> -> vector<12x16x8xf32>
    %32 = vector.extract_strided_slice %31 {offsets = [0, 0, 0], sizes = [4, 16, 8], strides = [1, 1, 1]} : vector<12x16x8xf32> to vector<4x16x8xf32>
    %33 = vector.extract_strided_slice %31 {offsets = [4, 0, 0], sizes = [4, 16, 8], strides = [1, 1, 1]} : vector<12x16x8xf32> to vector<4x16x8xf32>
    %34 = vector.extract_strided_slice %31 {offsets = [8, 0, 0], sizes = [4, 16, 8], strides = [1, 1, 1]} : vector<12x16x8xf32> to vector<4x16x8xf32>
    %c0_6 = arith.constant 0 : index
    %c0_7 = arith.constant 0 : index
    %c0_8 = arith.constant 0 : index
    %35 = vector.load %arg4[%c0_6, %c0_7, %c0_8] : memref<4x8x32xf32, #tpu.memory_space<vmem>>, vector<4x8x32xf32>
    %c0_9 = arith.constant 0 : index
    %c0_10 = arith.constant 0 : index
    %36 = vector.load %arg5[%c0_9, %c0_10] : memref<1x32xf32, #tpu.memory_space<vmem>>, vector<1x32xf32>
    %c0_11 = arith.constant 0 : index
    %c0_12 = arith.constant 0 : index
    %37 = vector.load %arg6[%c0_11, %c0_12] : memref<1x32xf32, #tpu.memory_space<vmem>>, vector<1x32xf32>
    %c0_13 = arith.constant 0 : index
    %c0_14 = arith.constant 0 : index
    %38 = vector.load %arg7[%c0_13, %c0_14] : memref<1x32xf32, #tpu.memory_space<vmem>>, vector<1x32xf32>
    %c0_15 = arith.constant 0 : index
    %c0_16 = arith.constant 0 : index
    %39 = vector.load %arg12[%c0_15, %c0_16] : memref<1x32xf32, #tpu.memory_space<vmem>>, vector<1x32xf32>
    %c0_17 = arith.constant 0 : index
    %c0_18 = arith.constant 0 : index
    %40 = vector.load %arg13[%c0_17, %c0_18] : memref<1x32xf32, #tpu.memory_space<vmem>>, vector<1x32xf32>
    %c0_19 = arith.constant 0 : index
    %c0_20 = arith.constant 0 : index
    %41 = vector.load %arg11[%c0_19, %c0_20] : memref<1x32xf32, #tpu.memory_space<vmem>>, vector<1x32xf32>
    %42 = vector.extract_strided_slice %32 {offsets = [0, 0, 0], sizes = [4, 8, 8], strides = [1, 1, 1]} : vector<4x16x8xf32> to vector<4x8x8xf32>
    %43 = vector.extract_strided_slice %1 {offsets = [0, 0], sizes = [8, 32], strides = [1, 1]} : vector<16x32xf32> to vector<8x32xf32>
    "tpu.trace_start"() <{level = 10 : i32, message = "hqd,hkd->hqk"}> : () -> ()
    %cst_21 = arith.constant dense<0.000000e+00> : vector<4x8x16xf32>
    %44 = tpu.matmul %42, %33, %cst_21 {dimension_numbers = #tpu.dot_dimension_numbers<[2], [2], [1], [1], [0, 0, 0, 1, 1, 1], [0], [0]>} : vector<4x8x8xf32>, vector<4x16x8xf32>, vector<4x8x16xf32> -> vector<4x8x16xf32>
    "tpu.trace_stop"() : () -> ()
    %cst_22 = arith.constant 0.353553385 : f32
    %45 = vector.broadcast %cst_22 : f32 to vector<4x8x16xf32>
    %46 = arith.mulf %44, %45 : vector<4x8x16xf32>
    %cst_23 = arith.constant dense<0xFF800000> : vector<4x8xf32>
    %47 = vector.multi_reduction <maximumf>, %46, %cst_23 [2] : vector<4x8x16xf32> to vector<4x8xf32>
    %48 = vector.shape_cast %47 : vector<4x8xf32> to vector<4x8x1xf32>
    %49 = vector.broadcast %48 : vector<4x8x1xf32> to vector<4x8x16xf32>
    %50 = arith.subf %46, %49 : vector<4x8x16xf32>
    %51 = math.exp %50 : vector<4x8x16xf32>
    %cst_24 = arith.constant dense<0.000000e+00> : vector<4x8xf32>
    %52 = vector.multi_reduction <add>, %51, %cst_24 [2] : vector<4x8x16xf32> to vector<4x8xf32>
    %53 = vector.shape_cast %52 : vector<4x8xf32> to vector<4x8x1xf32>
    %54 = tpu.reciprocal %53 {approx = true} : vector<4x8x1xf32> -> vector<4x8x1xf32>
    %55 = vector.broadcast %54 : vector<4x8x1xf32> to vector<4x8x16xf32>
    %56 = arith.mulf %51, %55 : vector<4x8x16xf32>
    "tpu.trace_start"() <{level = 10 : i32, message = "hqk,hkd->hqd"}> : () -> ()
    %cst_25 = arith.constant dense<0.000000e+00> : vector<4x8x8xf32>
    %57 = tpu.matmul %56, %34, %cst_25 {dimension_numbers = #tpu.dot_dimension_numbers<[2], [1], [1], [2], [0, 0, 0, 1, 1, 2], [0], [0]>} : vector<4x8x16xf32>, vector<4x16x8xf32>, vector<4x8x8xf32> -> vector<4x8x8xf32>
    "tpu.trace_stop"() : () -> ()
    "tpu.trace_start"() <{level = 10 : i32, message = "hqd,hde->hqe"}> : () -> ()
    %cst_26 = arith.constant dense<0.000000e+00> : vector<4x8x32xf32>
    %58 = tpu.matmul %57, %35, %cst_26 {dimension_numbers = #tpu.dot_dimension_numbers<[2], [1], [1], [2], [0, 0, 0, 1, 1, 2], [0], [0]>} : vector<4x8x8xf32>, vector<4x8x32xf32>, vector<4x8x32xf32> -> vector<4x8x32xf32>
    "tpu.trace_stop"() : () -> ()
    %cst_27 = arith.constant dense<0.000000e+00> : vector<8x32xf32>
    %59 = vector.multi_reduction <add>, %58, %cst_27 [0] : vector<4x8x32xf32> to vector<8x32xf32>
    %60 = vector.broadcast %36 : vector<1x32xf32> to vector<8x32xf32>
    %61 = arith.addf %59, %60 : vector<8x32xf32>
    %62 = arith.addf %43, %61 : vector<8x32xf32>
    %cst_28 = arith.constant dense<0.000000e+00> : vector<8xf32>
    %63 = vector.multi_reduction <add>, %62, %cst_28 [1] : vector<8x32xf32> to vector<8xf32>
    %64 = vector.shape_cast %63 : vector<8xf32> to vector<8x1xf32>
    %cst_29 = arith.constant 3.200000e+01 : f32
    %65 = vector.broadcast %cst_29 : f32 to vector<8x1xf32>
    %66 = arith.divf %64, %65 : vector<8x1xf32>
    %67 = vector.broadcast %66 : vector<8x1xf32> to vector<8x32xf32>
    %68 = arith.subf %62, %67 : vector<8x32xf32>
    %69 = arith.mulf %68, %68 : vector<8x32xf32>
    %cst_30 = arith.constant dense<0.000000e+00> : vector<8xf32>
    %70 = vector.multi_reduction <add>, %69, %cst_30 [1] : vector<8x32xf32> to vector<8xf32>
    %71 = vector.shape_cast %70 : vector<8xf32> to vector<8x1xf32>
    %cst_31 = arith.constant 3.200000e+01 : f32
    %72 = vector.broadcast %cst_31 : f32 to vector<8x1xf32>
    %73 = arith.divf %71, %72 : vector<8x1xf32>
    %cst_32 = arith.constant 9.99999974E-6 : f32
    %74 = vector.broadcast %cst_32 : f32 to vector<8x1xf32>
    %75 = arith.addf %73, %74 : vector<8x1xf32>
    %76 = math.rsqrt %75 : vector<8x1xf32>
    %77 = vector.broadcast %66 : vector<8x1xf32> to vector<8x32xf32>
    %78 = arith.subf %62, %77 : vector<8x32xf32>
    %79 = vector.broadcast %76 : vector<8x1xf32> to vector<8x32xf32>
    %80 = arith.mulf %78, %79 : vector<8x32xf32>
    %81 = vector.broadcast %37 : vector<1x32xf32> to vector<8x32xf32>
    %82 = arith.mulf %80, %81 : vector<8x32xf32>
    %83 = vector.broadcast %38 : vector<1x32xf32> to vector<8x32xf32>
    %84 = arith.addf %82, %83 : vector<8x32xf32>
    %cst_33 = arith.constant 0.000000e+00 : f32
    %85 = vector.broadcast %cst_33 : f32 to vector<8x32xf32>
    %c0_34 = arith.constant 0 : index
    %c0_35 = arith.constant 0 : index
    %86 = vector.load %arg8[%c0_34, %c0_35] : memref<32x64xf32, #tpu.memory_space<vmem>>, vector<32x32xf32>
    %cst_36 = arith.constant dense<0.000000e+00> : vector<8x32xf32>
    %87 = tpu.matmul %84, %86, %cst_36 {dimension_numbers = #tpu.dot_dimension_numbers<[1], [0], [0], [1], [0, 0, 1, 1], [], []>} : vector<8x32xf32>, vector<32x32xf32>, vector<8x32xf32> -> vector<8x32xf32>
    %c0_37 = arith.constant 0 : index
    %c0_38 = arith.constant 0 : index
    %88 = vector.load %arg9[%c0_37, %c0_38] : memref<1x64xf32, #tpu.memory_space<vmem>>, vector<1x32xf32>
    %89 = vector.broadcast %88 : vector<1x32xf32> to vector<8x32xf32>
    %90 = arith.addf %87, %89 : vector<8x32xf32>
    %cst_39 = arith.constant 0.000000e+00 : f32
    %91 = vector.broadcast %cst_39 : f32 to vector<8x32xf32>
    %92 = arith.maximumf %90, %91 : vector<8x32xf32>
    %c0_40 = arith.constant 0 : index
    %c0_41 = arith.constant 0 : index
    %93 = vector.load %arg10[%c0_40, %c0_41] : memref<64x32xf32, #tpu.memory_space<vmem>>, vector<32x32xf32>
    %cst_42 = arith.constant dense<0.000000e+00> : vector<8x32xf32>
    %94 = tpu.matmul %92, %93, %cst_42 {dimension_numbers = #tpu.dot_dimension_numbers<[1], [0], [0], [1], [0, 0, 1, 1], [], []>} : vector<8x32xf32>, vector<32x32xf32>, vector<8x32xf32> -> vector<8x32xf32>
    %95 = arith.addf %85, %94 : vector<8x32xf32>
    %c0_43 = arith.constant 0 : index
    %c32 = arith.constant 32 : index
    %96 = vector.load %arg8[%c0_43, %c32] : memref<32x64xf32, #tpu.memory_space<vmem>>, vector<32x32xf32>
    %cst_44 = arith.constant dense<0.000000e+00> : vector<8x32xf32>
    %97 = tpu.matmul %84, %96, %cst_44 {dimension_numbers = #tpu.dot_dimension_numbers<[1], [0], [0], [1], [0, 0, 1, 1], [], []>} : vector<8x32xf32>, vector<32x32xf32>, vector<8x32xf32> -> vector<8x32xf32>
    %c0_45 = arith.constant 0 : index
    %c32_46 = arith.constant 32 : index
    %98 = vector.load %arg9[%c0_45, %c32_46] : memref<1x64xf32, #tpu.memory_space<vmem>>, vector<1x32xf32>
    %99 = vector.broadcast %98 : vector<1x32xf32> to vector<8x32xf32>
    %100 = arith.addf %97, %99 : vector<8x32xf32>
    %cst_47 = arith.constant 0.000000e+00 : f32
    %101 = vector.broadcast %cst_47 : f32 to vector<8x32xf32>
    %102 = arith.maximumf %100, %101 : vector<8x32xf32>
    %c32_48 = arith.constant 32 : index
    %c0_49 = arith.constant 0 : index
    %103 = vector.load %arg10[%c32_48, %c0_49] : memref<64x32xf32, #tpu.memory_space<vmem>>, vector<32x32xf32>
    %cst_50 = arith.constant dense<0.000000e+00> : vector<8x32xf32>
    %104 = tpu.matmul %102, %103, %cst_50 {dimension_numbers = #tpu.dot_dimension_numbers<[1], [0], [0], [1], [0, 0, 1, 1], [], []>} : vector<8x32xf32>, vector<32x32xf32>, vector<8x32xf32> -> vector<8x32xf32>
    %105 = arith.addf %95, %104 : vector<8x32xf32>
    %106 = vector.broadcast %41 : vector<1x32xf32> to vector<8x32xf32>
    %107 = arith.addf %105, %106 : vector<8x32xf32>
    %108 = arith.addf %84, %107 : vector<8x32xf32>
    %cst_51 = arith.constant dense<0.000000e+00> : vector<8xf32>
    %109 = vector.multi_reduction <add>, %108, %cst_51 [1] : vector<8x32xf32> to vector<8xf32>
    %110 = vector.shape_cast %109 : vector<8xf32> to vector<8x1xf32>
    %cst_52 = arith.constant 3.200000e+01 : f32
    %111 = vector.broadcast %cst_52 : f32 to vector<8x1xf32>
    %112 = arith.divf %110, %111 : vector<8x1xf32>
    %113 = vector.broadcast %112 : vector<8x1xf32> to vector<8x32xf32>
    %114 = arith.subf %108, %113 : vector<8x32xf32>
    %115 = arith.mulf %114, %114 : vector<8x32xf32>
    %cst_53 = arith.constant dense<0.000000e+00> : vector<8xf32>
    %116 = vector.multi_reduction <add>, %115, %cst_53 [1] : vector<8x32xf32> to vector<8xf32>
    %117 = vector.shape_cast %116 : vector<8xf32> to vector<8x1xf32>
    %cst_54 = arith.constant 3.200000e+01 : f32
    %118 = vector.broadcast %cst_54 : f32 to vector<8x1xf32>
    %119 = arith.divf %117, %118 : vector<8x1xf32>
    %cst_55 = arith.constant 9.99999974E-6 : f32
    %120 = vector.broadcast %cst_55 : f32 to vector<8x1xf32>
    %121 = arith.addf %119, %120 : vector<8x1xf32>
    %122 = math.rsqrt %121 : vector<8x1xf32>
    %123 = vector.broadcast %112 : vector<8x1xf32> to vector<8x32xf32>
    %124 = arith.subf %108, %123 : vector<8x32xf32>
    %125 = vector.broadcast %122 : vector<8x1xf32> to vector<8x32xf32>
    %126 = arith.mulf %124, %125 : vector<8x32xf32>
    %127 = vector.broadcast %39 : vector<1x32xf32> to vector<8x32xf32>
    %128 = arith.mulf %126, %127 : vector<8x32xf32>
    %129 = vector.broadcast %40 : vector<1x32xf32> to vector<8x32xf32>
    %130 = arith.addf %128, %129 : vector<8x32xf32>
    %c0_56 = arith.constant 0 : index
    %c0_57 = arith.constant 0 : index
    %c0_58 = arith.constant 0 : index
    %131 = vector.load %arg14[%c0_56, %c0_57, %c0_58] : memref<1x16x32xf32, #tpu.memory_space<vmem>>, vector<1x8x32xf32>
    %132 = vector.shape_cast %131 : vector<1x8x32xf32> to vector<8x32xf32>
    %133 = vector.shape_cast %130 : vector<8x32xf32> to vector<1x8x32xf32>
    tpu.vector_store %arg14[%c0_56, %c0_57, %c0_58], %133 {strides = array<i32>} : memref<1x16x32xf32, #tpu.memory_space<vmem>>, vector<1x8x32xf32>,
    %134 = vector.extract_strided_slice %32 {offsets = [0, 8, 0], sizes = [4, 8, 8], strides = [1, 1, 1]} : vector<4x16x8xf32> to vector<4x8x8xf32>
    %135 = vector.extract_strided_slice %1 {offsets = [8, 0], sizes = [8, 32], strides = [1, 1]} : vector<16x32xf32> to vector<8x32xf32>
    "tpu.trace_start"() <{level = 10 : i32, message = "hqd,hkd->hqk"}> : () -> ()
    %cst_59 = arith.constant dense<0.000000e+00> : vector<4x8x16xf32>
    %136 = tpu.matmul %134, %33, %cst_59 {dimension_numbers = #tpu.dot_dimension_numbers<[2], [2], [1], [1], [0, 0, 0, 1, 1, 1], [0], [0]>} : vector<4x8x8xf32>, vector<4x16x8xf32>, vector<4x8x16xf32> -> vector<4x8x16xf32>
    "tpu.trace_stop"() : () -> ()
    %cst_60 = arith.constant 0.353553385 : f32
    %137 = vector.broadcast %cst_60 : f32 to vector<4x8x16xf32>
    %138 = arith.mulf %136, %137 : vector<4x8x16xf32>
    %cst_61 = arith.constant dense<0xFF800000> : vector<4x8xf32>
    %139 = vector.multi_reduction <maximumf>, %138, %cst_61 [2] : vector<4x8x16xf32> to vector<4x8xf32>
    %140 = vector.shape_cast %139 : vector<4x8xf32> to vector<4x8x1xf32>
    %141 = vector.broadcast %140 : vector<4x8x1xf32> to vector<4x8x16xf32>
    %142 = arith.subf %138, %141 : vector<4x8x16xf32>
    %143 = math.exp %142 : vector<4x8x16xf32>
    %cst_62 = arith.constant dense<0.000000e+00> : vector<4x8xf32>
    %144 = vector.multi_reduction <add>, %143, %cst_62 [2] : vector<4x8x16xf32> to vector<4x8xf32>
    %145 = vector.shape_cast %144 : vector<4x8xf32> to vector<4x8x1xf32>
    %146 = tpu.reciprocal %145 {approx = true} : vector<4x8x1xf32> -> vector<4x8x1xf32>
    %147 = vector.broadcast %146 : vector<4x8x1xf32> to vector<4x8x16xf32>
    %148 = arith.mulf %143, %147 : vector<4x8x16xf32>
    "tpu.trace_start"() <{level = 10 : i32, message = "hqk,hkd->hqd"}> : () -> ()
    %cst_63 = arith.constant dense<0.000000e+00> : vector<4x8x8xf32>
    %149 = tpu.matmul %148, %34, %cst_63 {dimension_numbers = #tpu.dot_dimension_numbers<[2], [1], [1], [2], [0, 0, 0, 1, 1, 2], [0], [0]>} : vector<4x8x16xf32>, vector<4x16x8xf32>, vector<4x8x8xf32> -> vector<4x8x8xf32>
    "tpu.trace_stop"() : () -> ()
    "tpu.trace_start"() <{level = 10 : i32, message = "hqd,hde->hqe"}> : () -> ()
    %cst_64 = arith.constant dense<0.000000e+00> : vector<4x8x32xf32>
    %150 = tpu.matmul %149, %35, %cst_64 {dimension_numbers = #tpu.dot_dimension_numbers<[2], [1], [1], [2], [0, 0, 0, 1, 1, 2], [0], [0]>} : vector<4x8x8xf32>, vector<4x8x32xf32>, vector<4x8x32xf32> -> vector<4x8x32xf32>
    "tpu.trace_stop"() : () -> ()
    %cst_65 = arith.constant dense<0.000000e+00> : vector<8x32xf32>
    %151 = vector.multi_reduction <add>, %150, %cst_65 [0] : vector<4x8x32xf32> to vector<8x32xf32>
    %152 = vector.broadcast %36 : vector<1x32xf32> to vector<8x32xf32>
    %153 = arith.addf %151, %152 : vector<8x32xf32>
    %154 = arith.addf %135, %153 : vector<8x32xf32>
    %cst_66 = arith.constant dense<0.000000e+00> : vector<8xf32>
    %155 = vector.multi_reduction <add>, %154, %cst_66 [1] : vector<8x32xf32> to vector<8xf32>
    %156 = vector.shape_cast %155 : vector<8xf32> to vector<8x1xf32>
    %cst_67 = arith.constant 3.200000e+01 : f32
    %157 = vector.broadcast %cst_67 : f32 to vector<8x1xf32>
    %158 = arith.divf %156, %157 : vector<8x1xf32>
    %159 = vector.broadcast %158 : vector<8x1xf32> to vector<8x32xf32>
    %160 = arith.subf %154, %159 : vector<8x32xf32>
    %161 = arith.mulf %160, %160 : vector<8x32xf32>
    %cst_68 = arith.constant dense<0.000000e+00> : vector<8xf32>
    %162 = vector.multi_reduction <add>, %161, %cst_68 [1] : vector<8x32xf32> to vector<8xf32>
    %163 = vector.shape_cast %162 : vector<8xf32> to vector<8x1xf32>
    %cst_69 = arith.constant 3.200000e+01 : f32
    %164 = vector.broadcast %cst_69 : f32 to vector<8x1xf32>
    %165 = arith.divf %163, %164 : vector<8x1xf32>
    %cst_70 = arith.constant 9.99999974E-6 : f32
    %166 = vector.broadcast %cst_70 : f32 to vector<8x1xf32>
    %167 = arith.addf %165, %166 : vector<8x1xf32>
    %168 = math.rsqrt %167 : vector<8x1xf32>
    %169 = vector.broadcast %158 : vector<8x1xf32> to vector<8x32xf32>
    %170 = arith.subf %154, %169 : vector<8x32xf32>
    %171 = vector.broadcast %168 : vector<8x1xf32> to vector<8x32xf32>
    %172 = arith.mulf %170, %171 : vector<8x32xf32>
    %173 = vector.broadcast %37 : vector<1x32xf32> to vector<8x32xf32>
    %174 = arith.mulf %172, %173 : vector<8x32xf32>
    %175 = vector.broadcast %38 : vector<1x32xf32> to vector<8x32xf32>
    %176 = arith.addf %174, %175 : vector<8x32xf32>
    %cst_71 = arith.constant 0.000000e+00 : f32
    %177 = vector.broadcast %cst_71 : f32 to vector<8x32xf32>
    %c0_72 = arith.constant 0 : index
    %c0_73 = arith.constant 0 : index
    %178 = vector.load %arg8[%c0_72, %c0_73] : memref<32x64xf32, #tpu.memory_space<vmem>>, vector<32x32xf32>
    %cst_74 = arith.constant dense<0.000000e+00> : vector<8x32xf32>
    %179 = tpu.matmul %176, %178, %cst_74 {dimension_numbers = #tpu.dot_dimension_numbers<[1], [0], [0], [1], [0, 0, 1, 1], [], []>} : vector<8x32xf32>, vector<32x32xf32>, vector<8x32xf32> -> vector<8x32xf32>
    %c0_75 = arith.constant 0 : index
    %c0_76 = arith.constant 0 : index
    %180 = vector.load %arg9[%c0_75, %c0_76] : memref<1x64xf32, #tpu.memory_space<vmem>>, vector<1x32xf32>
    %181 = vector.broadcast %180 : vector<1x32xf32> to vector<8x32xf32>
    %182 = arith.addf %179, %181 : vector<8x32xf32>
    %cst_77 = arith.constant 0.000000e+00 : f32
    %183 = vector.broadcast %cst_77 : f32 to vector<8x32xf32>
    %184 = arith.maximumf %182, %183 : vector<8x32xf32>
    %c0_78 = arith.constant 0 : index
    %c0_79 = arith.constant 0 : index
    %185 = vector.load %arg10[%c0_78, %c0_79] : memref<64x32xf32, #tpu.memory_space<vmem>>, vector<32x32xf32>
    %cst_80 = arith.constant dense<0.000000e+00> : vector<8x32xf32>
    %186 = tpu.matmul %184, %185, %cst_80 {dimension_numbers = #tpu.dot_dimension_numbers<[1], [0], [0], [1], [0, 0, 1, 1], [], []>} : vector<8x32xf32>, vector<32x32xf32>, vector<8x32xf32> -> vector<8x32xf32>
    %187 = arith.addf %177, %186 : vector<8x32xf32>
    %c0_81 = arith.constant 0 : index
    %c32_82 = arith.constant 32 : index
    %188 = vector.load %arg8[%c0_81, %c32_82] : memref<32x64xf32, #tpu.memory_space<vmem>>, vector<32x32xf32>
    %cst_83 = arith.constant dense<0.000000e+00> : vector<8x32xf32>
    %189 = tpu.matmul %176, %188, %cst_83 {dimension_numbers = #tpu.dot_dimension_numbers<[1], [0], [0], [1], [0, 0, 1, 1], [], []>} : vector<8x32xf32>, vector<32x32xf32>, vector<8x32xf32> -> vector<8x32xf32>
    %c0_84 = arith.constant 0 : index
    %c32_85 = arith.constant 32 : index
    %190 = vector.load %arg9[%c0_84, %c32_85] : memref<1x64xf32, #tpu.memory_space<vmem>>, vector<1x32xf32>
    %191 = vector.broadcast %190 : vector<1x32xf32> to vector<8x32xf32>
    %192 = arith.addf %189, %191 : vector<8x32xf32>
    %cst_86 = arith.constant 0.000000e+00 : f32
    %193 = vector.broadcast %cst_86 : f32 to vector<8x32xf32>
    %194 = arith.maximumf %192, %193 : vector<8x32xf32>
    %c32_87 = arith.constant 32 : index
    %c0_88 = arith.constant 0 : index
    %195 = vector.load %arg10[%c32_87, %c0_88] : memref<64x32xf32, #tpu.memory_space<vmem>>, vector<32x32xf32>
    %cst_89 = arith.constant dense<0.000000e+00> : vector<8x32xf32>
    %196 = tpu.matmul %194, %195, %cst_89 {dimension_numbers = #tpu.dot_dimension_numbers<[1], [0], [0], [1], [0, 0, 1, 1], [], []>} : vector<8x32xf32>, vector<32x32xf32>, vector<8x32xf32> -> vector<8x32xf32>
    %197 = arith.addf %187, %196 : vector<8x32xf32>
    %198 = vector.broadcast %41 : vector<1x32xf32> to vector<8x32xf32>
    %199 = arith.addf %197, %198 : vector<8x32xf32>
    %200 = arith.addf %176, %199 : vector<8x32xf32>
    %cst_90 = arith.constant dense<0.000000e+00> : vector<8xf32>
    %201 = vector.multi_reduction <add>, %200, %cst_90 [1] : vector<8x32xf32> to vector<8xf32>
    %202 = vector.shape_cast %201 : vector<8xf32> to vector<8x1xf32>
    %cst_91 = arith.constant 3.200000e+01 : f32
    %203 = vector.broadcast %cst_91 : f32 to vector<8x1xf32>
    %204 = arith.divf %202, %203 : vector<8x1xf32>
    %205 = vector.broadcast %204 : vector<8x1xf32> to vector<8x32xf32>
    %206 = arith.subf %200, %205 : vector<8x32xf32>
    %207 = arith.mulf %206, %206 : vector<8x32xf32>
    %cst_92 = arith.constant dense<0.000000e+00> : vector<8xf32>
    %208 = vector.multi_reduction <add>, %207, %cst_92 [1] : vector<8x32xf32> to vector<8xf32>
    %209 = vector.shape_cast %208 : vector<8xf32> to vector<8x1xf32>
    %cst_93 = arith.constant 3.200000e+01 : f32
    %210 = vector.broadcast %cst_93 : f32 to vector<8x1xf32>
    %211 = arith.divf %209, %210 : vector<8x1xf32>
    %cst_94 = arith.constant 9.99999974E-6 : f32
    %212 = vector.broadcast %cst_94 : f32 to vector<8x1xf32>
    %213 = arith.addf %211, %212 : vector<8x1xf32>
    %214 = math.rsqrt %213 : vector<8x1xf32>
    %215 = vector.broadcast %204 : vector<8x1xf32> to vector<8x32xf32>
    %216 = arith.subf %200, %215 : vector<8x32xf32>
    %217 = vector.broadcast %214 : vector<8x1xf32> to vector<8x32xf32>
    %218 = arith.mulf %216, %217 : vector<8x32xf32>
    %219 = vector.broadcast %39 : vector<1x32xf32> to vector<8x32xf32>
    %220 = arith.mulf %218, %219 : vector<8x32xf32>
    %221 = vector.broadcast %40 : vector<1x32xf32> to vector<8x32xf32>
    %222 = arith.addf %220, %221 : vector<8x32xf32>
    %c0_95 = arith.constant 0 : index
    %c8 = arith.constant 8 : index
    %c0_96 = arith.constant 0 : index
    %223 = vector.load %arg14[%c0_95, %c8, %c0_96] : memref<1x16x32xf32, #tpu.memory_space<vmem>>, vector<1x8x32xf32>
    %224 = vector.shape_cast %223 : vector<1x8x32xf32> to vector<8x32xf32>
    %225 = vector.shape_cast %222 : vector<8x32xf32> to vector<1x8x32xf32>
    tpu.vector_store %arg14[%c0_95, %c8, %c0_96], %225 {strides = array<i32>} : memref<1x16x32xf32, #tpu.memory_space<vmem>>, vector<1x8x32xf32>,
    return
  }
  func.func @transform_0(%arg0: i32) -> (i32, i32, i32) {
    %c0_i32 = arith.constant 0 : i32
    %c0_i32_0 = arith.constant 0 : i32
    %c0_i32_1 = arith.constant 0 : i32
    return %arg0, %c0_i32, %c0_i32_0 : i32, i32, i32
  }
  func.func @transform_1(%arg0: i32) -> (i32, i32) {
    %c0_i32 = arith.constant 0 : i32
    %c0_i32_0 = arith.constant 0 : i32
    %c0_i32_1 = arith.constant 0 : i32
    return %c0_i32, %c0_i32_0 : i32, i32
  }
  func.func @transform_2(%arg0: i32) -> (i32, i32) {
    %c0_i32 = arith.constant 0 : i32
    %c0_i32_0 = arith.constant 0 : i32
    %c0_i32_1 = arith.constant 0 : i32
    return %c0_i32, %c0_i32_0 : i32, i32
  }
  func.func @transform_3(%arg0: i32) -> (i32, i32, i32) {
    %c0_i32 = arith.constant 0 : i32
    %c0_i32_0 = arith.constant 0 : i32
    %c0_i32_1 = arith.constant 0 : i32
    %c0_i32_2 = arith.constant 0 : i32
    return %c0_i32, %c0_i32_0, %c0_i32_1 : i32, i32, i32
  }
  func.func @transform_4(%arg0: i32) -> (i32, i32) {
    %c0_i32 = arith.constant 0 : i32
    %c0_i32_0 = arith.constant 0 : i32
    %c0_i32_1 = arith.constant 0 : i32
    return %c0_i32, %c0_i32_0 : i32, i32
  }
  func.func @transform_5(%arg0: i32) -> (i32, i32) {
    %c0_i32 = arith.constant 0 : i32
    %c0_i32_0 = arith.constant 0 : i32
    %c0_i32_1 = arith.constant 0 : i32
    return %c0_i32, %c0_i32_0 : i32, i32
  }
  func.func @transform_6(%arg0: i32) -> (i32, i32) {
    %c0_i32 = arith.constant 0 : i32
    %c0_i32_0 = arith.constant 0 : i32
    %c0_i32_1 = arith.constant 0 : i32
    return %c0_i32, %c0_i32_0 : i32, i32
  }
  func.func @transform_7(%arg0: i32) -> (i32, i32) {
    %c0_i32 = arith.constant 0 : i32
    %c0_i32_0 = arith.constant 0 : i32
    %c0_i32_1 = arith.constant 0 : i32
    return %c0_i32, %c0_i32_0 : i32, i32
  }
  func.func @transform_8(%arg0: i32) -> (i32, i32) {
    %c0_i32 = arith.constant 0 : i32
    %c0_i32_0 = arith.constant 0 : i32
    %c0_i32_1 = arith.constant 0 : i32
    return %c0_i32, %c0_i32_0 : i32, i32
  }
  func.func @transform_9(%arg0: i32) -> (i32, i32) {
    %c0_i32 = arith.constant 0 : i32
    %c0_i32_0 = arith.constant 0 : i32
    %c0_i32_1 = arith.constant 0 : i32
    return %c0_i32, %c0_i32_0 : i32, i32
  }
  func.func @transform_10(%arg0: i32) -> (i32, i32) {
    %c0_i32 = arith.constant 0 : i32
    %c0_i32_0 = arith.constant 0 : i32
    %c0_i32_1 = arith.constant 0 : i32
    return %c0_i32, %c0_i32_0 : i32, i32
  }
  func.func @transform_11(%arg0: i32) -> (i32, i32) {
    %c0_i32 = arith.constant 0 : i32
    %c0_i32_0 = arith.constant 0 : i32
    %c0_i32_1 = arith.constant 0 : i32
    return %c0_i32, %c0_i32_0 : i32, i32
  }
  func.func @transform_12(%arg0: i32) -> (i32, i32) {
    %c0_i32 = arith.constant 0 : i32
    %c0_i32_0 = arith.constant 0 : i32
    %c0_i32_1 = arith.constant 0 : i32
    return %c0_i32, %c0_i32_0 : i32, i32
  }
  func.func @transform_13(%arg0: i32) -> (i32, i32, i32) {
    %c0_i32 = arith.constant 0 : i32
    %c0_i32_0 = arith.constant 0 : i32
    %c0_i32_1 = arith.constant 0 : i32
    return %arg0, %c0_i32, %c0_i32_0 : i32, i32, i32
  }
}

module attributes {stable_mosaic.version = 11 : i64} {
  func.func @encoder_block_kernel(%arg0: i32, %arg1: memref<1x16x32xf32, #tpu.memory_space<vmem>>, %arg2: memref<32x96xf32, #tpu.memory_space<vmem>>, %arg3: memref<1x96xf32, #tpu.memory_space<vmem>>, %arg4: memref<4x8x32xf32, #tpu.memory_space<vmem>>, %arg5: memref<1x32xf32, #tpu.memory_space<vmem>>, %arg6: memref<1x32xf32, #tpu.memory_space<vmem>>, %arg7: memref<1x32xf32, #tpu.memory_space<vmem>>, %arg8: memref<32x64xf32, #tpu.memory_space<vmem>>, %arg9: memref<1x64xf32, #tpu.memory_space<vmem>>, %arg10: memref<64x32xf32, #tpu.memory_space<vmem>>, %arg11: memref<1x32xf32, #tpu.memory_space<vmem>>, %arg12: memref<1x32xf32, #tpu.memory_space<vmem>>, %arg13: memref<1x32xf32, #tpu.memory_space<vmem>>, %arg14: memref<1x16x32xf32, #tpu.memory_space<vmem>>) attributes {dimension_semantics = [#tpu.dimension_semantics<parallel>], iteration_bounds = array<i64: 2>, scalar_prefetch = 0 : i64, scratch_operands = 0 : i64, tpu.core_type = #tpu.core_type<tc>, window_params = [{transform_indices = @transform_0, window_bounds = array<i64: 1, 16, 32>}, {pipeline_mode = #tpu.pipeline_mode<synchronous>, transform_indices = @transform_1, window_bounds = array<i64: 32, 96>}, {pipeline_mode = #tpu.pipeline_mode<synchronous>, transform_indices = @transform_2, window_bounds = array<i64: 1, 96>}, {pipeline_mode = #tpu.pipeline_mode<synchronous>, transform_indices = @transform_3, window_bounds = array<i64: 4, 8, 32>}, {pipeline_mode = #tpu.pipeline_mode<synchronous>, transform_indices = @transform_4, window_bounds = array<i64: 1, 32>}, {pipeline_mode = #tpu.pipeline_mode<synchronous>, transform_indices = @transform_5, window_bounds = array<i64: 1, 32>}, {pipeline_mode = #tpu.pipeline_mode<synchronous>, transform_indices = @transform_6, window_bounds = array<i64: 1, 32>}, {pipeline_mode = #tpu.pipeline_mode<synchronous>, transform_indices = @transform_7, window_bounds = array<i64: 32, 64>}, {pipeline_mode = #tpu.pipeline_mode<synchronous>, transform_indices = @transform_8, window_bounds = array<i64: 1, 64>}, {pipeline_mode = #tpu.pipeline_mode<synchronous>, transform_indices = @transform_9, window_bounds = array<i64: 64, 32>}, {pipeline_mode = #tpu.pipeline_mode<synchronous>, transform_indices = @transform_10, window_bounds = array<i64: 1, 32>}, {pipeline_mode = #tpu.pipeline_mode<synchronous>, transform_indices = @transform_11, window_bounds = array<i64: 1, 32>}, {pipeline_mode = #tpu.pipeline_mode<synchronous>, transform_indices = @transform_12, window_bounds = array<i64: 1, 32>}, {transform_indices = @transform_13, window_bounds = array<i64: 1, 16, 32>}]} {
    %c0 = arith.constant 0 : index
    %c0_0 = arith.constant 0 : index
    %c0_1 = arith.constant 0 : index
    %0 = vector.load %arg1[%c0, %c0_0, %c0_1] : memref<1x16x32xf32, #tpu.memory_space<vmem>>, vector<1x16x32xf32>
    %1 = vector.shape_cast %0 : vector<1x16x32xf32> to vector<16x32xf32>
    %c0_2 = arith.constant 0 : index
    %c0_3 = arith.constant 0 : index
    %2 = vector.load %arg2[%c0_2, %c0_3] : memref<32x96xf32, #tpu.memory_space<vmem>>, vector<32x96xf32>
    %cst = arith.constant dense<0.000000e+00> : vector<16x96xf32>
    %3 = tpu.matmul %1, %2, %cst {dimension_numbers = #tpu.dot_dimension_numbers<[1], [0], [0], [1], [0, 0, 1, 1], [], []>} : vector<16x32xf32>, vector<32x96xf32>, vector<16x96xf32> -> vector<16x96xf32>
    %c0_4 = arith.constant 0 : index
    %c0_5 = arith.constant 0 : index
    %4 = vector.load %arg3[%c0_4, %c0_5] : memref<1x96xf32, #tpu.memory_space<vmem>>, vector<1x96xf32>
    %5 = vector.broadcast %4 : vector<1x96xf32> to vector<16x96xf32>
    %6 = arith.addf %3, %5 : vector<16x96xf32>
    %7 = vector.extract_strided_slice %6 {offsets = [0, 0], sizes = [16, 8], strides = [1, 1]} : vector<16x96xf32> to vector<16x8xf32>
    %8 = vector.extract_strided_slice %6 {offsets = [0, 8], sizes = [16, 8], strides = [1, 1]} : vector<16x96xf32> to vector<16x8xf32>
    %9 = vector.extract_strided_slice %6 {offsets = [0, 16], sizes = [16, 8], strides = [1, 1]} : vector<16x96xf32> to vector<16x8xf32>
    %10 = vector.extract_strided_slice %6 {offsets = [0, 24], sizes = [16, 8], strides = [1, 1]} : vector<16x96xf32> to vector<16x8xf32>
    %11 = vector.extract_strided_slice %6 {offsets = [0, 32], sizes = [16, 8], strides = [1, 1]} : vector<16x96xf32> to vector<16x8xf32>
    %12 = vector.extract_strided_slice %6 {offsets = [0, 40], sizes = [16, 8], strides = [1, 1]} : vector<16x96xf32> to vector<16x8xf32>
    %13 = vector.extract_strided_slice %6 {offsets = [0, 48], sizes = [16, 8], strides = [1, 1]} : vector<16x96xf32> to vector<16x8xf32>
    %14 = vector.extract_strided_slice %6 {offsets = [0, 56], sizes = [16, 8], strides = [1, 1]} : vector<16x96xf32> to vector<16x8xf32>
    %15 = vector.extract_strided_slice %6 {offsets = [0, 64], sizes = [16, 8], strides = [1, 1]} : vector<16x96xf32> to vector<16x8xf32>
    %16 = vector.extract_strided_slice %6 {offsets = [0, 72], sizes = [16, 8], strides = [1, 1]} : vector<16x96xf32> to vector<16x8xf32>
    %17 = vector.extract_strided_slice %6 {offsets = [0, 80], sizes = [16, 8], strides = [1, 1]} : vector<16x96xf32> to vector<16x8xf32>
    %18 = vector.extract_strided_slice %6 {offsets = [0, 88], sizes = [16, 8], strides = [1, 1]} : vector<16x96xf32> to vector<16x8xf32>
    %19 = vector.shape_cast %7 : vector<16x8xf32> to vector<1x16x8xf32>
    %20 = vector.shape_cast %8 : vector<16x8xf32> to vector<1x16x8xf32>
    %21 = vector.shape_cast %9 : vector<16x8xf32> to vector<1x16x8xf32>
    %22 = vector.shape_cast %10 : vector<16x8xf32> to vector<1x16x8xf32>
    %23 = vector.shape_cast %11 : vector<16x8xf32> to vector<1x16x8xf32>
    %24 = vector.shape_cast %12 : vector<16x8xf32> to vector<1x16x8xf32>
    %25 = vector.shape_cast %13 : vector<16x8xf32> to vector<1x16x8xf32>
    %26 = vector.shape_cast %14 : vector<16x8xf32> to vector<1x16x8xf32>
    %27 = vector.shape_cast %15 : vector<16x8xf32> to vector<1x16x8xf32>
    %28 = vector.shape_cast %16 : vector<16x8xf32> to vector<1x16x8xf32>
    %29 = vector.shape_cast %17 : vector<16x8xf32> to vector<1x16x8xf32>
    %30 = vector.shape_cast %18 : vector<16x8xf32> to vector<1x16x8xf32>
    %31 = tpu.concatenate %19, %20, %21, %22, %23, %24, %25, %26, %27, %28, %29, %30 in 0 : vector<1x16x8xf32>, vector<1x16x8xf32>, vector<1x16x8xf32>, vector<1x16x8xf32>, vector<1x16x8xf32>, vector<1x16x8xf32>, vector<1x16x8xf32>, vector<1x16x8xf32>, vector<1x16x8xf32>, vector<1x16x8xf32>, vector<1x16x8xf32>, vector<1x16x8xf32> -> vector<12x16x8xf32>
    %32 = vector.extract_strided_slice %31 {offsets = [0, 0, 0], sizes = [4, 16, 8], strides = [1, 1, 1]} : vector<12x16x8xf32> to vector<4x16x8xf32>
    %33 = vector.extract_strided_slice %31 {offsets = [4, 0, 0], sizes = [4, 16, 8], strides = [1, 1, 1]} : vector<12x16x8xf32> to vector<4x16x8xf32>
    %34 = vector.extract_strided_slice %31 {offsets = [8, 0, 0], sizes = [4, 16, 8], strides = [1, 1, 1]} : vector<12x16x8xf32> to vector<4x16x8xf32>
    %c0_6 = arith.constant 0 : index
    %c0_7 = arith.constant 0 : index
    %c0_8 = arith.constant 0 : index
    %35 = vector.load %arg4[%c0_6, %c0_7, %c0_8] : memref<4x8x32xf32, #tpu.memory_space<vmem>>, vector<4x8x32xf32>
    %c0_9 = arith.constant 0 : index
    %c0_10 = arith.constant 0 : index
    %36 = vector.load %arg5[%c0_9, %c0_10] : memref<1x32xf32, #tpu.memory_space<vmem>>, vector<1x32xf32>
    %c0_11 = arith.constant 0 : index
    %c0_12 = arith.constant 0 : index
    %37 = vector.load %arg6[%c0_11, %c0_12] : memref<1x32xf32, #tpu.memory_space<vmem>>, vector<1x32xf32>
    %c0_13 = arith.constant 0 : index
    %c0_14 = arith.constant 0 : index
    %38 = vector.load %arg7[%c0_13, %c0_14] : memref<1x32xf32, #tpu.memory_space<vmem>>, vector<1x32xf32>
    %c0_15 = arith.constant 0 : index
    %c0_16 = arith.constant 0 : index
    %39 = vector.load %arg12[%c0_15, %c0_16] : memref<1x32xf32, #tpu.memory_space<vmem>>, vector<1x32xf32>
    %c0_17 = arith.constant 0 : index
    %c0_18 = arith.constant 0 : index
    %40 = vector.load %arg13[%c0_17, %c0_18] : memref<1x32xf32, #tpu.memory_space<vmem>>, vector<1x32xf32>
    %c0_19 = arith.constant 0 : index
    %c0_20 = arith.constant 0 : index
    %41 = vector.load %arg11[%c0_19, %c0_20] : memref<1x32xf32, #tpu.memory_space<vmem>>, vector<1x32xf32>
    %42 = vector.extract_strided_slice %32 {offsets = [0, 0, 0], sizes = [4, 8, 8], strides = [1, 1, 1]} : vector<4x16x8xf32> to vector<4x8x8xf32>
    %43 = vector.extract_strided_slice %1 {offsets = [0, 0], sizes = [8, 32], strides = [1, 1]} : vector<16x32xf32> to vector<8x32xf32>
    "tpu.trace_start"() <{level = 10 : i32, message = "hqd,hkd->hqk"}> : () -> ()
    %cst_21 = arith.constant dense<0.000000e+00> : vector<4x8x16xf32>
    %44 = tpu.matmul %42, %33, %cst_21 {dimension_numbers = #tpu.dot_dimension_numbers<[2], [2], [1], [1], [0, 0, 0, 1, 1, 1], [0], [0]>} : vector<4x8x8xf32>, vector<4x16x8xf32>, vector<4x8x16xf32> -> vector<4x8x16xf32>
    "tpu.trace_stop"() : () -> ()
    %cst_22 = arith.constant 0.353553385 : f32
    %45 = vector.broadcast %cst_22 : f32 to vector<4x8x16xf32>
    %46 = arith.mulf %44, %45 : vector<4x8x16xf32>
    %cst_23 = arith.constant dense<0xFF800000> : vector<4x8xf32>
    %47 = vector.multi_reduction <maximumf>, %46, %cst_23 [2] : vector<4x8x16xf32> to vector<4x8xf32>
    %48 = vector.shape_cast %47 : vector<4x8xf32> to vector<4x8x1xf32>
    %49 = vector.broadcast %48 : vector<4x8x1xf32> to vector<4x8x16xf32>
    %50 = arith.subf %46, %49 : vector<4x8x16xf32>
    %51 = math.exp %50 : vector<4x8x16xf32>
    %cst_24 = arith.constant dense<0.000000e+00> : vector<4x8xf32>
    %52 = vector.multi_reduction <add>, %51, %cst_24 [2] : vector<4x8x16xf32> to vector<4x8xf32>
    %53 = vector.shape_cast %52 : vector<4x8xf32> to vector<4x8x1xf32>
    %54 = tpu.reciprocal %53 {approx = true} : vector<4x8x1xf32> -> vector<4x8x1xf32>
    %55 = vector.broadcast %54 : vector<4x8x1xf32> to vector<4x8x16xf32>
    %56 = arith.mulf %51, %55 : vector<4x8x16xf32>
    "tpu.trace_start"() <{level = 10 : i32, message = "hqk,hkd->hqd"}> : () -> ()
    %cst_25 = arith.constant dense<0.000000e+00> : vector<4x8x8xf32>
    %57 = tpu.matmul %56, %34, %cst_25 {dimension_numbers = #tpu.dot_dimension_numbers<[2], [1], [1], [2], [0, 0, 0, 1, 1, 2], [0], [0]>} : vector<4x8x16xf32>, vector<4x16x8xf32>, vector<4x8x8xf32> -> vector<4x8x8xf32>
    "tpu.trace_stop"() : () -> ()
    "tpu.trace_start"() <{level = 10 : i32, message = "hqd,hde->hqe"}> : () -> ()
    %cst_26 = arith.constant dense<0.000000e+00> : vector<4x8x32xf32>
    %58 = tpu.matmul %57, %35, %cst_26 {dimension_numbers = #tpu.dot_dimension_numbers<[2], [1], [1], [2], [0, 0, 0, 1, 1, 2], [0], [0]>} : vector<4x8x8xf32>, vector<4x8x32xf32>, vector<4x8x32xf32> -> vector<4x8x32xf32>
    "tpu.trace_stop"() : () -> ()
    %cst_27 = arith.constant dense<0.000000e+00> : vector<8x32xf32>
    %59 = vector.multi_reduction <add>, %58, %cst_27 [0] : vector<4x8x32xf32> to vector<8x32xf32>
    %60 = vector.broadcast %36 : vector<1x32xf32> to vector<8x32xf32>
    %61 = arith.addf %59, %60 : vector<8x32xf32>
    %62 = arith.addf %43, %61 : vector<8x32xf32>
    %cst_28 = arith.constant dense<0.000000e+00> : vector<8xf32>
    %63 = vector.multi_reduction <add>, %62, %cst_28 [1] : vector<8x32xf32> to vector<8xf32>
    %64 = vector.shape_cast %63 : vector<8xf32> to vector<8x1xf32>
    %cst_29 = arith.constant 3.200000e+01 : f32
    %65 = vector.broadcast %cst_29 : f32 to vector<8x1xf32>
    %66 = arith.divf %64, %65 : vector<8x1xf32>
    %67 = vector.broadcast %66 : vector<8x1xf32> to vector<8x32xf32>
    %68 = arith.subf %62, %67 : vector<8x32xf32>
    %69 = arith.mulf %68, %68 : vector<8x32xf32>
    %cst_30 = arith.constant dense<0.000000e+00> : vector<8xf32>
    %70 = vector.multi_reduction <add>, %69, %cst_30 [1] : vector<8x32xf32> to vector<8xf32>
    %71 = vector.shape_cast %70 : vector<8xf32> to vector<8x1xf32>
    %cst_31 = arith.constant 3.200000e+01 : f32
    %72 = vector.broadcast %cst_31 : f32 to vector<8x1xf32>
    %73 = arith.divf %71, %72 : vector<8x1xf32>
    %cst_32 = arith.constant 9.99999974E-6 : f32
    %74 = vector.broadcast %cst_32 : f32 to vector<8x1xf32>
    %75 = arith.addf %73, %74 : vector<8x1xf32>
    %76 = math.rsqrt %75 : vector<8x1xf32>
    %77 = vector.broadcast %66 : vector<8x1xf32> to vector<8x32xf32>
    %78 = arith.subf %62, %77 : vector<8x32xf32>
    %79 = vector.broadcast %76 : vector<8x1xf32> to vector<8x32xf32>
    %80 = arith.mulf %78, %79 : vector<8x32xf32>
    %81 = vector.broadcast %37 : vector<1x32xf32> to vector<8x32xf32>
    %82 = arith.mulf %80, %81 : vector<8x32xf32>
    %83 = vector.broadcast %38 : vector<1x32xf32> to vector<8x32xf32>
    %84 = arith.addf %82, %83 : vector<8x32xf32>
    %cst_33 = arith.constant 0.000000e+00 : f32
    %85 = vector.broadcast %cst_33 : f32 to vector<8x32xf32>
    %c0_34 = arith.constant 0 : index
    %c0_35 = arith.constant 0 : index
    %86 = vector.load %arg8[%c0_34, %c0_35] : memref<32x64xf32, #tpu.memory_space<vmem>>, vector<32x32xf32>
    %cst_36 = arith.constant dense<0.000000e+00> : vector<8x32xf32>
    %87 = tpu.matmul %84, %86, %cst_36 {dimension_numbers = #tpu.dot_dimension_numbers<[1], [0], [0], [1], [0, 0, 1, 1], [], []>} : vector<8x32xf32>, vector<32x32xf32>, vector<8x32xf32> -> vector<8x32xf32>
    %c0_37 = arith.constant 0 : index
    %c0_38 = arith.constant 0 : index
    %88 = vector.load %arg9[%c0_37, %c0_38] : memref<1x64xf32, #tpu.memory_space<vmem>>, vector<1x32xf32>
    %89 = vector.broadcast %88 : vector<1x32xf32> to vector<8x32xf32>
    %90 = arith.addf %87, %89 : vector<8x32xf32>
    %cst_39 = arith.constant 0.000000e+00 : f32
    %91 = vector.broadcast %cst_39 : f32 to vector<8x32xf32>
    %92 = arith.maximumf %90, %91 : vector<8x32xf32>
    %c0_40 = arith.constant 0 : index
    %c0_41 = arith.constant 0 : index
    %93 = vector.load %arg10[%c0_40, %c0_41] : memref<64x32xf32, #tpu.memory_space<vmem>>, vector<32x32xf32>
    %cst_42 = arith.constant dense<0.000000e+00> : vector<8x32xf32>
    %94 = tpu.matmul %92, %93, %cst_42 {dimension_numbers = #tpu.dot_dimension_numbers<[1], [0], [0], [1], [0, 0, 1, 1], [], []>} : vector<8x32xf32>, vector<32x32xf32>, vector<8x32xf32> -> vector<8x32xf32>
    %95 = arith.addf %85, %94 : vector<8x32xf32>
    %c0_43 = arith.constant 0 : index
    %c32 = arith.constant 32 : index
    %96 = vector.load %arg8[%c0_43, %c32] : memref<32x64xf32, #tpu.memory_space<vmem>>, vector<32x32xf32>
    %cst_44 = arith.constant dense<0.000000e+00> : vector<8x32xf32>
    %97 = tpu.matmul %84, %96, %cst_44 {dimension_numbers = #tpu.dot_dimension_numbers<[1], [0], [0], [1], [0, 0, 1, 1], [], []>} : vector<8x32xf32>, vector<32x32xf32>, vector<8x32xf32> -> vector<8x32xf32>
    %c0_45 = arith.constant 0 : index
    %c32_46 = arith.constant 32 : index
    %98 = vector.load %arg9[%c0_45, %c32_46] : memref<1x64xf32, #tpu.memory_space<vmem>>, vector<1x32xf32>
    %99 = vector.broadcast %98 : vector<1x32xf32> to vector<8x32xf32>
    %100 = arith.addf %97, %99 : vector<8x32xf32>
    %cst_47 = arith.constant 0.000000e+00 : f32
    %101 = vector.broadcast %cst_47 : f32 to vector<8x32xf32>
    %102 = arith.maximumf %100, %101 : vector<8x32xf32>
    %c32_48 = arith.constant 32 : index
    %c0_49 = arith.constant 0 : index
    %103 = vector.load %arg10[%c32_48, %c0_49] : memref<64x32xf32, #tpu.memory_space<vmem>>, vector<32x32xf32>
    %cst_50 = arith.constant dense<0.000000e+00> : vector<8x32xf32>
    %104 = tpu.matmul %102, %103, %cst_50 {dimension_numbers = #tpu.dot_dimension_numbers<[1], [0], [0], [1], [0, 0, 1, 1], [], []>} : vector<8x32xf32>, vector<32x32xf32>, vector<8x32xf32> -> vector<8x32xf32>
    %105 = arith.addf %95, %104 : vector<8x32xf32>
    %106 = vector.broadcast %41 : vector<1x32xf32> to vector<8x32xf32>
    %107 = arith.addf %105, %106 : vector<8x32xf32>
    %108 = arith.addf %84, %107 : vector<8x32xf32>
    %cst_51 = arith.constant dense<0.000000e+00> : vector<8xf32>
    %109 = vector.multi_reduction <add>, %108, %cst_51 [1] : vector<8x32xf32> to vector<8xf32>
    %110 = vector.shape_cast %109 : vector<8xf32> to vector<8x1xf32>
    %cst_52 = arith.constant 3.200000e+01 : f32
    %111 = vector.broadcast %cst_52 : f32 to vector<8x1xf32>
    %112 = arith.divf %110, %111 : vector<8x1xf32>
    %113 = vector.broadcast %112 : vector<8x1xf32> to vector<8x32xf32>
    %114 = arith.subf %108, %113 : vector<8x32xf32>
    %115 = arith.mulf %114, %114 : vector<8x32xf32>
    %cst_53 = arith.constant dense<0.000000e+00> : vector<8xf32>
    %116 = vector.multi_reduction <add>, %115, %cst_53 [1] : vector<8x32xf32> to vector<8xf32>
    %117 = vector.shape_cast %116 : vector<8xf32> to vector<8x1xf32>
    %cst_54 = arith.constant 3.200000e+01 : f32
    %118 = vector.broadcast %cst_54 : f32 to vector<8x1xf32>
    %119 = arith.divf %117, %118 : vector<8x1xf32>
    %cst_55 = arith.constant 9.99999974E-6 : f32
    %120 = vector.broadcast %cst_55 : f32 to vector<8x1xf32>
    %121 = arith.addf %119, %120 : vector<8x1xf32>
    %122 = math.rsqrt %121 : vector<8x1xf32>
    %123 = vector.broadcast %112 : vector<8x1xf32> to vector<8x32xf32>
    %124 = arith.subf %108, %123 : vector<8x32xf32>
    %125 = vector.broadcast %122 : vector<8x1xf32> to vector<8x32xf32>
    %126 = arith.mulf %124, %125 : vector<8x32xf32>
    %127 = vector.broadcast %39 : vector<1x32xf32> to vector<8x32xf32>
    %128 = arith.mulf %126, %127 : vector<8x32xf32>
    %129 = vector.broadcast %40 : vector<1x32xf32> to vector<8x32xf32>
    %130 = arith.addf %128, %129 : vector<8x32xf32>
    %c0_56 = arith.constant 0 : index
    %c0_57 = arith.constant 0 : index
    %c0_58 = arith.constant 0 : index
    %131 = vector.load %arg14[%c0_56, %c0_57, %c0_58] : memref<1x16x32xf32, #tpu.memory_space<vmem>>, vector<1x8x32xf32>
    %132 = vector.shape_cast %131 : vector<1x8x32xf32> to vector<8x32xf32>
    %133 = vector.shape_cast %130 : vector<8x32xf32> to vector<1x8x32xf32>
    tpu.vector_store %arg14[%c0_56, %c0_57, %c0_58], %133 {strides = array<i32>} : memref<1x16x32xf32, #tpu.memory_space<vmem>>, vector<1x8x32xf32>,
    %134 = vector.extract_strided_slice %32 {offsets = [0, 8, 0], sizes = [4, 8, 8], strides = [1, 1, 1]} : vector<4x16x8xf32> to vector<4x8x8xf32>
    %135 = vector.extract_strided_slice %1 {offsets = [8, 0], sizes = [8, 32], strides = [1, 1]} : vector<16x32xf32> to vector<8x32xf32>
    "tpu.trace_start"() <{level = 10 : i32, message = "hqd,hkd->hqk"}> : () -> ()
    %cst_59 = arith.constant dense<0.000000e+00> : vector<4x8x16xf32>
    %136 = tpu.matmul %134, %33, %cst_59 {dimension_numbers = #tpu.dot_dimension_numbers<[2], [2], [1], [1], [0, 0, 0, 1, 1, 1], [0], [0]>} : vector<4x8x8xf32>, vector<4x16x8xf32>, vector<4x8x16xf32> -> vector<4x8x16xf32>
    "tpu.trace_stop"() : () -> ()
    %cst_60 = arith.constant 0.353553385 : f32
    %137 = vector.broadcast %cst_60 : f32 to vector<4x8x16xf32>
    %138 = arith.mulf %136, %137 : vector<4x8x16xf32>
    %cst_61 = arith.constant dense<0xFF800000> : vector<4x8xf32>
    %139 = vector.multi_reduction <maximumf>, %138, %cst_61 [2] : vector<4x8x16xf32> to vector<4x8xf32>
    %140 = vector.shape_cast %139 : vector<4x8xf32> to vector<4x8x1xf32>
    %141 = vector.broadcast %140 : vector<4x8x1xf32> to vector<4x8x16xf32>
    %142 = arith.subf %138, %141 : vector<4x8x16xf32>
    %143 = math.exp %142 : vector<4x8x16xf32>
    %cst_62 = arith.constant dense<0.000000e+00> : vector<4x8xf32>
    %144 = vector.multi_reduction <add>, %143, %cst_62 [2] : vector<4x8x16xf32> to vector<4x8xf32>
    %145 = vector.shape_cast %144 : vector<4x8xf32> to vector<4x8x1xf32>
    %146 = tpu.reciprocal %145 {approx = true} : vector<4x8x1xf32> -> vector<4x8x1xf32>
    %147 = vector.broadcast %146 : vector<4x8x1xf32> to vector<4x8x16xf32>
    %148 = arith.mulf %143, %147 : vector<4x8x16xf32>
    "tpu.trace_start"() <{level = 10 : i32, message = "hqk,hkd->hqd"}> : () -> ()
    %cst_63 = arith.constant dense<0.000000e+00> : vector<4x8x8xf32>
    %149 = tpu.matmul %148, %34, %cst_63 {dimension_numbers = #tpu.dot_dimension_numbers<[2], [1], [1], [2], [0, 0, 0, 1, 1, 2], [0], [0]>} : vector<4x8x16xf32>, vector<4x16x8xf32>, vector<4x8x8xf32> -> vector<4x8x8xf32>
    "tpu.trace_stop"() : () -> ()
    "tpu.trace_start"() <{level = 10 : i32, message = "hqd,hde->hqe"}> : () -> ()
    %cst_64 = arith.constant dense<0.000000e+00> : vector<4x8x32xf32>
    %150 = tpu.matmul %149, %35, %cst_64 {dimension_numbers = #tpu.dot_dimension_numbers<[2], [1], [1], [2], [0, 0, 0, 1, 1, 2], [0], [0]>} : vector<4x8x8xf32>, vector<4x8x32xf32>, vector<4x8x32xf32> -> vector<4x8x32xf32>
    "tpu.trace_stop"() : () -> ()
    %cst_65 = arith.constant dense<0.000000e+00> : vector<8x32xf32>
    %151 = vector.multi_reduction <add>, %150, %cst_65 [0] : vector<4x8x32xf32> to vector<8x32xf32>
    %152 = vector.broadcast %36 : vector<1x32xf32> to vector<8x32xf32>
    %153 = arith.addf %151, %152 : vector<8x32xf32>
    %154 = arith.addf %135, %153 : vector<8x32xf32>
    %cst_66 = arith.constant dense<0.000000e+00> : vector<8xf32>
    %155 = vector.multi_reduction <add>, %154, %cst_66 [1] : vector<8x32xf32> to vector<8xf32>
    %156 = vector.shape_cast %155 : vector<8xf32> to vector<8x1xf32>
    %cst_67 = arith.constant 3.200000e+01 : f32
    %157 = vector.broadcast %cst_67 : f32 to vector<8x1xf32>
    %158 = arith.divf %156, %157 : vector<8x1xf32>
    %159 = vector.broadcast %158 : vector<8x1xf32> to vector<8x32xf32>
    %160 = arith.subf %154, %159 : vector<8x32xf32>
    %161 = arith.mulf %160, %160 : vector<8x32xf32>
    %cst_68 = arith.constant dense<0.000000e+00> : vector<8xf32>
    %162 = vector.multi_reduction <add>, %161, %cst_68 [1] : vector<8x32xf32> to vector<8xf32>
    %163 = vector.shape_cast %162 : vector<8xf32> to vector<8x1xf32>
    %cst_69 = arith.constant 3.200000e+01 : f32
    %164 = vector.broadcast %cst_69 : f32 to vector<8x1xf32>
    %165 = arith.divf %163, %164 : vector<8x1xf32>
    %cst_70 = arith.constant 9.99999974E-6 : f32
    %166 = vector.broadcast %cst_70 : f32 to vector<8x1xf32>
    %167 = arith.addf %165, %166 : vector<8x1xf32>
    %168 = math.rsqrt %167 : vector<8x1xf32>
    %169 = vector.broadcast %158 : vector<8x1xf32> to vector<8x32xf32>
    %170 = arith.subf %154, %169 : vector<8x32xf32>
    %171 = vector.broadcast %168 : vector<8x1xf32> to vector<8x32xf32>
    %172 = arith.mulf %170, %171 : vector<8x32xf32>
    %173 = vector.broadcast %37 : vector<1x32xf32> to vector<8x32xf32>
    %174 = arith.mulf %172, %173 : vector<8x32xf32>
    %175 = vector.broadcast %38 : vector<1x32xf32> to vector<8x32xf32>
    %176 = arith.addf %174, %175 : vector<8x32xf32>
    %cst_71 = arith.constant 0.000000e+00 : f32
    %177 = vector.broadcast %cst_71 : f32 to vector<8x32xf32>
    %c0_72 = arith.constant 0 : index
    %c0_73 = arith.constant 0 : index
    %178 = vector.load %arg8[%c0_72, %c0_73] : memref<32x64xf32, #tpu.memory_space<vmem>>, vector<32x32xf32>
    %cst_74 = arith.constant dense<0.000000e+00> : vector<8x32xf32>
    %179 = tpu.matmul %176, %178, %cst_74 {dimension_numbers = #tpu.dot_dimension_numbers<[1], [0], [0], [1], [0, 0, 1, 1], [], []>} : vector<8x32xf32>, vector<32x32xf32>, vector<8x32xf32> -> vector<8x32xf32>
    %c0_75 = arith.constant 0 : index
    %c0_76 = arith.constant 0 : index
    %180 = vector.load %arg9[%c0_75, %c0_76] : memref<1x64xf32, #tpu.memory_space<vmem>>, vector<1x32xf32>
    %181 = vector.broadcast %180 : vector<1x32xf32> to vector<8x32xf32>
    %182 = arith.addf %179, %181 : vector<8x32xf32>
    %cst_77 = arith.constant 0.000000e+00 : f32
    %183 = vector.broadcast %cst_77 : f32 to vector<8x32xf32>
    %184 = arith.maximumf %182, %183 : vector<8x32xf32>
    %c0_78 = arith.constant 0 : index
    %c0_79 = arith.constant 0 : index
    %185 = vector.load %arg10[%c0_78, %c0_79] : memref<64x32xf32, #tpu.memory_space<vmem>>, vector<32x32xf32>
    %cst_80 = arith.constant dense<0.000000e+00> : vector<8x32xf32>
    %186 = tpu.matmul %184, %185, %cst_80 {dimension_numbers = #tpu.dot_dimension_numbers<[1], [0], [0], [1], [0, 0, 1, 1], [], []>} : vector<8x32xf32>, vector<32x32xf32>, vector<8x32xf32> -> vector<8x32xf32>
    %187 = arith.addf %177, %186 : vector<8x32xf32>
    %c0_81 = arith.constant 0 : index
    %c32_82 = arith.constant 32 : index
    %188 = vector.load %arg8[%c0_81, %c32_82] : memref<32x64xf32, #tpu.memory_space<vmem>>, vector<32x32xf32>
    %cst_83 = arith.constant dense<0.000000e+00> : vector<8x32xf32>
    %189 = tpu.matmul %176, %188, %cst_83 {dimension_numbers = #tpu.dot_dimension_numbers<[1], [0], [0], [1], [0, 0, 1, 1], [], []>} : vector<8x32xf32>, vector<32x32xf32>, vector<8x32xf32> -> vector<8x32xf32>
    %c0_84 = arith.constant 0 : index
    %c32_85 = arith.constant 32 : index
    %190 = vector.load %arg9[%c0_84, %c32_85] : memref<1x64xf32, #tpu.memory_space<vmem>>, vector<1x32xf32>
    %191 = vector.broadcast %190 : vector<1x32xf32> to vector<8x32xf32>
    %192 = arith.addf %189, %191 : vector<8x32xf32>
    %cst_86 = arith.constant 0.000000e+00 : f32
    %193 = vector.broadcast %cst_86 : f32 to vector<8x32xf32>
    %194 = arith.maximumf %192, %193 : vector<8x32xf32>
    %c32_87 = arith.constant 32 : index
    %c0_88 = arith.constant 0 : index
    %195 = vector.load %arg10[%c32_87, %c0_88] : memref<64x32xf32, #tpu.memory_space<vmem>>, vector<32x32xf32>
    %cst_89 = arith.constant dense<0.000000e+00> : vector<8x32xf32>
    %196 = tpu.matmul %194, %195, %cst_89 {dimension_numbers = #tpu.dot_dimension_numbers<[1], [0], [0], [1], [0, 0, 1, 1], [], []>} : vector<8x32xf32>, vector<32x32xf32>, vector<8x32xf32> -> vector<8x32xf32>
    %197 = arith.addf %187, %196 : vector<8x32xf32>
    %198 = vector.broadcast %41 : vector<1x32xf32> to vector<8x32xf32>
    %199 = arith.addf %197, %198 : vector<8x32xf32>
    %200 = arith.addf %176, %199 : vector<8x32xf32>
    %cst_90 = arith.constant dense<0.000000e+00> : vector<8xf32>
    %201 = vector.multi_reduction <add>, %200, %cst_90 [1] : vector<8x32xf32> to vector<8xf32>
    %202 = vector.shape_cast %201 : vector<8xf32> to vector<8x1xf32>
    %cst_91 = arith.constant 3.200000e+01 : f32
    %203 = vector.broadcast %cst_91 : f32 to vector<8x1xf32>
    %204 = arith.divf %202, %203 : vector<8x1xf32>
    %205 = vector.broadcast %204 : vector<8x1xf32> to vector<8x32xf32>
    %206 = arith.subf %200, %205 : vector<8x32xf32>
    %207 = arith.mulf %206, %206 : vector<8x32xf32>
    %cst_92 = arith.constant dense<0.000000e+00> : vector<8xf32>
    %208 = vector.multi_reduction <add>, %207, %cst_92 [1] : vector<8x32xf32> to vector<8xf32>
    %209 = vector.shape_cast %208 : vector<8xf32> to vector<8x1xf32>
    %cst_93 = arith.constant 3.200000e+01 : f32
    %210 = vector.broadcast %cst_93 : f32 to vector<8x1xf32>
    %211 = arith.divf %209, %210 : vector<8x1xf32>
    %cst_94 = arith.constant 9.99999974E-6 : f32
    %212 = vector.broadcast %cst_94 : f32 to vector<8x1xf32>
    %213 = arith.addf %211, %212 : vector<8x1xf32>
    %214 = math.rsqrt %213 : vector<8x1xf32>
    %215 = vector.broadcast %204 : vector<8x1xf32> to vector<8x32xf32>
    %216 = arith.subf %200, %215 : vector<8x32xf32>
    %217 = vector.broadcast %214 : vector<8x1xf32> to vector<8x32xf32>
    %218 = arith.mulf %216, %217 : vector<8x32xf32>
    %219 = vector.broadcast %39 : vector<1x32xf32> to vector<8x32xf32>
    %220 = arith.mulf %218, %219 : vector<8x32xf32>
    %221 = vector.broadcast %40 : vector<1x32xf32> to vector<8x32xf32>
    %222 = arith.addf %220, %221 : vector<8x32xf32>
    %c0_95 = arith.constant 0 : index
    %c8 = arith.constant 8 : index
    %c0_96 = arith.constant 0 : index
    %223 = vector.load %arg14[%c0_95, %c8, %c0_96] : memref<1x16x32xf32, #tpu.memory_space<vmem>>, vector<1x8x32xf32>
    %224 = vector.shape_cast %223 : vector<1x8x32xf32> to vector<8x32xf32>
    %225 = vector.shape_cast %222 : vector<8x32xf32> to vector<1x8x32xf32>
    tpu.vector_store %arg14[%c0_95, %c8, %c0_96], %225 {strides = array<i32>} : memref<1x16x32xf32, #tpu.memory_space<vmem>>, vector<1x8x32xf32>,
    return
  }
  func.func @transform_0(%arg0: i32) -> (i32, i32, i32) {
    %c0_i32 = arith.constant 0 : i32
    %c0_i32_0 = arith.constant 0 : i32
    %c0_i32_1 = arith.constant 0 : i32
    return %arg0, %c0_i32, %c0_i32_0 : i32, i32, i32
  }
  func.func @transform_1(%arg0: i32) -> (i32, i32) {
    %c0_i32 = arith.constant 0 : i32
    %c0_i32_0 = arith.constant 0 : i32
    %c0_i32_1 = arith.constant 0 : i32
    return %c0_i32, %c0_i32_0 : i32, i32
  }
  func.func @transform_2(%arg0: i32) -> (i32, i32) {
    %c0_i32 = arith.constant 0 : i32
    %c0_i32_0 = arith.constant 0 : i32
    %c0_i32_1 = arith.constant 0 : i32
    return %c0_i32, %c0_i32_0 : i32, i32
  }
  func.func @transform_3(%arg0: i32) -> (i32, i32, i32) {
    %c0_i32 = arith.constant 0 : i32
    %c0_i32_0 = arith.constant 0 : i32
    %c0_i32_1 = arith.constant 0 : i32
    %c0_i32_2 = arith.constant 0 : i32
    return %c0_i32, %c0_i32_0, %c0_i32_1 : i32, i32, i32
  }
  func.func @transform_4(%arg0: i32) -> (i32, i32) {
    %c0_i32 = arith.constant 0 : i32
    %c0_i32_0 = arith.constant 0 : i32
    %c0_i32_1 = arith.constant 0 : i32
    return %c0_i32, %c0_i32_0 : i32, i32
  }
  func.func @transform_5(%arg0: i32) -> (i32, i32) {
    %c0_i32 = arith.constant 0 : i32
    %c0_i32_0 = arith.constant 0 : i32
    %c0_i32_1 = arith.constant 0 : i32
    return %c0_i32, %c0_i32_0 : i32, i32
  }
  func.func @transform_6(%arg0: i32) -> (i32, i32) {
    %c0_i32 = arith.constant 0 : i32
    %c0_i32_0 = arith.constant 0 : i32
    %c0_i32_1 = arith.constant 0 : i32
    return %c0_i32, %c0_i32_0 : i32, i32
  }
  func.func @transform_7(%arg0: i32) -> (i32, i32) {
    %c0_i32 = arith.constant 0 : i32
    %c0_i32_0 = arith.constant 0 : i32
    %c0_i32_1 = arith.constant 0 : i32
    return %c0_i32, %c0_i32_0 : i32, i32
  }
  func.func @transform_8(%arg0: i32) -> (i32, i32) {
    %c0_i32 = arith.constant 0 : i32
    %c0_i32_0 = arith.constant 0 : i32
    %c0_i32_1 = arith.constant 0 : i32
    return %c0_i32, %c0_i32_0 : i32, i32
  }
  func.func @transform_9(%arg0: i32) -> (i32, i32) {
    %c0_i32 = arith.constant 0 : i32
    %c0_i32_0 = arith.constant 0 : i32
    %c0_i32_1 = arith.constant 0 : i32
    return %c0_i32, %c0_i32_0 : i32, i32
  }
  func.func @transform_10(%arg0: i32) -> (i32, i32) {
    %c0_i32 = arith.constant 0 : i32
    %c0_i32_0 = arith.constant 0 : i32
    %c0_i32_1 = arith.constant 0 : i32
    return %c0_i32, %c0_i32_0 : i32, i32
  }
  func.func @transform_11(%arg0: i32) -> (i32, i32) {
    %c0_i32 = arith.constant 0 : i32
    %c0_i32_0 = arith.constant 0 : i32
    %c0_i32_1 = arith.constant 0 : i32
    return %c0_i32, %c0_i32_0 : i32, i32
  }
  func.func @transform_12(%arg0: i32) -> (i32, i32) {
    %c0_i32 = arith.constant 0 : i32
    %c0_i32_0 = arith.constant 0 : i32
    %c0_i32_1 = arith.constant 0 : i32
    return %c0_i32, %c0_i32_0 : i32, i32
  }
  func.func @transform_13(%arg0: i32) -> (i32, i32, i32) {
    %c0_i32 = arith.constant 0 : i32
    %c0_i32_0 = arith.constant 0 : i32
    %c0_i32_1 = arith.constant 0 : i32
    return %arg0, %c0_i32, %c0_i32_0 : i32, i32, i32
  }
}

</mosaic_0001>

<llo_original>
// kernel: tpu_custom_call.1
$region0: #{tpu_custom_call.1}
  #allocation0 [shape = 'u32[]', space=smem, size = 0x4, offset = 0x4, fixed_abs, tag = 'smem constant byte address 0x4 - core index']
  #allocation1 [shape = 'u32[144,128]{1,0:T(1,128)}', space=vmem, size = 0x12000, scoped, tag = 'internal scratch']
  %s0 = inlined_call_operand.vmem [shape: f32[2,16,32], index: 0, kind: input, shape index: {}]
  %s1 = inlined_call_operand.vmem [shape: f32[32,96], index: 1, kind: input, shape index: {}]
  %s2 = inlined_call_operand.vmem [shape: f32[1,96], index: 2, kind: input, shape index: {}]
  %s3 = inlined_call_operand.vmem [shape: f32[4,8,32], index: 3, kind: input, shape index: {}]
  %s4 = inlined_call_operand.vmem [shape: f32[1,32], index: 4, kind: input, shape index: {}]
  %s5 = inlined_call_operand.hbm [shape: f32[1,32], index: 5, kind: input, shape index: {}]
  %s6 = inlined_call_operand.hbm [shape: f32[1,32], index: 6, kind: input, shape index: {}]
  %s7 = inlined_call_operand.hbm [shape: f32[32,64], index: 7, kind: input, shape index: {}]
  %s8 = inlined_call_operand.hbm [shape: f32[1,64], index: 8, kind: input, shape index: {}]
  %s9 = inlined_call_operand.vmem [shape: f32[64,32], index: 9, kind: input, shape index: {}]
  %s10 = inlined_call_operand.vmem [shape: f32[1,32], index: 10, kind: input, shape index: {}]
  %s11 = inlined_call_operand.vmem [shape: f32[1,32], index: 11, kind: input, shape index: {}]
  %s12 = inlined_call_operand.vmem [shape: f32[1,32], index: 12, kind: input, shape index: {}]
  %s13 = inlined_call_operand.hbm [shape: f32[2,16,32], index: 13, kind: output, shape index: {}]
  %s14 = sld [smem:[#allocation0]]
  $region101: #{tpu_custom_call.1} parent=0
    _
  %s16 = ssub.s32 1, %s14
  %s17 = scalar_select 0, %s16, %s14
  $region1: #{tpu_custom_call.1} parent=0
    #allocation2 [shape = 'u8[512]{0}', space=vmem, size = 0x400, scoped, tag = 'input window, operand 5, single buffered']
    #allocation3 [shape = 's32[2]{0}', space=sflag, size = 0x8, scoped, tag = 'scoped memory for tpu_custom_call.1']
    #allocation4 [shape = 's32[2]{0}', space=sflag, size = 0x8, scoped, tag = 'scoped memory for tpu_custom_call.1']
    #allocation5 [shape = 'u8[512]{0}', space=vmem, size = 0x400, scoped, tag = 'input window, operand 6, single buffered']
    #allocation6 [shape = 's32[1]{0}', space=sflag, size = 0x4, scoped, tag = 'scoped memory for tpu_custom_call.1']
    #allocation7 [shape = 'u8[16384]{0}', space=vmem, size = 0x4000, scoped, tag = 'input window, operand 7, single buffered']
    #allocation8 [shape = 'u8[512]{0}', space=vmem, size = 0x400, scoped, tag = 'input window, operand 8, single buffered']
    #allocation9 [shape = 's32[1]{0}', space=sflag, size = 0x4, scoped, tag = 'scoped memory for tpu_custom_call.1']
    #allocation10 [shape = 'u8[16384]{0}', space=vmem, size = 0x4000, scoped, tag = 'output window, operand 0']
    %18 = vsyncpa [#allocation3], 0
    %19 = vsyncpa [#allocation6], 0
    %20 = vsyncpa [#allocation9], 0
    %21 = vsyncpa [#allocation4], 0
    %s22 = scalar_lea.sflag [#allocation4], 1
    %23 = vsyncpa %s22, 0
    loop: start=0, step=1, limit=4
    $region2: #{tpu_custom_call.1} parent=1 // loop_pre_header
      _
    $region3: #{tpu_custom_call.1} parent=1 // loop_header
      %s25 = sphi 0, %s29
      %p26 = scmp.ge.s32.totalorder %s25, 4
      %s35 = sphi 0, %s37
      %s38 = sphi 0, %s35
      %s39 = sphi 0, %s38
      %s55 = sphi 0, %s39
      %s59 = sphi 0, %s59
      %s61 = sphi 0, %s59
      %s62 = sphi 0, %s61
      %s76 = sphi 0, %s62
      %s80 = sphi 0, %s80
      %s82 = sphi 0, %s80
      %s83 = sphi 0, %s82
      %s97 = sphi 0, %s83
      %s101 = sphi 0, %s101
      %s103 = sphi 0, %s101
      %s104 = sphi 0, %s103
      %s118 = sphi 0, %s104
      %s122 = sphi 0, %s122
      %s124 = sphi 0, %s122
      %s125 = sphi 0, %s124
      %s139 = sphi 0, %s125
      %s143 = sphi 0, %s143
      %s145 = sphi 0, %s143
      %s146 = sphi 0, %s145
      %s160 = sphi 0, %s146
      %s164 = sphi 0, %s164
      %s166 = sphi 0, %s164
      %s167 = sphi 0, %s166
      %s181 = sphi 0, %s167
      %s185 = sphi 0, %s185
      %s187 = sphi 0, %s185
      %s188 = sphi 0, %s187
      %s202 = sphi 0, %s188
      %s206 = sphi 0, %s206
      %s208 = sphi 0, %s206
      %s209 = sphi 0, %s208
      %s223 = sphi 0, %s209
      %s227 = sphi 0, %s227
      %s229 = sphi 0, %s227
      %s230 = sphi 0, %s229
      %s244 = sphi 0, %s230
      %s248 = sphi 0, %s248
      %s250 = sphi 0, %s248
      %s251 = sphi 0, %s250
      %s265 = sphi 0, %s251
      %s269 = sphi 0, %s269
      %s271 = sphi 0, %s269
      %s272 = sphi 0, %s271
      %s286 = sphi 0, %s272
      %s290 = sphi 0, %s290
      %s292 = sphi 0, %s290
      %s293 = sphi 0, %s292
      %s307 = sphi 0, %s293
      %s313 = sphi 0, %s315
      %s316 = sphi 0, %s313
      %s317 = sphi 0, %s316
      %s333 = sphi 0, %s317
    $region4: #{tpu_custom_call.1} parent=1 // loop_header_branch
      %28 = sbr.rel (%p26) target = $region8
    $region5: #{tpu_custom_call.1} parent=1 // loop_body
      %s30 = ssub.s32 %s25, 1
      %s31 = ssub.s32 %s25, 2
      %s32 = sadd.s32 %s25, 1
      %s33 = ssub.s32 %s25, %s32
      %p34 = scmp.eq.s32.totalorder %s33, 0
      %s36 = sadd.s32 %s35, 1
      %s37 = scalar_select %p34, %s35, %s36
      %p40 = pneg %p34
      %p41 = scmp.eq.s32.totalorder %s25, 1
      %p42 = por %p40, %p41
      %p43 = scmp.ne.s32.totalorder %s35, %s38
      %p44 = scmp.eq.s32.totalorder %s25, 0
      %p45 = por %p43, %p44
      %p46 = scmp.ne.s32.totalorder %s35, %s38
      %p47 = scmp.eq.s32.totalorder %s30, 1
      %p48 = por %p46, %p47
      %p49 = scmp.ne.s32.totalorder %s38, %s39
      %p50 = scmp.eq.s32.totalorder %s30, 0
      %p51 = por %p49, %p50
      %p52 = scmp.ne.s32.totalorder %s38, %s39
      %p53 = scmp.eq.s32.totalorder %s31, 1
      %p54 = por %p52, %p53
      %p56 = scmp.ne.s32.totalorder %s39, %s55
      %p57 = scmp.eq.s32.totalorder %s31, 0
      %p58 = por %p56, %p57
      %s60 = sadd.s32 %s59, 1
      %p63 = scmp.eq.s32.totalorder %s25, 1
      %p64 = scmp.ne.s32.totalorder %s59, %s61
      %p65 = scmp.eq.s32.totalorder %s25, 0
      %p66 = por %p64, %p65
      %p67 = scmp.ne.s32.totalorder %s59, %s61
      %p68 = scmp.eq.s32.totalorder %s30, 1
      %p69 = por %p67, %p68
      %p70 = scmp.ne.s32.totalorder %s61, %s62
      %p71 = scmp.eq.s32.totalorder %s30, 0
      %p72 = por %p70, %p71
      %p73 = scmp.ne.s32.totalorder %s61, %s62
      %p74 = scmp.eq.s32.totalorder %s31, 1
      %p75 = por %p73, %p74
      %p77 = scmp.ne.s32.totalorder %s62, %s76
      %p78 = scmp.eq.s32.totalorder %s31, 0
      %p79 = por %p77, %p78
      %s81 = sadd.s32 %s80, 1
      %p84 = scmp.eq.s32.totalorder %s25, 1
      %p85 = scmp.ne.s32.totalorder %s80, %s82
      %p86 = scmp.eq.s32.totalorder %s25, 0
      %p87 = por %p85, %p86
      %p88 = scmp.ne.s32.totalorder %s80, %s82
      %p89 = scmp.eq.s32.totalorder %s30, 1
      %p90 = por %p88, %p89
      %p91 = scmp.ne.s32.totalorder %s82, %s83
      %p92 = scmp.eq.s32.totalorder %s30, 0
      %p93 = por %p91, %p92
      %p94 = scmp.ne.s32.totalorder %s82, %s83
      %p95 = scmp.eq.s32.totalorder %s31, 1
      %p96 = por %p94, %p95
      %p98 = scmp.ne.s32.totalorder %s83, %s97
      %p99 = scmp.eq.s32.totalorder %s31, 0
      %p100 = por %p98, %p99
      %s102 = sadd.s32 %s101, 1
      %p105 = scmp.eq.s32.totalorder %s25, 1
      %p106 = scmp.ne.s32.totalorder %s101, %s103
      %p107 = scmp.eq.s32.totalorder %s25, 0
      %p108 = por %p106, %p107
      %p109 = scmp.ne.s32.totalorder %s101, %s103
      %p110 = scmp.eq.s32.totalorder %s30, 1
      %p111 = por %p109, %p110
      %p112 = scmp.ne.s32.totalorder %s103, %s104
      %p113 = scmp.eq.s32.totalorder %s30, 0
      %p114 = por %p112, %p113
      %p115 = scmp.ne.s32.totalorder %s103, %s104
      %p116 = scmp.eq.s32.totalorder %s31, 1
      %p117 = por %p115, %p116
      %p119 = scmp.ne.s32.totalorder %s104, %s118
      %p120 = scmp.eq.s32.totalorder %s31, 0
      %p121 = por %p119, %p120
      %s123 = sadd.s32 %s122, 1
      %p126 = scmp.eq.s32.totalorder %s25, 1
      %p127 = scmp.ne.s32.totalorder %s122, %s124
      %p128 = scmp.eq.s32.totalorder %s25, 0
      %p129 = por %p127, %p128
      %p130 = scmp.ne.s32.totalorder %s122, %s124
      %p131 = scmp.eq.s32.totalorder %s30, 1
      %p132 = por %p130, %p131
      %p133 = scmp.ne.s32.totalorder %s124, %s125
      %p134 = scmp.eq.s32.totalorder %s30, 0
      %p135 = por %p133, %p134
      %p136 = scmp.ne.s32.totalorder %s124, %s125
      %p137 = scmp.eq.s32.totalorder %s31, 1
      %p138 = por %p136, %p137
      %p140 = scmp.ne.s32.totalorder %s125, %s139
      %p141 = scmp.eq.s32.totalorder %s31, 0
      %p142 = por %p140, %p141
      %s144 = sadd.s32 %s143, 1
      %p147 = scmp.eq.s32.totalorder %s25, 1
      %p148 = scmp.ne.s32.totalorder %s143, %s145
      %p149 = scmp.eq.s32.totalorder %s25, 0
      %p150 = por %p148, %p149
      %p151 = scmp.ne.s32.totalorder %s143, %s145
      %p152 = scmp.eq.s32.totalorder %s30, 1
      %p153 = por %p151, %p152
      %p154 = scmp.ne.s32.totalorder %s145, %s146
      %p155 = scmp.eq.s32.totalorder %s30, 0
      %p156 = por %p154, %p155
      %p157 = scmp.ne.s32.totalorder %s145, %s146
      %p158 = scmp.eq.s32.totalorder %s31, 1
      %p159 = por %p157, %p158
      %p161 = scmp.ne.s32.totalorder %s146, %s160
      %p162 = scmp.eq.s32.totalorder %s31, 0
      %p163 = por %p161, %p162
      %s165 = sadd.s32 %s164, 1
      %p168 = scmp.eq.s32.totalorder %s25, 1
      %p169 = scmp.ne.s32.totalorder %s164, %s166
      %p170 = scmp.eq.s32.totalorder %s25, 0
      %p171 = por %p169, %p170
      %p172 = scmp.ne.s32.totalorder %s164, %s166
      %p173 = scmp.eq.s32.totalorder %s30, 1
      %p174 = por %p172, %p173
      %p175 = scmp.ne.s32.totalorder %s166, %s167
      %p176 = scmp.eq.s32.totalorder %s30, 0
      %p177 = por %p175, %p176
      %p178 = scmp.ne.s32.totalorder %s166, %s167
      %p179 = scmp.eq.s32.totalorder %s31, 1
      %p180 = por %p178, %p179
      %p182 = scmp.ne.s32.totalorder %s167, %s181
      %p183 = scmp.eq.s32.totalorder %s31, 0
      %p184 = por %p182, %p183
      %s186 = sadd.s32 %s185, 1
      %p189 = scmp.eq.s32.totalorder %s25, 1
      %p190 = scmp.ne.s32.totalorder %s185, %s187
      %p191 = scmp.eq.s32.totalorder %s25, 0
      %p192 = por %p190, %p191
      %p193 = scmp.ne.s32.totalorder %s185, %s187
      %p194 = scmp.eq.s32.totalorder %s30, 1
      %p195 = por %p193, %p194
      %p196 = scmp.ne.s32.totalorder %s187, %s188
      %p197 = scmp.eq.s32.totalorder %s30, 0
      %p198 = por %p196, %p197
      %p199 = scmp.ne.s32.totalorder %s187, %s188
      %p200 = scmp.eq.s32.totalorder %s31, 1
      %p201 = por %p199, %p200
      %p203 = scmp.ne.s32.totalorder %s188, %s202
      %p204 = scmp.eq.s32.totalorder %s31, 0
      %p205 = por %p203, %p204
      %s207 = sadd.s32 %s206, 1
      %p210 = scmp.eq.s32.totalorder %s25, 1
      %p211 = scmp.ne.s32.totalorder %s206, %s208
      %p212 = scmp.eq.s32.totalorder %s25, 0
      %p213 = por %p211, %p212
      %p214 = scmp.ne.s32.totalorder %s206, %s208
      %p215 = scmp.eq.s32.totalorder %s30, 1
      %p216 = por %p214, %p215
      %p217 = scmp.ne.s32.totalorder %s208, %s209
      %p218 = scmp.eq.s32.totalorder %s30, 0
      %p219 = por %p217, %p218
      %p220 = scmp.ne.s32.totalorder %s208, %s209
      %p221 = scmp.eq.s32.totalorder %s31, 1
      %p222 = por %p220, %p221
      %p224 = scmp.ne.s32.totalorder %s209, %s223
      %p225 = scmp.eq.s32.totalorder %s31, 0
      %p226 = por %p224, %p225
      %s228 = sadd.s32 %s227, 1
      %p231 = scmp.eq.s32.totalorder %s25, 1
      %p232 = scmp.ne.s32.totalorder %s227, %s229
      %p233 = scmp.eq.s32.totalorder %s25, 0
      %p234 = por %p232, %p233
      %p235 = scmp.ne.s32.totalorder %s227, %s229
      %p236 = scmp.eq.s32.totalorder %s30, 1
      %p237 = por %p235, %p236
      %p238 = scmp.ne.s32.totalorder %s229, %s230
      %p239 = scmp.eq.s32.totalorder %s30, 0
      %p240 = por %p238, %p239
      %p241 = scmp.ne.s32.totalorder %s229, %s230
      %p242 = scmp.eq.s32.totalorder %s31, 1
      %p243 = por %p241, %p242
      %p245 = scmp.ne.s32.totalorder %s230, %s244
      %p246 = scmp.eq.s32.totalorder %s31, 0
      %p247 = por %p245, %p246
      %s249 = sadd.s32 %s248, 1
      %p252 = scmp.eq.s32.totalorder %s25, 1
      %p253 = scmp.ne.s32.totalorder %s248, %s250
      %p254 = scmp.eq.s32.totalorder %s25, 0
      %p255 = por %p253, %p254
      %p256 = scmp.ne.s32.totalorder %s248, %s250
      %p257 = scmp.eq.s32.totalorder %s30, 1
      %p258 = por %p256, %p257
      %p259 = scmp.ne.s32.totalorder %s250, %s251
      %p260 = scmp.eq.s32.totalorder %s30, 0
      %p261 = por %p259, %p260
      %p262 = scmp.ne.s32.totalorder %s250, %s251
      %p263 = scmp.eq.s32.totalorder %s31, 1
      %p264 = por %p262, %p263
      %p266 = scmp.ne.s32.totalorder %s251, %s265
      %p267 = scmp.eq.s32.totalorder %s31, 0
      %p268 = por %p266, %p267
      %s270 = sadd.s32 %s269, 1
      %p273 = scmp.eq.s32.totalorder %s25, 1
      %p274 = scmp.ne.s32.totalorder %s269, %s271
      %p275 = scmp.eq.s32.totalorder %s25, 0
      %p276 = por %p274, %p275
      %p277 = scmp.ne.s32.totalorder %s269, %s271
      %p278 = scmp.eq.s32.totalorder %s30, 1
      %p279 = por %p277, %p278
      %p280 = scmp.ne.s32.totalorder %s271, %s272
      %p281 = scmp.eq.s32.totalorder %s30, 0
      %p282 = por %p280, %p281
      %p283 = scmp.ne.s32.totalorder %s271, %s272
      %p284 = scmp.eq.s32.totalorder %s31, 1
      %p285 = por %p283, %p284
      %p287 = scmp.ne.s32.totalorder %s272, %s286
      %p288 = scmp.eq.s32.totalorder %s31, 0
      %p289 = por %p287, %p288
      %s291 = sadd.s32 %s290, 1
      %p294 = scmp.eq.s32.totalorder %s25, 1
      %p295 = scmp.ne.s32.totalorder %s290, %s292
      %p296 = scmp.eq.s32.totalorder %s25, 0
      %p297 = por %p295, %p296
      %p298 = scmp.ne.s32.totalorder %s290, %s292
      %p299 = scmp.eq.s32.totalorder %s30, 1
      %p300 = por %p298, %p299
      %p301 = scmp.ne.s32.totalorder %s292, %s293
      %p302 = scmp.eq.s32.totalorder %s30, 0
      %p303 = por %p301, %p302
      %p304 = scmp.ne.s32.totalorder %s292, %s293
      %p305 = scmp.eq.s32.totalorder %s31, 1
      %p306 = por %p304, %p305
      %p308 = scmp.ne.s32.totalorder %s293, %s307
      %p309 = scmp.eq.s32.totalorder %s31, 0
      %p310 = por %p308, %p309
      %s311 = ssub.s32 %s25, %s32
      %p312 = scmp.eq.s32.totalorder %s311, 0
      %s314 = sadd.s32 %s313, 1
      %s315 = scalar_select %p312, %s313, %s314
      %p318 = pneg %p312
      %p319 = scmp.eq.s32.totalorder %s25, 1
      %p320 = por %p318, %p319
      %p321 = scmp.ne.s32.totalorder %s313, %s316
      %p322 = scmp.eq.s32.totalorder %s25, 0
      %p323 = por %p321, %p322
      %p324 = scmp.ne.s32.totalorder %s313, %s316
      %p325 = scmp.eq.s32.totalorder %s30, 1
      %p326 = por %p324, %p325
      %p327 = scmp.ne.s32.totalorder %s316, %s317
      %p328 = scmp.eq.s32.totalorder %s30, 0
      %p329 = por %p327, %p328
      %p330 = scmp.ne.s32.totalorder %s316, %s317
      %p331 = scmp.eq.s32.totalorder %s31, 1
      %p332 = por %p330, %p331
      %p334 = scmp.ne.s32.totalorder %s317, %s333
      %p335 = scmp.eq.s32.totalorder %s31, 0
      %p336 = por %p334, %p335
      %p337 = scmp.le.s32.totalorder 1, %s25
      %p338 = scmp.lt.s32.totalorder %s25, 3
      %p339 = pnand %p337, %p338
      %p340 = pneg %p339
      // Predicated region
      $region9: #{tpu_custom_call.1} parent=5 // pred_check
        _
      $region10: #{tpu_custom_call.1} parent=5 // pred_check_branch
        %342 = sbr.rel (%p339) target = $region12
      $region11: #{tpu_custom_call.1} parent=5 // pred_region
        %s343 = ssub.s32 %s25, 1
        // Predicated region
        $region13: #{tpu_custom_call.1} parent=11 // pred_check
          %p344 = pneg %p72
        $region14: #{tpu_custom_call.1} parent=11 // pred_check_branch
          %346 = sbr.rel (%p344) target = $region16
        $region15: #{tpu_custom_call.1} parent=11 // pred_region
          _
        $region16: #{tpu_custom_call.1} parent=11 // pred_fallthru
          _
        // Predicated region
        $region17: #{tpu_custom_call.1} parent=11 // pred_check
          %p347 = pneg %p93
        $region18: #{tpu_custom_call.1} parent=11 // pred_check_branch
          %349 = sbr.rel (%p347) target = $region20
        $region19: #{tpu_custom_call.1} parent=11 // pred_region
          _
        $region20: #{tpu_custom_call.1} parent=11 // pred_fallthru
          _
        // Predicated region
        $region21: #{tpu_custom_call.1} parent=11 // pred_check
          %p350 = pneg %p114
        $region22: #{tpu_custom_call.1} parent=11 // pred_check_branch
          %352 = sbr.rel (%p350) target = $region24
        $region23: #{tpu_custom_call.1} parent=11 // pred_region
          _
        $region24: #{tpu_custom_call.1} parent=11 // pred_fallthru
          _
        // Predicated region
        $region25: #{tpu_custom_call.1} parent=11 // pred_check
          %p353 = pneg %p135
        $region26: #{tpu_custom_call.1} parent=11 // pred_check_branch
          %355 = sbr.rel (%p353) target = $region28
        $region27: #{tpu_custom_call.1} parent=11 // pred_region
          _
        $region28: #{tpu_custom_call.1} parent=11 // pred_fallthru
          _
        // Predicated region
        $region29: #{tpu_custom_call.1} parent=11 // pred_check
          %p356 = pneg %p156
        $region30: #{tpu_custom_call.1} parent=11 // pred_check_branch
          %358 = sbr.rel (%p356) target = $region32
        $region31: #{tpu_custom_call.1} parent=11 // pred_region
          %s360 = ssub.s32 16, 16
          %361 = vsyncadd [#allocation3], %s360
          %s363 = sshll.u32 [#allocation2], 4
          %s364 = int_to_ptr.vmem [resolvable:$true] %s363
          %366 = dma.hbm_to_vmem [thread:$0]  %s5, 16, %s364, [#allocation3]
        $region32: #{tpu_custom_call.1} parent=11 // pred_fallthru
          _
        // Predicated region
        $region33: #{tpu_custom_call.1} parent=11 // pred_check
          %p367 = pneg %p177
        $region34: #{tpu_custom_call.1} parent=11 // pred_check_branch
          %369 = sbr.rel (%p367) target = $region36
        $region35: #{tpu_custom_call.1} parent=11 // pred_region
          %s371 = ssub.s32 16, 16
          %372 = vsyncadd [#allocation6], %s371
          %s374 = sshll.u32 [#allocation5], 4
          %s375 = int_to_ptr.vmem [resolvable:$true] %s374
          %377 = dma.hbm_to_vmem [thread:$0]  %s6, 16, %s375, [#allocation6]
        $region36: #{tpu_custom_call.1} parent=11 // pred_fallthru
          _
        // Predicated region
        $region37: #{tpu_custom_call.1} parent=11 // pred_check
          %p378 = pneg %p198
        $region38: #{tpu_custom_call.1} parent=11 // pred_check_branch
          %380 = sbr.rel (%p378) target = $region40
        $region39: #{tpu_custom_call.1} parent=11 // pred_region
          %s382 = ssub.s32 512, 512
          %383 = vsyncadd [#allocation6], %s382
          %s384 = sshll.u32 [#allocation7], 4
          %s385 = int_to_ptr.vmem [resolvable:$true] %s384
          %390 = dma.hbm_to_vmem [thread:$0]  %s7, 512, %s385, [#allocation6], 128, 128, 8
        $region40: #{tpu_custom_call.1} parent=11 // pred_fallthru
          _
        // Predicated region
        $region41: #{tpu_custom_call.1} parent=11 // pred_check
          %p391 = pneg %p219
        $region42: #{tpu_custom_call.1} parent=11 // pred_check_branch
          %393 = sbr.rel (%p391) target = $region44
        $region43: #{tpu_custom_call.1} parent=11 // pred_region
          %s395 = ssub.s32 16, 16
          %396 = vsyncadd [#allocation9], %s395
          %s398 = sshll.u32 [#allocation8], 4
          %s399 = int_to_ptr.vmem [resolvable:$true] %s398
          %401 = dma.hbm_to_vmem [thread:$0]  %s8, 16, %s399, [#allocation9]
        $region44: #{tpu_custom_call.1} parent=11 // pred_fallthru
          _
        // Predicated region
        $region45: #{tpu_custom_call.1} parent=11 // pred_check
          %p402 = pneg %p240
        $region46: #{tpu_custom_call.1} parent=11 // pred_check_branch
          %404 = sbr.rel (%p402) target = $region48
        $region47: #{tpu_custom_call.1} parent=11 // pred_region
          _
        $region48: #{tpu_custom_call.1} parent=11 // pred_fallthru
          _
        // Predicated region
        $region49: #{tpu_custom_call.1} parent=11 // pred_check
          %p405 = pneg %p261
        $region50: #{tpu_custom_call.1} parent=11 // pred_check_branch
          %407 = sbr.rel (%p405) target = $region52
        $region51: #{tpu_custom_call.1} parent=11 // pred_region
          _
        $region52: #{tpu_custom_call.1} parent=11 // pred_fallthru
          _
        // Predicated region
        $region53: #{tpu_custom_call.1} parent=11 // pred_check
          %p408 = pneg %p282
        $region54: #{tpu_custom_call.1} parent=11 // pred_check_branch
          %410 = sbr.rel (%p408) target = $region56
        $region55: #{tpu_custom_call.1} parent=11 // pred_region
          _
        $region56: #{tpu_custom_call.1} parent=11 // pred_fallthru
          _
        // Predicated region
        $region57: #{tpu_custom_call.1} parent=11 // pred_check
          %p411 = pneg %p303
        $region58: #{tpu_custom_call.1} parent=11 // pred_check_branch
          %413 = sbr.rel (%p411) target = $region60
        $region59: #{tpu_custom_call.1} parent=11 // pred_region
          _
        $region60: #{tpu_custom_call.1} parent=11 // pred_fallthru
          _
      $region12: #{tpu_custom_call.1} parent=5 // pred_fallthru
        _
      %p414 = scmp.lt.s32.totalorder %s25, 2
      // Predicated region
      $region61: #{tpu_custom_call.1} parent=5 // pred_check
        %p415 = pneg %p414
      $region62: #{tpu_custom_call.1} parent=5 // pred_check_branch
        %417 = sbr.rel (%p415) target = $region64
      $region63: #{tpu_custom_call.1} parent=5 // pred_region
        // Predicated region
        $region65: #{tpu_custom_call.1} parent=63 // pred_check
          %p418 = pneg %p45
        $region66: #{tpu_custom_call.1} parent=63 // pred_check_branch
          %420 = sbr.rel (%p418) target = $region68
        $region67: #{tpu_custom_call.1} parent=63 // pred_region
          %p421 = scmp.lt.s32.totalorder %s25, 1
          %s422 = scalar_select %p421, %s25, 1
          %s423 = smul.addr %s422, 2
          %s424 = smul.addr %s423, 8
          %s425 = scalar_lea.vmem %s0, %s424
        $region68: #{tpu_custom_call.1} parent=63 // pred_fallthru
          _
      $region64: #{tpu_custom_call.1} parent=5 // pred_fallthru
        _
      %p426 = scmp.le.s32.totalorder 1, %s25
      %p427 = scmp.lt.s32.totalorder %s25, 3
      %p428 = pnand %p426, %p427
      %p429 = pneg %p428
      // Predicated region
      $region69: #{tpu_custom_call.1} parent=5 // pred_check
        _
      $region70: #{tpu_custom_call.1} parent=5 // pred_check_branch
        %431 = sbr.rel (%p428) target = $region72
      $region71: #{tpu_custom_call.1} parent=5 // pred_region
        %s432 = ssub.s32 %s25, 1
        // Predicated region
        $region73: #{tpu_custom_call.1} parent=71 // pred_check
          %p433 = pneg %p156
        $region74: #{tpu_custom_call.1} parent=71 // pred_check_branch
          %435 = sbr.rel (%p433) target = $region76
        $region75: #{tpu_custom_call.1} parent=71 // pred_region
          %436 = dma.done [#allocation3], 16
        $region76: #{tpu_custom_call.1} parent=71 // pred_fallthru
          _
        // Predicated region
        $region77: #{tpu_custom_call.1} parent=71 // pred_check
          %p437 = pneg %p177
        $region78: #{tpu_custom_call.1} parent=71 // pred_check_branch
          %439 = sbr.rel (%p437) target = $region80
        $region79: #{tpu_custom_call.1} parent=71 // pred_region
          %440 = dma.done [#allocation6], 16
        $region80: #{tpu_custom_call.1} parent=71 // pred_fallthru
          _
        // Predicated region
        $region81: #{tpu_custom_call.1} parent=71 // pred_check
          %p441 = pneg %p198
        $region82: #{tpu_custom_call.1} parent=71 // pred_check_branch
          %443 = sbr.rel (%p441) target = $region84
        $region83: #{tpu_custom_call.1} parent=71 // pred_region
          %444 = dma.done [#allocation6], 512
        $region84: #{tpu_custom_call.1} parent=71 // pred_fallthru
          _
        // Predicated region
        $region85: #{tpu_custom_call.1} parent=71 // pred_check
          %p445 = pneg %p219
        $region86: #{tpu_custom_call.1} parent=71 // pred_check_branch
          %447 = sbr.rel (%p445) target = $region88
        $region87: #{tpu_custom_call.1} parent=71 // pred_region
          %448 = dma.done [#allocation9], 16
        $region88: #{tpu_custom_call.1} parent=71 // pred_fallthru
          _
        %p449 = scmp.lt.s32.totalorder %s30, 1
        %s450 = scalar_select %p449, %s30, 1
        %s451 = smul.addr %s450, 2
        %s452 = smul.addr %s451, 8
        %s453 = scalar_lea.vmem %s0, %s452
        %p454 = pneg %p51
        %p455 = pneg %p48
        %p456 = pneg %p72
        %p457 = pneg %p69
        %p458 = pneg %p93
        %p459 = pneg %p90
        %p460 = pneg %p114
        %p461 = pneg %p111
        %p462 = pneg %p135
        %p463 = pneg %p132
        %p464 = pneg %p156
        %p465 = pneg %p153
        %p466 = pneg %p177
        %p467 = pneg %p174
        %p468 = pneg %p198
        %p469 = pneg %p195
        %p470 = pneg %p219
        %p471 = pneg %p216
        %p472 = pneg %p240
        %p473 = pneg %p237
        %p474 = pneg %p261
        %p475 = pneg %p258
        %p476 = pneg %p282
        %p477 = pneg %p279
        %p478 = pneg %p303
        %p479 = pneg %p300
        %p480 = pneg %p329
        %p481 = pneg %p326
        %s482 = sand.u32 %s316, 1
        %s483 = scalar_lea.sflag [#allocation4], %s482
        %s484 = sand.u32 %s316, 1
        %s485 = smul.addr %s484, 16
        %s486 = scalar_lea.vmem [#allocation10], %s485
        %p487 = scmp.lt.s32.totalorder %s30, 1
        %s488 = scalar_select %p487, %s30, 1
        %s489 = smul.addr %s488, 2
        %s490 = smul.addr %s489, 8
        %s491 = scalar_lea.vmem %s0, %s490
        %v492 = vld [vmem:[%s491] sm:$0xff]
        %v493 = vld [vmem:[%s491 + $0x8] sm:$0xff]
        %v494 = vld [vmem:[%s1] sm:$0xff]
        %v495 = vld [vmem:[%s1 + $0x8] sm:$0xff]
        %v496 = vld [vmem:[%s1 + $0x10] sm:$0xff]
        %v497 = vld [vmem:[%s1 + $0x18] sm:$0xff]
        %v498 = vld [vmem:[%s2] sm:$0x1]
        %v500 = vlaneseq
        %v501 = vshrl.u32 %v500, 7
        %v502 = vsub.s32 0, %v501
        %v503 = vrot.slane %v498, %v502
        %vm505 = vcmask 261120
        %v507 = vsel %vm505, %v492, 0
        %v510 = vsel %vm505, %v493, 0
        %512 = vmatprep.subr.mxu0 0.0
        %513 = vmatpush1.msra.mxu0 %v494
        %514 = vmatprep.subr.mxu0 0.0
        %515 = vmatpush1.msra.mxu0 %v495
        %516 = vmatprep.subr.mxu0 0.0
        %517 = vmatpush1.msra.mxu0 %v496
        %518 = vmatprep.subr.mxu0 0.0
        %519 = vmatpush1.msra.mxu0 %v497
        %520 = vmatprep.subr.mxu0 0.0
        %521 = vmatpush1.msra.mxu0 0.0
        %522 = vmatprep.subr.mxu0 0.0
        %523 = vmatpush1.msra.mxu0 0.0
        %524 = vmatprep.subr.mxu0 0.0
        %525 = vmatpush1.msra.mxu0 0.0
        %526 = vmatprep.subr.mxu0 0.0
        %527 = vmatpush1.msra.mxu0 0.0
        %528 = vmatprep.subr.mxu0 0.0
        %529 = vmatpush1.msra.mxu0 0.0
        %530 = vmatprep.subr.mxu0 0.0
        %531 = vmatpush1.msra.mxu0 0.0
        %532 = vmatprep.subr.mxu0 0.0
        %533 = vmatpush1.msra.mxu0 0.0
        %534 = vmatprep.subr.mxu0 0.0
        %535 = vmatpush1.msra.mxu0 0.0
        %536 = vmatprep.subr.mxu0 0.0
        %537 = vmatpush1.msra.mxu0 0.0
        %538 = vmatprep.subr.mxu0 0.0
        %539 = vmatpush1.msra.mxu0 0.0
        %540 = vmatprep.subr.mxu0 0.0
        %541 = vmatpush1.msra.mxu0 0.0
        %542 = vmatprep.subr.mxu0 0.0
        %543 = vmatpush1.msra.mxu0 0.0
        %544 = vmatprep.subr.mxu0 0.0
        %545 = vmatpush1.msra.mxu0 0.0
        %546 = vmatprep.subr.mxu0 0.0
        %547 = vmatpush1.msra.mxu0 0.0
        %548 = vmatprep.subr.mxu0 0.0
        %549 = vmatpush1.msra.mxu0 0.0
        %550 = vmatprep.subr.mxu0 0.0
        %551 = vmatpush1.msra.mxu0 0.0
        %552 = vmatprep.subr.mxu0 0.0
        %553 = vmatpush1.msra.mxu0 0.0
        %554 = vmatprep.subr.mxu0 0.0
        %555 = vmatpush1.msra.mxu0 0.0
        %556 = vmatprep.subr.mxu0 0.0
        %557 = vmatpush1.msra.mxu0 0.0
        %558 = vmatprep.subr.mxu0 0.0
        %559 = vmatpush1.msra.mxu0 0.0
        %560 = vmatprep.subr.mxu0 0.0
        %561 = vmatpush1.msra.mxu0 0.0
        %562 = vmatprep.subr.mxu0 0.0
        %563 = vmatpush1.msra.mxu0 0.0
        %564 = vmatprep.subr.mxu0 0.0
        %565 = vmatpush1.msra.mxu0 0.0
        %566 = vmatprep.subr.mxu0 0.0
        %567 = vmatpush1.msra.mxu0 0.0
        %568 = vmatprep.subr.mxu0 0.0
        %569 = vmatpush1.msra.mxu0 0.0
        %570 = vmatprep.subr.mxu0 0.0
        %571 = vmatpush1.msra.mxu0 0.0
        %572 = vmatprep.subr.mxu0 0.0
        %573 = vmatpush1.msra.mxu0 0.0
        %574 = vmatprep.subr.mxu0 0.0
        %575 = vmatpush1.msra.mxu0 0.0
        %576 = vmatprep.mubr.f32.mxu0 0.0
        %577 = vmatmul.mubr.f32.gmra.mrb[0].mxu0 %v507
        %v578 = vpop.f32.mrb[0].mxu0
        %v579 = vadd.f32 %v503, %v578
        %v580 = vpop.f32.mrb[0].mxu0
        %581 = vmatprep.mubr.f32.mxu0 0.0
        %582 = vmatmul.mubr.f32.gmra.mrb[0].mxu0 %v510
        %v583 = vpop.f32.mrb[0].mxu0
        %v584 = vadd.f32 %v503, %v583
        %v585 = vpop.f32.mrb[0].mxu0
        %586 = vdwg.mxu0
        %589 = vrot.lane.b32.xlu0 %v579, 120
        %v590 = vpop.permute.xlu0 %589
        %591 = vrot.lane.b32.xlu0 %v584, 120
        %v592 = vpop.permute.xlu0 %591
        %593 = vrot.lane.b32.xlu0 %v579, 112
        %v594 = vpop.permute.xlu0 %593
        %595 = vrot.lane.b32.xlu0 %v584, 112
        %v596 = vpop.permute.xlu0 %595
        %597 = vrot.lane.b32.xlu0 %v579, 104
        %v598 = vpop.permute.xlu0 %597
        %599 = vrot.lane.b32.xlu0 %v584, 104
        %v600 = vpop.permute.xlu0 %599
        %601 = vrot.lane.b32.xlu0 %v579, 96
        %v602 = vpop.permute.xlu0 %601
        %603 = vrot.lane.b32.xlu0 %v584, 96
        %v604 = vpop.permute.xlu0 %603
        %605 = vrot.lane.b32.xlu0 %v579, 88
        %v606 = vpop.permute.xlu0 %605
        %607 = vrot.lane.b32.xlu0 %v584, 88
        %v608 = vpop.permute.xlu0 %607
        %609 = vrot.lane.b32.xlu0 %v579, 80
        %v610 = vpop.permute.xlu0 %609
        %611 = vrot.lane.b32.xlu0 %v584, 80
        %v612 = vpop.permute.xlu0 %611
        %613 = vrot.lane.b32.xlu0 %v579, 72
        %v614 = vpop.permute.xlu0 %613
        %615 = vrot.lane.b32.xlu0 %v584, 72
        %v616 = vpop.permute.xlu0 %615
        %617 = vrot.lane.b32.xlu0 %v579, 64
        %v618 = vpop.permute.xlu0 %617
        %619 = vrot.lane.b32.xlu0 %v584, 64
        %v620 = vpop.permute.xlu0 %619
        %623 = vrot.lane.b32.xlu0 %v579, 56
        %v624 = vpop.permute.xlu0 %623
        %625 = vrot.lane.b32.xlu0 %v584, 56
        %v626 = vpop.permute.xlu0 %625
        %629 = vrot.lane.b32.xlu0 %v579, 48
        %v630 = vpop.permute.xlu0 %629
        %631 = vrot.lane.b32.xlu0 %v584, 48
        %v632 = vpop.permute.xlu0 %631
        %635 = vrot.lane.b32.xlu0 %v579, 40
        %v636 = vpop.permute.xlu0 %635
        %637 = vrot.lane.b32.xlu0 %v584, 40
        %v638 = vpop.permute.xlu0 %637
        %v641 = vld [vmem:[%s3] sm:$0xff]
        %v642 = vld [vmem:[%s3 + $0x8] sm:$0xff]
        %v643 = vld [vmem:[%s3 + $0x10] sm:$0xff]
        %v644 = vld [vmem:[%s3 + $0x18] sm:$0xff]
        %v645 = vld [vmem:[%s4] sm:$0x1]
        %v646 = vld [vmem:[#allocation2] sm:$0x1]
        %v647 = vld [vmem:[#allocation5] sm:$0x1]
        %v648 = vld [vmem:[%s11] sm:$0x1]
        %v649 = vld [vmem:[%s12] sm:$0x1]
        %v650 = vld [vmem:[%s10] sm:$0x1]
        %vm651 = vcmask 64512
        %v652 = vsel %vm651, %v579, 0
        %v654 = vsel %vm651, %v602, 0
        %v656 = vsel %vm651, %v604, 0
        %658 = vmatprep.subr.mxu0 0.0
        %659 = vmatpush1.xpose.msra.mxu0 %v654
        %660 = vmatprep.subr.mxu0 0.0
        %661 = vmatpush1.xpose.msra.mxu0 %v656
        %662 = vmatprep.subr.mxu0 0.0
        %663 = vmatpush1.xpose.msra.mxu0 0.0
        %664 = vmatprep.subr.mxu0 0.0
        %665 = vmatpush1.xpose.msra.mxu0 0.0
        %666 = vmatprep.subr.mxu0 0.0
        %667 = vmatpush1.xpose.msra.mxu0 0.0
        %668 = vmatprep.subr.mxu0 0.0
        %669 = vmatpush1.xpose.msra.mxu0 0.0
        %670 = vmatprep.subr.mxu0 0.0
        %671 = vmatpush1.xpose.msra.mxu0 0.0
        %672 = vmatprep.subr.mxu0 0.0
        %673 = vmatpush1.xpose.msra.mxu0 0.0
        %674 = vmatprep.subr.mxu0 0.0
        %675 = vmatpush1.xpose.msra.mxu0 0.0
        %676 = vmatprep.subr.mxu0 0.0
        %677 = vmatpush1.xpose.msra.mxu0 0.0
        %678 = vmatprep.subr.mxu0 0.0
        %679 = vmatpush1.xpose.msra.mxu0 0.0
        %680 = vmatprep.subr.mxu0 0.0
        %681 = vmatpush1.xpose.msra.mxu0 0.0
        %682 = vmatprep.subr.mxu0 0.0
        %683 = vmatpush1.xpose.msra.mxu0 0.0
        %684 = vmatprep.subr.mxu0 0.0
        %685 = vmatpush1.xpose.msra.mxu0 0.0
        %686 = vmatprep.subr.mxu0 0.0
        %687 = vmatpush1.xpose.msra.mxu0 0.0
        %688 = vmatprep.subr.mxu0 0.0
        %689 = vmatpush1.xpose.msra.mxu0 0.0
        %690 = vmatprep.subr.mxu0 0.0
        %691 = vmatpush1.xpose.msra.mxu0 0.0
        %692 = vmatprep.subr.mxu0 0.0
        %693 = vmatpush1.xpose.msra.mxu0 0.0
        %694 = vmatprep.subr.mxu0 0.0
        %695 = vmatpush1.xpose.msra.mxu0 0.0
        %696 = vmatprep.subr.mxu0 0.0
        %697 = vmatpush1.xpose.msra.mxu0 0.0
        %698 = vmatprep.subr.mxu0 0.0
        %699 = vmatpush1.xpose.msra.mxu0 0.0
        %700 = vmatprep.subr.mxu0 0.0
        %701 = vmatpush1.xpose.msra.mxu0 0.0
        %702 = vmatprep.subr.mxu0 0.0
        %703 = vmatpush1.xpose.msra.mxu0 0.0
        %704 = vmatprep.subr.mxu0 0.0
        %705 = vmatpush1.xpose.msra.mxu0 0.0
        %706 = vmatprep.subr.mxu0 0.0
        %707 = vmatpush1.xpose.msra.mxu0 0.0
        %708 = vmatprep.subr.mxu0 0.0
        %709 = vmatpush1.xpose.msra.mxu0 0.0
        %710 = vmatprep.subr.mxu0 0.0
        %711 = vmatpush1.xpose.msra.mxu0 0.0
        %712 = vmatprep.subr.mxu0 0.0
        %713 = vmatpush1.xpose.msra.mxu0 0.0
        %714 = vmatprep.subr.mxu0 0.0
        %715 = vmatpush1.xpose.msra.mxu0 0.0
        %716 = vmatprep.subr.mxu0 0.0
        %717 = vmatpush1.xpose.msra.mxu0 0.0
        %718 = vmatprep.subr.mxu0 0.0
        %719 = vmatpush1.xpose.msra.mxu0 0.0
        %720 = vmatprep.subr.mxu0 0.0
        %721 = vmatpush1.xpose.msra.mxu0 0.0
        %722 = vmatprep.mubr.f32.mxu0 0.0
        %723 = vmatmul.mubr.f32.gmra.mrb[0].mxu0 %v652
        %v724 = vpop.f32.mrb[0].mxu0
        %v725 = vadd.f32 0.0, %v724
        %v726 = vpop.f32.mrb[0].mxu0
        %727 = vdwg.mxu0
        %v728 = vsel %vm651, %v590, 0
        %v730 = vsel %vm651, %v606, 0
        %v732 = vsel %vm651, %v608, 0
        %734 = vmatprep.subr.mxu0 0.0
        %735 = vmatpush1.xpose.msra.mxu0 %v730
        %736 = vmatprep.subr.mxu0 0.0
        %737 = vmatpush1.xpose.msra.mxu0 %v732
        %738 = vmatprep.subr.mxu0 0.0
        %739 = vmatpush1.xpose.msra.mxu0 0.0
        %740 = vmatprep.subr.mxu0 0.0
        %741 = vmatpush1.xpose.msra.mxu0 0.0
        %742 = vmatprep.subr.mxu0 0.0
        %743 = vmatpush1.xpose.msra.mxu0 0.0
        %744 = vmatprep.subr.mxu0 0.0
        %745 = vmatpush1.xpose.msra.mxu0 0.0
        %746 = vmatprep.subr.mxu0 0.0
        %747 = vmatpush1.xpose.msra.mxu0 0.0
        %748 = vmatprep.subr.mxu0 0.0
        %749 = vmatpush1.xpose.msra.mxu0 0.0
        %750 = vmatprep.subr.mxu0 0.0
        %751 = vmatpush1.xpose.msra.mxu0 0.0
        %752 = vmatprep.subr.mxu0 0.0
        %753 = vmatpush1.xpose.msra.mxu0 0.0
        %754 = vmatprep.subr.mxu0 0.0
        %755 = vmatpush1.xpose.msra.mxu0 0.0
        %756 = vmatprep.subr.mxu0 0.0
        %757 = vmatpush1.xpose.msra.mxu0 0.0
        %758 = vmatprep.subr.mxu0 0.0
        %759 = vmatpush1.xpose.msra.mxu0 0.0
        %760 = vmatprep.subr.mxu0 0.0
        %761 = vmatpush1.xpose.msra.mxu0 0.0
        %762 = vmatprep.subr.mxu0 0.0
        %763 = vmatpush1.xpose.msra.mxu0 0.0
        %764 = vmatprep.subr.mxu0 0.0
        %765 = vmatpush1.xpose.msra.mxu0 0.0
        %766 = vmatprep.subr.mxu0 0.0
        %767 = vmatpush1.xpose.msra.mxu0 0.0
        %768 = vmatprep.subr.mxu0 0.0
        %769 = vmatpush1.xpose.msra.mxu0 0.0
        %770 = vmatprep.subr.mxu0 0.0
        %771 = vmatpush1.xpose.msra.mxu0 0.0
        %772 = vmatprep.subr.mxu0 0.0
        %773 = vmatpush1.xpose.msra.mxu0 0.0
        %774 = vmatprep.subr.mxu0 0.0
        %775 = vmatpush1.xpose.msra.mxu0 0.0
        %776 = vmatprep.subr.mxu0 0.0
        %777 = vmatpush1.xpose.msra.mxu0 0.0
        %778 = vmatprep.subr.mxu0 0.0
        %779 = vmatpush1.xpose.msra.mxu0 0.0
        %780 = vmatprep.subr.mxu0 0.0
        %781 = vmatpush1.xpose.msra.mxu0 0.0
        %782 = vmatprep.subr.mxu0 0.0
        %783 = vmatpush1.xpose.msra.mxu0 0.0
        %784 = vmatprep.subr.mxu0 0.0
        %785 = vmatpush1.xpose.msra.mxu0 0.0
        %786 = vmatprep.subr.mxu0 0.0
        %787 = vmatpush1.xpose.msra.mxu0 0.0
        %788 = vmatprep.subr.mxu0 0.0
        %789 = vmatpush1.xpose.msra.mxu0 0.0
        %790 = vmatprep.subr.mxu0 0.0
        %791 = vmatpush1.xpose.msra.mxu0 0.0
        %792 = vmatprep.subr.mxu0 0.0
        %793 = vmatpush1.xpose.msra.mxu0 0.0
        %794 = vmatprep.subr.mxu0 0.0
        %795 = vmatpush1.xpose.msra.mxu0 0.0
        %796 = vmatprep.subr.mxu0 0.0
        %797 = vmatpush1.xpose.msra.mxu0 0.0
        %798 = vmatprep.mubr.f32.mxu0 0.0
        %799 = vmatmul.mubr.f32.gmra.mrb[0].mxu0 %v728
        %v800 = vpop.f32.mrb[0].mxu0
        %v801 = vadd.f32 0.0, %v800
        %v802 = vpop.f32.mrb[0].mxu0
        %803 = vdwg.mxu0
        %v804 = vsel %vm651, %v594, 0
        %v806 = vsel %vm651, %v610, 0
        %v808 = vsel %vm651, %v612, 0
        %810 = vmatprep.subr.mxu0 0.0
        %811 = vmatpush1.xpose.msra.mxu0 %v806
        %812 = vmatprep.subr.mxu0 0.0
        %813 = vmatpush1.xpose.msra.mxu0 %v808
        %814 = vmatprep.subr.mxu0 0.0
        %815 = vmatpush1.xpose.msra.mxu0 0.0
        %816 = vmatprep.subr.mxu0 0.0
        %817 = vmatpush1.xpose.msra.mxu0 0.0
        %818 = vmatprep.subr.mxu0 0.0
        %819 = vmatpush1.xpose.msra.mxu0 0.0
        %820 = vmatprep.subr.mxu0 0.0
        %821 = vmatpush1.xpose.msra.mxu0 0.0
        %822 = vmatprep.subr.mxu0 0.0
        %823 = vmatpush1.xpose.msra.mxu0 0.0
        %824 = vmatprep.subr.mxu0 0.0
        %825 = vmatpush1.xpose.msra.mxu0 0.0
        %826 = vmatprep.subr.mxu0 0.0
        %827 = vmatpush1.xpose.msra.mxu0 0.0
        %828 = vmatprep.subr.mxu0 0.0
        %829 = vmatpush1.xpose.msra.mxu0 0.0
        %830 = vmatprep.subr.mxu0 0.0
        %831 = vmatpush1.xpose.msra.mxu0 0.0
        %832 = vmatprep.subr.mxu0 0.0
        %833 = vmatpush1.xpose.msra.mxu0 0.0
        %834 = vmatprep.subr.mxu0 0.0
        %835 = vmatpush1.xpose.msra.mxu0 0.0
        %836 = vmatprep.subr.mxu0 0.0
        %837 = vmatpush1.xpose.msra.mxu0 0.0
        %838 = vmatprep.subr.mxu0 0.0
        %839 = vmatpush1.xpose.msra.mxu0 0.0
        %840 = vmatprep.subr.mxu0 0.0
        %841 = vmatpush1.xpose.msra.mxu0 0.0
        %842 = vmatprep.subr.mxu0 0.0
        %843 = vmatpush1.xpose.msra.mxu0 0.0
        %844 = vmatprep.subr.mxu0 0.0
        %845 = vmatpush1.xpose.msra.mxu0 0.0
        %846 = vmatprep.subr.mxu0 0.0
        %847 = vmatpush1.xpose.msra.mxu0 0.0
        %848 = vmatprep.subr.mxu0 0.0
        %849 = vmatpush1.xpose.msra.mxu0 0.0
        %850 = vmatprep.subr.mxu0 0.0
        %851 = vmatpush1.xpose.msra.mxu0 0.0
        %852 = vmatprep.subr.mxu0 0.0
        %853 = vmatpush1.xpose.msra.mxu0 0.0
        %854 = vmatprep.subr.mxu0 0.0
        %855 = vmatpush1.xpose.msra.mxu0 0.0
        %856 = vmatprep.subr.mxu0 0.0
        %857 = vmatpush1.xpose.msra.mxu0 0.0
        %858 = vmatprep.subr.mxu0 0.0
        %859 = vmatpush1.xpose.msra.mxu0 0.0
        %860 = vmatprep.subr.mxu0 0.0
        %861 = vmatpush1.xpose.msra.mxu0 0.0
        %862 = vmatprep.subr.mxu0 0.0
        %863 = vmatpush1.xpose.msra.mxu0 0.0
        %864 = vmatprep.subr.mxu0 0.0
        %865 = vmatpush1.xpose.msra.mxu0 0.0
        %866 = vmatprep.subr.mxu0 0.0
        %867 = vmatpush1.xpose.msra.mxu0 0.0
        %868 = vmatprep.subr.mxu0 0.0
        %869 = vmatpush1.xpose.msra.mxu0 0.0
        %870 = vmatprep.subr.mxu0 0.0
        %871 = vmatpush1.xpose.msra.mxu0 0.0
        %872 = vmatprep.subr.mxu0 0.0
        %873 = vmatpush1.xpose.msra.mxu0 0.0
        %874 = vmatprep.mubr.f32.mxu0 0.0
        %875 = vmatmul.mubr.f32.gmra.mrb[0].mxu0 %v804
        %v876 = vpop.f32.mrb[0].mxu0
        %v877 = vadd.f32 0.0, %v876
        %v878 = vpop.f32.mrb[0].mxu0
        %879 = vdwg.mxu0
        %v880 = vsel %vm651, %v598, 0
        %v882 = vsel %vm651, %v614, 0
        %v884 = vsel %vm651, %v616, 0
        %886 = vmatprep.subr.mxu0 0.0
        %887 = vmatpush1.xpose.msra.mxu0 %v882
        %888 = vmatprep.subr.mxu0 0.0
        %889 = vmatpush1.xpose.msra.mxu0 %v884
        %890 = vmatprep.subr.mxu0 0.0
        %891 = vmatpush1.xpose.msra.mxu0 0.0
        %892 = vmatprep.subr.mxu0 0.0
        %893 = vmatpush1.xpose.msra.mxu0 0.0
        %894 = vmatprep.subr.mxu0 0.0
        %895 = vmatpush1.xpose.msra.mxu0 0.0
        %896 = vmatprep.subr.mxu0 0.0
        %897 = vmatpush1.xpose.msra.mxu0 0.0
        %898 = vmatprep.subr.mxu0 0.0
        %899 = vmatpush1.xpose.msra.mxu0 0.0
        %900 = vmatprep.subr.mxu0 0.0
        %901 = vmatpush1.xpose.msra.mxu0 0.0
        %902 = vmatprep.subr.mxu0 0.0
        %903 = vmatpush1.xpose.msra.mxu0 0.0
        %904 = vmatprep.subr.mxu0 0.0
        %905 = vmatpush1.xpose.msra.mxu0 0.0
        %906 = vmatprep.subr.mxu0 0.0
        %907 = vmatpush1.xpose.msra.mxu0 0.0
        %908 = vmatprep.subr.mxu0 0.0
        %909 = vmatpush1.xpose.msra.mxu0 0.0
        %910 = vmatprep.subr.mxu0 0.0
        %911 = vmatpush1.xpose.msra.mxu0 0.0
        %912 = vmatprep.subr.mxu0 0.0
        %913 = vmatpush1.xpose.msra.mxu0 0.0
        %914 = vmatprep.subr.mxu0 0.0
        %915 = vmatpush1.xpose.msra.mxu0 0.0
        %916 = vmatprep.subr.mxu0 0.0
        %917 = vmatpush1.xpose.msra.mxu0 0.0
        %918 = vmatprep.subr.mxu0 0.0
        %919 = vmatpush1.xpose.msra.mxu0 0.0
        %920 = vmatprep.subr.mxu0 0.0
        %921 = vmatpush1.xpose.msra.mxu0 0.0
        %922 = vmatprep.subr.mxu0 0.0
        %923 = vmatpush1.xpose.msra.mxu0 0.0
        %924 = vmatprep.subr.mxu0 0.0
        %925 = vmatpush1.xpose.msra.mxu0 0.0
        %926 = vmatprep.subr.mxu0 0.0
        %927 = vmatpush1.xpose.msra.mxu0 0.0
        %928 = vmatprep.subr.mxu0 0.0
        %929 = vmatpush1.xpose.msra.mxu0 0.0
        %930 = vmatprep.subr.mxu0 0.0
        %931 = vmatpush1.xpose.msra.mxu0 0.0
        %932 = vmatprep.subr.mxu0 0.0
        %933 = vmatpush1.xpose.msra.mxu0 0.0
        %934 = vmatprep.subr.mxu0 0.0
        %935 = vmatpush1.xpose.msra.mxu0 0.0
        %936 = vmatprep.subr.mxu0 0.0
        %937 = vmatpush1.xpose.msra.mxu0 0.0
        %938 = vmatprep.subr.mxu0 0.0
        %939 = vmatpush1.xpose.msra.mxu0 0.0
        %940 = vmatprep.subr.mxu0 0.0
        %941 = vmatpush1.xpose.msra.mxu0 0.0
        %942 = vmatprep.subr.mxu0 0.0
        %943 = vmatpush1.xpose.msra.mxu0 0.0
        %944 = vmatprep.subr.mxu0 0.0
        %945 = vmatpush1.xpose.msra.mxu0 0.0
        %946 = vmatprep.subr.mxu0 0.0
        %947 = vmatpush1.xpose.msra.mxu0 0.0
        %948 = vmatprep.subr.mxu0 0.0
        %949 = vmatpush1.xpose.msra.mxu0 0.0
        %950 = vmatprep.mubr.f32.mxu0 0.0
        %951 = vmatmul.mubr.f32.gmra.mrb[0].mxu0 %v880
        %v952 = vpop.f32.mrb[0].mxu0
        %v953 = vadd.f32 0.0, %v952
        %v954 = vpop.f32.mrb[0].mxu0
        %955 = vdwg.mxu0
        %v956 = vmul.f32 %v725, 0.35355338
        %v957 = vmul.f32 %v801, 0.35355338
        %v958 = vmul.f32 %v877, 0.35355338
        %v959 = vmul.f32 %v953, 0.35355338
        %vm960 = vcmask 130048
        %v961 = vsel %vm960, %v956, -inf
        %962 = vmax.xlane.f32.xlu0 %v961
        %v963 = vpop.xlane.xlu0 %962
        %v964 = vsel %vm960, %v957, -inf
        %965 = vmax.xlane.f32.xlu0 %v964
        %v966 = vpop.xlane.xlu0 %965
        %v967 = vsel %vm960, %v958, -inf
        %968 = vmax.xlane.f32.xlu0 %v967
        %v969 = vpop.xlane.xlu0 %968
        %v970 = vsel %vm960, %v959, -inf
        %971 = vmax.xlane.f32.xlu0 %v970
        %v972 = vpop.xlane.xlu0 %971
        %v973 = vsub.f32 %v956, %v963
        %v974 = vsub.f32 %v957, %v966
        %v975 = vsub.f32 %v958, %v969
        %v976 = vsub.f32 %v959, %v972
        %v977 = vmul.f32 %v973, 1.442695
        %v978 = vpow.pop %v977
        %v979 = vmul.f32 %v974, 1.442695
        %v980 = vpow.pop %v979
        %v981 = vmul.f32 %v975, 1.442695
        %v982 = vpow.pop %v981
        %v983 = vmul.f32 %v976, 1.442695
        %v984 = vpow.pop %v983
        %v985 = vsel %vm960, %v978, 0.0
        %986 = vadd.xlane.f32.xlu0 %v985
        %v987 = vpop.xlane.xlu0 %986
        %v988 = vsel %vm960, %v980, 0.0
        %989 = vadd.xlane.f32.xlu0 %v988
        %v990 = vpop.xlane.xlu0 %989
        %v991 = vsel %vm960, %v982, 0.0
        %992 = vadd.xlane.f32.xlu0 %v991
        %v993 = vpop.xlane.xlu0 %992
        %v994 = vsel %vm960, %v984, 0.0
        %995 = vadd.xlane.f32.xlu0 %v994
        %v996 = vpop.xlane.xlu0 %995
        %v997 = vrcp.pop %v987
        %v998 = vrcp.pop %v990
        %v999 = vrcp.pop %v993
        %v1000 = vrcp.pop %v996
        %v1001 = vmul.f32 %v978, %v997
        %v1002 = vmul.f32 %v980, %v998
        %v1003 = vmul.f32 %v982, %v999
        %v1004 = vmul.f32 %v984, %v1000
        %v1006 = vsel %vm960, %v1001, 0
        %1008 = vmatprep.subr.mxu0 0.0
        %1009 = vmatpush1.msra.mxu0 %v618
        %1010 = vmatprep.subr.mxu0 0.0
        %1011 = vmatpush1.msra.mxu0 %v620
        %1012 = vmatprep.subr.mxu0 0.0
        %1013 = vmatpush1.msra.mxu0 0.0
        %1014 = vmatprep.subr.mxu0 0.0
        %1015 = vmatpush1.msra.mxu0 0.0
        %1016 = vmatprep.subr.mxu0 0.0
        %1017 = vmatpush1.msra.mxu0 0.0
        %1018 = vmatprep.subr.mxu0 0.0
        %1019 = vmatpush1.msra.mxu0 0.0
        %1020 = vmatprep.subr.mxu0 0.0
        %1021 = vmatpush1.msra.mxu0 0.0
        %1022 = vmatprep.subr.mxu0 0.0
        %1023 = vmatpush1.msra.mxu0 0.0
        %1024 = vmatprep.subr.mxu0 0.0
        %1025 = vmatpush1.msra.mxu0 0.0
        %1026 = vmatprep.subr.mxu0 0.0
        %1027 = vmatpush1.msra.mxu0 0.0
        %1028 = vmatprep.subr.mxu0 0.0
        %1029 = vmatpush1.msra.mxu0 0.0
        %1030 = vmatprep.subr.mxu0 0.0
        %1031 = vmatpush1.msra.mxu0 0.0
        %1032 = vmatprep.subr.mxu0 0.0
        %1033 = vmatpush1.msra.mxu0 0.0
        %1034 = vmatprep.subr.mxu0 0.0
        %1035 = vmatpush1.msra.mxu0 0.0
        %1036 = vmatprep.subr.mxu0 0.0
        %1037 = vmatpush1.msra.mxu0 0.0
        %1038 = vmatprep.subr.mxu0 0.0
        %1039 = vmatpush1.msra.mxu0 0.0
        %1040 = vmatprep.subr.mxu0 0.0
        %1041 = vmatpush1.msra.mxu0 0.0
        %1042 = vmatprep.subr.mxu0 0.0
        %1043 = vmatpush1.msra.mxu0 0.0
        %1044 = vmatprep.subr.mxu0 0.0
        %1045 = vmatpush1.msra.mxu0 0.0
        %1046 = vmatprep.subr.mxu0 0.0
        %1047 = vmatpush1.msra.mxu0 0.0
        %1048 = vmatprep.subr.mxu0 0.0
        %1049 = vmatpush1.msra.mxu0 0.0
        %1050 = vmatprep.subr.mxu0 0.0
        %1051 = vmatpush1.msra.mxu0 0.0
        %1052 = vmatprep.subr.mxu0 0.0
        %1053 = vmatpush1.msra.mxu0 0.0
        %1054 = vmatprep.subr.mxu0 0.0
        %1055 = vmatpush1.msra.mxu0 0.0
        %1056 = vmatprep.subr.mxu0 0.0
        %1057 = vmatpush1.msra.mxu0 0.0
        %1058 = vmatprep.subr.mxu0 0.0
        %1059 = vmatpush1.msra.mxu0 0.0
        %1060 = vmatprep.subr.mxu0 0.0
        %1061 = vmatpush1.msra.mxu0 0.0
        %1062 = vmatprep.subr.mxu0 0.0
        %1063 = vmatpush1.msra.mxu0 0.0
        %1064 = vmatprep.subr.mxu0 0.0
        %1065 = vmatpush1.msra.mxu0 0.0
        %1066 = vmatprep.subr.mxu0 0.0
        %1067 = vmatpush1.msra.mxu0 0.0
        %1068 = vmatprep.subr.mxu0 0.0
        %1069 = vmatpush1.msra.mxu0 0.0
        %1070 = vmatprep.subr.mxu0 0.0
        %1071 = vmatpush1.msra.mxu0 0.0
        %1072 = vmatprep.mubr.f32.mxu0 0.0
        %1073 = vmatmul.mubr.f32.gmra.mrb[0].mxu0 %v1006
        %v1074 = vpop.f32.mrb[0].mxu0
        %v1075 = vadd.f32 0.0, %v1074
        %v1076 = vpop.f32.mrb[0].mxu0
        %1077 = vdwg.mxu0
        %v1079 = vsel %vm960, %v1002, 0
        %1081 = vmatprep.subr.mxu0 0.0
        %1082 = vmatpush1.msra.mxu0 %v624
        %1083 = vmatprep.subr.mxu0 0.0
        %1084 = vmatpush1.msra.mxu0 %v626
        %1085 = vmatprep.subr.mxu0 0.0
        %1086 = vmatpush1.msra.mxu0 0.0
        %1087 = vmatprep.subr.mxu0 0.0
        %1088 = vmatpush1.msra.mxu0 0.0
        %1089 = vmatprep.subr.mxu0 0.0
        %1090 = vmatpush1.msra.mxu0 0.0
        %1091 = vmatprep.subr.mxu0 0.0
        %1092 = vmatpush1.msra.mxu0 0.0
        %1093 = vmatprep.subr.mxu0 0.0
        %1094 = vmatpush1.msra.mxu0 0.0
        %1095 = vmatprep.subr.mxu0 0.0
        %1096 = vmatpush1.msra.mxu0 0.0
        %1097 = vmatprep.subr.mxu0 0.0
        %1098 = vmatpush1.msra.mxu0 0.0
        %1099 = vmatprep.subr.mxu0 0.0
        %1100 = vmatpush1.msra.mxu0 0.0
        %1101 = vmatprep.subr.mxu0 0.0
        %1102 = vmatpush1.msra.mxu0 0.0
        %1103 = vmatprep.subr.mxu0 0.0
        %1104 = vmatpush1.msra.mxu0 0.0
        %1105 = vmatprep.subr.mxu0 0.0
        %1106 = vmatpush1.msra.mxu0 0.0
        %1107 = vmatprep.subr.mxu0 0.0
        %1108 = vmatpush1.msra.mxu0 0.0
        %1109 = vmatprep.subr.mxu0 0.0
        %1110 = vmatpush1.msra.mxu0 0.0
        %1111 = vmatprep.subr.mxu0 0.0
        %1112 = vmatpush1.msra.mxu0 0.0
        %1113 = vmatprep.subr.mxu0 0.0
        %1114 = vmatpush1.msra.mxu0 0.0
        %1115 = vmatprep.subr.mxu0 0.0
        %1116 = vmatpush1.msra.mxu0 0.0
        %1117 = vmatprep.subr.mxu0 0.0
        %1118 = vmatpush1.msra.mxu0 0.0
        %1119 = vmatprep.subr.mxu0 0.0
        %1120 = vmatpush1.msra.mxu0 0.0
        %1121 = vmatprep.subr.mxu0 0.0
        %1122 = vmatpush1.msra.mxu0 0.0
        %1123 = vmatprep.subr.mxu0 0.0
        %1124 = vmatpush1.msra.mxu0 0.0
        %1125 = vmatprep.subr.mxu0 0.0
        %1126 = vmatpush1.msra.mxu0 0.0
        %1127 = vmatprep.subr.mxu0 0.0
        %1128 = vmatpush1.msra.mxu0 0.0
        %1129 = vmatprep.subr.mxu0 0.0
        %1130 = vmatpush1.msra.mxu0 0.0
        %1131 = vmatprep.subr.mxu0 0.0
        %1132 = vmatpush1.msra.mxu0 0.0
        %1133 = vmatprep.subr.mxu0 0.0
        %1134 = vmatpush1.msra.mxu0 0.0
        %1135 = vmatprep.subr.mxu0 0.0
        %1136 = vmatpush1.msra.mxu0 0.0
        %1137 = vmatprep.subr.mxu0 0.0
        %1138 = vmatpush1.msra.mxu0 0.0
        %1139 = vmatprep.subr.mxu0 0.0
        %1140 = vmatpush1.msra.mxu0 0.0
        %1141 = vmatprep.subr.mxu0 0.0
        %1142 = vmatpush1.msra.mxu0 0.0
        %1143 = vmatprep.subr.mxu0 0.0
        %1144 = vmatpush1.msra.mxu0 0.0
        %1145 = vmatprep.mubr.f32.mxu0 0.0
        %1146 = vmatmul.mubr.f32.gmra.mrb[0].mxu0 %v1079
        %v1147 = vpop.f32.mrb[0].mxu0
        %v1148 = vadd.f32 0.0, %v1147
        %v1149 = vpop.f32.mrb[0].mxu0
        %1150 = vdwg.mxu0
        %v1152 = vsel %vm960, %v1003, 0
        %1154 = vmatprep.subr.mxu0 0.0
        %1155 = vmatpush1.msra.mxu0 %v630
        %1156 = vmatprep.subr.mxu0 0.0
        %1157 = vmatpush1.msra.mxu0 %v632
        %1158 = vmatprep.subr.mxu0 0.0
        %1159 = vmatpush1.msra.mxu0 0.0
        %1160 = vmatprep.subr.mxu0 0.0
        %1161 = vmatpush1.msra.mxu0 0.0
        %1162 = vmatprep.subr.mxu0 0.0
        %1163 = vmatpush1.msra.mxu0 0.0
        %1164 = vmatprep.subr.mxu0 0.0
        %1165 = vmatpush1.msra.mxu0 0.0
        %1166 = vmatprep.subr.mxu0 0.0
        %1167 = vmatpush1.msra.mxu0 0.0
        %1168 = vmatprep.subr.mxu0 0.0
        %1169 = vmatpush1.msra.mxu0 0.0
        %1170 = vmatprep.subr.mxu0 0.0
        %1171 = vmatpush1.msra.mxu0 0.0
        %1172 = vmatprep.subr.mxu0 0.0
        %1173 = vmatpush1.msra.mxu0 0.0
        %1174 = vmatprep.subr.mxu0 0.0
        %1175 = vmatpush1.msra.mxu0 0.0
        %1176 = vmatprep.subr.mxu0 0.0
        %1177 = vmatpush1.msra.mxu0 0.0
        %1178 = vmatprep.subr.mxu0 0.0
        %1179 = vmatpush1.msra.mxu0 0.0
        %1180 = vmatprep.subr.mxu0 0.0
        %1181 = vmatpush1.msra.mxu0 0.0
        %1182 = vmatprep.subr.mxu0 0.0
        %1183 = vmatpush1.msra.mxu0 0.0
        %1184 = vmatprep.subr.mxu0 0.0
        %1185 = vmatpush1.msra.mxu0 0.0
        %1186 = vmatprep.subr.mxu0 0.0
        %1187 = vmatpush1.msra.mxu0 0.0
        %1188 = vmatprep.subr.mxu0 0.0
        %1189 = vmatpush1.msra.mxu0 0.0
        %1190 = vmatprep.subr.mxu0 0.0
        %1191 = vmatpush1.msra.mxu0 0.0
        %1192 = vmatprep.subr.mxu0 0.0
        %1193 = vmatpush1.msra.mxu0 0.0
        %1194 = vmatprep.subr.mxu0 0.0
        %1195 = vmatpush1.msra.mxu0 0.0
        %1196 = vmatprep.subr.mxu0 0.0
        %1197 = vmatpush1.msra.mxu0 0.0
        %1198 = vmatprep.subr.mxu0 0.0
        %1199 = vmatpush1.msra.mxu0 0.0
        %1200 = vmatprep.subr.mxu0 0.0
        %1201 = vmatpush1.msra.mxu0 0.0
        %1202 = vmatprep.subr.mxu0 0.0
        %1203 = vmatpush1.msra.mxu0 0.0
        %1204 = vmatprep.subr.mxu0 0.0
        %1205 = vmatpush1.msra.mxu0 0.0
        %1206 = vmatprep.subr.mxu0 0.0
        %1207 = vmatpush1.msra.mxu0 0.0
        %1208 = vmatprep.subr.mxu0 0.0
        %1209 = vmatpush1.msra.mxu0 0.0
        %1210 = vmatprep.subr.mxu0 0.0
        %1211 = vmatpush1.msra.mxu0 0.0
        %1212 = vmatprep.subr.mxu0 0.0
        %1213 = vmatpush1.msra.mxu0 0.0
        %1214 = vmatprep.subr.mxu0 0.0
        %1215 = vmatpush1.msra.mxu0 0.0
        %1216 = vmatprep.subr.mxu0 0.0
        %1217 = vmatpush1.msra.mxu0 0.0
        %1218 = vmatprep.mubr.f32.mxu0 0.0
        %1219 = vmatmul.mubr.f32.gmra.mrb[0].mxu0 %v1152
        %v1220 = vpop.f32.mrb[0].mxu0
        %v1221 = vadd.f32 0.0, %v1220
        %v1222 = vpop.f32.mrb[0].mxu0
        %1223 = vdwg.mxu0
        %v1225 = vsel %vm960, %v1004, 0
        %1227 = vmatprep.subr.mxu0 0.0
        %1228 = vmatpush1.msra.mxu0 %v636
        %1229 = vmatprep.subr.mxu0 0.0
        %1230 = vmatpush1.msra.mxu0 %v638
        %1231 = vmatprep.subr.mxu0 0.0
        %1232 = vmatpush1.msra.mxu0 0.0
        %1233 = vmatprep.subr.mxu0 0.0
        %1234 = vmatpush1.msra.mxu0 0.0
        %1235 = vmatprep.subr.mxu0 0.0
        %1236 = vmatpush1.msra.mxu0 0.0
        %1237 = vmatprep.subr.mxu0 0.0
        %1238 = vmatpush1.msra.mxu0 0.0
        %1239 = vmatprep.subr.mxu0 0.0
        %1240 = vmatpush1.msra.mxu0 0.0
        %1241 = vmatprep.subr.mxu0 0.0
        %1242 = vmatpush1.msra.mxu0 0.0
        %1243 = vmatprep.subr.mxu0 0.0
        %1244 = vmatpush1.msra.mxu0 0.0
        %1245 = vmatprep.subr.mxu0 0.0
        %1246 = vmatpush1.msra.mxu0 0.0
        %1247 = vmatprep.subr.mxu0 0.0
        %1248 = vmatpush1.msra.mxu0 0.0
        %1249 = vmatprep.subr.mxu0 0.0
        %1250 = vmatpush1.msra.mxu0 0.0
        %1251 = vmatprep.subr.mxu0 0.0
        %1252 = vmatpush1.msra.mxu0 0.0
        %1253 = vmatprep.subr.mxu0 0.0
        %1254 = vmatpush1.msra.mxu0 0.0
        %1255 = vmatprep.subr.mxu0 0.0
        %1256 = vmatpush1.msra.mxu0 0.0
        %1257 = vmatprep.subr.mxu0 0.0
        %1258 = vmatpush1.msra.mxu0 0.0
        %1259 = vmatprep.subr.mxu0 0.0
        %1260 = vmatpush1.msra.mxu0 0.0
        %1261 = vmatprep.subr.mxu0 0.0
        %1262 = vmatpush1.msra.mxu0 0.0
        %1263 = vmatprep.subr.mxu0 0.0
        %1264 = vmatpush1.msra.mxu0 0.0
        %1265 = vmatprep.subr.mxu0 0.0
        %1266 = vmatpush1.msra.mxu0 0.0
        %1267 = vmatprep.subr.mxu0 0.0
        %1268 = vmatpush1.msra.mxu0 0.0
        %1269 = vmatprep.subr.mxu0 0.0
        %1270 = vmatpush1.msra.mxu0 0.0
        %1271 = vmatprep.subr.mxu0 0.0
        %1272 = vmatpush1.msra.mxu0 0.0
        %1273 = vmatprep.subr.mxu0 0.0
        %1274 = vmatpush1.msra.mxu0 0.0
        %1275 = vmatprep.subr.mxu0 0.0
        %1276 = vmatpush1.msra.mxu0 0.0
        %1277 = vmatprep.subr.mxu0 0.0
        %1278 = vmatpush1.msra.mxu0 0.0
        %1279 = vmatprep.subr.mxu0 0.0
        %1280 = vmatpush1.msra.mxu0 0.0
        %1281 = vmatprep.subr.mxu0 0.0
        %1282 = vmatpush1.msra.mxu0 0.0
        %1283 = vmatprep.subr.mxu0 0.0
        %1284 = vmatpush1.msra.mxu0 0.0
        %1285 = vmatprep.subr.mxu0 0.0
        %1286 = vmatpush1.msra.mxu0 0.0
        %1287 = vmatprep.subr.mxu0 0.0
        %1288 = vmatpush1.msra.mxu0 0.0
        %1289 = vmatprep.subr.mxu0 0.0
        %1290 = vmatpush1.msra.mxu0 0.0
        %1291 = vmatprep.mubr.f32.mxu0 0.0
        %1292 = vmatmul.mubr.f32.gmra.mrb[0].mxu0 %v1225
        %v1293 = vpop.f32.mrb[0].mxu0
        %v1294 = vadd.f32 0.0, %v1293
        %v1295 = vpop.f32.mrb[0].mxu0
        %1296 = vdwg.mxu0
        %v1298 = vsel %vm651, %v1075, 0
        %1300 = vmatprep.subr.mxu0 0.0
        %1301 = vmatpush1.msra.mxu0 %v641
        %1302 = vmatprep.subr.mxu0 0.0
        %1303 = vmatpush1.msra.mxu0 0.0
        %1304 = vmatprep.subr.mxu0 0.0
        %1305 = vmatpush1.msra.mxu0 0.0
        %1306 = vmatprep.subr.mxu0 0.0
        %1307 = vmatpush1.msra.mxu0 0.0
        %1308 = vmatprep.subr.mxu0 0.0
        %1309 = vmatpush1.msra.mxu0 0.0
        %1310 = vmatprep.subr.mxu0 0.0
        %1311 = vmatpush1.msra.mxu0 0.0
        %1312 = vmatprep.subr.mxu0 0.0
        %1313 = vmatpush1.msra.mxu0 0.0
        %1314 = vmatprep.subr.mxu0 0.0
        %1315 = vmatpush1.msra.mxu0 0.0
        %1316 = vmatprep.subr.mxu0 0.0
        %1317 = vmatpush1.msra.mxu0 0.0
        %1318 = vmatprep.subr.mxu0 0.0
        %1319 = vmatpush1.msra.mxu0 0.0
        %1320 = vmatprep.subr.mxu0 0.0
        %1321 = vmatpush1.msra.mxu0 0.0
        %1322 = vmatprep.subr.mxu0 0.0
        %1323 = vmatpush1.msra.mxu0 0.0
        %1324 = vmatprep.subr.mxu0 0.0
        %1325 = vmatpush1.msra.mxu0 0.0
        %1326 = vmatprep.subr.mxu0 0.0
        %1327 = vmatpush1.msra.mxu0 0.0
        %1328 = vmatprep.subr.mxu0 0.0
        %1329 = vmatpush1.msra.mxu0 0.0
        %1330 = vmatprep.subr.mxu0 0.0
        %1331 = vmatpush1.msra.mxu0 0.0
        %1332 = vmatprep.subr.mxu0 0.0
        %1333 = vmatpush1.msra.mxu0 0.0
        %1334 = vmatprep.subr.mxu0 0.0
        %1335 = vmatpush1.msra.mxu0 0.0
        %1336 = vmatprep.subr.mxu0 0.0
        %1337 = vmatpush1.msra.mxu0 0.0
        %1338 = vmatprep.subr.mxu0 0.0
        %1339 = vmatpush1.msra.mxu0 0.0
        %1340 = vmatprep.subr.mxu0 0.0
        %1341 = vmatpush1.msra.mxu0 0.0
        %1342 = vmatprep.subr.mxu0 0.0
        %1343 = vmatpush1.msra.mxu0 0.0
        %1344 = vmatprep.subr.mxu0 0.0
        %1345 = vmatpush1.msra.mxu0 0.0
        %1346 = vmatprep.subr.mxu0 0.0
        %1347 = vmatpush1.msra.mxu0 0.0
        %1348 = vmatprep.subr.mxu0 0.0
        %1349 = vmatpush1.msra.mxu0 0.0
        %1350 = vmatprep.subr.mxu0 0.0
        %1351 = vmatpush1.msra.mxu0 0.0
        %1352 = vmatprep.subr.mxu0 0.0
        %1353 = vmatpush1.msra.mxu0 0.0
        %1354 = vmatprep.subr.mxu0 0.0
        %1355 = vmatpush1.msra.mxu0 0.0
        %1356 = vmatprep.subr.mxu0 0.0
        %1357 = vmatpush1.msra.mxu0 0.0
        %1358 = vmatprep.subr.mxu0 0.0
        %1359 = vmatpush1.msra.mxu0 0.0
        %1360 = vmatprep.subr.mxu0 0.0
        %1361 = vmatpush1.msra.mxu0 0.0
        %1362 = vmatprep.subr.mxu0 0.0
        %1363 = vmatpush1.msra.mxu0 0.0
        %1364 = vmatprep.mubr.f32.mxu0 0.0
        %1365 = vmatmul.mubr.f32.gmra.mrb[0].mxu0 %v1298
        %v1366 = vpop.f32.mrb[0].mxu0
        %v1367 = vadd.f32 0.0, %v1366
        %v1368 = vpop.f32.mrb[0].mxu0
        %1369 = vdwg.mxu0
        %v1371 = vsel %vm651, %v1148, 0
        %1373 = vmatprep.subr.mxu0 0.0
        %1374 = vmatpush1.msra.mxu0 %v642
        %1375 = vmatprep.subr.mxu0 0.0
        %1376 = vmatpush1.msra.mxu0 0.0
        %1377 = vmatprep.subr.mxu0 0.0
        %1378 = vmatpush1.msra.mxu0 0.0
        %1379 = vmatprep.subr.mxu0 0.0
        %1380 = vmatpush1.msra.mxu0 0.0
        %1381 = vmatprep.subr.mxu0 0.0
        %1382 = vmatpush1.msra.mxu0 0.0
        %1383 = vmatprep.subr.mxu0 0.0
        %1384 = vmatpush1.msra.mxu0 0.0
        %1385 = vmatprep.subr.mxu0 0.0
        %1386 = vmatpush1.msra.mxu0 0.0
        %1387 = vmatprep.subr.mxu0 0.0
        %1388 = vmatpush1.msra.mxu0 0.0
        %1389 = vmatprep.subr.mxu0 0.0
        %1390 = vmatpush1.msra.mxu0 0.0
        %1391 = vmatprep.subr.mxu0 0.0
        %1392 = vmatpush1.msra.mxu0 0.0
        %1393 = vmatprep.subr.mxu0 0.0
        %1394 = vmatpush1.msra.mxu0 0.0
        %1395 = vmatprep.subr.mxu0 0.0
        %1396 = vmatpush1.msra.mxu0 0.0
        %1397 = vmatprep.subr.mxu0 0.0
        %1398 = vmatpush1.msra.mxu0 0.0
        %1399 = vmatprep.subr.mxu0 0.0
        %1400 = vmatpush1.msra.mxu0 0.0
        %1401 = vmatprep.subr.mxu0 0.0
        %1402 = vmatpush1.msra.mxu0 0.0
        %1403 = vmatprep.subr.mxu0 0.0
        %1404 = vmatpush1.msra.mxu0 0.0
        %1405 = vmatprep.subr.mxu0 0.0
        %1406 = vmatpush1.msra.mxu0 0.0
        %1407 = vmatprep.subr.mxu0 0.0
        %1408 = vmatpush1.msra.mxu0 0.0
        %1409 = vmatprep.subr.mxu0 0.0
        %1410 = vmatpush1.msra.mxu0 0.0
        %1411 = vmatprep.subr.mxu0 0.0
        %1412 = vmatpush1.msra.mxu0 0.0
        %1413 = vmatprep.subr.mxu0 0.0
        %1414 = vmatpush1.msra.mxu0 0.0
        %1415 = vmatprep.subr.mxu0 0.0
        %1416 = vmatpush1.msra.mxu0 0.0
        %1417 = vmatprep.subr.mxu0 0.0
        %1418 = vmatpush1.msra.mxu0 0.0
        %1419 = vmatprep.subr.mxu0 0.0
        %1420 = vmatpush1.msra.mxu0 0.0
        %1421 = vmatprep.subr.mxu0 0.0
        %1422 = vmatpush1.msra.mxu0 0.0
        %1423 = vmatprep.subr.mxu0 0.0
        %1424 = vmatpush1.msra.mxu0 0.0
        %1425 = vmatprep.subr.mxu0 0.0
        %1426 = vmatpush1.msra.mxu0 0.0
        %1427 = vmatprep.subr.mxu0 0.0
        %1428 = vmatpush1.msra.mxu0 0.0
        %1429 = vmatprep.subr.mxu0 0.0
        %1430 = vmatpush1.msra.mxu0 0.0
        %1431 = vmatprep.subr.mxu0 0.0
        %1432 = vmatpush1.msra.mxu0 0.0
        %1433 = vmatprep.subr.mxu0 0.0
        %1434 = vmatpush1.msra.mxu0 0.0
        %1435 = vmatprep.subr.mxu0 0.0
        %1436 = vmatpush1.msra.mxu0 0.0
        %1437 = vmatprep.mubr.f32.mxu0 0.0
        %1438 = vmatmul.mubr.f32.gmra.mrb[0].mxu0 %v1371
        %v1439 = vpop.f32.mrb[0].mxu0
        %v1440 = vadd.f32 0.0, %v1439
        %v1441 = vpop.f32.mrb[0].mxu0
        %1442 = vdwg.mxu0
        %v1444 = vsel %vm651, %v1221, 0
        %1446 = vmatprep.subr.mxu0 0.0
        %1447 = vmatpush1.msra.mxu0 %v643
        %1448 = vmatprep.subr.mxu0 0.0
        %1449 = vmatpush1.msra.mxu0 0.0
        %1450 = vmatprep.subr.mxu0 0.0
        %1451 = vmatpush1.msra.mxu0 0.0
        %1452 = vmatprep.subr.mxu0 0.0
        %1453 = vmatpush1.msra.mxu0 0.0
        %1454 = vmatprep.subr.mxu0 0.0
        %1455 = vmatpush1.msra.mxu0 0.0
        %1456 = vmatprep.subr.mxu0 0.0
        %1457 = vmatpush1.msra.mxu0 0.0
        %1458 = vmatprep.subr.mxu0 0.0
        %1459 = vmatpush1.msra.mxu0 0.0
        %1460 = vmatprep.subr.mxu0 0.0
        %1461 = vmatpush1.msra.mxu0 0.0
        %1462 = vmatprep.subr.mxu0 0.0
        %1463 = vmatpush1.msra.mxu0 0.0
        %1464 = vmatprep.subr.mxu0 0.0
        %1465 = vmatpush1.msra.mxu0 0.0
        %1466 = vmatprep.subr.mxu0 0.0
        %1467 = vmatpush1.msra.mxu0 0.0
        %1468 = vmatprep.subr.mxu0 0.0
        %1469 = vmatpush1.msra.mxu0 0.0
        %1470 = vmatprep.subr.mxu0 0.0
        %1471 = vmatpush1.msra.mxu0 0.0
        %1472 = vmatprep.subr.mxu0 0.0
        %1473 = vmatpush1.msra.mxu0 0.0
        %1474 = vmatprep.subr.mxu0 0.0
        %1475 = vmatpush1.msra.mxu0 0.0
        %1476 = vmatprep.subr.mxu0 0.0
        %1477 = vmatpush1.msra.mxu0 0.0
        %1478 = vmatprep.subr.mxu0 0.0
        %1479 = vmatpush1.msra.mxu0 0.0
        %1480 = vmatprep.subr.mxu0 0.0
        %1481 = vmatpush1.msra.mxu0 0.0
        %1482 = vmatprep.subr.mxu0 0.0
        %1483 = vmatpush1.msra.mxu0 0.0
        %1484 = vmatprep.subr.mxu0 0.0
        %1485 = vmatpush1.msra.mxu0 0.0
        %1486 = vmatprep.subr.mxu0 0.0
        %1487 = vmatpush1.msra.mxu0 0.0
        %1488 = vmatprep.subr.mxu0 0.0
        %1489 = vmatpush1.msra.mxu0 0.0
        %1490 = vmatprep.subr.mxu0 0.0
        %1491 = vmatpush1.msra.mxu0 0.0
        %1492 = vmatprep.subr.mxu0 0.0
        %1493 = vmatpush1.msra.mxu0 0.0
        %1494 = vmatprep.subr.mxu0 0.0
        %1495 = vmatpush1.msra.mxu0 0.0
        %1496 = vmatprep.subr.mxu0 0.0
        %1497 = vmatpush1.msra.mxu0 0.0
        %1498 = vmatprep.subr.mxu0 0.0
        %1499 = vmatpush1.msra.mxu0 0.0
        %1500 = vmatprep.subr.mxu0 0.0
        %1501 = vmatpush1.msra.mxu0 0.0
        %1502 = vmatprep.subr.mxu0 0.0
        %1503 = vmatpush1.msra.mxu0 0.0
        %1504 = vmatprep.subr.mxu0 0.0
        %1505 = vmatpush1.msra.mxu0 0.0
        %1506 = vmatprep.subr.mxu0 0.0
        %1507 = vmatpush1.msra.mxu0 0.0
        %1508 = vmatprep.subr.mxu0 0.0
        %1509 = vmatpush1.msra.mxu0 0.0
        %1510 = vmatprep.mubr.f32.mxu0 0.0
        %1511 = vmatmul.mubr.f32.gmra.mrb[0].mxu0 %v1444
        %v1512 = vpop.f32.mrb[0].mxu0
        %v1513 = vadd.f32 0.0, %v1512
        %v1514 = vpop.f32.mrb[0].mxu0
        %1515 = vdwg.mxu0
        %v1517 = vsel %vm651, %v1294, 0
        %1519 = vmatprep.subr.mxu0 0.0
        %1520 = vmatpush1.msra.mxu0 %v644
        %1521 = vmatprep.subr.mxu0 0.0
        %1522 = vmatpush1.msra.mxu0 0.0
        %1523 = vmatprep.subr.mxu0 0.0
        %1524 = vmatpush1.msra.mxu0 0.0
        %1525 = vmatprep.subr.mxu0 0.0
        %1526 = vmatpush1.msra.mxu0 0.0
        %1527 = vmatprep.subr.mxu0 0.0
        %1528 = vmatpush1.msra.mxu0 0.0
        %1529 = vmatprep.subr.mxu0 0.0
        %1530 = vmatpush1.msra.mxu0 0.0
        %1531 = vmatprep.subr.mxu0 0.0
        %1532 = vmatpush1.msra.mxu0 0.0
        %1533 = vmatprep.subr.mxu0 0.0
        %1534 = vmatpush1.msra.mxu0 0.0
        %1535 = vmatprep.subr.mxu0 0.0
        %1536 = vmatpush1.msra.mxu0 0.0
        %1537 = vmatprep.subr.mxu0 0.0
        %1538 = vmatpush1.msra.mxu0 0.0
        %1539 = vmatprep.subr.mxu0 0.0
        %1540 = vmatpush1.msra.mxu0 0.0
        %1541 = vmatprep.subr.mxu0 0.0
        %1542 = vmatpush1.msra.mxu0 0.0
        %1543 = vmatprep.subr.mxu0 0.0
        %1544 = vmatpush1.msra.mxu0 0.0
        %1545 = vmatprep.subr.mxu0 0.0
        %1546 = vmatpush1.msra.mxu0 0.0
        %1547 = vmatprep.subr.mxu0 0.0
        %1548 = vmatpush1.msra.mxu0 0.0
        %1549 = vmatprep.subr.mxu0 0.0
        %1550 = vmatpush1.msra.mxu0 0.0
        %1551 = vmatprep.subr.mxu0 0.0
        %1552 = vmatpush1.msra.mxu0 0.0
        %1553 = vmatprep.subr.mxu0 0.0
        %1554 = vmatpush1.msra.mxu0 0.0
        %1555 = vmatprep.subr.mxu0 0.0
        %1556 = vmatpush1.msra.mxu0 0.0
        %1557 = vmatprep.subr.mxu0 0.0
        %1558 = vmatpush1.msra.mxu0 0.0
        %1559 = vmatprep.subr.mxu0 0.0
        %1560 = vmatpush1.msra.mxu0 0.0
        %1561 = vmatprep.subr.mxu0 0.0
        %1562 = vmatpush1.msra.mxu0 0.0
        %1563 = vmatprep.subr.mxu0 0.0
        %1564 = vmatpush1.msra.mxu0 0.0
        %1565 = vmatprep.subr.mxu0 0.0
        %1566 = vmatpush1.msra.mxu0 0.0
        %1567 = vmatprep.subr.mxu0 0.0
        %1568 = vmatpush1.msra.mxu0 0.0
        %1569 = vmatprep.subr.mxu0 0.0
        %1570 = vmatpush1.msra.mxu0 0.0
        %1571 = vmatprep.subr.mxu0 0.0
        %1572 = vmatpush1.msra.mxu0 0.0
        %1573 = vmatprep.subr.mxu0 0.0
        %1574 = vmatpush1.msra.mxu0 0.0
        %1575 = vmatprep.subr.mxu0 0.0
        %1576 = vmatpush1.msra.mxu0 0.0
        %1577 = vmatprep.subr.mxu0 0.0
        %1578 = vmatpush1.msra.mxu0 0.0
        %1579 = vmatprep.subr.mxu0 0.0
        %1580 = vmatpush1.msra.mxu0 0.0
        %1581 = vmatprep.subr.mxu0 0.0
        %1582 = vmatpush1.msra.mxu0 0.0
        %1583 = vmatprep.mubr.f32.mxu0 0.0
        %1584 = vmatmul.mubr.f32.gmra.mrb[0].mxu0 %v1517
        %v1585 = vpop.f32.mrb[0].mxu0
        %v1586 = vadd.f32 0.0, %v1585
        %v1587 = vpop.f32.mrb[0].mxu0
        %1588 = vdwg.mxu0
        %v1589 = vsel %vm505, %v1367, 0.0
        %v1590 = vsel %vm505, %v1440, 0.0
        %v1591 = vadd.f32 %v1589, %v1590
        %v1592 = vsel %vm505, %v1513, 0.0
        %v1593 = vadd.f32 %v1591, %v1592
        %v1594 = vsel %vm505, %v1586, 0.0
        %v1595 = vadd.f32 %v1593, %v1594
        %v1597 = vlaneseq
        %v1598 = vshrl.u32 %v1597, 7
        %v1599 = vsub.s32 0, %v1598
        %v1600 = vrot.slane %v645, %v1599
        %v1602 = vadd.f32 %v1595, %v1600
        %v1603 = vadd.f32 %v492, %v1602
        %v1604 = vsel %vm505, %v1603, 0.0
        %1605 = vadd.xlane.f32.xlu0 %v1604
        %v1606 = vpop.xlane.xlu0 %1605
        %v1607 = vrcp.pop 32.0
        %v1608 = vmul.f32 %v1606, %v1607
        %v1609 = vsub.f32 %v1603, %v1608
        %v1610 = vmul.f32 %v1609, %v1609
        %v1611 = vsel %vm505, %v1610, 0.0
        %1612 = vadd.xlane.f32.xlu0 %v1611
        %v1613 = vpop.xlane.xlu0 %1612
        %v1614 = vmul.f32 %v1613, %v1607
        %v1615 = vadd.f32 %v1614, 1e-05
        %v1616 = vrsqrt.pop %v1615
        %v1617 = vmul.f32 %v1609, %v1616
        %v1619 = vlaneseq
        %v1620 = vshrl.u32 %v1619, 7
        %v1621 = vsub.s32 0, %v1620
        %v1622 = vrot.slane %v646, %v1621
        %v1624 = vmul.f32 %v1617, %v1622
        %v1626 = vlaneseq
        %v1627 = vshrl.u32 %v1626, 7
        %v1628 = vsub.s32 0, %v1627
        %v1629 = vrot.slane %v647, %v1628
        %v1631 = vadd.f32 %v1624, %v1629
        %v1632 = vld [vmem:[#allocation7] sm:$0xff]
        %v1633 = vld [vmem:[#allocation7 + $0x8] sm:$0xff]
        %v1634 = vld [vmem:[#allocation7 + $0x10] sm:$0xff]
        %v1635 = vld [vmem:[#allocation7 + $0x18] sm:$0xff]
        %v1636 = vld [vmem:[#allocation8] sm:$0x1]
        %v1638 = vlaneseq
        %v1639 = vshrl.u32 %v1638, 7
        %v1640 = vsub.s32 0, %v1639
        %v1641 = vrot.slane %v1636, %v1640
        %v1644 = vsel %vm505, %v1631, 0
        %1646 = vmatprep.subr.mxu0 0.0
        %1647 = vmatpush1.msra.mxu0 %v1632
        %1648 = vmatprep.subr.mxu0 0.0
        %1649 = vmatpush1.msra.mxu0 %v1633
        %1650 = vmatprep.subr.mxu0 0.0
        %1651 = vmatpush1.msra.mxu0 %v1634
        %1652 = vmatprep.subr.mxu0 0.0
        %1653 = vmatpush1.msra.mxu0 %v1635
        %1654 = vmatprep.subr.mxu0 0.0
        %1655 = vmatpush1.msra.mxu0 0.0
        %1656 = vmatprep.subr.mxu0 0.0
        %1657 = vmatpush1.msra.mxu0 0.0
        %1658 = vmatprep.subr.mxu0 0.0
        %1659 = vmatpush1.msra.mxu0 0.0
        %1660 = vmatprep.subr.mxu0 0.0
        %1661 = vmatpush1.msra.mxu0 0.0
        %1662 = vmatprep.subr.mxu0 0.0
        %1663 = vmatpush1.msra.mxu0 0.0
        %1664 = vmatprep.subr.mxu0 0.0
        %1665 = vmatpush1.msra.mxu0 0.0
        %1666 = vmatprep.subr.mxu0 0.0
        %1667 = vmatpush1.msra.mxu0 0.0
        %1668 = vmatprep.subr.mxu0 0.0
        %1669 = vmatpush1.msra.mxu0 0.0
        %1670 = vmatprep.subr.mxu0 0.0
        %1671 = vmatpush1.msra.mxu0 0.0
        %1672 = vmatprep.subr.mxu0 0.0
        %1673 = vmatpush1.msra.mxu0 0.0
        %1674 = vmatprep.subr.mxu0 0.0
        %1675 = vmatpush1.msra.mxu0 0.0
        %1676 = vmatprep.subr.mxu0 0.0
        %1677 = vmatpush1.msra.mxu0 0.0
        %1678 = vmatprep.subr.mxu0 0.0
        %1679 = vmatpush1.msra.mxu0 0.0
        %1680 = vmatprep.subr.mxu0 0.0
        %1681 = vmatpush1.msra.mxu0 0.0
        %1682 = vmatprep.subr.mxu0 0.0
        %1683 = vmatpush1.msra.mxu0 0.0
        %1684 = vmatprep.subr.mxu0 0.0
        %1685 = vmatpush1.msra.mxu0 0.0
        %1686 = vmatprep.subr.mxu0 0.0
        %1687 = vmatpush1.msra.mxu0 0.0
        %1688 = vmatprep.subr.mxu0 0.0
        %1689 = vmatpush1.msra.mxu0 0.0
        %1690 = vmatprep.subr.mxu0 0.0
        %1691 = vmatpush1.msra.mxu0 0.0
        %1692 = vmatprep.subr.mxu0 0.0
        %1693 = vmatpush1.msra.mxu0 0.0
        %1694 = vmatprep.subr.mxu0 0.0
        %1695 = vmatpush1.msra.mxu0 0.0
        %1696 = vmatprep.subr.mxu0 0.0
        %1697 = vmatpush1.msra.mxu0 0.0
        %1698 = vmatprep.subr.mxu0 0.0
        %1699 = vmatpush1.msra.mxu0 0.0
        %1700 = vmatprep.subr.mxu0 0.0
        %1701 = vmatpush1.msra.mxu0 0.0
        %1702 = vmatprep.subr.mxu0 0.0
        %1703 = vmatpush1.msra.mxu0 0.0
        %1704 = vmatprep.subr.mxu0 0.0
        %1705 = vmatpush1.msra.mxu0 0.0
        %1706 = vmatprep.subr.mxu0 0.0
        %1707 = vmatpush1.msra.mxu0 0.0
        %1708 = vmatprep.subr.mxu0 0.0
        %1709 = vmatpush1.msra.mxu0 0.0
        %1710 = vmatprep.mubr.f32.mxu0 0.0
        %1711 = vmatmul.mubr.f32.gmra.mrb[0].mxu0 %v1644
        %v1712 = vpop.f32.mrb[0].mxu0
        %v1713 = vadd.f32 %v1641, %v1712
        %v1714 = vpop.f32.mrb[0].mxu0
        %1715 = vdwg.mxu0
        %v1716 = vmax.f32 %v1713, 0.0
        %v1717 = vld [vmem:[%s9] sm:$0xff]
        %v1718 = vld [vmem:[%s9 + $0x8] sm:$0xff]
        %v1719 = vld [vmem:[%s9 + $0x10] sm:$0xff]
        %v1720 = vld [vmem:[%s9 + $0x18] sm:$0xff]
        %1725 = vrot.lane.b32.xlu0 %v1632, 96
        %v1726 = vpop.permute.xlu0 %1725
        %1727 = vrot.lane.b32.xlu0 %v1633, 96
        %v1728 = vpop.permute.xlu0 %1727
        %1729 = vrot.lane.b32.xlu0 %v1634, 96
        %v1730 = vpop.permute.xlu0 %1729
        %1731 = vrot.lane.b32.xlu0 %v1635, 96
        %v1732 = vpop.permute.xlu0 %1731
        %1737 = vrot.lane.b32.xlu0 %v1641, 96
        %v1738 = vpop.permute.xlu0 %1737
        %1740 = vmatprep.subr.mxu0 0.0
        %1741 = vmatpush1.msra.mxu0 %v1726
        %1742 = vmatprep.subr.mxu0 0.0
        %1743 = vmatpush1.msra.mxu0 %v1728
        %1744 = vmatprep.subr.mxu0 0.0
        %1745 = vmatpush1.msra.mxu0 %v1730
        %1746 = vmatprep.subr.mxu0 0.0
        %1747 = vmatpush1.msra.mxu0 %v1732
        %1748 = vmatprep.subr.mxu0 0.0
        %1749 = vmatpush1.msra.mxu0 0.0
        %1750 = vmatprep.subr.mxu0 0.0
        %1751 = vmatpush1.msra.mxu0 0.0
        %1752 = vmatprep.subr.mxu0 0.0
        %1753 = vmatpush1.msra.mxu0 0.0
        %1754 = vmatprep.subr.mxu0 0.0
        %1755 = vmatpush1.msra.mxu0 0.0
        %1756 = vmatprep.subr.mxu0 0.0
        %1757 = vmatpush1.msra.mxu0 0.0
        %1758 = vmatprep.subr.mxu0 0.0
        %1759 = vmatpush1.msra.mxu0 0.0
        %1760 = vmatprep.subr.mxu0 0.0
        %1761 = vmatpush1.msra.mxu0 0.0
        %1762 = vmatprep.subr.mxu0 0.0
        %1763 = vmatpush1.msra.mxu0 0.0
        %1764 = vmatprep.subr.mxu0 0.0
        %1765 = vmatpush1.msra.mxu0 0.0
        %1766 = vmatprep.subr.mxu0 0.0
        %1767 = vmatpush1.msra.mxu0 0.0
        %1768 = vmatprep.subr.mxu0 0.0
        %1769 = vmatpush1.msra.mxu0 0.0
        %1770 = vmatprep.subr.mxu0 0.0
        %1771 = vmatpush1.msra.mxu0 0.0
        %1772 = vmatprep.subr.mxu0 0.0
        %1773 = vmatpush1.msra.mxu0 0.0
        %1774 = vmatprep.subr.mxu0 0.0
        %1775 = vmatpush1.msra.mxu0 0.0
        %1776 = vmatprep.subr.mxu0 0.0
        %1777 = vmatpush1.msra.mxu0 0.0
        %1778 = vmatprep.subr.mxu0 0.0
        %1779 = vmatpush1.msra.mxu0 0.0
        %1780 = vmatprep.subr.mxu0 0.0
        %1781 = vmatpush1.msra.mxu0 0.0
        %1782 = vmatprep.subr.mxu0 0.0
        %1783 = vmatpush1.msra.mxu0 0.0
        %1784 = vmatprep.subr.mxu0 0.0
        %1785 = vmatpush1.msra.mxu0 0.0
        %1786 = vmatprep.subr.mxu0 0.0
        %1787 = vmatpush1.msra.mxu0 0.0
        %1788 = vmatprep.subr.mxu0 0.0
        %1789 = vmatpush1.msra.mxu0 0.0
        %1790 = vmatprep.subr.mxu0 0.0
        %1791 = vmatpush1.msra.mxu0 0.0
        %1792 = vmatprep.subr.mxu0 0.0
        %1793 = vmatpush1.msra.mxu0 0.0
        %1794 = vmatprep.subr.mxu0 0.0
        %1795 = vmatpush1.msra.mxu0 0.0
        %1796 = vmatprep.subr.mxu0 0.0
        %1797 = vmatpush1.msra.mxu0 0.0
        %1798 = vmatprep.subr.mxu0 0.0
        %1799 = vmatpush1.msra.mxu0 0.0
        %1800 = vmatprep.subr.mxu0 0.0
        %1801 = vmatpush1.msra.mxu0 0.0
        %1802 = vmatprep.subr.mxu0 0.0
        %1803 = vmatpush1.msra.mxu0 0.0
        %1804 = vmatprep.mubr.f32.mxu0 0.0
        %1805 = vmatmul.mubr.f32.gmra.mrb[0].mxu0 %v1644
        %v1806 = vpop.f32.mrb[0].mxu0
        %v1807 = vadd.f32 %v1738, %v1806
        %v1808 = vpop.f32.mrb[0].mxu0
        %1809 = vdwg.mxu0
        %v1810 = vmax.f32 %v1807, 0.0
        %v1811 = vld [vmem:[%s9 + $0x20] sm:$0xff]
        %v1812 = vld [vmem:[%s9 + $0x28] sm:$0xff]
        %v1813 = vld [vmem:[%s9 + $0x30] sm:$0xff]
        %v1814 = vld [vmem:[%s9 + $0x38] sm:$0xff]
        %v1816 = vsel %vm505, %v1810, 0
        %1818 = vmatprep.subr.mxu0 0.0
        %1819 = vmatpush1.msra.mxu0 %v1811
        %1820 = vmatprep.subr.mxu0 0.0
        %1821 = vmatpush1.msra.mxu0 %v1812
        %1822 = vmatprep.subr.mxu0 0.0
        %1823 = vmatpush1.msra.mxu0 %v1813
        %1824 = vmatprep.subr.mxu0 0.0
        %1825 = vmatpush1.msra.mxu0 %v1814
        %1826 = vmatprep.subr.mxu0 0.0
        %1827 = vmatpush1.msra.mxu0 0.0
        %1828 = vmatprep.subr.mxu0 0.0
        %1829 = vmatpush1.msra.mxu0 0.0
        %1830 = vmatprep.subr.mxu0 0.0
        %1831 = vmatpush1.msra.mxu0 0.0
        %1832 = vmatprep.subr.mxu0 0.0
        %1833 = vmatpush1.msra.mxu0 0.0
        %1834 = vmatprep.subr.mxu0 0.0
        %1835 = vmatpush1.msra.mxu0 0.0
        %1836 = vmatprep.subr.mxu0 0.0
        %1837 = vmatpush1.msra.mxu0 0.0
        %1838 = vmatprep.subr.mxu0 0.0
        %1839 = vmatpush1.msra.mxu0 0.0
        %1840 = vmatprep.subr.mxu0 0.0
        %1841 = vmatpush1.msra.mxu0 0.0
        %1842 = vmatprep.subr.mxu0 0.0
        %1843 = vmatpush1.msra.mxu0 0.0
        %1844 = vmatprep.subr.mxu0 0.0
        %1845 = vmatpush1.msra.mxu0 0.0
        %1846 = vmatprep.subr.mxu0 0.0
        %1847 = vmatpush1.msra.mxu0 0.0
        %1848 = vmatprep.subr.mxu0 0.0
        %1849 = vmatpush1.msra.mxu0 0.0
        %1850 = vmatprep.subr.mxu0 0.0
        %1851 = vmatpush1.msra.mxu0 0.0
        %1852 = vmatprep.subr.mxu0 0.0
        %1853 = vmatpush1.msra.mxu0 0.0
        %1854 = vmatprep.subr.mxu0 0.0
        %1855 = vmatpush1.msra.mxu0 0.0
        %1856 = vmatprep.subr.mxu0 0.0
        %1857 = vmatpush1.msra.mxu0 0.0
        %1858 = vmatprep.subr.mxu0 0.0
        %1859 = vmatpush1.msra.mxu0 0.0
        %1860 = vmatprep.subr.mxu0 0.0
        %1861 = vmatpush1.msra.mxu0 0.0
        %1862 = vmatprep.subr.mxu0 0.0
        %1863 = vmatpush1.msra.mxu0 0.0
        %1864 = vmatprep.subr.mxu0 0.0
        %1865 = vmatpush1.msra.mxu0 0.0
        %1866 = vmatprep.subr.mxu0 0.0
        %1867 = vmatpush1.msra.mxu0 0.0
        %1868 = vmatprep.subr.mxu0 0.0
        %1869 = vmatpush1.msra.mxu0 0.0
        %1870 = vmatprep.subr.mxu0 0.0
        %1871 = vmatpush1.msra.mxu0 0.0
        %1872 = vmatprep.subr.mxu0 0.0
        %1873 = vmatpush1.msra.mxu0 0.0
        %1874 = vmatprep.subr.mxu0 0.0
        %1875 = vmatpush1.msra.mxu0 0.0
        %1876 = vmatprep.subr.mxu0 0.0
        %1877 = vmatpush1.msra.mxu0 0.0
        %1878 = vmatprep.subr.mxu0 0.0
        %1879 = vmatpush1.msra.mxu0 0.0
        %1880 = vmatprep.subr.mxu0 0.0
        %1881 = vmatpush1.msra.mxu0 0.0
        %1882 = vmatprep.mubr.f32.mxu0 0.0
        %1883 = vmatmul.mubr.f32.gmra.mrb[0].mxu0 %v1816
        %v1884 = vpop.f32.mrb[0].mxu0
        %v1885 = vadd.f32 0.0, %v1884
        %v1886 = vpop.f32.mrb[0].mxu0
        %1887 = vdwg.mxu0
        %v1889 = vsel %vm505, %v1716, 0
        %1891 = vmatprep.subr.mxu0 0.0
        %1892 = vmatpush1.msra.mxu0 %v1717
        %1893 = vmatprep.subr.mxu0 0.0
        %1894 = vmatpush1.msra.mxu0 %v1718
        %1895 = vmatprep.subr.mxu0 0.0
        %1896 = vmatpush1.msra.mxu0 %v1719
        %1897 = vmatprep.subr.mxu0 0.0
        %1898 = vmatpush1.msra.mxu0 %v1720
        %1899 = vmatprep.subr.mxu0 0.0
        %1900 = vmatpush1.msra.mxu0 0.0
        %1901 = vmatprep.subr.mxu0 0.0
        %1902 = vmatpush1.msra.mxu0 0.0
        %1903 = vmatprep.subr.mxu0 0.0
        %1904 = vmatpush1.msra.mxu0 0.0
        %1905 = vmatprep.subr.mxu0 0.0
        %1906 = vmatpush1.msra.mxu0 0.0
        %1907 = vmatprep.subr.mxu0 0.0
        %1908 = vmatpush1.msra.mxu0 0.0
        %1909 = vmatprep.subr.mxu0 0.0
        %1910 = vmatpush1.msra.mxu0 0.0
        %1911 = vmatprep.subr.mxu0 0.0
        %1912 = vmatpush1.msra.mxu0 0.0
        %1913 = vmatprep.subr.mxu0 0.0
        %1914 = vmatpush1.msra.mxu0 0.0
        %1915 = vmatprep.subr.mxu0 0.0
        %1916 = vmatpush1.msra.mxu0 0.0
        %1917 = vmatprep.subr.mxu0 0.0
        %1918 = vmatpush1.msra.mxu0 0.0
        %1919 = vmatprep.subr.mxu0 0.0
        %1920 = vmatpush1.msra.mxu0 0.0
        %1921 = vmatprep.subr.mxu0 0.0
        %1922 = vmatpush1.msra.mxu0 0.0
        %1923 = vmatprep.subr.mxu0 0.0
        %1924 = vmatpush1.msra.mxu0 0.0
        %1925 = vmatprep.subr.mxu0 0.0
        %1926 = vmatpush1.msra.mxu0 0.0
        %1927 = vmatprep.subr.mxu0 0.0
        %1928 = vmatpush1.msra.mxu0 0.0
        %1929 = vmatprep.subr.mxu0 0.0
        %1930 = vmatpush1.msra.mxu0 0.0
        %1931 = vmatprep.subr.mxu0 0.0
        %1932 = vmatpush1.msra.mxu0 0.0
        %1933 = vmatprep.subr.mxu0 0.0
        %1934 = vmatpush1.msra.mxu0 0.0
        %1935 = vmatprep.subr.mxu0 0.0
        %1936 = vmatpush1.msra.mxu0 0.0
        %1937 = vmatprep.subr.mxu0 0.0
        %1938 = vmatpush1.msra.mxu0 0.0
        %1939 = vmatprep.subr.mxu0 0.0
        %1940 = vmatpush1.msra.mxu0 0.0
        %1941 = vmatprep.subr.mxu0 0.0
        %1942 = vmatpush1.msra.mxu0 0.0
        %1943 = vmatprep.subr.mxu0 0.0
        %1944 = vmatpush1.msra.mxu0 0.0
        %1945 = vmatprep.subr.mxu0 0.0
        %1946 = vmatpush1.msra.mxu0 0.0
        %1947 = vmatprep.subr.mxu0 0.0
        %1948 = vmatpush1.msra.mxu0 0.0
        %1949 = vmatprep.subr.mxu0 0.0
        %1950 = vmatpush1.msra.mxu0 0.0
        %1951 = vmatprep.subr.mxu0 0.0
        %1952 = vmatpush1.msra.mxu0 0.0
        %1953 = vmatprep.subr.mxu0 0.0
        %1954 = vmatpush1.msra.mxu0 0.0
        %1955 = vmatprep.mubr.f32.mxu0 0.0
        %1956 = vmatmul.mubr.f32.gmra.mrb[0].mxu0 %v1889
        %v1957 = vpop.f32.mrb[0].mxu0
        %v1958 = vadd.f32 %v1885, %v1957
        %v1959 = vpop.f32.mrb[0].mxu0
        %1960 = vdwg.mxu0
        %v1962 = vlaneseq
        %v1963 = vshrl.u32 %v1962, 7
        %v1964 = vsub.s32 0, %v1963
        %v1965 = vrot.slane %v650, %v1964
        %v1967 = vadd.f32 %v1958, %v1965
        %v1968 = vadd.f32 %v1631, %v1967
        %v1969 = vsel %vm505, %v1968, 0.0
        %1970 = vadd.xlane.f32.xlu0 %v1969
        %v1971 = vpop.xlane.xlu0 %1970
        %v1972 = vmul.f32 %v1971, %v1607
        %v1973 = vsub.f32 %v1968, %v1972
        %v1974 = vmul.f32 %v1973, %v1973
        %v1975 = vsel %vm505, %v1974, 0.0
        %1976 = vadd.xlane.f32.xlu0 %v1975
        %v1977 = vpop.xlane.xlu0 %1976
        %v1978 = vmul.f32 %v1977, %v1607
        %v1979 = vadd.f32 %v1978, 1e-05
        %v1980 = vrsqrt.pop %v1979
        %v1981 = vmul.f32 %v1973, %v1980
        %v1983 = vlaneseq
        %v1984 = vshrl.u32 %v1983, 7
        %v1985 = vsub.s32 0, %v1984
        %v1986 = vrot.slane %v648, %v1985
        %v1988 = vmul.f32 %v1981, %v1986
        %v1990 = vlaneseq
        %v1991 = vshrl.u32 %v1990, 7
        %v1992 = vsub.s32 0, %v1991
        %v1993 = vrot.slane %v649, %v1992
        %v1995 = vadd.f32 %v1988, %v1993
        %1996 = vst.msk [vmem:[%s486] sm:$0xff] %vm505, %v1995
        %v1997 = vsel %vm651, %v584, 0
        %1999 = vmatprep.subr.mxu0 0.0
        %2000 = vmatpush1.xpose.msra.mxu0 %v654
        %2001 = vmatprep.subr.mxu0 0.0
        %2002 = vmatpush1.xpose.msra.mxu0 %v656
        %2003 = vmatprep.subr.mxu0 0.0
        %2004 = vmatpush1.xpose.msra.mxu0 0.0
        %2005 = vmatprep.subr.mxu0 0.0
        %2006 = vmatpush1.xpose.msra.mxu0 0.0
        %2007 = vmatprep.subr.mxu0 0.0
        %2008 = vmatpush1.xpose.msra.mxu0 0.0
        %2009 = vmatprep.subr.mxu0 0.0
        %2010 = vmatpush1.xpose.msra.mxu0 0.0
        %2011 = vmatprep.subr.mxu0 0.0
        %2012 = vmatpush1.xpose.msra.mxu0 0.0
        %2013 = vmatprep.subr.mxu0 0.0
        %2014 = vmatpush1.xpose.msra.mxu0 0.0
        %2015 = vmatprep.subr.mxu0 0.0
        %2016 = vmatpush1.xpose.msra.mxu0 0.0
        %2017 = vmatprep.subr.mxu0 0.0
        %2018 = vmatpush1.xpose.msra.mxu0 0.0
        %2019 = vmatprep.subr.mxu0 0.0
        %2020 = vmatpush1.xpose.msra.mxu0 0.0
        %2021 = vmatprep.subr.mxu0 0.0
        %2022 = vmatpush1.xpose.msra.mxu0 0.0
        %2023 = vmatprep.subr.mxu0 0.0
        %2024 = vmatpush1.xpose.msra.mxu0 0.0
        %2025 = vmatprep.subr.mxu0 0.0
        %2026 = vmatpush1.xpose.msra.mxu0 0.0
        %2027 = vmatprep.subr.mxu0 0.0
        %2028 = vmatpush1.xpose.msra.mxu0 0.0
        %2029 = vmatprep.subr.mxu0 0.0
        %2030 = vmatpush1.xpose.msra.mxu0 0.0
        %2031 = vmatprep.subr.mxu0 0.0
        %2032 = vmatpush1.xpose.msra.mxu0 0.0
        %2033 = vmatprep.subr.mxu0 0.0
        %2034 = vmatpush1.xpose.msra.mxu0 0.0
        %2035 = vmatprep.subr.mxu0 0.0
        %2036 = vmatpush1.xpose.msra.mxu0 0.0
        %2037 = vmatprep.subr.mxu0 0.0
        %2038 = vmatpush1.xpose.msra.mxu0 0.0
        %2039 = vmatprep.subr.mxu0 0.0
        %2040 = vmatpush1.xpose.msra.mxu0 0.0
        %2041 = vmatprep.subr.mxu0 0.0
        %2042 = vmatpush1.xpose.msra.mxu0 0.0
        %2043 = vmatprep.subr.mxu0 0.0
        %2044 = vmatpush1.xpose.msra.mxu0 0.0
        %2045 = vmatprep.subr.mxu0 0.0
        %2046 = vmatpush1.xpose.msra.mxu0 0.0
        %2047 = vmatprep.subr.mxu0 0.0
        %2048 = vmatpush1.xpose.msra.mxu0 0.0
        %2049 = vmatprep.subr.mxu0 0.0
        %2050 = vmatpush1.xpose.msra.mxu0 0.0
        %2051 = vmatprep.subr.mxu0 0.0
        %2052 = vmatpush1.xpose.msra.mxu0 0.0
        %2053 = vmatprep.subr.mxu0 0.0
        %2054 = vmatpush1.xpose.msra.mxu0 0.0
        %2055 = vmatprep.subr.mxu0 0.0
        %2056 = vmatpush1.xpose.msra.mxu0 0.0
        %2057 = vmatprep.subr.mxu0 0.0
        %2058 = vmatpush1.xpose.msra.mxu0 0.0
        %2059 = vmatprep.subr.mxu0 0.0
        %2060 = vmatpush1.xpose.msra.mxu0 0.0
        %2061 = vmatprep.subr.mxu0 0.0
        %2062 = vmatpush1.xpose.msra.mxu0 0.0
        %2063 = vmatprep.mubr.f32.mxu0 0.0
        %2064 = vmatmul.mubr.f32.gmra.mrb[0].mxu0 %v1997
        %v2065 = vpop.f32.mrb[0].mxu0
        %v2066 = vadd.f32 0.0, %v2065
        %v2067 = vpop.f32.mrb[0].mxu0
        %2068 = vdwg.mxu0
        %v2069 = vsel %vm651, %v592, 0
        %2071 = vmatprep.subr.mxu0 0.0
        %2072 = vmatpush1.xpose.msra.mxu0 %v730
        %2073 = vmatprep.subr.mxu0 0.0
        %2074 = vmatpush1.xpose.msra.mxu0 %v732
        %2075 = vmatprep.subr.mxu0 0.0
        %2076 = vmatpush1.xpose.msra.mxu0 0.0
        %2077 = vmatprep.subr.mxu0 0.0
        %2078 = vmatpush1.xpose.msra.mxu0 0.0
        %2079 = vmatprep.subr.mxu0 0.0
        %2080 = vmatpush1.xpose.msra.mxu0 0.0
        %2081 = vmatprep.subr.mxu0 0.0
        %2082 = vmatpush1.xpose.msra.mxu0 0.0
        %2083 = vmatprep.subr.mxu0 0.0
        %2084 = vmatpush1.xpose.msra.mxu0 0.0
        %2085 = vmatprep.subr.mxu0 0.0
        %2086 = vmatpush1.xpose.msra.mxu0 0.0
        %2087 = vmatprep.subr.mxu0 0.0
        %2088 = vmatpush1.xpose.msra.mxu0 0.0
        %2089 = vmatprep.subr.mxu0 0.0
        %2090 = vmatpush1.xpose.msra.mxu0 0.0
        %2091 = vmatprep.subr.mxu0 0.0
        %2092 = vmatpush1.xpose.msra.mxu0 0.0
        %2093 = vmatprep.subr.mxu0 0.0
        %2094 = vmatpush1.xpose.msra.mxu0 0.0
        %2095 = vmatprep.subr.mxu0 0.0
        %2096 = vmatpush1.xpose.msra.mxu0 0.0
        %2097 = vmatprep.subr.mxu0 0.0
        %2098 = vmatpush1.xpose.msra.mxu0 0.0
        %2099 = vmatprep.subr.mxu0 0.0
        %2100 = vmatpush1.xpose.msra.mxu0 0.0
        %2101 = vmatprep.subr.mxu0 0.0
        %2102 = vmatpush1.xpose.msra.mxu0 0.0
        %2103 = vmatprep.subr.mxu0 0.0
        %2104 = vmatpush1.xpose.msra.mxu0 0.0
        %2105 = vmatprep.subr.mxu0 0.0
        %2106 = vmatpush1.xpose.msra.mxu0 0.0
        %2107 = vmatprep.subr.mxu0 0.0
        %2108 = vmatpush1.xpose.msra.mxu0 0.0
        %2109 = vmatprep.subr.mxu0 0.0
        %2110 = vmatpush1.xpose.msra.mxu0 0.0
        %2111 = vmatprep.subr.mxu0 0.0
        %2112 = vmatpush1.xpose.msra.mxu0 0.0
        %2113 = vmatprep.subr.mxu0 0.0
        %2114 = vmatpush1.xpose.msra.mxu0 0.0
        %2115 = vmatprep.subr.mxu0 0.0
        %2116 = vmatpush1.xpose.msra.mxu0 0.0
        %2117 = vmatprep.subr.mxu0 0.0
        %2118 = vmatpush1.xpose.msra.mxu0 0.0
        %2119 = vmatprep.subr.mxu0 0.0
        %2120 = vmatpush1.xpose.msra.mxu0 0.0
        %2121 = vmatprep.subr.mxu0 0.0
        %2122 = vmatpush1.xpose.msra.mxu0 0.0
        %2123 = vmatprep.subr.mxu0 0.0
        %2124 = vmatpush1.xpose.msra.mxu0 0.0
        %2125 = vmatprep.subr.mxu0 0.0
        %2126 = vmatpush1.xpose.msra.mxu0 0.0
        %2127 = vmatprep.subr.mxu0 0.0
        %2128 = vmatpush1.xpose.msra.mxu0 0.0
        %2129 = vmatprep.subr.mxu0 0.0
        %2130 = vmatpush1.xpose.msra.mxu0 0.0
        %2131 = vmatprep.subr.mxu0 0.0
        %2132 = vmatpush1.xpose.msra.mxu0 0.0
        %2133 = vmatprep.subr.mxu0 0.0
        %2134 = vmatpush1.xpose.msra.mxu0 0.0
        %2135 = vmatprep.mubr.f32.mxu0 0.0
        %2136 = vmatmul.mubr.f32.gmra.mrb[0].mxu0 %v2069
        %v2137 = vpop.f32.mrb[0].mxu0
        %v2138 = vadd.f32 0.0, %v2137
        %v2139 = vpop.f32.mrb[0].mxu0
        %2140 = vdwg.mxu0
        %v2141 = vsel %vm651, %v596, 0
        %2143 = vmatprep.subr.mxu0 0.0
        %2144 = vmatpush1.xpose.msra.mxu0 %v806
        %2145 = vmatprep.subr.mxu0 0.0
        %2146 = vmatpush1.xpose.msra.mxu0 %v808
        %2147 = vmatprep.subr.mxu0 0.0
        %2148 = vmatpush1.xpose.msra.mxu0 0.0
        %2149 = vmatprep.subr.mxu0 0.0
        %2150 = vmatpush1.xpose.msra.mxu0 0.0
        %2151 = vmatprep.subr.mxu0 0.0
        %2152 = vmatpush1.xpose.msra.mxu0 0.0
        %2153 = vmatprep.subr.mxu0 0.0
        %2154 = vmatpush1.xpose.msra.mxu0 0.0
        %2155 = vmatprep.subr.mxu0 0.0
        %2156 = vmatpush1.xpose.msra.mxu0 0.0
        %2157 = vmatprep.subr.mxu0 0.0
        %2158 = vmatpush1.xpose.msra.mxu0 0.0
        %2159 = vmatprep.subr.mxu0 0.0
        %2160 = vmatpush1.xpose.msra.mxu0 0.0
        %2161 = vmatprep.subr.mxu0 0.0
        %2162 = vmatpush1.xpose.msra.mxu0 0.0
        %2163 = vmatprep.subr.mxu0 0.0
        %2164 = vmatpush1.xpose.msra.mxu0 0.0
        %2165 = vmatprep.subr.mxu0 0.0
        %2166 = vmatpush1.xpose.msra.mxu0 0.0
        %2167 = vmatprep.subr.mxu0 0.0
        %2168 = vmatpush1.xpose.msra.mxu0 0.0
        %2169 = vmatprep.subr.mxu0 0.0
        %2170 = vmatpush1.xpose.msra.mxu0 0.0
        %2171 = vmatprep.subr.mxu0 0.0
        %2172 = vmatpush1.xpose.msra.mxu0 0.0
        %2173 = vmatprep.subr.mxu0 0.0
        %2174 = vmatpush1.xpose.msra.mxu0 0.0
        %2175 = vmatprep.subr.mxu0 0.0
        %2176 = vmatpush1.xpose.msra.mxu0 0.0
        %2177 = vmatprep.subr.mxu0 0.0
        %2178 = vmatpush1.xpose.msra.mxu0 0.0
        %2179 = vmatprep.subr.mxu0 0.0
        %2180 = vmatpush1.xpose.msra.mxu0 0.0
        %2181 = vmatprep.subr.mxu0 0.0
        %2182 = vmatpush1.xpose.msra.mxu0 0.0
        %2183 = vmatprep.subr.mxu0 0.0
        %2184 = vmatpush1.xpose.msra.mxu0 0.0
        %2185 = vmatprep.subr.mxu0 0.0
        %2186 = vmatpush1.xpose.msra.mxu0 0.0
        %2187 = vmatprep.subr.mxu0 0.0
        %2188 = vmatpush1.xpose.msra.mxu0 0.0
        %2189 = vmatprep.subr.mxu0 0.0
        %2190 = vmatpush1.xpose.msra.mxu0 0.0
        %2191 = vmatprep.subr.mxu0 0.0
        %2192 = vmatpush1.xpose.msra.mxu0 0.0
        %2193 = vmatprep.subr.mxu0 0.0
        %2194 = vmatpush1.xpose.msra.mxu0 0.0
        %2195 = vmatprep.subr.mxu0 0.0
        %2196 = vmatpush1.xpose.msra.mxu0 0.0
        %2197 = vmatprep.subr.mxu0 0.0
        %2198 = vmatpush1.xpose.msra.mxu0 0.0
        %2199 = vmatprep.subr.mxu0 0.0
        %2200 = vmatpush1.xpose.msra.mxu0 0.0
        %2201 = vmatprep.subr.mxu0 0.0
        %2202 = vmatpush1.xpose.msra.mxu0 0.0
        %2203 = vmatprep.subr.mxu0 0.0
        %2204 = vmatpush1.xpose.msra.mxu0 0.0
        %2205 = vmatprep.subr.mxu0 0.0
        %2206 = vmatpush1.xpose.msra.mxu0 0.0
        %2207 = vmatprep.mubr.f32.mxu0 0.0
        %2208 = vmatmul.mubr.f32.gmra.mrb[0].mxu0 %v2141
        %v2209 = vpop.f32.mrb[0].mxu0
        %v2210 = vadd.f32 0.0, %v2209
        %v2211 = vpop.f32.mrb[0].mxu0
        %2212 = vdwg.mxu0
        %v2213 = vsel %vm651, %v600, 0
        %2215 = vmatprep.subr.mxu0 0.0
        %2216 = vmatpush1.xpose.msra.mxu0 %v882
        %2217 = vmatprep.subr.mxu0 0.0
        %2218 = vmatpush1.xpose.msra.mxu0 %v884
        %2219 = vmatprep.subr.mxu0 0.0
        %2220 = vmatpush1.xpose.msra.mxu0 0.0
        %2221 = vmatprep.subr.mxu0 0.0
        %2222 = vmatpush1.xpose.msra.mxu0 0.0
        %2223 = vmatprep.subr.mxu0 0.0
        %2224 = vmatpush1.xpose.msra.mxu0 0.0
        %2225 = vmatprep.subr.mxu0 0.0
        %2226 = vmatpush1.xpose.msra.mxu0 0.0
        %2227 = vmatprep.subr.mxu0 0.0
        %2228 = vmatpush1.xpose.msra.mxu0 0.0
        %2229 = vmatprep.subr.mxu0 0.0
        %2230 = vmatpush1.xpose.msra.mxu0 0.0
        %2231 = vmatprep.subr.mxu0 0.0
        %2232 = vmatpush1.xpose.msra.mxu0 0.0
        %2233 = vmatprep.subr.mxu0 0.0
        %2234 = vmatpush1.xpose.msra.mxu0 0.0
        %2235 = vmatprep.subr.mxu0 0.0
        %2236 = vmatpush1.xpose.msra.mxu0 0.0
        %2237 = vmatprep.subr.mxu0 0.0
        %2238 = vmatpush1.xpose.msra.mxu0 0.0
        %2239 = vmatprep.subr.mxu0 0.0
        %2240 = vmatpush1.xpose.msra.mxu0 0.0
        %2241 = vmatprep.subr.mxu0 0.0
        %2242 = vmatpush1.xpose.msra.mxu0 0.0
        %2243 = vmatprep.subr.mxu0 0.0
        %2244 = vmatpush1.xpose.msra.mxu0 0.0
        %2245 = vmatprep.subr.mxu0 0.0
        %2246 = vmatpush1.xpose.msra.mxu0 0.0
        %2247 = vmatprep.subr.mxu0 0.0
        %2248 = vmatpush1.xpose.msra.mxu0 0.0
        %2249 = vmatprep.subr.mxu0 0.0
        %2250 = vmatpush1.xpose.msra.mxu0 0.0
        %2251 = vmatprep.subr.mxu0 0.0
        %2252 = vmatpush1.xpose.msra.mxu0 0.0
        %2253 = vmatprep.subr.mxu0 0.0
        %2254 = vmatpush1.xpose.msra.mxu0 0.0
        %2255 = vmatprep.subr.mxu0 0.0
        %2256 = vmatpush1.xpose.msra.mxu0 0.0
        %2257 = vmatprep.subr.mxu0 0.0
        %2258 = vmatpush1.xpose.msra.mxu0 0.0
        %2259 = vmatprep.subr.mxu0 0.0
        %2260 = vmatpush1.xpose.msra.mxu0 0.0
        %2261 = vmatprep.subr.mxu0 0.0
        %2262 = vmatpush1.xpose.msra.mxu0 0.0
        %2263 = vmatprep.subr.mxu0 0.0
        %2264 = vmatpush1.xpose.msra.mxu0 0.0
        %2265 = vmatprep.subr.mxu0 0.0
        %2266 = vmatpush1.xpose.msra.mxu0 0.0
        %2267 = vmatprep.subr.mxu0 0.0
        %2268 = vmatpush1.xpose.msra.mxu0 0.0
        %2269 = vmatprep.subr.mxu0 0.0
        %2270 = vmatpush1.xpose.msra.mxu0 0.0
        %2271 = vmatprep.subr.mxu0 0.0
        %2272 = vmatpush1.xpose.msra.mxu0 0.0
        %2273 = vmatprep.subr.mxu0 0.0
        %2274 = vmatpush1.xpose.msra.mxu0 0.0
        %2275 = vmatprep.subr.mxu0 0.0
        %2276 = vmatpush1.xpose.msra.mxu0 0.0
        %2277 = vmatprep.subr.mxu0 0.0
        %2278 = vmatpush1.xpose.msra.mxu0 0.0
        %2279 = vmatprep.mubr.f32.mxu0 0.0
        %2280 = vmatmul.mubr.f32.gmra.mrb[0].mxu0 %v2213
        %v2281 = vpop.f32.mrb[0].mxu0
        %v2282 = vadd.f32 0.0, %v2281
        %v2283 = vpop.f32.mrb[0].mxu0
        %2284 = vdwg.mxu0
        %v2285 = vmul.f32 %v2066, 0.35355338
        %v2286 = vmul.f32 %v2138, 0.35355338
        %v2287 = vmul.f32 %v2210, 0.35355338
        %v2288 = vmul.f32 %v2282, 0.35355338
        %v2289 = vsel %vm960, %v2285, -inf
        %2290 = vmax.xlane.f32.xlu0 %v2289
        %v2291 = vpop.xlane.xlu0 %2290
        %v2292 = vsel %vm960, %v2286, -inf
        %2293 = vmax.xlane.f32.xlu0 %v2292
        %v2294 = vpop.xlane.xlu0 %2293
        %v2295 = vsel %vm960, %v2287, -inf
        %2296 = vmax.xlane.f32.xlu0 %v2295
        %v2297 = vpop.xlane.xlu0 %2296
        %v2298 = vsel %vm960, %v2288, -inf
        %2299 = vmax.xlane.f32.xlu0 %v2298
        %v2300 = vpop.xlane.xlu0 %2299
        %v2301 = vsub.f32 %v2285, %v2291
        %v2302 = vsub.f32 %v2286, %v2294
        %v2303 = vsub.f32 %v2287, %v2297
        %v2304 = vsub.f32 %v2288, %v2300
        %v2305 = vmul.f32 %v2301, 1.442695
        %v2306 = vpow.pop %v2305
        %v2307 = vmul.f32 %v2302, 1.442695
        %v2308 = vpow.pop %v2307
        %v2309 = vmul.f32 %v2303, 1.442695
        %v2310 = vpow.pop %v2309
        %v2311 = vmul.f32 %v2304, 1.442695
        %v2312 = vpow.pop %v2311
        %v2313 = vsel %vm960, %v2306, 0.0
        %2314 = vadd.xlane.f32.xlu0 %v2313
        %v2315 = vpop.xlane.xlu0 %2314
        %v2316 = vsel %vm960, %v2308, 0.0
        %2317 = vadd.xlane.f32.xlu0 %v2316
        %v2318 = vpop.xlane.xlu0 %2317
        %v2319 = vsel %vm960, %v2310, 0.0
        %2320 = vadd.xlane.f32.xlu0 %v2319
        %v2321 = vpop.xlane.xlu0 %2320
        %v2322 = vsel %vm960, %v2312, 0.0
        %2323 = vadd.xlane.f32.xlu0 %v2322
        %v2324 = vpop.xlane.xlu0 %2323
        %v2325 = vrcp.pop %v2315
        %v2326 = vrcp.pop %v2318
        %v2327 = vrcp.pop %v2321
        %v2328 = vrcp.pop %v2324
        %v2329 = vmul.f32 %v2306, %v2325
        %v2330 = vmul.f32 %v2308, %v2326
        %v2331 = vmul.f32 %v2310, %v2327
        %v2332 = vmul.f32 %v2312, %v2328
        %v2334 = vsel %vm960, %v2329, 0
        %2336 = vmatprep.subr.mxu0 0.0
        %2337 = vmatpush1.msra.mxu0 %v618
        %2338 = vmatprep.subr.mxu0 0.0
        %2339 = vmatpush1.msra.mxu0 %v620
        %2340 = vmatprep.subr.mxu0 0.0
        %2341 = vmatpush1.msra.mxu0 0.0
        %2342 = vmatprep.subr.mxu0 0.0
        %2343 = vmatpush1.msra.mxu0 0.0
        %2344 = vmatprep.subr.mxu0 0.0
        %2345 = vmatpush1.msra.mxu0 0.0
        %2346 = vmatprep.subr.mxu0 0.0
        %2347 = vmatpush1.msra.mxu0 0.0
        %2348 = vmatprep.subr.mxu0 0.0
        %2349 = vmatpush1.msra.mxu0 0.0
        %2350 = vmatprep.subr.mxu0 0.0
        %2351 = vmatpush1.msra.mxu0 0.0
        %2352 = vmatprep.subr.mxu0 0.0
        %2353 = vmatpush1.msra.mxu0 0.0
        %2354 = vmatprep.subr.mxu0 0.0
        %2355 = vmatpush1.msra.mxu0 0.0
        %2356 = vmatprep.subr.mxu0 0.0
        %2357 = vmatpush1.msra.mxu0 0.0
        %2358 = vmatprep.subr.mxu0 0.0
        %2359 = vmatpush1.msra.mxu0 0.0
        %2360 = vmatprep.subr.mxu0 0.0
        %2361 = vmatpush1.msra.mxu0 0.0
        %2362 = vmatprep.subr.mxu0 0.0
        %2363 = vmatpush1.msra.mxu0 0.0
        %2364 = vmatprep.subr.mxu0 0.0
        %2365 = vmatpush1.msra.mxu0 0.0
        %2366 = vmatprep.subr.mxu0 0.0
        %2367 = vmatpush1.msra.mxu0 0.0
        %2368 = vmatprep.subr.mxu0 0.0
        %2369 = vmatpush1.msra.mxu0 0.0
        %2370 = vmatprep.subr.mxu0 0.0
        %2371 = vmatpush1.msra.mxu0 0.0
        %2372 = vmatprep.subr.mxu0 0.0
        %2373 = vmatpush1.msra.mxu0 0.0
        %2374 = vmatprep.subr.mxu0 0.0
        %2375 = vmatpush1.msra.mxu0 0.0
        %2376 = vmatprep.subr.mxu0 0.0
        %2377 = vmatpush1.msra.mxu0 0.0
        %2378 = vmatprep.subr.mxu0 0.0
        %2379 = vmatpush1.msra.mxu0 0.0
        %2380 = vmatprep.subr.mxu0 0.0
        %2381 = vmatpush1.msra.mxu0 0.0
        %2382 = vmatprep.subr.mxu0 0.0
        %2383 = vmatpush1.msra.mxu0 0.0
        %2384 = vmatprep.subr.mxu0 0.0
        %2385 = vmatpush1.msra.mxu0 0.0
        %2386 = vmatprep.subr.mxu0 0.0
        %2387 = vmatpush1.msra.mxu0 0.0
        %2388 = vmatprep.subr.mxu0 0.0
        %2389 = vmatpush1.msra.mxu0 0.0
        %2390 = vmatprep.subr.mxu0 0.0
        %2391 = vmatpush1.msra.mxu0 0.0
        %2392 = vmatprep.subr.mxu0 0.0
        %2393 = vmatpush1.msra.mxu0 0.0
        %2394 = vmatprep.subr.mxu0 0.0
        %2395 = vmatpush1.msra.mxu0 0.0
        %2396 = vmatprep.subr.mxu0 0.0
        %2397 = vmatpush1.msra.mxu0 0.0
        %2398 = vmatprep.subr.mxu0 0.0
        %2399 = vmatpush1.msra.mxu0 0.0
        %2400 = vmatprep.mubr.f32.mxu0 0.0
        %2401 = vmatmul.mubr.f32.gmra.mrb[0].mxu0 %v2334
        %v2402 = vpop.f32.mrb[0].mxu0
        %v2403 = vadd.f32 0.0, %v2402
        %v2404 = vpop.f32.mrb[0].mxu0
        %2405 = vdwg.mxu0
        %v2407 = vsel %vm960, %v2330, 0
        %2409 = vmatprep.subr.mxu0 0.0
        %2410 = vmatpush1.msra.mxu0 %v624
        %2411 = vmatprep.subr.mxu0 0.0
        %2412 = vmatpush1.msra.mxu0 %v626
        %2413 = vmatprep.subr.mxu0 0.0
        %2414 = vmatpush1.msra.mxu0 0.0
        %2415 = vmatprep.subr.mxu0 0.0
        %2416 = vmatpush1.msra.mxu0 0.0
        %2417 = vmatprep.subr.mxu0 0.0
        %2418 = vmatpush1.msra.mxu0 0.0
        %2419 = vmatprep.subr.mxu0 0.0
        %2420 = vmatpush1.msra.mxu0 0.0
        %2421 = vmatprep.subr.mxu0 0.0
        %2422 = vmatpush1.msra.mxu0 0.0
        %2423 = vmatprep.subr.mxu0 0.0
        %2424 = vmatpush1.msra.mxu0 0.0
        %2425 = vmatprep.subr.mxu0 0.0
        %2426 = vmatpush1.msra.mxu0 0.0
        %2427 = vmatprep.subr.mxu0 0.0
        %2428 = vmatpush1.msra.mxu0 0.0
        %2429 = vmatprep.subr.mxu0 0.0
        %2430 = vmatpush1.msra.mxu0 0.0
        %2431 = vmatprep.subr.mxu0 0.0
        %2432 = vmatpush1.msra.mxu0 0.0
        %2433 = vmatprep.subr.mxu0 0.0
        %2434 = vmatpush1.msra.mxu0 0.0
        %2435 = vmatprep.subr.mxu0 0.0
        %2436 = vmatpush1.msra.mxu0 0.0
        %2437 = vmatprep.subr.mxu0 0.0
        %2438 = vmatpush1.msra.mxu0 0.0
        %2439 = vmatprep.subr.mxu0 0.0
        %2440 = vmatpush1.msra.mxu0 0.0
        %2441 = vmatprep.subr.mxu0 0.0
        %2442 = vmatpush1.msra.mxu0 0.0
        %2443 = vmatprep.subr.mxu0 0.0
        %2444 = vmatpush1.msra.mxu0 0.0
        %2445 = vmatprep.subr.mxu0 0.0
        %2446 = vmatpush1.msra.mxu0 0.0
        %2447 = vmatprep.subr.mxu0 0.0
        %2448 = vmatpush1.msra.mxu0 0.0
        %2449 = vmatprep.subr.mxu0 0.0
        %2450 = vmatpush1.msra.mxu0 0.0
        %2451 = vmatprep.subr.mxu0 0.0
        %2452 = vmatpush1.msra.mxu0 0.0
        %2453 = vmatprep.subr.mxu0 0.0
        %2454 = vmatpush1.msra.mxu0 0.0
        %2455 = vmatprep.subr.mxu0 0.0
        %2456 = vmatpush1.msra.mxu0 0.0
        %2457 = vmatprep.subr.mxu0 0.0
        %2458 = vmatpush1.msra.mxu0 0.0
        %2459 = vmatprep.subr.mxu0 0.0
        %2460 = vmatpush1.msra.mxu0 0.0
        %2461 = vmatprep.subr.mxu0 0.0
        %2462 = vmatpush1.msra.mxu0 0.0
        %2463 = vmatprep.subr.mxu0 0.0
        %2464 = vmatpush1.msra.mxu0 0.0
        %2465 = vmatprep.subr.mxu0 0.0
        %2466 = vmatpush1.msra.mxu0 0.0
        %2467 = vmatprep.subr.mxu0 0.0
        %2468 = vmatpush1.msra.mxu0 0.0
        %2469 = vmatprep.subr.mxu0 0.0
        %2470 = vmatpush1.msra.mxu0 0.0
        %2471 = vmatprep.subr.mxu0 0.0
        %2472 = vmatpush1.msra.mxu0 0.0
        %2473 = vmatprep.mubr.f32.mxu0 0.0
        %2474 = vmatmul.mubr.f32.gmra.mrb[0].mxu0 %v2407
        %v2475 = vpop.f32.mrb[0].mxu0
        %v2476 = vadd.f32 0.0, %v2475
        %v2477 = vpop.f32.mrb[0].mxu0
        %2478 = vdwg.mxu0
        %v2480 = vsel %vm960, %v2331, 0
        %2482 = vmatprep.subr.mxu0 0.0
        %2483 = vmatpush1.msra.mxu0 %v630
        %2484 = vmatprep.subr.mxu0 0.0
        %2485 = vmatpush1.msra.mxu0 %v632
        %2486 = vmatprep.subr.mxu0 0.0
        %2487 = vmatpush1.msra.mxu0 0.0
        %2488 = vmatprep.subr.mxu0 0.0
        %2489 = vmatpush1.msra.mxu0 0.0
        %2490 = vmatprep.subr.mxu0 0.0
        %2491 = vmatpush1.msra.mxu0 0.0
        %2492 = vmatprep.subr.mxu0 0.0
        %2493 = vmatpush1.msra.mxu0 0.0
        %2494 = vmatprep.subr.mxu0 0.0
        %2495 = vmatpush1.msra.mxu0 0.0
        %2496 = vmatprep.subr.mxu0 0.0
        %2497 = vmatpush1.msra.mxu0 0.0
        %2498 = vmatprep.subr.mxu0 0.0
        %2499 = vmatpush1.msra.mxu0 0.0
        %2500 = vmatprep.subr.mxu0 0.0
        %2501 = vmatpush1.msra.mxu0 0.0
        %2502 = vmatprep.subr.mxu0 0.0
        %2503 = vmatpush1.msra.mxu0 0.0
        %2504 = vmatprep.subr.mxu0 0.0
        %2505 = vmatpush1.msra.mxu0 0.0
        %2506 = vmatprep.subr.mxu0 0.0
        %2507 = vmatpush1.msra.mxu0 0.0
        %2508 = vmatprep.subr.mxu0 0.0
        %2509 = vmatpush1.msra.mxu0 0.0
        %2510 = vmatprep.subr.mxu0 0.0
        %2511 = vmatpush1.msra.mxu0 0.0
        %2512 = vmatprep.subr.mxu0 0.0
        %2513 = vmatpush1.msra.mxu0 0.0
        %2514 = vmatprep.subr.mxu0 0.0
        %2515 = vmatpush1.msra.mxu0 0.0
        %2516 = vmatprep.subr.mxu0 0.0
        %2517 = vmatpush1.msra.mxu0 0.0
        %2518 = vmatprep.subr.mxu0 0.0
        %2519 = vmatpush1.msra.mxu0 0.0
        %2520 = vmatprep.subr.mxu0 0.0
        %2521 = vmatpush1.msra.mxu0 0.0
        %2522 = vmatprep.subr.mxu0 0.0
        %2523 = vmatpush1.msra.mxu0 0.0
        %2524 = vmatprep.subr.mxu0 0.0
        %2525 = vmatpush1.msra.mxu0 0.0
        %2526 = vmatprep.subr.mxu0 0.0
        %2527 = vmatpush1.msra.mxu0 0.0
        %2528 = vmatprep.subr.mxu0 0.0
        %2529 = vmatpush1.msra.mxu0 0.0
        %2530 = vmatprep.subr.mxu0 0.0
        %2531 = vmatpush1.msra.mxu0 0.0
        %2532 = vmatprep.subr.mxu0 0.0
        %2533 = vmatpush1.msra.mxu0 0.0
        %2534 = vmatprep.subr.mxu0 0.0
        %2535 = vmatpush1.msra.mxu0 0.0
        %2536 = vmatprep.subr.mxu0 0.0
        %2537 = vmatpush1.msra.mxu0 0.0
        %2538 = vmatprep.subr.mxu0 0.0
        %2539 = vmatpush1.msra.mxu0 0.0
        %2540 = vmatprep.subr.mxu0 0.0
        %2541 = vmatpush1.msra.mxu0 0.0
        %2542 = vmatprep.subr.mxu0 0.0
        %2543 = vmatpush1.msra.mxu0 0.0
        %2544 = vmatprep.subr.mxu0 0.0
        %2545 = vmatpush1.msra.mxu0 0.0
        %2546 = vmatprep.mubr.f32.mxu0 0.0
        %2547 = vmatmul.mubr.f32.gmra.mrb[0].mxu0 %v2480
        %v2548 = vpop.f32.mrb[0].mxu0
        %v2549 = vadd.f32 0.0, %v2548
        %v2550 = vpop.f32.mrb[0].mxu0
        %2551 = vdwg.mxu0
        %v2553 = vsel %vm960, %v2332, 0
        %2555 = vmatprep.subr.mxu0 0.0
        %2556 = vmatpush1.msra.mxu0 %v636
        %2557 = vmatprep.subr.mxu0 0.0
        %2558 = vmatpush1.msra.mxu0 %v638
        %2559 = vmatprep.subr.mxu0 0.0
        %2560 = vmatpush1.msra.mxu0 0.0
        %2561 = vmatprep.subr.mxu0 0.0
        %2562 = vmatpush1.msra.mxu0 0.0
        %2563 = vmatprep.subr.mxu0 0.0
        %2564 = vmatpush1.msra.mxu0 0.0
        %2565 = vmatprep.subr.mxu0 0.0
        %2566 = vmatpush1.msra.mxu0 0.0
        %2567 = vmatprep.subr.mxu0 0.0
        %2568 = vmatpush1.msra.mxu0 0.0
        %2569 = vmatprep.subr.mxu0 0.0
        %2570 = vmatpush1.msra.mxu0 0.0
        %2571 = vmatprep.subr.mxu0 0.0
        %2572 = vmatpush1.msra.mxu0 0.0
        %2573 = vmatprep.subr.mxu0 0.0
        %2574 = vmatpush1.msra.mxu0 0.0
        %2575 = vmatprep.subr.mxu0 0.0
        %2576 = vmatpush1.msra.mxu0 0.0
        %2577 = vmatprep.subr.mxu0 0.0
        %2578 = vmatpush1.msra.mxu0 0.0
        %2579 = vmatprep.subr.mxu0 0.0
        %2580 = vmatpush1.msra.mxu0 0.0
        %2581 = vmatprep.subr.mxu0 0.0
        %2582 = vmatpush1.msra.mxu0 0.0
        %2583 = vmatprep.subr.mxu0 0.0
        %2584 = vmatpush1.msra.mxu0 0.0
        %2585 = vmatprep.subr.mxu0 0.0
        %2586 = vmatpush1.msra.mxu0 0.0
        %2587 = vmatprep.subr.mxu0 0.0
        %2588 = vmatpush1.msra.mxu0 0.0
        %2589 = vmatprep.subr.mxu0 0.0
        %2590 = vmatpush1.msra.mxu0 0.0
        %2591 = vmatprep.subr.mxu0 0.0
        %2592 = vmatpush1.msra.mxu0 0.0
        %2593 = vmatprep.subr.mxu0 0.0
        %2594 = vmatpush1.msra.mxu0 0.0
        %2595 = vmatprep.subr.mxu0 0.0
        %2596 = vmatpush1.msra.mxu0 0.0
        %2597 = vmatprep.subr.mxu0 0.0
        %2598 = vmatpush1.msra.mxu0 0.0
        %2599 = vmatprep.subr.mxu0 0.0
        %2600 = vmatpush1.msra.mxu0 0.0
        %2601 = vmatprep.subr.mxu0 0.0
        %2602 = vmatpush1.msra.mxu0 0.0
        %2603 = vmatprep.subr.mxu0 0.0
        %2604 = vmatpush1.msra.mxu0 0.0
        %2605 = vmatprep.subr.mxu0 0.0
        %2606 = vmatpush1.msra.mxu0 0.0
        %2607 = vmatprep.subr.mxu0 0.0
        %2608 = vmatpush1.msra.mxu0 0.0
        %2609 = vmatprep.subr.mxu0 0.0
        %2610 = vmatpush1.msra.mxu0 0.0
        %2611 = vmatprep.subr.mxu0 0.0
        %2612 = vmatpush1.msra.mxu0 0.0
        %2613 = vmatprep.subr.mxu0 0.0
        %2614 = vmatpush1.msra.mxu0 0.0
        %2615 = vmatprep.subr.mxu0 0.0
        %2616 = vmatpush1.msra.mxu0 0.0
        %2617 = vmatprep.subr.mxu0 0.0
        %2618 = vmatpush1.msra.mxu0 0.0
        %2619 = vmatprep.mubr.f32.mxu0 0.0
        %2620 = vmatmul.mubr.f32.gmra.mrb[0].mxu0 %v2553
        %v2621 = vpop.f32.mrb[0].mxu0
        %v2622 = vadd.f32 0.0, %v2621
        %v2623 = vpop.f32.mrb[0].mxu0
        %2624 = vdwg.mxu0
        %v2626 = vsel %vm651, %v2403, 0
        %2628 = vmatprep.subr.mxu0 0.0
        %2629 = vmatpush1.msra.mxu0 %v641
        %2630 = vmatprep.subr.mxu0 0.0
        %2631 = vmatpush1.msra.mxu0 0.0
        %2632 = vmatprep.subr.mxu0 0.0
        %2633 = vmatpush1.msra.mxu0 0.0
        %2634 = vmatprep.subr.mxu0 0.0
        %2635 = vmatpush1.msra.mxu0 0.0
        %2636 = vmatprep.subr.mxu0 0.0
        %2637 = vmatpush1.msra.mxu0 0.0
        %2638 = vmatprep.subr.mxu0 0.0
        %2639 = vmatpush1.msra.mxu0 0.0
        %2640 = vmatprep.subr.mxu0 0.0
        %2641 = vmatpush1.msra.mxu0 0.0
        %2642 = vmatprep.subr.mxu0 0.0
        %2643 = vmatpush1.msra.mxu0 0.0
        %2644 = vmatprep.subr.mxu0 0.0
        %2645 = vmatpush1.msra.mxu0 0.0
        %2646 = vmatprep.subr.mxu0 0.0
        %2647 = vmatpush1.msra.mxu0 0.0
        %2648 = vmatprep.subr.mxu0 0.0
        %2649 = vmatpush1.msra.mxu0 0.0
        %2650 = vmatprep.subr.mxu0 0.0
        %2651 = vmatpush1.msra.mxu0 0.0
        %2652 = vmatprep.subr.mxu0 0.0
        %2653 = vmatpush1.msra.mxu0 0.0
        %2654 = vmatprep.subr.mxu0 0.0
        %2655 = vmatpush1.msra.mxu0 0.0
        %2656 = vmatprep.subr.mxu0 0.0
        %2657 = vmatpush1.msra.mxu0 0.0
        %2658 = vmatprep.subr.mxu0 0.0
        %2659 = vmatpush1.msra.mxu0 0.0
        %2660 = vmatprep.subr.mxu0 0.0
        %2661 = vmatpush1.msra.mxu0 0.0
        %2662 = vmatprep.subr.mxu0 0.0
        %2663 = vmatpush1.msra.mxu0 0.0
        %2664 = vmatprep.subr.mxu0 0.0
        %2665 = vmatpush1.msra.mxu0 0.0
        %2666 = vmatprep.subr.mxu0 0.0
        %2667 = vmatpush1.msra.mxu0 0.0
        %2668 = vmatprep.subr.mxu0 0.0
        %2669 = vmatpush1.msra.mxu0 0.0
        %2670 = vmatprep.subr.mxu0 0.0
        %2671 = vmatpush1.msra.mxu0 0.0
        %2672 = vmatprep.subr.mxu0 0.0
        %2673 = vmatpush1.msra.mxu0 0.0
        %2674 = vmatprep.subr.mxu0 0.0
        %2675 = vmatpush1.msra.mxu0 0.0
        %2676 = vmatprep.subr.mxu0 0.0
        %2677 = vmatpush1.msra.mxu0 0.0
        %2678 = vmatprep.subr.mxu0 0.0
        %2679 = vmatpush1.msra.mxu0 0.0
        %2680 = vmatprep.subr.mxu0 0.0
        %2681 = vmatpush1.msra.mxu0 0.0
        %2682 = vmatprep.subr.mxu0 0.0
        %2683 = vmatpush1.msra.mxu0 0.0
        %2684 = vmatprep.subr.mxu0 0.0
        %2685 = vmatpush1.msra.mxu0 0.0
        %2686 = vmatprep.subr.mxu0 0.0
        %2687 = vmatpush1.msra.mxu0 0.0
        %2688 = vmatprep.subr.mxu0 0.0
        %2689 = vmatpush1.msra.mxu0 0.0
        %2690 = vmatprep.subr.mxu0 0.0
        %2691 = vmatpush1.msra.mxu0 0.0
        %2692 = vmatprep.mubr.f32.mxu0 0.0
        %2693 = vmatmul.mubr.f32.gmra.mrb[0].mxu0 %v2626
        %v2694 = vpop.f32.mrb[0].mxu0
        %v2695 = vadd.f32 0.0, %v2694
        %v2696 = vpop.f32.mrb[0].mxu0
        %2697 = vdwg.mxu0
        %v2699 = vsel %vm651, %v2476, 0
        %2701 = vmatprep.subr.mxu0 0.0
        %2702 = vmatpush1.msra.mxu0 %v642
        %2703 = vmatprep.subr.mxu0 0.0
        %2704 = vmatpush1.msra.mxu0 0.0
        %2705 = vmatprep.subr.mxu0 0.0
        %2706 = vmatpush1.msra.mxu0 0.0
        %2707 = vmatprep.subr.mxu0 0.0
        %2708 = vmatpush1.msra.mxu0 0.0
        %2709 = vmatprep.subr.mxu0 0.0
        %2710 = vmatpush1.msra.mxu0 0.0
        %2711 = vmatprep.subr.mxu0 0.0
        %2712 = vmatpush1.msra.mxu0 0.0
        %2713 = vmatprep.subr.mxu0 0.0
        %2714 = vmatpush1.msra.mxu0 0.0
        %2715 = vmatprep.subr.mxu0 0.0
        %2716 = vmatpush1.msra.mxu0 0.0
        %2717 = vmatprep.subr.mxu0 0.0
        %2718 = vmatpush1.msra.mxu0 0.0
        %2719 = vmatprep.subr.mxu0 0.0
        %2720 = vmatpush1.msra.mxu0 0.0
        %2721 = vmatprep.subr.mxu0 0.0
        %2722 = vmatpush1.msra.mxu0 0.0
        %2723 = vmatprep.subr.mxu0 0.0
        %2724 = vmatpush1.msra.mxu0 0.0
        %2725 = vmatprep.subr.mxu0 0.0
        %2726 = vmatpush1.msra.mxu0 0.0
        %2727 = vmatprep.subr.mxu0 0.0
        %2728 = vmatpush1.msra.mxu0 0.0
        %2729 = vmatprep.subr.mxu0 0.0
        %2730 = vmatpush1.msra.mxu0 0.0
        %2731 = vmatprep.subr.mxu0 0.0
        %2732 = vmatpush1.msra.mxu0 0.0
        %2733 = vmatprep.subr.mxu0 0.0
        %2734 = vmatpush1.msra.mxu0 0.0
        %2735 = vmatprep.subr.mxu0 0.0
        %2736 = vmatpush1.msra.mxu0 0.0
        %2737 = vmatprep.subr.mxu0 0.0
        %2738 = vmatpush1.msra.mxu0 0.0
        %2739 = vmatprep.subr.mxu0 0.0
        %2740 = vmatpush1.msra.mxu0 0.0
        %2741 = vmatprep.subr.mxu0 0.0
        %2742 = vmatpush1.msra.mxu0 0.0
        %2743 = vmatprep.subr.mxu0 0.0
        %2744 = vmatpush1.msra.mxu0 0.0
        %2745 = vmatprep.subr.mxu0 0.0
        %2746 = vmatpush1.msra.mxu0 0.0
        %2747 = vmatprep.subr.mxu0 0.0
        %2748 = vmatpush1.msra.mxu0 0.0
        %2749 = vmatprep.subr.mxu0 0.0
        %2750 = vmatpush1.msra.mxu0 0.0
        %2751 = vmatprep.subr.mxu0 0.0
        %2752 = vmatpush1.msra.mxu0 0.0
        %2753 = vmatprep.subr.mxu0 0.0
        %2754 = vmatpush1.msra.mxu0 0.0
        %2755 = vmatprep.subr.mxu0 0.0
        %2756 = vmatpush1.msra.mxu0 0.0
        %2757 = vmatprep.subr.mxu0 0.0
        %2758 = vmatpush1.msra.mxu0 0.0
        %2759 = vmatprep.subr.mxu0 0.0
        %2760 = vmatpush1.msra.mxu0 0.0
        %2761 = vmatprep.subr.mxu0 0.0
        %2762 = vmatpush1.msra.mxu0 0.0
        %2763 = vmatprep.subr.mxu0 0.0
        %2764 = vmatpush1.msra.mxu0 0.0
        %2765 = vmatprep.mubr.f32.mxu0 0.0
        %2766 = vmatmul.mubr.f32.gmra.mrb[0].mxu0 %v2699
        %v2767 = vpop.f32.mrb[0].mxu0
        %v2768 = vadd.f32 0.0, %v2767
        %v2769 = vpop.f32.mrb[0].mxu0
        %2770 = vdwg.mxu0
        %v2772 = vsel %vm651, %v2549, 0
        %2774 = vmatprep.subr.mxu0 0.0
        %2775 = vmatpush1.msra.mxu0 %v643
        %2776 = vmatprep.subr.mxu0 0.0
        %2777 = vmatpush1.msra.mxu0 0.0
        %2778 = vmatprep.subr.mxu0 0.0
        %2779 = vmatpush1.msra.mxu0 0.0
        %2780 = vmatprep.subr.mxu0 0.0
        %2781 = vmatpush1.msra.mxu0 0.0
        %2782 = vmatprep.subr.mxu0 0.0
        %2783 = vmatpush1.msra.mxu0 0.0
        %2784 = vmatprep.subr.mxu0 0.0
        %2785 = vmatpush1.msra.mxu0 0.0
        %2786 = vmatprep.subr.mxu0 0.0
        %2787 = vmatpush1.msra.mxu0 0.0
        %2788 = vmatprep.subr.mxu0 0.0
        %2789 = vmatpush1.msra.mxu0 0.0
        %2790 = vmatprep.subr.mxu0 0.0
        %2791 = vmatpush1.msra.mxu0 0.0
        %2792 = vmatprep.subr.mxu0 0.0
        %2793 = vmatpush1.msra.mxu0 0.0
        %2794 = vmatprep.subr.mxu0 0.0
        %2795 = vmatpush1.msra.mxu0 0.0
        %2796 = vmatprep.subr.mxu0 0.0
        %2797 = vmatpush1.msra.mxu0 0.0
        %2798 = vmatprep.subr.mxu0 0.0
        %2799 = vmatpush1.msra.mxu0 0.0
        %2800 = vmatprep.subr.mxu0 0.0
        %2801 = vmatpush1.msra.mxu0 0.0
        %2802 = vmatprep.subr.mxu0 0.0
        %2803 = vmatpush1.msra.mxu0 0.0
        %2804 = vmatprep.subr.mxu0 0.0
        %2805 = vmatpush1.msra.mxu0 0.0
        %2806 = vmatprep.subr.mxu0 0.0
        %2807 = vmatpush1.msra.mxu0 0.0
        %2808 = vmatprep.subr.mxu0 0.0
        %2809 = vmatpush1.msra.mxu0 0.0
        %2810 = vmatprep.subr.mxu0 0.0
        %2811 = vmatpush1.msra.mxu0 0.0
        %2812 = vmatprep.subr.mxu0 0.0
        %2813 = vmatpush1.msra.mxu0 0.0
        %2814 = vmatprep.subr.mxu0 0.0
        %2815 = vmatpush1.msra.mxu0 0.0
        %2816 = vmatprep.subr.mxu0 0.0
        %2817 = vmatpush1.msra.mxu0 0.0
        %2818 = vmatprep.subr.mxu0 0.0
        %2819 = vmatpush1.msra.mxu0 0.0
        %2820 = vmatprep.subr.mxu0 0.0
        %2821 = vmatpush1.msra.mxu0 0.0
        %2822 = vmatprep.subr.mxu0 0.0
        %2823 = vmatpush1.msra.mxu0 0.0
        %2824 = vmatprep.subr.mxu0 0.0
        %2825 = vmatpush1.msra.mxu0 0.0
        %2826 = vmatprep.subr.mxu0 0.0
        %2827 = vmatpush1.msra.mxu0 0.0
        %2828 = vmatprep.subr.mxu0 0.0
        %2829 = vmatpush1.msra.mxu0 0.0
        %2830 = vmatprep.subr.mxu0 0.0
        %2831 = vmatpush1.msra.mxu0 0.0
        %2832 = vmatprep.subr.mxu0 0.0
        %2833 = vmatpush1.msra.mxu0 0.0
        %2834 = vmatprep.subr.mxu0 0.0
        %2835 = vmatpush1.msra.mxu0 0.0
        %2836 = vmatprep.subr.mxu0 0.0
        %2837 = vmatpush1.msra.mxu0 0.0
        %2838 = vmatprep.mubr.f32.mxu0 0.0
        %2839 = vmatmul.mubr.f32.gmra.mrb[0].mxu0 %v2772
        %v2840 = vpop.f32.mrb[0].mxu0
        %v2841 = vadd.f32 0.0, %v2840
        %v2842 = vpop.f32.mrb[0].mxu0
        %2843 = vdwg.mxu0
        %v2845 = vsel %vm651, %v2622, 0
        %2847 = vmatprep.subr.mxu0 0.0
        %2848 = vmatpush1.msra.mxu0 %v644
        %2849 = vmatprep.subr.mxu0 0.0
        %2850 = vmatpush1.msra.mxu0 0.0
        %2851 = vmatprep.subr.mxu0 0.0
        %2852 = vmatpush1.msra.mxu0 0.0
        %2853 = vmatprep.subr.mxu0 0.0
        %2854 = vmatpush1.msra.mxu0 0.0
        %2855 = vmatprep.subr.mxu0 0.0
        %2856 = vmatpush1.msra.mxu0 0.0
        %2857 = vmatprep.subr.mxu0 0.0
        %2858 = vmatpush1.msra.mxu0 0.0
        %2859 = vmatprep.subr.mxu0 0.0
        %2860 = vmatpush1.msra.mxu0 0.0
        %2861 = vmatprep.subr.mxu0 0.0
        %2862 = vmatpush1.msra.mxu0 0.0
        %2863 = vmatprep.subr.mxu0 0.0
        %2864 = vmatpush1.msra.mxu0 0.0
        %2865 = vmatprep.subr.mxu0 0.0
        %2866 = vmatpush1.msra.mxu0 0.0
        %2867 = vmatprep.subr.mxu0 0.0
        %2868 = vmatpush1.msra.mxu0 0.0
        %2869 = vmatprep.subr.mxu0 0.0
        %2870 = vmatpush1.msra.mxu0 0.0
        %2871 = vmatprep.subr.mxu0 0.0
        %2872 = vmatpush1.msra.mxu0 0.0
        %2873 = vmatprep.subr.mxu0 0.0
        %2874 = vmatpush1.msra.mxu0 0.0
        %2875 = vmatprep.subr.mxu0 0.0
        %2876 = vmatpush1.msra.mxu0 0.0
        %2877 = vmatprep.subr.mxu0 0.0
        %2878 = vmatpush1.msra.mxu0 0.0
        %2879 = vmatprep.subr.mxu0 0.0
        %2880 = vmatpush1.msra.mxu0 0.0
        %2881 = vmatprep.subr.mxu0 0.0
        %2882 = vmatpush1.msra.mxu0 0.0
        %2883 = vmatprep.subr.mxu0 0.0
        %2884 = vmatpush1.msra.mxu0 0.0
        %2885 = vmatprep.subr.mxu0 0.0
        %2886 = vmatpush1.msra.mxu0 0.0
        %2887 = vmatprep.subr.mxu0 0.0
        %2888 = vmatpush1.msra.mxu0 0.0
        %2889 = vmatprep.subr.mxu0 0.0
        %2890 = vmatpush1.msra.mxu0 0.0
        %2891 = vmatprep.subr.mxu0 0.0
        %2892 = vmatpush1.msra.mxu0 0.0
        %2893 = vmatprep.subr.mxu0 0.0
        %2894 = vmatpush1.msra.mxu0 0.0
        %2895 = vmatprep.subr.mxu0 0.0
        %2896 = vmatpush1.msra.mxu0 0.0
        %2897 = vmatprep.subr.mxu0 0.0
        %2898 = vmatpush1.msra.mxu0 0.0
        %2899 = vmatprep.subr.mxu0 0.0
        %2900 = vmatpush1.msra.mxu0 0.0
        %2901 = vmatprep.subr.mxu0 0.0
        %2902 = vmatpush1.msra.mxu0 0.0
        %2903 = vmatprep.subr.mxu0 0.0
        %2904 = vmatpush1.msra.mxu0 0.0
        %2905 = vmatprep.subr.mxu0 0.0
        %2906 = vmatpush1.msra.mxu0 0.0
        %2907 = vmatprep.subr.mxu0 0.0
        %2908 = vmatpush1.msra.mxu0 0.0
        %2909 = vmatprep.subr.mxu0 0.0
        %2910 = vmatpush1.msra.mxu0 0.0
        %2911 = vmatprep.mubr.f32.mxu0 0.0
        %2912 = vmatmul.mubr.f32.gmra.mrb[0].mxu0 %v2845
        %v2913 = vpop.f32.mrb[0].mxu0
        %v2914 = vadd.f32 0.0, %v2913
        %v2915 = vpop.f32.mrb[0].mxu0
        %2916 = vdwg.mxu0
        %v2917 = vsel %vm505, %v2695, 0.0
        %v2918 = vsel %vm505, %v2768, 0.0
        %v2919 = vadd.f32 %v2917, %v2918
        %v2920 = vsel %vm505, %v2841, 0.0
        %v2921 = vadd.f32 %v2919, %v2920
        %v2922 = vsel %vm505, %v2914, 0.0
        %v2923 = vadd.f32 %v2921, %v2922
        %v2924 = vadd.f32 %v2923, %v1600
        %v2925 = vadd.f32 %v493, %v2924
        %v2926 = vsel %vm505, %v2925, 0.0
        %2927 = vadd.xlane.f32.xlu0 %v2926
        %v2928 = vpop.xlane.xlu0 %2927
        %v2929 = vmul.f32 %v2928, %v1607
        %v2930 = vsub.f32 %v2925, %v2929
        %v2931 = vmul.f32 %v2930, %v2930
        %v2932 = vsel %vm505, %v2931, 0.0
        %2933 = vadd.xlane.f32.xlu0 %v2932
        %v2934 = vpop.xlane.xlu0 %2933
        %v2935 = vmul.f32 %v2934, %v1607
        %v2936 = vadd.f32 %v2935, 1e-05
        %v2937 = vrsqrt.pop %v2936
        %v2938 = vmul.f32 %v2930, %v2937
        %v2939 = vmul.f32 %v2938, %v1622
        %v2940 = vadd.f32 %v2939, %v1629
        %v2941 = vld [vmem:[#allocation7] sm:$0xff]
        %v2942 = vld [vmem:[#allocation7 + $0x8] sm:$0xff]
        %v2943 = vld [vmem:[#allocation7 + $0x10] sm:$0xff]
        %v2944 = vld [vmem:[#allocation7 + $0x18] sm:$0xff]
        %v2945 = vld [vmem:[#allocation8] sm:$0x1]
        %v2947 = vlaneseq
        %v2948 = vshrl.u32 %v2947, 7
        %v2949 = vsub.s32 0, %v2948
        %v2950 = vrot.slane %v2945, %v2949
        %v2953 = vsel %vm505, %v2940, 0
        %2955 = vmatprep.subr.mxu0 0.0
        %2956 = vmatpush1.msra.mxu0 %v2941
        %2957 = vmatprep.subr.mxu0 0.0
        %2958 = vmatpush1.msra.mxu0 %v2942
        %2959 = vmatprep.subr.mxu0 0.0
        %2960 = vmatpush1.msra.mxu0 %v2943
        %2961 = vmatprep.subr.mxu0 0.0
        %2962 = vmatpush1.msra.mxu0 %v2944
        %2963 = vmatprep.subr.mxu0 0.0
        %2964 = vmatpush1.msra.mxu0 0.0
        %2965 = vmatprep.subr.mxu0 0.0
        %2966 = vmatpush1.msra.mxu0 0.0
        %2967 = vmatprep.subr.mxu0 0.0
        %2968 = vmatpush1.msra.mxu0 0.0
        %2969 = vmatprep.subr.mxu0 0.0
        %2970 = vmatpush1.msra.mxu0 0.0
        %2971 = vmatprep.subr.mxu0 0.0
        %2972 = vmatpush1.msra.mxu0 0.0
        %2973 = vmatprep.subr.mxu0 0.0
        %2974 = vmatpush1.msra.mxu0 0.0
        %2975 = vmatprep.subr.mxu0 0.0
        %2976 = vmatpush1.msra.mxu0 0.0
        %2977 = vmatprep.subr.mxu0 0.0
        %2978 = vmatpush1.msra.mxu0 0.0
        %2979 = vmatprep.subr.mxu0 0.0
        %2980 = vmatpush1.msra.mxu0 0.0
        %2981 = vmatprep.subr.mxu0 0.0
        %2982 = vmatpush1.msra.mxu0 0.0
        %2983 = vmatprep.subr.mxu0 0.0
        %2984 = vmatpush1.msra.mxu0 0.0
        %2985 = vmatprep.subr.mxu0 0.0
        %2986 = vmatpush1.msra.mxu0 0.0
        %2987 = vmatprep.subr.mxu0 0.0
        %2988 = vmatpush1.msra.mxu0 0.0
        %2989 = vmatprep.subr.mxu0 0.0
        %2990 = vmatpush1.msra.mxu0 0.0
        %2991 = vmatprep.subr.mxu0 0.0
        %2992 = vmatpush1.msra.mxu0 0.0
        %2993 = vmatprep.subr.mxu0 0.0
        %2994 = vmatpush1.msra.mxu0 0.0
        %2995 = vmatprep.subr.mxu0 0.0
        %2996 = vmatpush1.msra.mxu0 0.0
        %2997 = vmatprep.subr.mxu0 0.0
        %2998 = vmatpush1.msra.mxu0 0.0
        %2999 = vmatprep.subr.mxu0 0.0
        %3000 = vmatpush1.msra.mxu0 0.0
        %3001 = vmatprep.subr.mxu0 0.0
        %3002 = vmatpush1.msra.mxu0 0.0
        %3003 = vmatprep.subr.mxu0 0.0
        %3004 = vmatpush1.msra.mxu0 0.0
        %3005 = vmatprep.subr.mxu0 0.0
        %3006 = vmatpush1.msra.mxu0 0.0
        %3007 = vmatprep.subr.mxu0 0.0
        %3008 = vmatpush1.msra.mxu0 0.0
        %3009 = vmatprep.subr.mxu0 0.0
        %3010 = vmatpush1.msra.mxu0 0.0
        %3011 = vmatprep.subr.mxu0 0.0
        %3012 = vmatpush1.msra.mxu0 0.0
        %3013 = vmatprep.subr.mxu0 0.0
        %3014 = vmatpush1.msra.mxu0 0.0
        %3015 = vmatprep.subr.mxu0 0.0
        %3016 = vmatpush1.msra.mxu0 0.0
        %3017 = vmatprep.subr.mxu0 0.0
        %3018 = vmatpush1.msra.mxu0 0.0
        %3019 = vmatprep.mubr.f32.mxu0 0.0
        %3020 = vmatmul.mubr.f32.gmra.mrb[0].mxu0 %v2953
        %v3021 = vpop.f32.mrb[0].mxu0
        %v3022 = vadd.f32 %v2950, %v3021
        %v3023 = vpop.f32.mrb[0].mxu0
        %3024 = vdwg.mxu0
        %v3025 = vmax.f32 %v3022, 0.0
        %v3026 = vld [vmem:[%s9] sm:$0xff]
        %v3027 = vld [vmem:[%s9 + $0x8] sm:$0xff]
        %v3028 = vld [vmem:[%s9 + $0x10] sm:$0xff]
        %v3029 = vld [vmem:[%s9 + $0x18] sm:$0xff]
        %3034 = vrot.lane.b32.xlu0 %v2941, 96
        %v3035 = vpop.permute.xlu0 %3034
        %3036 = vrot.lane.b32.xlu0 %v2942, 96
        %v3037 = vpop.permute.xlu0 %3036
        %3038 = vrot.lane.b32.xlu0 %v2943, 96
        %v3039 = vpop.permute.xlu0 %3038
        %3040 = vrot.lane.b32.xlu0 %v2944, 96
        %v3041 = vpop.permute.xlu0 %3040
        %3046 = vrot.lane.b32.xlu0 %v2950, 96
        %v3047 = vpop.permute.xlu0 %3046
        %3049 = vmatprep.subr.mxu0 0.0
        %3050 = vmatpush1.msra.mxu0 %v3035
        %3051 = vmatprep.subr.mxu0 0.0
        %3052 = vmatpush1.msra.mxu0 %v3037
        %3053 = vmatprep.subr.mxu0 0.0
        %3054 = vmatpush1.msra.mxu0 %v3039
        %3055 = vmatprep.subr.mxu0 0.0
        %3056 = vmatpush1.msra.mxu0 %v3041
        %3057 = vmatprep.subr.mxu0 0.0
        %3058 = vmatpush1.msra.mxu0 0.0
        %3059 = vmatprep.subr.mxu0 0.0
        %3060 = vmatpush1.msra.mxu0 0.0
        %3061 = vmatprep.subr.mxu0 0.0
        %3062 = vmatpush1.msra.mxu0 0.0
        %3063 = vmatprep.subr.mxu0 0.0
        %3064 = vmatpush1.msra.mxu0 0.0
        %3065 = vmatprep.subr.mxu0 0.0
        %3066 = vmatpush1.msra.mxu0 0.0
        %3067 = vmatprep.subr.mxu0 0.0
        %3068 = vmatpush1.msra.mxu0 0.0
        %3069 = vmatprep.subr.mxu0 0.0
        %3070 = vmatpush1.msra.mxu0 0.0
        %3071 = vmatprep.subr.mxu0 0.0
        %3072 = vmatpush1.msra.mxu0 0.0
        %3073 = vmatprep.subr.mxu0 0.0
        %3074 = vmatpush1.msra.mxu0 0.0
        %3075 = vmatprep.subr.mxu0 0.0
        %3076 = vmatpush1.msra.mxu0 0.0
        %3077 = vmatprep.subr.mxu0 0.0
        %3078 = vmatpush1.msra.mxu0 0.0
        %3079 = vmatprep.subr.mxu0 0.0
        %3080 = vmatpush1.msra.mxu0 0.0
        %3081 = vmatprep.subr.mxu0 0.0
        %3082 = vmatpush1.msra.mxu0 0.0
        %3083 = vmatprep.subr.mxu0 0.0
        %3084 = vmatpush1.msra.mxu0 0.0
        %3085 = vmatprep.subr.mxu0 0.0
        %3086 = vmatpush1.msra.mxu0 0.0
        %3087 = vmatprep.subr.mxu0 0.0
        %3088 = vmatpush1.msra.mxu0 0.0
        %3089 = vmatprep.subr.mxu0 0.0
        %3090 = vmatpush1.msra.mxu0 0.0
        %3091 = vmatprep.subr.mxu0 0.0
        %3092 = vmatpush1.msra.mxu0 0.0
        %3093 = vmatprep.subr.mxu0 0.0
        %3094 = vmatpush1.msra.mxu0 0.0
        %3095 = vmatprep.subr.mxu0 0.0
        %3096 = vmatpush1.msra.mxu0 0.0
        %3097 = vmatprep.subr.mxu0 0.0
        %3098 = vmatpush1.msra.mxu0 0.0
        %3099 = vmatprep.subr.mxu0 0.0
        %3100 = vmatpush1.msra.mxu0 0.0
        %3101 = vmatprep.subr.mxu0 0.0
        %3102 = vmatpush1.msra.mxu0 0.0
        %3103 = vmatprep.subr.mxu0 0.0
        %3104 = vmatpush1.msra.mxu0 0.0
        %3105 = vmatprep.subr.mxu0 0.0
        %3106 = vmatpush1.msra.mxu0 0.0
        %3107 = vmatprep.subr.mxu0 0.0
        %3108 = vmatpush1.msra.mxu0 0.0
        %3109 = vmatprep.subr.mxu0 0.0
        %3110 = vmatpush1.msra.mxu0 0.0
        %3111 = vmatprep.subr.mxu0 0.0
        %3112 = vmatpush1.msra.mxu0 0.0
        %3113 = vmatprep.mubr.f32.mxu0 0.0
        %3114 = vmatmul.mubr.f32.gmra.mrb[0].mxu0 %v2953
        %v3115 = vpop.f32.mrb[0].mxu0
        %v3116 = vadd.f32 %v3047, %v3115
        %v3117 = vpop.f32.mrb[0].mxu0
        %3118 = vdwg.mxu0
        %v3119 = vmax.f32 %v3116, 0.0
        %v3120 = vld [vmem:[%s9 + $0x20] sm:$0xff]
        %v3121 = vld [vmem:[%s9 + $0x28] sm:$0xff]
        %v3122 = vld [vmem:[%s9 + $0x30] sm:$0xff]
        %v3123 = vld [vmem:[%s9 + $0x38] sm:$0xff]
        %v3125 = vsel %vm505, %v3119, 0
        %3127 = vmatprep.subr.mxu0 0.0
        %3128 = vmatpush1.msra.mxu0 %v3120
        %3129 = vmatprep.subr.mxu0 0.0
        %3130 = vmatpush1.msra.mxu0 %v3121
        %3131 = vmatprep.subr.mxu0 0.0
        %3132 = vmatpush1.msra.mxu0 %v3122
        %3133 = vmatprep.subr.mxu0 0.0
        %3134 = vmatpush1.msra.mxu0 %v3123
        %3135 = vmatprep.subr.mxu0 0.0
        %3136 = vmatpush1.msra.mxu0 0.0
        %3137 = vmatprep.subr.mxu0 0.0
        %3138 = vmatpush1.msra.mxu0 0.0
        %3139 = vmatprep.subr.mxu0 0.0
        %3140 = vmatpush1.msra.mxu0 0.0
        %3141 = vmatprep.subr.mxu0 0.0
        %3142 = vmatpush1.msra.mxu0 0.0
        %3143 = vmatprep.subr.mxu0 0.0
        %3144 = vmatpush1.msra.mxu0 0.0
        %3145 = vmatprep.subr.mxu0 0.0
        %3146 = vmatpush1.msra.mxu0 0.0
        %3147 = vmatprep.subr.mxu0 0.0
        %3148 = vmatpush1.msra.mxu0 0.0
        %3149 = vmatprep.subr.mxu0 0.0
        %3150 = vmatpush1.msra.mxu0 0.0
        %3151 = vmatprep.subr.mxu0 0.0
        %3152 = vmatpush1.msra.mxu0 0.0
        %3153 = vmatprep.subr.mxu0 0.0
        %3154 = vmatpush1.msra.mxu0 0.0
        %3155 = vmatprep.subr.mxu0 0.0
        %3156 = vmatpush1.msra.mxu0 0.0
        %3157 = vmatprep.subr.mxu0 0.0
        %3158 = vmatpush1.msra.mxu0 0.0
        %3159 = vmatprep.subr.mxu0 0.0
        %3160 = vmatpush1.msra.mxu0 0.0
        %3161 = vmatprep.subr.mxu0 0.0
        %3162 = vmatpush1.msra.mxu0 0.0
        %3163 = vmatprep.subr.mxu0 0.0
        %3164 = vmatpush1.msra.mxu0 0.0
        %3165 = vmatprep.subr.mxu0 0.0
        %3166 = vmatpush1.msra.mxu0 0.0
        %3167 = vmatprep.subr.mxu0 0.0
        %3168 = vmatpush1.msra.mxu0 0.0
        %3169 = vmatprep.subr.mxu0 0.0
        %3170 = vmatpush1.msra.mxu0 0.0
        %3171 = vmatprep.subr.mxu0 0.0
        %3172 = vmatpush1.msra.mxu0 0.0
        %3173 = vmatprep.subr.mxu0 0.0
        %3174 = vmatpush1.msra.mxu0 0.0
        %3175 = vmatprep.subr.mxu0 0.0
        %3176 = vmatpush1.msra.mxu0 0.0
        %3177 = vmatprep.subr.mxu0 0.0
        %3178 = vmatpush1.msra.mxu0 0.0
        %3179 = vmatprep.subr.mxu0 0.0
        %3180 = vmatpush1.msra.mxu0 0.0
        %3181 = vmatprep.subr.mxu0 0.0
        %3182 = vmatpush1.msra.mxu0 0.0
        %3183 = vmatprep.subr.mxu0 0.0
        %3184 = vmatpush1.msra.mxu0 0.0
        %3185 = vmatprep.subr.mxu0 0.0
        %3186 = vmatpush1.msra.mxu0 0.0
        %3187 = vmatprep.subr.mxu0 0.0
        %3188 = vmatpush1.msra.mxu0 0.0
        %3189 = vmatprep.subr.mxu0 0.0
        %3190 = vmatpush1.msra.mxu0 0.0
        %3191 = vmatprep.mubr.f32.mxu0 0.0
        %3192 = vmatmul.mubr.f32.gmra.mrb[0].mxu0 %v3125
        %v3193 = vpop.f32.mrb[0].mxu0
        %v3194 = vadd.f32 0.0, %v3193
        %v3195 = vpop.f32.mrb[0].mxu0
        %3196 = vdwg.mxu0
        %v3198 = vsel %vm505, %v3025, 0
        %3200 = vmatprep.subr.mxu0 0.0
        %3201 = vmatpush1.msra.mxu0 %v3026
        %3202 = vmatprep.subr.mxu0 0.0
        %3203 = vmatpush1.msra.mxu0 %v3027
        %3204 = vmatprep.subr.mxu0 0.0
        %3205 = vmatpush1.msra.mxu0 %v3028
        %3206 = vmatprep.subr.mxu0 0.0
        %3207 = vmatpush1.msra.mxu0 %v3029
        %3208 = vmatprep.subr.mxu0 0.0
        %3209 = vmatpush1.msra.mxu0 0.0
        %3210 = vmatprep.subr.mxu0 0.0
        %3211 = vmatpush1.msra.mxu0 0.0
        %3212 = vmatprep.subr.mxu0 0.0
        %3213 = vmatpush1.msra.mxu0 0.0
        %3214 = vmatprep.subr.mxu0 0.0
        %3215 = vmatpush1.msra.mxu0 0.0
        %3216 = vmatprep.subr.mxu0 0.0
        %3217 = vmatpush1.msra.mxu0 0.0
        %3218 = vmatprep.subr.mxu0 0.0
        %3219 = vmatpush1.msra.mxu0 0.0
        %3220 = vmatprep.subr.mxu0 0.0
        %3221 = vmatpush1.msra.mxu0 0.0
        %3222 = vmatprep.subr.mxu0 0.0
        %3223 = vmatpush1.msra.mxu0 0.0
        %3224 = vmatprep.subr.mxu0 0.0
        %3225 = vmatpush1.msra.mxu0 0.0
        %3226 = vmatprep.subr.mxu0 0.0
        %3227 = vmatpush1.msra.mxu0 0.0
        %3228 = vmatprep.subr.mxu0 0.0
        %3229 = vmatpush1.msra.mxu0 0.0
        %3230 = vmatprep.subr.mxu0 0.0
        %3231 = vmatpush1.msra.mxu0 0.0
        %3232 = vmatprep.subr.mxu0 0.0
        %3233 = vmatpush1.msra.mxu0 0.0
        %3234 = vmatprep.subr.mxu0 0.0
        %3235 = vmatpush1.msra.mxu0 0.0
        %3236 = vmatprep.subr.mxu0 0.0
        %3237 = vmatpush1.msra.mxu0 0.0
        %3238 = vmatprep.subr.mxu0 0.0
        %3239 = vmatpush1.msra.mxu0 0.0
        %3240 = vmatprep.subr.mxu0 0.0
        %3241 = vmatpush1.msra.mxu0 0.0
        %3242 = vmatprep.subr.mxu0 0.0
        %3243 = vmatpush1.msra.mxu0 0.0
        %3244 = vmatprep.subr.mxu0 0.0
        %3245 = vmatpush1.msra.mxu0 0.0
        %3246 = vmatprep.subr.mxu0 0.0
        %3247 = vmatpush1.msra.mxu0 0.0
        %3248 = vmatprep.subr.mxu0 0.0
        %3249 = vmatpush1.msra.mxu0 0.0
        %3250 = vmatprep.subr.mxu0 0.0
        %3251 = vmatpush1.msra.mxu0 0.0
        %3252 = vmatprep.subr.mxu0 0.0
        %3253 = vmatpush1.msra.mxu0 0.0
        %3254 = vmatprep.subr.mxu0 0.0
        %3255 = vmatpush1.msra.mxu0 0.0
        %3256 = vmatprep.subr.mxu0 0.0
        %3257 = vmatpush1.msra.mxu0 0.0
        %3258 = vmatprep.subr.mxu0 0.0
        %3259 = vmatpush1.msra.mxu0 0.0
        %3260 = vmatprep.subr.mxu0 0.0
        %3261 = vmatpush1.msra.mxu0 0.0
        %3262 = vmatprep.subr.mxu0 0.0
        %3263 = vmatpush1.msra.mxu0 0.0
        %3264 = vmatprep.mubr.f32.mxu0 0.0
        %3265 = vmatmul.mubr.f32.gmra.mrb[0].mxu0 %v3198
        %v3266 = vpop.f32.mrb[0].mxu0
        %v3267 = vadd.f32 %v3194, %v3266
        %v3268 = vpop.f32.mrb[0].mxu0
        %3269 = vdwg.mxu0
        %v3270 = vadd.f32 %v3267, %v1965
        %v3271 = vadd.f32 %v2940, %v3270
        %v3272 = vsel %vm505, %v3271, 0.0
        %3273 = vadd.xlane.f32.xlu0 %v3272
        %v3274 = vpop.xlane.xlu0 %3273
        %v3275 = vmul.f32 %v3274, %v1607
        %v3276 = vsub.f32 %v3271, %v3275
        %v3277 = vmul.f32 %v3276, %v3276
        %v3278 = vsel %vm505, %v3277, 0.0
        %3279 = vadd.xlane.f32.xlu0 %v3278
        %v3280 = vpop.xlane.xlu0 %3279
        %v3281 = vmul.f32 %v3280, %v1607
        %v3282 = vadd.f32 %v3281, 1e-05
        %v3283 = vrsqrt.pop %v3282
        %v3284 = vmul.f32 %v3276, %v3283
        %v3285 = vmul.f32 %v3284, %v1986
        %v3286 = vadd.f32 %v3285, %v1993
        %3287 = vst.msk [vmem:[%s486 + $0x8] sm:$0xff] %vm505, %v3286
        %s3288 = sand.u32 %s316, 1
        %s3289 = scalar_lea.sflag [#allocation4], %s3288
        %s3290 = sand.u32 %s316, 1
        %s3291 = smul.addr %s3290, 16
        %s3292 = scalar_lea.vmem [#allocation10], %s3291
        // Predicated region
        $region89: #{tpu_custom_call.1} parent=71 // pred_check
          %p3293 = pneg %p326
        $region90: #{tpu_custom_call.1} parent=71 // pred_check_branch
          %3295 = sbr.rel (%p3293) target = $region92
        $region91: #{tpu_custom_call.1} parent=71 // pred_region
          %s3297 = ssub.s32 256, 256
          %3298 = vsyncadd %s3289, %s3297
          %s3299 = smul.addr %s30, 2
          %s3300 = smul.addr %s3299, 128
          %s3301 = scalar_lea.hbm %s13, %s3300
          %s3302 = sshll.u32 %s3292, 4
          %s3303 = int_to_ptr.vmem [resolvable:$true] %s3302
          %3308 = dma.vmem_to_hbm [thread:$0]  %s3303, 256, %s3301, %s3289, 128, 128, 8
        $region92: #{tpu_custom_call.1} parent=71 // pred_fallthru
          _
      $region72: #{tpu_custom_call.1} parent=5 // pred_fallthru
        _
      %p3309 = scmp.le.s32.totalorder 2, %s25
      // Predicated region
      $region93: #{tpu_custom_call.1} parent=5 // pred_check
        %p3310 = pneg %p3309
      $region94: #{tpu_custom_call.1} parent=5 // pred_check_branch
        %3312 = sbr.rel (%p3310) target = $region96
      $region95: #{tpu_custom_call.1} parent=5 // pred_region
        %s3313 = ssub.s32 %s25, 2
        // Predicated region
        $region97: #{tpu_custom_call.1} parent=95 // pred_check
          %p3314 = pneg %p332
        $region98: #{tpu_custom_call.1} parent=95 // pred_check_branch
          %3316 = sbr.rel (%p3314) target = $region100
        $region99: #{tpu_custom_call.1} parent=95 // pred_region
          %s3317 = sand.u32 %s317, 1
          %s3318 = scalar_lea.sflag [#allocation4], %s3317
          %s3319 = sand.u32 %s317, 1
          %s3320 = smul.addr %s3319, 16
          %s3321 = scalar_lea.vmem [#allocation10], %s3320
          %3322 = dma.done %s3318, 256
        $region100: #{tpu_custom_call.1} parent=95 // pred_fallthru
          _
      $region96: #{tpu_custom_call.1} parent=5 // pred_fallthru
        _
    $region6: #{tpu_custom_call.1} parent=1 // loop_footer
      %s29 = sadd.s32 1, %s25
    $region7: #{tpu_custom_call.1} parent=1 // loop_footer_branch
      %24 = sbr.rel target = $region3
    $region8: #{tpu_custom_call.1} parent=1 // loop_exit
      _
    %3323 = vsyncpa [#allocation3], 1
    %s3324 = scalar_lea.sflag [#allocation3], 1
    %3325 = vsyncpa %s3324, 1
    %3326 = vsyncpa [#allocation6], 1
    %3327 = vsyncpa [#allocation9], 1
    %3328 = vsyncpa [#allocation4], 1
    %s3329 = scalar_lea.sflag [#allocation4], 1
    %3330 = vsyncpa %s3329, 1

// kernel: tpu_custom_call.1
$region0: #{tpu_custom_call.1}
  #allocation0 [shape = 'u32[]', space=smem, size = 0x4, offset = 0x4, fixed_abs, tag = 'smem constant byte address 0x4 - core index']
  #allocation1 [shape = 'u32[144,128]{1,0:T(1,128)}', space=vmem, size = 0x12000, scoped, tag = 'internal scratch']
  %s0 = inlined_call_operand.vmem [shape: f32[2,16,32], index: 0, kind: input, shape index: {}]
  %s1 = inlined_call_operand.vmem [shape: f32[32,96], index: 1, kind: input, shape index: {}]
  %s2 = inlined_call_operand.vmem [shape: f32[1,96], index: 2, kind: input, shape index: {}]
  %s3 = inlined_call_operand.vmem [shape: f32[4,8,32], index: 3, kind: input, shape index: {}]
  %s4 = inlined_call_operand.vmem [shape: f32[1,32], index: 4, kind: input, shape index: {}]
  %s5 = inlined_call_operand.hbm [shape: f32[1,32], index: 5, kind: input, shape index: {}]
  %s6 = inlined_call_operand.hbm [shape: f32[1,32], index: 6, kind: input, shape index: {}]
  %s7 = inlined_call_operand.hbm [shape: f32[32,64], index: 7, kind: input, shape index: {}]
  %s8 = inlined_call_operand.hbm [shape: f32[1,64], index: 8, kind: input, shape index: {}]
  %s9 = inlined_call_operand.vmem [shape: f32[64,32], index: 9, kind: input, shape index: {}]
  %s10 = inlined_call_operand.vmem [shape: f32[1,32], index: 10, kind: input, shape index: {}]
  %s11 = inlined_call_operand.vmem [shape: f32[1,32], index: 11, kind: input, shape index: {}]
  %s12 = inlined_call_operand.vmem [shape: f32[1,32], index: 12, kind: input, shape index: {}]
  %s13 = inlined_call_operand.hbm [shape: f32[2,16,32], index: 13, kind: output, shape index: {}]
  %s14 = sld [smem:[#allocation0]]
  $region101: #{tpu_custom_call.1} parent=0
    _
  %s16 = ssub.s32 1, %s14
  %s17 = scalar_select 0, %s16, %s14
  $region1: #{tpu_custom_call.1} parent=0
    #allocation2 [shape = 'u8[512]{0}', space=vmem, size = 0x400, scoped, tag = 'input window, operand 5, single buffered']
    #allocation3 [shape = 's32[2]{0}', space=sflag, size = 0x8, scoped, tag = 'scoped memory for tpu_custom_call.1']
    #allocation4 [shape = 's32[2]{0}', space=sflag, size = 0x8, scoped, tag = 'scoped memory for tpu_custom_call.1']
    #allocation5 [shape = 'u8[512]{0}', space=vmem, size = 0x400, scoped, tag = 'input window, operand 6, single buffered']
    #allocation6 [shape = 's32[1]{0}', space=sflag, size = 0x4, scoped, tag = 'scoped memory for tpu_custom_call.1']
    #allocation7 [shape = 'u8[16384]{0}', space=vmem, size = 0x4000, scoped, tag = 'input window, operand 7, single buffered']
    #allocation8 [shape = 'u8[512]{0}', space=vmem, size = 0x400, scoped, tag = 'input window, operand 8, single buffered']
    #allocation9 [shape = 's32[1]{0}', space=sflag, size = 0x4, scoped, tag = 'scoped memory for tpu_custom_call.1']
    #allocation10 [shape = 'u8[16384]{0}', space=vmem, size = 0x4000, scoped, tag = 'output window, operand 0']
    %18 = vsyncpa [#allocation3], 0
    %19 = vsyncpa [#allocation6], 0
    %20 = vsyncpa [#allocation9], 0
    %21 = vsyncpa [#allocation4], 0
    %s22 = scalar_lea.sflag [#allocation4], 1
    %23 = vsyncpa %s22, 0
    loop: start=0, step=1, limit=4
    $region2: #{tpu_custom_call.1} parent=1 // loop_pre_header
      _
    $region3: #{tpu_custom_call.1} parent=1 // loop_header
      %s25 = sphi 0, %s29
      %p26 = scmp.ge.s32.totalorder %s25, 4
      %s35 = sphi 0, %s37
      %s38 = sphi 0, %s35
      %s39 = sphi 0, %s38
      %s55 = sphi 0, %s39
      %s59 = sphi 0, %s59
      %s61 = sphi 0, %s59
      %s62 = sphi 0, %s61
      %s76 = sphi 0, %s62
      %s80 = sphi 0, %s80
      %s82 = sphi 0, %s80
      %s83 = sphi 0, %s82
      %s97 = sphi 0, %s83
      %s101 = sphi 0, %s101
      %s103 = sphi 0, %s101
      %s104 = sphi 0, %s103
      %s118 = sphi 0, %s104
      %s122 = sphi 0, %s122
      %s124 = sphi 0, %s122
      %s125 = sphi 0, %s124
      %s139 = sphi 0, %s125
      %s143 = sphi 0, %s143
      %s145 = sphi 0, %s143
      %s146 = sphi 0, %s145
      %s160 = sphi 0, %s146
      %s164 = sphi 0, %s164
      %s166 = sphi 0, %s164
      %s167 = sphi 0, %s166
      %s181 = sphi 0, %s167
      %s185 = sphi 0, %s185
      %s187 = sphi 0, %s185
      %s188 = sphi 0, %s187
      %s202 = sphi 0, %s188
      %s206 = sphi 0, %s206
      %s208 = sphi 0, %s206
      %s209 = sphi 0, %s208
      %s223 = sphi 0, %s209
      %s227 = sphi 0, %s227
      %s229 = sphi 0, %s227
      %s230 = sphi 0, %s229
      %s244 = sphi 0, %s230
      %s248 = sphi 0, %s248
      %s250 = sphi 0, %s248
      %s251 = sphi 0, %s250
      %s265 = sphi 0, %s251
      %s269 = sphi 0, %s269
      %s271 = sphi 0, %s269
      %s272 = sphi 0, %s271
      %s286 = sphi 0, %s272
      %s290 = sphi 0, %s290
      %s292 = sphi 0, %s290
      %s293 = sphi 0, %s292
      %s307 = sphi 0, %s293
      %s313 = sphi 0, %s315
      %s316 = sphi 0, %s313
      %s317 = sphi 0, %s316
      %s333 = sphi 0, %s317
    $region4: #{tpu_custom_call.1} parent=1 // loop_header_branch
      %28 = sbr.rel (%p26) target = $region8
    $region5: #{tpu_custom_call.1} parent=1 // loop_body
      %s30 = ssub.s32 %s25, 1
      %s31 = ssub.s32 %s25, 2
      %s32 = sadd.s32 %s25, 1
      %s33 = ssub.s32 %s25, %s32
      %p34 = scmp.eq.s32.totalorder %s33, 0
      %s36 = sadd.s32 %s35, 1
      %s37 = scalar_select %p34, %s35, %s36
      %p40 = pneg %p34
      %p41 = scmp.eq.s32.totalorder %s25, 1
      %p42 = por %p40, %p41
      %p43 = scmp.ne.s32.totalorder %s35, %s38
      %p44 = scmp.eq.s32.totalorder %s25, 0
      %p45 = por %p43, %p44
      %p46 = scmp.ne.s32.totalorder %s35, %s38
      %p47 = scmp.eq.s32.totalorder %s30, 1
      %p48 = por %p46, %p47
      %p49 = scmp.ne.s32.totalorder %s38, %s39
      %p50 = scmp.eq.s32.totalorder %s30, 0
      %p51 = por %p49, %p50
      %p52 = scmp.ne.s32.totalorder %s38, %s39
      %p53 = scmp.eq.s32.totalorder %s31, 1
      %p54 = por %p52, %p53
      %p56 = scmp.ne.s32.totalorder %s39, %s55
      %p57 = scmp.eq.s32.totalorder %s31, 0
      %p58 = por %p56, %p57
      %s60 = sadd.s32 %s59, 1
      %p63 = scmp.eq.s32.totalorder %s25, 1
      %p64 = scmp.ne.s32.totalorder %s59, %s61
      %p65 = scmp.eq.s32.totalorder %s25, 0
      %p66 = por %p64, %p65
      %p67 = scmp.ne.s32.totalorder %s59, %s61
      %p68 = scmp.eq.s32.totalorder %s30, 1
      %p69 = por %p67, %p68
      %p70 = scmp.ne.s32.totalorder %s61, %s62
      %p71 = scmp.eq.s32.totalorder %s30, 0
      %p72 = por %p70, %p71
      %p73 = scmp.ne.s32.totalorder %s61, %s62
      %p74 = scmp.eq.s32.totalorder %s31, 1
      %p75 = por %p73, %p74
      %p77 = scmp.ne.s32.totalorder %s62, %s76
      %p78 = scmp.eq.s32.totalorder %s31, 0
      %p79 = por %p77, %p78
      %s81 = sadd.s32 %s80, 1
      %p84 = scmp.eq.s32.totalorder %s25, 1
      %p85 = scmp.ne.s32.totalorder %s80, %s82
      %p86 = scmp.eq.s32.totalorder %s25, 0
      %p87 = por %p85, %p86
      %p88 = scmp.ne.s32.totalorder %s80, %s82
      %p89 = scmp.eq.s32.totalorder %s30, 1
      %p90 = por %p88, %p89
      %p91 = scmp.ne.s32.totalorder %s82, %s83
      %p92 = scmp.eq.s32.totalorder %s30, 0
      %p93 = por %p91, %p92
      %p94 = scmp.ne.s32.totalorder %s82, %s83
      %p95 = scmp.eq.s32.totalorder %s31, 1
      %p96 = por %p94, %p95
      %p98 = scmp.ne.s32.totalorder %s83, %s97
      %p99 = scmp.eq.s32.totalorder %s31, 0
      %p100 = por %p98, %p99
      %s102 = sadd.s32 %s101, 1
      %p105 = scmp.eq.s32.totalorder %s25, 1
      %p106 = scmp.ne.s32.totalorder %s101, %s103
      %p107 = scmp.eq.s32.totalorder %s25, 0
      %p108 = por %p106, %p107
      %p109 = scmp.ne.s32.totalorder %s101, %s103
      %p110 = scmp.eq.s32.totalorder %s30, 1
      %p111 = por %p109, %p110
      %p112 = scmp.ne.s32.totalorder %s103, %s104
      %p113 = scmp.eq.s32.totalorder %s30, 0
      %p114 = por %p112, %p113
      %p115 = scmp.ne.s32.totalorder %s103, %s104
      %p116 = scmp.eq.s32.totalorder %s31, 1
      %p117 = por %p115, %p116
      %p119 = scmp.ne.s32.totalorder %s104, %s118
      %p120 = scmp.eq.s32.totalorder %s31, 0
      %p121 = por %p119, %p120
      %s123 = sadd.s32 %s122, 1
      %p126 = scmp.eq.s32.totalorder %s25, 1
      %p127 = scmp.ne.s32.totalorder %s122, %s124
      %p128 = scmp.eq.s32.totalorder %s25, 0
      %p129 = por %p127, %p128
      %p130 = scmp.ne.s32.totalorder %s122, %s124
      %p131 = scmp.eq.s32.totalorder %s30, 1
      %p132 = por %p130, %p131
      %p133 = scmp.ne.s32.totalorder %s124, %s125
      %p134 = scmp.eq.s32.totalorder %s30, 0
      %p135 = por %p133, %p134
      %p136 = scmp.ne.s32.totalorder %s124, %s125
      %p137 = scmp.eq.s32.totalorder %s31, 1
      %p138 = por %p136, %p137
      %p140 = scmp.ne.s32.totalorder %s125, %s139
      %p141 = scmp.eq.s32.totalorder %s31, 0
      %p142 = por %p140, %p141
      %s144 = sadd.s32 %s143, 1
      %p147 = scmp.eq.s32.totalorder %s25, 1
      %p148 = scmp.ne.s32.totalorder %s143, %s145
      %p149 = scmp.eq.s32.totalorder %s25, 0
      %p150 = por %p148, %p149
      %p151 = scmp.ne.s32.totalorder %s143, %s145
      %p152 = scmp.eq.s32.totalorder %s30, 1
      %p153 = por %p151, %p152
      %p154 = scmp.ne.s32.totalorder %s145, %s146
      %p155 = scmp.eq.s32.totalorder %s30, 0
      %p156 = por %p154, %p155
      %p157 = scmp.ne.s32.totalorder %s145, %s146
      %p158 = scmp.eq.s32.totalorder %s31, 1
      %p159 = por %p157, %p158
      %p161 = scmp.ne.s32.totalorder %s146, %s160
      %p162 = scmp.eq.s32.totalorder %s31, 0
      %p163 = por %p161, %p162
      %s165 = sadd.s32 %s164, 1
      %p168 = scmp.eq.s32.totalorder %s25, 1
      %p169 = scmp.ne.s32.totalorder %s164, %s166
      %p170 = scmp.eq.s32.totalorder %s25, 0
      %p171 = por %p169, %p170
      %p172 = scmp.ne.s32.totalorder %s164, %s166
      %p173 = scmp.eq.s32.totalorder %s30, 1
      %p174 = por %p172, %p173
      %p175 = scmp.ne.s32.totalorder %s166, %s167
      %p176 = scmp.eq.s32.totalorder %s30, 0
      %p177 = por %p175, %p176
      %p178 = scmp.ne.s32.totalorder %s166, %s167
      %p179 = scmp.eq.s32.totalorder %s31, 1
      %p180 = por %p178, %p179
      %p182 = scmp.ne.s32.totalorder %s167, %s181
      %p183 = scmp.eq.s32.totalorder %s31, 0
      %p184 = por %p182, %p183
      %s186 = sadd.s32 %s185, 1
      %p189 = scmp.eq.s32.totalorder %s25, 1
      %p190 = scmp.ne.s32.totalorder %s185, %s187
      %p191 = scmp.eq.s32.totalorder %s25, 0
      %p192 = por %p190, %p191
      %p193 = scmp.ne.s32.totalorder %s185, %s187
      %p194 = scmp.eq.s32.totalorder %s30, 1
      %p195 = por %p193, %p194
      %p196 = scmp.ne.s32.totalorder %s187, %s188
      %p197 = scmp.eq.s32.totalorder %s30, 0
      %p198 = por %p196, %p197
      %p199 = scmp.ne.s32.totalorder %s187, %s188
      %p200 = scmp.eq.s32.totalorder %s31, 1
      %p201 = por %p199, %p200
      %p203 = scmp.ne.s32.totalorder %s188, %s202
      %p204 = scmp.eq.s32.totalorder %s31, 0
      %p205 = por %p203, %p204
      %s207 = sadd.s32 %s206, 1
      %p210 = scmp.eq.s32.totalorder %s25, 1
      %p211 = scmp.ne.s32.totalorder %s206, %s208
      %p212 = scmp.eq.s32.totalorder %s25, 0
      %p213 = por %p211, %p212
      %p214 = scmp.ne.s32.totalorder %s206, %s208
      %p215 = scmp.eq.s32.totalorder %s30, 1
      %p216 = por %p214, %p215
      %p217 = scmp.ne.s32.totalorder %s208, %s209
      %p218 = scmp.eq.s32.totalorder %s30, 0
      %p219 = por %p217, %p218
      %p220 = scmp.ne.s32.totalorder %s208, %s209
      %p221 = scmp.eq.s32.totalorder %s31, 1
      %p222 = por %p220, %p221
      %p224 = scmp.ne.s32.totalorder %s209, %s223
      %p225 = scmp.eq.s32.totalorder %s31, 0
      %p226 = por %p224, %p225
      %s228 = sadd.s32 %s227, 1
      %p231 = scmp.eq.s32.totalorder %s25, 1
      %p232 = scmp.ne.s32.totalorder %s227, %s229
      %p233 = scmp.eq.s32.totalorder %s25, 0
      %p234 = por %p232, %p233
      %p235 = scmp.ne.s32.totalorder %s227, %s229
      %p236 = scmp.eq.s32.totalorder %s30, 1
      %p237 = por %p235, %p236
      %p238 = scmp.ne.s32.totalorder %s229, %s230
      %p239 = scmp.eq.s32.totalorder %s30, 0
      %p240 = por %p238, %p239
      %p241 = scmp.ne.s32.totalorder %s229, %s230
      %p242 = scmp.eq.s32.totalorder %s31, 1
      %p243 = por %p241, %p242
      %p245 = scmp.ne.s32.totalorder %s230, %s244
      %p246 = scmp.eq.s32.totalorder %s31, 0
      %p247 = por %p245, %p246
      %s249 = sadd.s32 %s248, 1
      %p252 = scmp.eq.s32.totalorder %s25, 1
      %p253 = scmp.ne.s32.totalorder %s248, %s250
      %p254 = scmp.eq.s32.totalorder %s25, 0
      %p255 = por %p253, %p254
      %p256 = scmp.ne.s32.totalorder %s248, %s250
      %p257 = scmp.eq.s32.totalorder %s30, 1
      %p258 = por %p256, %p257
      %p259 = scmp.ne.s32.totalorder %s250, %s251
      %p260 = scmp.eq.s32.totalorder %s30, 0
      %p261 = por %p259, %p260
      %p262 = scmp.ne.s32.totalorder %s250, %s251
      %p263 = scmp.eq.s32.totalorder %s31, 1
      %p264 = por %p262, %p263
      %p266 = scmp.ne.s32.totalorder %s251, %s265
      %p267 = scmp.eq.s32.totalorder %s31, 0
      %p268 = por %p266, %p267
      %s270 = sadd.s32 %s269, 1
      %p273 = scmp.eq.s32.totalorder %s25, 1
      %p274 = scmp.ne.s32.totalorder %s269, %s271
      %p275 = scmp.eq.s32.totalorder %s25, 0
      %p276 = por %p274, %p275
      %p277 = scmp.ne.s32.totalorder %s269, %s271
      %p278 = scmp.eq.s32.totalorder %s30, 1
      %p279 = por %p277, %p278
      %p280 = scmp.ne.s32.totalorder %s271, %s272
      %p281 = scmp.eq.s32.totalorder %s30, 0
      %p282 = por %p280, %p281
      %p283 = scmp.ne.s32.totalorder %s271, %s272
      %p284 = scmp.eq.s32.totalorder %s31, 1
      %p285 = por %p283, %p284
      %p287 = scmp.ne.s32.totalorder %s272, %s286
      %p288 = scmp.eq.s32.totalorder %s31, 0
      %p289 = por %p287, %p288
      %s291 = sadd.s32 %s290, 1
      %p294 = scmp.eq.s32.totalorder %s25, 1
      %p295 = scmp.ne.s32.totalorder %s290, %s292
      %p296 = scmp.eq.s32.totalorder %s25, 0
      %p297 = por %p295, %p296
      %p298 = scmp.ne.s32.totalorder %s290, %s292
      %p299 = scmp.eq.s32.totalorder %s30, 1
      %p300 = por %p298, %p299
      %p301 = scmp.ne.s32.totalorder %s292, %s293
      %p302 = scmp.eq.s32.totalorder %s30, 0
      %p303 = por %p301, %p302
      %p304 = scmp.ne.s32.totalorder %s292, %s293
      %p305 = scmp.eq.s32.totalorder %s31, 1
      %p306 = por %p304, %p305
      %p308 = scmp.ne.s32.totalorder %s293, %s307
      %p309 = scmp.eq.s32.totalorder %s31, 0
      %p310 = por %p308, %p309
      %s311 = ssub.s32 %s25, %s32
      %p312 = scmp.eq.s32.totalorder %s311, 0
      %s314 = sadd.s32 %s313, 1
      %s315 = scalar_select %p312, %s313, %s314
      %p318 = pneg %p312
      %p319 = scmp.eq.s32.totalorder %s25, 1
      %p320 = por %p318, %p319
      %p321 = scmp.ne.s32.totalorder %s313, %s316
      %p322 = scmp.eq.s32.totalorder %s25, 0
      %p323 = por %p321, %p322
      %p324 = scmp.ne.s32.totalorder %s313, %s316
      %p325 = scmp.eq.s32.totalorder %s30, 1
      %p326 = por %p324, %p325
      %p327 = scmp.ne.s32.totalorder %s316, %s317
      %p328 = scmp.eq.s32.totalorder %s30, 0
      %p329 = por %p327, %p328
      %p330 = scmp.ne.s32.totalorder %s316, %s317
      %p331 = scmp.eq.s32.totalorder %s31, 1
      %p332 = por %p330, %p331
      %p334 = scmp.ne.s32.totalorder %s317, %s333
      %p335 = scmp.eq.s32.totalorder %s31, 0
      %p336 = por %p334, %p335
      %p337 = scmp.le.s32.totalorder 1, %s25
      %p338 = scmp.lt.s32.totalorder %s25, 3
      %p339 = pnand %p337, %p338
      %p340 = pneg %p339
      // Predicated region
      $region9: #{tpu_custom_call.1} parent=5 // pred_check
        _
      $region10: #{tpu_custom_call.1} parent=5 // pred_check_branch
        %342 = sbr.rel (%p339) target = $region12
      $region11: #{tpu_custom_call.1} parent=5 // pred_region
        %s343 = ssub.s32 %s25, 1
        // Predicated region
        $region13: #{tpu_custom_call.1} parent=11 // pred_check
          %p344 = pneg %p72
        $region14: #{tpu_custom_call.1} parent=11 // pred_check_branch
          %346 = sbr.rel (%p344) target = $region16
        $region15: #{tpu_custom_call.1} parent=11 // pred_region
          _
        $region16: #{tpu_custom_call.1} parent=11 // pred_fallthru
          _
        // Predicated region
        $region17: #{tpu_custom_call.1} parent=11 // pred_check
          %p347 = pneg %p93
        $region18: #{tpu_custom_call.1} parent=11 // pred_check_branch
          %349 = sbr.rel (%p347) target = $region20
        $region19: #{tpu_custom_call.1} parent=11 // pred_region
          _
        $region20: #{tpu_custom_call.1} parent=11 // pred_fallthru
          _
        // Predicated region
        $region21: #{tpu_custom_call.1} parent=11 // pred_check
          %p350 = pneg %p114
        $region22: #{tpu_custom_call.1} parent=11 // pred_check_branch
          %352 = sbr.rel (%p350) target = $region24
        $region23: #{tpu_custom_call.1} parent=11 // pred_region
          _
        $region24: #{tpu_custom_call.1} parent=11 // pred_fallthru
          _
        // Predicated region
        $region25: #{tpu_custom_call.1} parent=11 // pred_check
          %p353 = pneg %p135
        $region26: #{tpu_custom_call.1} parent=11 // pred_check_branch
          %355 = sbr.rel (%p353) target = $region28
        $region27: #{tpu_custom_call.1} parent=11 // pred_region
          _
        $region28: #{tpu_custom_call.1} parent=11 // pred_fallthru
          _
        // Predicated region
        $region29: #{tpu_custom_call.1} parent=11 // pred_check
          %p356 = pneg %p156
        $region30: #{tpu_custom_call.1} parent=11 // pred_check_branch
          %358 = sbr.rel (%p356) target = $region32
        $region31: #{tpu_custom_call.1} parent=11 // pred_region
          %s360 = ssub.s32 16, 16
          %361 = vsyncadd [#allocation3], %s360
          %s363 = sshll.u32 [#allocation2], 4
          %s364 = int_to_ptr.vmem [resolvable:$true] %s363
          %366 = dma.hbm_to_vmem [thread:$0]  %s5, 16, %s364, [#allocation3]
        $region32: #{tpu_custom_call.1} parent=11 // pred_fallthru
          _
        // Predicated region
        $region33: #{tpu_custom_call.1} parent=11 // pred_check
          %p367 = pneg %p177
        $region34: #{tpu_custom_call.1} parent=11 // pred_check_branch
          %369 = sbr.rel (%p367) target = $region36
        $region35: #{tpu_custom_call.1} parent=11 // pred_region
          %s371 = ssub.s32 16, 16
          %372 = vsyncadd [#allocation6], %s371
          %s374 = sshll.u32 [#allocation5], 4
          %s375 = int_to_ptr.vmem [resolvable:$true] %s374
          %377 = dma.hbm_to_vmem [thread:$0]  %s6, 16, %s375, [#allocation6]
        $region36: #{tpu_custom_call.1} parent=11 // pred_fallthru
          _
        // Predicated region
        $region37: #{tpu_custom_call.1} parent=11 // pred_check
          %p378 = pneg %p198
        $region38: #{tpu_custom_call.1} parent=11 // pred_check_branch
          %380 = sbr.rel (%p378) target = $region40
        $region39: #{tpu_custom_call.1} parent=11 // pred_region
          %s382 = ssub.s32 512, 512
          %383 = vsyncadd [#allocation6], %s382
          %s384 = sshll.u32 [#allocation7], 4
          %s385 = int_to_ptr.vmem [resolvable:$true] %s384
          %390 = dma.hbm_to_vmem [thread:$0]  %s7, 512, %s385, [#allocation6], 128, 128, 8
        $region40: #{tpu_custom_call.1} parent=11 // pred_fallthru
          _
        // Predicated region
        $region41: #{tpu_custom_call.1} parent=11 // pred_check
          %p391 = pneg %p219
        $region42: #{tpu_custom_call.1} parent=11 // pred_check_branch
          %393 = sbr.rel (%p391) target = $region44
        $region43: #{tpu_custom_call.1} parent=11 // pred_region
          %s395 = ssub.s32 16, 16
          %396 = vsyncadd [#allocation9], %s395
          %s398 = sshll.u32 [#allocation8], 4
          %s399 = int_to_ptr.vmem [resolvable:$true] %s398
          %401 = dma.hbm_to_vmem [thread:$0]  %s8, 16, %s399, [#allocation9]
        $region44: #{tpu_custom_call.1} parent=11 // pred_fallthru
          _
        // Predicated region
        $region45: #{tpu_custom_call.1} parent=11 // pred_check
          %p402 = pneg %p240
        $region46: #{tpu_custom_call.1} parent=11 // pred_check_branch
          %404 = sbr.rel (%p402) target = $region48
        $region47: #{tpu_custom_call.1} parent=11 // pred_region
          _
        $region48: #{tpu_custom_call.1} parent=11 // pred_fallthru
          _
        // Predicated region
        $region49: #{tpu_custom_call.1} parent=11 // pred_check
          %p405 = pneg %p261
        $region50: #{tpu_custom_call.1} parent=11 // pred_check_branch
          %407 = sbr.rel (%p405) target = $region52
        $region51: #{tpu_custom_call.1} parent=11 // pred_region
          _
        $region52: #{tpu_custom_call.1} parent=11 // pred_fallthru
          _
        // Predicated region
        $region53: #{tpu_custom_call.1} parent=11 // pred_check
          %p408 = pneg %p282
        $region54: #{tpu_custom_call.1} parent=11 // pred_check_branch
          %410 = sbr.rel (%p408) target = $region56
        $region55: #{tpu_custom_call.1} parent=11 // pred_region
          _
        $region56: #{tpu_custom_call.1} parent=11 // pred_fallthru
          _
        // Predicated region
        $region57: #{tpu_custom_call.1} parent=11 // pred_check
          %p411 = pneg %p303
        $region58: #{tpu_custom_call.1} parent=11 // pred_check_branch
          %413 = sbr.rel (%p411) target = $region60
        $region59: #{tpu_custom_call.1} parent=11 // pred_region
          _
        $region60: #{tpu_custom_call.1} parent=11 // pred_fallthru
          _
      $region12: #{tpu_custom_call.1} parent=5 // pred_fallthru
        _
      %p414 = scmp.lt.s32.totalorder %s25, 2
      // Predicated region
      $region61: #{tpu_custom_call.1} parent=5 // pred_check
        %p415 = pneg %p414
      $region62: #{tpu_custom_call.1} parent=5 // pred_check_branch
        %417 = sbr.rel (%p415) target = $region64
      $region63: #{tpu_custom_call.1} parent=5 // pred_region
        // Predicated region
        $region65: #{tpu_custom_call.1} parent=63 // pred_check
          %p418 = pneg %p45
        $region66: #{tpu_custom_call.1} parent=63 // pred_check_branch
          %420 = sbr.rel (%p418) target = $region68
        $region67: #{tpu_custom_call.1} parent=63 // pred_region
          %p421 = scmp.lt.s32.totalorder %s25, 1
          %s422 = scalar_select %p421, %s25, 1
          %s423 = smul.addr %s422, 2
          %s424 = smul.addr %s423, 8
          %s425 = scalar_lea.vmem %s0, %s424
        $region68: #{tpu_custom_call.1} parent=63 // pred_fallthru
          _
      $region64: #{tpu_custom_call.1} parent=5 // pred_fallthru
        _
      %p426 = scmp.le.s32.totalorder 1, %s25
      %p427 = scmp.lt.s32.totalorder %s25, 3
      %p428 = pnand %p426, %p427
      %p429 = pneg %p428
      // Predicated region
      $region69: #{tpu_custom_call.1} parent=5 // pred_check
        _
      $region70: #{tpu_custom_call.1} parent=5 // pred_check_branch
        %431 = sbr.rel (%p428) target = $region72
      $region71: #{tpu_custom_call.1} parent=5 // pred_region
        %s432 = ssub.s32 %s25, 1
        // Predicated region
        $region73: #{tpu_custom_call.1} parent=71 // pred_check
          %p433 = pneg %p156
        $region74: #{tpu_custom_call.1} parent=71 // pred_check_branch
          %435 = sbr.rel (%p433) target = $region76
        $region75: #{tpu_custom_call.1} parent=71 // pred_region
          %436 = dma.done [#allocation3], 16
        $region76: #{tpu_custom_call.1} parent=71 // pred_fallthru
          _
        // Predicated region
        $region77: #{tpu_custom_call.1} parent=71 // pred_check
          %p437 = pneg %p177
        $region78: #{tpu_custom_call.1} parent=71 // pred_check_branch
          %439 = sbr.rel (%p437) target = $region80
        $region79: #{tpu_custom_call.1} parent=71 // pred_region
          %440 = dma.done [#allocation6], 16
        $region80: #{tpu_custom_call.1} parent=71 // pred_fallthru
          _
        // Predicated region
        $region81: #{tpu_custom_call.1} parent=71 // pred_check
          %p441 = pneg %p198
        $region82: #{tpu_custom_call.1} parent=71 // pred_check_branch
          %443 = sbr.rel (%p441) target = $region84
        $region83: #{tpu_custom_call.1} parent=71 // pred_region
          %444 = dma.done [#allocation6], 512
        $region84: #{tpu_custom_call.1} parent=71 // pred_fallthru
          _
        // Predicated region
        $region85: #{tpu_custom_call.1} parent=71 // pred_check
          %p445 = pneg %p219
        $region86: #{tpu_custom_call.1} parent=71 // pred_check_branch
          %447 = sbr.rel (%p445) target = $region88
        $region87: #{tpu_custom_call.1} parent=71 // pred_region
          %448 = dma.done [#allocation9], 16
        $region88: #{tpu_custom_call.1} parent=71 // pred_fallthru
          _
        %p449 = scmp.lt.s32.totalorder %s30, 1
        %s450 = scalar_select %p449, %s30, 1
        %s451 = smul.addr %s450, 2
        %s452 = smul.addr %s451, 8
        %s453 = scalar_lea.vmem %s0, %s452
        %p454 = pneg %p51
        %p455 = pneg %p48
        %p456 = pneg %p72
        %p457 = pneg %p69
        %p458 = pneg %p93
        %p459 = pneg %p90
        %p460 = pneg %p114
        %p461 = pneg %p111
        %p462 = pneg %p135
        %p463 = pneg %p132
        %p464 = pneg %p156
        %p465 = pneg %p153
        %p466 = pneg %p177
        %p467 = pneg %p174
        %p468 = pneg %p198
        %p469 = pneg %p195
        %p470 = pneg %p219
        %p471 = pneg %p216
        %p472 = pneg %p240
        %p473 = pneg %p237
        %p474 = pneg %p261
        %p475 = pneg %p258
        %p476 = pneg %p282
        %p477 = pneg %p279
        %p478 = pneg %p303
        %p479 = pneg %p300
        %p480 = pneg %p329
        %p481 = pneg %p326
        %s482 = sand.u32 %s316, 1
        %s483 = scalar_lea.sflag [#allocation4], %s482
        %s484 = sand.u32 %s316, 1
        %s485 = smul.addr %s484, 16
        %s486 = scalar_lea.vmem [#allocation10], %s485
        %p487 = scmp.lt.s32.totalorder %s30, 1
        %s488 = scalar_select %p487, %s30, 1
        %s489 = smul.addr %s488, 2
        %s490 = smul.addr %s489, 8
        %s491 = scalar_lea.vmem %s0, %s490
        %v492 = vld [vmem:[%s491] sm:$0xff]
        %v493 = vld [vmem:[%s491 + $0x8] sm:$0xff]
        %v494 = vld [vmem:[%s1] sm:$0xff]
        %v495 = vld [vmem:[%s1 + $0x8] sm:$0xff]
        %v496 = vld [vmem:[%s1 + $0x10] sm:$0xff]
        %v497 = vld [vmem:[%s1 + $0x18] sm:$0xff]
        %v498 = vld [vmem:[%s2] sm:$0x1]
        %v500 = vlaneseq
        %v501 = vshrl.u32 %v500, 7
        %v502 = vsub.s32 0, %v501
        %v503 = vrot.slane %v498, %v502
        %vm505 = vcmask 261120
        %v507 = vsel %vm505, %v492, 0
        %v510 = vsel %vm505, %v493, 0
        %512 = vmatprep.subr.mxu0 0.0
        %513 = vmatpush1.msra.mxu0 %v494
        %514 = vmatprep.subr.mxu0 0.0
        %515 = vmatpush1.msra.mxu0 %v495
        %516 = vmatprep.subr.mxu0 0.0
        %517 = vmatpush1.msra.mxu0 %v496
        %518 = vmatprep.subr.mxu0 0.0
        %519 = vmatpush1.msra.mxu0 %v497
        %520 = vmatprep.subr.mxu0 0.0
        %521 = vmatpush1.msra.mxu0 0.0
        %522 = vmatprep.subr.mxu0 0.0
        %523 = vmatpush1.msra.mxu0 0.0
        %524 = vmatprep.subr.mxu0 0.0
        %525 = vmatpush1.msra.mxu0 0.0
        %526 = vmatprep.subr.mxu0 0.0
        %527 = vmatpush1.msra.mxu0 0.0
        %528 = vmatprep.subr.mxu0 0.0
        %529 = vmatpush1.msra.mxu0 0.0
        %530 = vmatprep.subr.mxu0 0.0
        %531 = vmatpush1.msra.mxu0 0.0
        %532 = vmatprep.subr.mxu0 0.0
        %533 = vmatpush1.msra.mxu0 0.0
        %534 = vmatprep.subr.mxu0 0.0
        %535 = vmatpush1.msra.mxu0 0.0
        %536 = vmatprep.subr.mxu0 0.0
        %537 = vmatpush1.msra.mxu0 0.0
        %538 = vmatprep.subr.mxu0 0.0
        %539 = vmatpush1.msra.mxu0 0.0
        %540 = vmatprep.subr.mxu0 0.0
        %541 = vmatpush1.msra.mxu0 0.0
        %542 = vmatprep.subr.mxu0 0.0
        %543 = vmatpush1.msra.mxu0 0.0
        %544 = vmatprep.subr.mxu0 0.0
        %545 = vmatpush1.msra.mxu0 0.0
        %546 = vmatprep.subr.mxu0 0.0
        %547 = vmatpush1.msra.mxu0 0.0
        %548 = vmatprep.subr.mxu0 0.0
        %549 = vmatpush1.msra.mxu0 0.0
        %550 = vmatprep.subr.mxu0 0.0
        %551 = vmatpush1.msra.mxu0 0.0
        %552 = vmatprep.subr.mxu0 0.0
        %553 = vmatpush1.msra.mxu0 0.0
        %554 = vmatprep.subr.mxu0 0.0
        %555 = vmatpush1.msra.mxu0 0.0
        %556 = vmatprep.subr.mxu0 0.0
        %557 = vmatpush1.msra.mxu0 0.0
        %558 = vmatprep.subr.mxu0 0.0
        %559 = vmatpush1.msra.mxu0 0.0
        %560 = vmatprep.subr.mxu0 0.0
        %561 = vmatpush1.msra.mxu0 0.0
        %562 = vmatprep.subr.mxu0 0.0
        %563 = vmatpush1.msra.mxu0 0.0
        %564 = vmatprep.subr.mxu0 0.0
        %565 = vmatpush1.msra.mxu0 0.0
        %566 = vmatprep.subr.mxu0 0.0
        %567 = vmatpush1.msra.mxu0 0.0
        %568 = vmatprep.subr.mxu0 0.0
        %569 = vmatpush1.msra.mxu0 0.0
        %570 = vmatprep.subr.mxu0 0.0
        %571 = vmatpush1.msra.mxu0 0.0
        %572 = vmatprep.subr.mxu0 0.0
        %573 = vmatpush1.msra.mxu0 0.0
        %574 = vmatprep.subr.mxu0 0.0
        %575 = vmatpush1.msra.mxu0 0.0
        %576 = vmatprep.mubr.f32.mxu0 0.0
        %577 = vmatmul.mubr.f32.gmra.mrb[0].mxu0 %v507
        %v578 = vpop.f32.mrb[0].mxu0
        %v579 = vadd.f32 %v503, %v578
        %v580 = vpop.f32.mrb[0].mxu0
        %581 = vmatprep.mubr.f32.mxu0 0.0
        %582 = vmatmul.mubr.f32.gmra.mrb[0].mxu0 %v510
        %v583 = vpop.f32.mrb[0].mxu0
        %v584 = vadd.f32 %v503, %v583
        %v585 = vpop.f32.mrb[0].mxu0
        %586 = vdwg.mxu0
        %589 = vrot.lane.b32.xlu0 %v579, 120
        %v590 = vpop.permute.xlu0 %589
        %591 = vrot.lane.b32.xlu0 %v584, 120
        %v592 = vpop.permute.xlu0 %591
        %593 = vrot.lane.b32.xlu0 %v579, 112
        %v594 = vpop.permute.xlu0 %593
        %595 = vrot.lane.b32.xlu0 %v584, 112
        %v596 = vpop.permute.xlu0 %595
        %597 = vrot.lane.b32.xlu0 %v579, 104
        %v598 = vpop.permute.xlu0 %597
        %599 = vrot.lane.b32.xlu0 %v584, 104
        %v600 = vpop.permute.xlu0 %599
        %601 = vrot.lane.b32.xlu0 %v579, 96
        %v602 = vpop.permute.xlu0 %601
        %603 = vrot.lane.b32.xlu0 %v584, 96
        %v604 = vpop.permute.xlu0 %603
        %605 = vrot.lane.b32.xlu0 %v579, 88
        %v606 = vpop.permute.xlu0 %605
        %607 = vrot.lane.b32.xlu0 %v584, 88
        %v608 = vpop.permute.xlu0 %607
        %609 = vrot.lane.b32.xlu0 %v579, 80
        %v610 = vpop.permute.xlu0 %609
        %611 = vrot.lane.b32.xlu0 %v584, 80
        %v612 = vpop.permute.xlu0 %611
        %613 = vrot.lane.b32.xlu0 %v579, 72
        %v614 = vpop.permute.xlu0 %613
        %615 = vrot.lane.b32.xlu0 %v584, 72
        %v616 = vpop.permute.xlu0 %615
        %617 = vrot.lane.b32.xlu0 %v579, 64
        %v618 = vpop.permute.xlu0 %617
        %619 = vrot.lane.b32.xlu0 %v584, 64
        %v620 = vpop.permute.xlu0 %619
        %623 = vrot.lane.b32.xlu0 %v579, 56
        %v624 = vpop.permute.xlu0 %623
        %625 = vrot.lane.b32.xlu0 %v584, 56
        %v626 = vpop.permute.xlu0 %625
        %629 = vrot.lane.b32.xlu0 %v579, 48
        %v630 = vpop.permute.xlu0 %629
        %631 = vrot.lane.b32.xlu0 %v584, 48
        %v632 = vpop.permute.xlu0 %631
        %635 = vrot.lane.b32.xlu0 %v579, 40
        %v636 = vpop.permute.xlu0 %635
        %637 = vrot.lane.b32.xlu0 %v584, 40
        %v638 = vpop.permute.xlu0 %637
        %v641 = vld [vmem:[%s3] sm:$0xff]
        %v642 = vld [vmem:[%s3 + $0x8] sm:$0xff]
        %v643 = vld [vmem:[%s3 + $0x10] sm:$0xff]
        %v644 = vld [vmem:[%s3 + $0x18] sm:$0xff]
        %v645 = vld [vmem:[%s4] sm:$0x1]
        %v646 = vld [vmem:[#allocation2] sm:$0x1]
        %v647 = vld [vmem:[#allocation5] sm:$0x1]
        %v648 = vld [vmem:[%s11] sm:$0x1]
        %v649 = vld [vmem:[%s12] sm:$0x1]
        %v650 = vld [vmem:[%s10] sm:$0x1]
        %vm651 = vcmask 64512
        %v652 = vsel %vm651, %v579, 0
        %v654 = vsel %vm651, %v602, 0
        %v656 = vsel %vm651, %v604, 0
        %658 = vmatprep.subr.mxu0 0.0
        %659 = vmatpush1.xpose.msra.mxu0 %v654
        %660 = vmatprep.subr.mxu0 0.0
        %661 = vmatpush1.xpose.msra.mxu0 %v656
        %662 = vmatprep.subr.mxu0 0.0
        %663 = vmatpush1.xpose.msra.mxu0 0.0
        %664 = vmatprep.subr.mxu0 0.0
        %665 = vmatpush1.xpose.msra.mxu0 0.0
        %666 = vmatprep.subr.mxu0 0.0
        %667 = vmatpush1.xpose.msra.mxu0 0.0
        %668 = vmatprep.subr.mxu0 0.0
        %669 = vmatpush1.xpose.msra.mxu0 0.0
        %670 = vmatprep.subr.mxu0 0.0
        %671 = vmatpush1.xpose.msra.mxu0 0.0
        %672 = vmatprep.subr.mxu0 0.0
        %673 = vmatpush1.xpose.msra.mxu0 0.0
        %674 = vmatprep.subr.mxu0 0.0
        %675 = vmatpush1.xpose.msra.mxu0 0.0
        %676 = vmatprep.subr.mxu0 0.0
        %677 = vmatpush1.xpose.msra.mxu0 0.0
        %678 = vmatprep.subr.mxu0 0.0
        %679 = vmatpush1.xpose.msra.mxu0 0.0
        %680 = vmatprep.subr.mxu0 0.0
        %681 = vmatpush1.xpose.msra.mxu0 0.0
        %682 = vmatprep.subr.mxu0 0.0
        %683 = vmatpush1.xpose.msra.mxu0 0.0
        %684 = vmatprep.subr.mxu0 0.0
        %685 = vmatpush1.xpose.msra.mxu0 0.0
        %686 = vmatprep.subr.mxu0 0.0
        %687 = vmatpush1.xpose.msra.mxu0 0.0
        %688 = vmatprep.subr.mxu0 0.0
        %689 = vmatpush1.xpose.msra.mxu0 0.0
        %690 = vmatprep.subr.mxu0 0.0
        %691 = vmatpush1.xpose.msra.mxu0 0.0
        %692 = vmatprep.subr.mxu0 0.0
        %693 = vmatpush1.xpose.msra.mxu0 0.0
        %694 = vmatprep.subr.mxu0 0.0
        %695 = vmatpush1.xpose.msra.mxu0 0.0
        %696 = vmatprep.subr.mxu0 0.0
        %697 = vmatpush1.xpose.msra.mxu0 0.0
        %698 = vmatprep.subr.mxu0 0.0
        %699 = vmatpush1.xpose.msra.mxu0 0.0
        %700 = vmatprep.subr.mxu0 0.0
        %701 = vmatpush1.xpose.msra.mxu0 0.0
        %702 = vmatprep.subr.mxu0 0.0
        %703 = vmatpush1.xpose.msra.mxu0 0.0
        %704 = vmatprep.subr.mxu0 0.0
        %705 = vmatpush1.xpose.msra.mxu0 0.0
        %706 = vmatprep.subr.mxu0 0.0
        %707 = vmatpush1.xpose.msra.mxu0 0.0
        %708 = vmatprep.subr.mxu0 0.0
        %709 = vmatpush1.xpose.msra.mxu0 0.0
        %710 = vmatprep.subr.mxu0 0.0
        %711 = vmatpush1.xpose.msra.mxu0 0.0
        %712 = vmatprep.subr.mxu0 0.0
        %713 = vmatpush1.xpose.msra.mxu0 0.0
        %714 = vmatprep.subr.mxu0 0.0
        %715 = vmatpush1.xpose.msra.mxu0 0.0
        %716 = vmatprep.subr.mxu0 0.0
        %717 = vmatpush1.xpose.msra.mxu0 0.0
        %718 = vmatprep.subr.mxu0 0.0
        %719 = vmatpush1.xpose.msra.mxu0 0.0
        %720 = vmatprep.subr.mxu0 0.0
        %721 = vmatpush1.xpose.msra.mxu0 0.0
        %722 = vmatprep.mubr.f32.mxu0 0.0
        %723 = vmatmul.mubr.f32.gmra.mrb[0].mxu0 %v652
        %v724 = vpop.f32.mrb[0].mxu0
        %v725 = vadd.f32 0.0, %v724
        %v726 = vpop.f32.mrb[0].mxu0
        %727 = vdwg.mxu0
        %v728 = vsel %vm651, %v590, 0
        %v730 = vsel %vm651, %v606, 0
        %v732 = vsel %vm651, %v608, 0
        %734 = vmatprep.subr.mxu0 0.0
        %735 = vmatpush1.xpose.msra.mxu0 %v730
        %736 = vmatprep.subr.mxu0 0.0
        %737 = vmatpush1.xpose.msra.mxu0 %v732
        %738 = vmatprep.subr.mxu0 0.0
        %739 = vmatpush1.xpose.msra.mxu0 0.0
        %740 = vmatprep.subr.mxu0 0.0
        %741 = vmatpush1.xpose.msra.mxu0 0.0
        %742 = vmatprep.subr.mxu0 0.0
        %743 = vmatpush1.xpose.msra.mxu0 0.0
        %744 = vmatprep.subr.mxu0 0.0
        %745 = vmatpush1.xpose.msra.mxu0 0.0
        %746 = vmatprep.subr.mxu0 0.0
        %747 = vmatpush1.xpose.msra.mxu0 0.0
        %748 = vmatprep.subr.mxu0 0.0
        %749 = vmatpush1.xpose.msra.mxu0 0.0
        %750 = vmatprep.subr.mxu0 0.0
        %751 = vmatpush1.xpose.msra.mxu0 0.0
        %752 = vmatprep.subr.mxu0 0.0
        %753 = vmatpush1.xpose.msra.mxu0 0.0
        %754 = vmatprep.subr.mxu0 0.0
        %755 = vmatpush1.xpose.msra.mxu0 0.0
        %756 = vmatprep.subr.mxu0 0.0
        %757 = vmatpush1.xpose.msra.mxu0 0.0
        %758 = vmatprep.subr.mxu0 0.0
        %759 = vmatpush1.xpose.msra.mxu0 0.0
        %760 = vmatprep.subr.mxu0 0.0
        %761 = vmatpush1.xpose.msra.mxu0 0.0
        %762 = vmatprep.subr.mxu0 0.0
        %763 = vmatpush1.xpose.msra.mxu0 0.0
        %764 = vmatprep.subr.mxu0 0.0
        %765 = vmatpush1.xpose.msra.mxu0 0.0
        %766 = vmatprep.subr.mxu0 0.0
        %767 = vmatpush1.xpose.msra.mxu0 0.0
        %768 = vmatprep.subr.mxu0 0.0
        %769 = vmatpush1.xpose.msra.mxu0 0.0
        %770 = vmatprep.subr.mxu0 0.0
        %771 = vmatpush1.xpose.msra.mxu0 0.0
        %772 = vmatprep.subr.mxu0 0.0
        %773 = vmatpush1.xpose.msra.mxu0 0.0
        %774 = vmatprep.subr.mxu0 0.0
        %775 = vmatpush1.xpose.msra.mxu0 0.0
        %776 = vmatprep.subr.mxu0 0.0
        %777 = vmatpush1.xpose.msra.mxu0 0.0
        %778 = vmatprep.subr.mxu0 0.0
        %779 = vmatpush1.xpose.msra.mxu0 0.0
        %780 = vmatprep.subr.mxu0 0.0
        %781 = vmatpush1.xpose.msra.mxu0 0.0
        %782 = vmatprep.subr.mxu0 0.0
        %783 = vmatpush1.xpose.msra.mxu0 0.0
        %784 = vmatprep.subr.mxu0 0.0
        %785 = vmatpush1.xpose.msra.mxu0 0.0
        %786 = vmatprep.subr.mxu0 0.0
        %787 = vmatpush1.xpose.msra.mxu0 0.0
        %788 = vmatprep.subr.mxu0 0.0
        %789 = vmatpush1.xpose.msra.mxu0 0.0
        %790 = vmatprep.subr.mxu0 0.0
        %791 = vmatpush1.xpose.msra.mxu0 0.0
        %792 = vmatprep.subr.mxu0 0.0
        %793 = vmatpush1.xpose.msra.mxu0 0.0
        %794 = vmatprep.subr.mxu0 0.0
        %795 = vmatpush1.xpose.msra.mxu0 0.0
        %796 = vmatprep.subr.mxu0 0.0
        %797 = vmatpush1.xpose.msra.mxu0 0.0
        %798 = vmatprep.mubr.f32.mxu0 0.0
        %799 = vmatmul.mubr.f32.gmra.mrb[0].mxu0 %v728
        %v800 = vpop.f32.mrb[0].mxu0
        %v801 = vadd.f32 0.0, %v800
        %v802 = vpop.f32.mrb[0].mxu0
        %803 = vdwg.mxu0
        %v804 = vsel %vm651, %v594, 0
        %v806 = vsel %vm651, %v610, 0
        %v808 = vsel %vm651, %v612, 0
        %810 = vmatprep.subr.mxu0 0.0
        %811 = vmatpush1.xpose.msra.mxu0 %v806
        %812 = vmatprep.subr.mxu0 0.0
        %813 = vmatpush1.xpose.msra.mxu0 %v808
        %814 = vmatprep.subr.mxu0 0.0
        %815 = vmatpush1.xpose.msra.mxu0 0.0
        %816 = vmatprep.subr.mxu0 0.0
        %817 = vmatpush1.xpose.msra.mxu0 0.0
        %818 = vmatprep.subr.mxu0 0.0
        %819 = vmatpush1.xpose.msra.mxu0 0.0
        %820 = vmatprep.subr.mxu0 0.0
        %821 = vmatpush1.xpose.msra.mxu0 0.0
        %822 = vmatprep.subr.mxu0 0.0
        %823 = vmatpush1.xpose.msra.mxu0 0.0
        %824 = vmatprep.subr.mxu0 0.0
        %825 = vmatpush1.xpose.msra.mxu0 0.0
        %826 = vmatprep.subr.mxu0 0.0
        %827 = vmatpush1.xpose.msra.mxu0 0.0
        %828 = vmatprep.subr.mxu0 0.0
        %829 = vmatpush1.xpose.msra.mxu0 0.0
        %830 = vmatprep.subr.mxu0 0.0
        %831 = vmatpush1.xpose.msra.mxu0 0.0
        %832 = vmatprep.subr.mxu0 0.0
        %833 = vmatpush1.xpose.msra.mxu0 0.0
        %834 = vmatprep.subr.mxu0 0.0
        %835 = vmatpush1.xpose.msra.mxu0 0.0
        %836 = vmatprep.subr.mxu0 0.0
        %837 = vmatpush1.xpose.msra.mxu0 0.0
        %838 = vmatprep.subr.mxu0 0.0
        %839 = vmatpush1.xpose.msra.mxu0 0.0
        %840 = vmatprep.subr.mxu0 0.0
        %841 = vmatpush1.xpose.msra.mxu0 0.0
        %842 = vmatprep.subr.mxu0 0.0
        %843 = vmatpush1.xpose.msra.mxu0 0.0
        %844 = vmatprep.subr.mxu0 0.0
        %845 = vmatpush1.xpose.msra.mxu0 0.0
        %846 = vmatprep.subr.mxu0 0.0
        %847 = vmatpush1.xpose.msra.mxu0 0.0
        %848 = vmatprep.subr.mxu0 0.0
        %849 = vmatpush1.xpose.msra.mxu0 0.0
        %850 = vmatprep.subr.mxu0 0.0
        %851 = vmatpush1.xpose.msra.mxu0 0.0
        %852 = vmatprep.subr.mxu0 0.0
        %853 = vmatpush1.xpose.msra.mxu0 0.0
        %854 = vmatprep.subr.mxu0 0.0
        %855 = vmatpush1.xpose.msra.mxu0 0.0
        %856 = vmatprep.subr.mxu0 0.0
        %857 = vmatpush1.xpose.msra.mxu0 0.0
        %858 = vmatprep.subr.mxu0 0.0
        %859 = vmatpush1.xpose.msra.mxu0 0.0
        %860 = vmatprep.subr.mxu0 0.0
        %861 = vmatpush1.xpose.msra.mxu0 0.0
        %862 = vmatprep.subr.mxu0 0.0
        %863 = vmatpush1.xpose.msra.mxu0 0.0
        %864 = vmatprep.subr.mxu0 0.0
        %865 = vmatpush1.xpose.msra.mxu0 0.0
        %866 = vmatprep.subr.mxu0 0.0
        %867 = vmatpush1.xpose.msra.mxu0 0.0
        %868 = vmatprep.subr.mxu0 0.0
        %869 = vmatpush1.xpose.msra.mxu0 0.0
        %870 = vmatprep.subr.mxu0 0.0
        %871 = vmatpush1.xpose.msra.mxu0 0.0
        %872 = vmatprep.subr.mxu0 0.0
        %873 = vmatpush1.xpose.msra.mxu0 0.0
        %874 = vmatprep.mubr.f32.mxu0 0.0
        %875 = vmatmul.mubr.f32.gmra.mrb[0].mxu0 %v804
        %v876 = vpop.f32.mrb[0].mxu0
        %v877 = vadd.f32 0.0, %v876
        %v878 = vpop.f32.mrb[0].mxu0
        %879 = vdwg.mxu0
        %v880 = vsel %vm651, %v598, 0
        %v882 = vsel %vm651, %v614, 0
        %v884 = vsel %vm651, %v616, 0
        %886 = vmatprep.subr.mxu0 0.0
        %887 = vmatpush1.xpose.msra.mxu0 %v882
        %888 = vmatprep.subr.mxu0 0.0
        %889 = vmatpush1.xpose.msra.mxu0 %v884
        %890 = vmatprep.subr.mxu0 0.0
        %891 = vmatpush1.xpose.msra.mxu0 0.0
        %892 = vmatprep.subr.mxu0 0.0
        %893 = vmatpush1.xpose.msra.mxu0 0.0
        %894 = vmatprep.subr.mxu0 0.0
        %895 = vmatpush1.xpose.msra.mxu0 0.0
        %896 = vmatprep.subr.mxu0 0.0
        %897 = vmatpush1.xpose.msra.mxu0 0.0
        %898 = vmatprep.subr.mxu0 0.0
        %899 = vmatpush1.xpose.msra.mxu0 0.0
        %900 = vmatprep.subr.mxu0 0.0
        %901 = vmatpush1.xpose.msra.mxu0 0.0
        %902 = vmatprep.subr.mxu0 0.0
        %903 = vmatpush1.xpose.msra.mxu0 0.0
        %904 = vmatprep.subr.mxu0 0.0
        %905 = vmatpush1.xpose.msra.mxu0 0.0
        %906 = vmatprep.subr.mxu0 0.0
        %907 = vmatpush1.xpose.msra.mxu0 0.0
        %908 = vmatprep.subr.mxu0 0.0
        %909 = vmatpush1.xpose.msra.mxu0 0.0
        %910 = vmatprep.subr.mxu0 0.0
        %911 = vmatpush1.xpose.msra.mxu0 0.0
        %912 = vmatprep.subr.mxu0 0.0
        %913 = vmatpush1.xpose.msra.mxu0 0.0
        %914 = vmatprep.subr.mxu0 0.0
        %915 = vmatpush1.xpose.msra.mxu0 0.0
        %916 = vmatprep.subr.mxu0 0.0
        %917 = vmatpush1.xpose.msra.mxu0 0.0
        %918 = vmatprep.subr.mxu0 0.0
        %919 = vmatpush1.xpose.msra.mxu0 0.0
        %920 = vmatprep.subr.mxu0 0.0
        %921 = vmatpush1.xpose.msra.mxu0 0.0
        %922 = vmatprep.subr.mxu0 0.0
        %923 = vmatpush1.xpose.msra.mxu0 0.0
        %924 = vmatprep.subr.mxu0 0.0
        %925 = vmatpush1.xpose.msra.mxu0 0.0
        %926 = vmatprep.subr.mxu0 0.0
        %927 = vmatpush1.xpose.msra.mxu0 0.0
        %928 = vmatprep.subr.mxu0 0.0
        %929 = vmatpush1.xpose.msra.mxu0 0.0
        %930 = vmatprep.subr.mxu0 0.0
        %931 = vmatpush1.xpose.msra.mxu0 0.0
        %932 = vmatprep.subr.mxu0 0.0
        %933 = vmatpush1.xpose.msra.mxu0 0.0
        %934 = vmatprep.subr.mxu0 0.0
        %935 = vmatpush1.xpose.msra.mxu0 0.0
        %936 = vmatprep.subr.mxu0 0.0
        %937 = vmatpush1.xpose.msra.mxu0 0.0
        %938 = vmatprep.subr.mxu0 0.0
        %939 = vmatpush1.xpose.msra.mxu0 0.0
        %940 = vmatprep.subr.mxu0 0.0
        %941 = vmatpush1.xpose.msra.mxu0 0.0
        %942 = vmatprep.subr.mxu0 0.0
        %943 = vmatpush1.xpose.msra.mxu0 0.0
        %944 = vmatprep.subr.mxu0 0.0
        %945 = vmatpush1.xpose.msra.mxu0 0.0
        %946 = vmatprep.subr.mxu0 0.0
        %947 = vmatpush1.xpose.msra.mxu0 0.0
        %948 = vmatprep.subr.mxu0 0.0
        %949 = vmatpush1.xpose.msra.mxu0 0.0
        %950 = vmatprep.mubr.f32.mxu0 0.0
        %951 = vmatmul.mubr.f32.gmra.mrb[0].mxu0 %v880
        %v952 = vpop.f32.mrb[0].mxu0
        %v953 = vadd.f32 0.0, %v952
        %v954 = vpop.f32.mrb[0].mxu0
        %955 = vdwg.mxu0
        %v956 = vmul.f32 %v725, 0.35355338
        %v957 = vmul.f32 %v801, 0.35355338
        %v958 = vmul.f32 %v877, 0.35355338
        %v959 = vmul.f32 %v953, 0.35355338
        %vm960 = vcmask 130048
        %v961 = vsel %vm960, %v956, -inf
        %962 = vmax.xlane.f32.xlu0 %v961
        %v963 = vpop.xlane.xlu0 %962
        %v964 = vsel %vm960, %v957, -inf
        %965 = vmax.xlane.f32.xlu0 %v964
        %v966 = vpop.xlane.xlu0 %965
        %v967 = vsel %vm960, %v958, -inf
        %968 = vmax.xlane.f32.xlu0 %v967
        %v969 = vpop.xlane.xlu0 %968
        %v970 = vsel %vm960, %v959, -inf
        %971 = vmax.xlane.f32.xlu0 %v970
        %v972 = vpop.xlane.xlu0 %971
        %v973 = vsub.f32 %v956, %v963
        %v974 = vsub.f32 %v957, %v966
        %v975 = vsub.f32 %v958, %v969
        %v976 = vsub.f32 %v959, %v972
        %v977 = vmul.f32 %v973, 1.442695
        %v978 = vpow.pop %v977
        %v979 = vmul.f32 %v974, 1.442695
        %v980 = vpow.pop %v979
        %v981 = vmul.f32 %v975, 1.442695
        %v982 = vpow.pop %v981
        %v983 = vmul.f32 %v976, 1.442695
        %v984 = vpow.pop %v983
        %v985 = vsel %vm960, %v978, 0.0
        %986 = vadd.xlane.f32.xlu0 %v985
        %v987 = vpop.xlane.xlu0 %986
        %v988 = vsel %vm960, %v980, 0.0
        %989 = vadd.xlane.f32.xlu0 %v988
        %v990 = vpop.xlane.xlu0 %989
        %v991 = vsel %vm960, %v982, 0.0
        %992 = vadd.xlane.f32.xlu0 %v991
        %v993 = vpop.xlane.xlu0 %992
        %v994 = vsel %vm960, %v984, 0.0
        %995 = vadd.xlane.f32.xlu0 %v994
        %v996 = vpop.xlane.xlu0 %995
        %v997 = vrcp.pop %v987
        %v998 = vrcp.pop %v990
        %v999 = vrcp.pop %v993
        %v1000 = vrcp.pop %v996
        %v1001 = vmul.f32 %v978, %v997
        %v1002 = vmul.f32 %v980, %v998
        %v1003 = vmul.f32 %v982, %v999
        %v1004 = vmul.f32 %v984, %v1000
        %v1006 = vsel %vm960, %v1001, 0
        %1008 = vmatprep.subr.mxu0 0.0
        %1009 = vmatpush1.msra.mxu0 %v618
        %1010 = vmatprep.subr.mxu0 0.0
        %1011 = vmatpush1.msra.mxu0 %v620
        %1012 = vmatprep.subr.mxu0 0.0
        %1013 = vmatpush1.msra.mxu0 0.0
        %1014 = vmatprep.subr.mxu0 0.0
        %1015 = vmatpush1.msra.mxu0 0.0
        %1016 = vmatprep.subr.mxu0 0.0
        %1017 = vmatpush1.msra.mxu0 0.0
        %1018 = vmatprep.subr.mxu0 0.0
        %1019 = vmatpush1.msra.mxu0 0.0
        %1020 = vmatprep.subr.mxu0 0.0
        %1021 = vmatpush1.msra.mxu0 0.0
        %1022 = vmatprep.subr.mxu0 0.0
        %1023 = vmatpush1.msra.mxu0 0.0
        %1024 = vmatprep.subr.mxu0 0.0
        %1025 = vmatpush1.msra.mxu0 0.0
        %1026 = vmatprep.subr.mxu0 0.0
        %1027 = vmatpush1.msra.mxu0 0.0
        %1028 = vmatprep.subr.mxu0 0.0
        %1029 = vmatpush1.msra.mxu0 0.0
        %1030 = vmatprep.subr.mxu0 0.0
        %1031 = vmatpush1.msra.mxu0 0.0
        %1032 = vmatprep.subr.mxu0 0.0
        %1033 = vmatpush1.msra.mxu0 0.0
        %1034 = vmatprep.subr.mxu0 0.0
        %1035 = vmatpush1.msra.mxu0 0.0
        %1036 = vmatprep.subr.mxu0 0.0
        %1037 = vmatpush1.msra.mxu0 0.0
        %1038 = vmatprep.subr.mxu0 0.0
        %1039 = vmatpush1.msra.mxu0 0.0
        %1040 = vmatprep.subr.mxu0 0.0
        %1041 = vmatpush1.msra.mxu0 0.0
        %1042 = vmatprep.subr.mxu0 0.0
        %1043 = vmatpush1.msra.mxu0 0.0
        %1044 = vmatprep.subr.mxu0 0.0
        %1045 = vmatpush1.msra.mxu0 0.0
        %1046 = vmatprep.subr.mxu0 0.0
        %1047 = vmatpush1.msra.mxu0 0.0
        %1048 = vmatprep.subr.mxu0 0.0
        %1049 = vmatpush1.msra.mxu0 0.0
        %1050 = vmatprep.subr.mxu0 0.0
        %1051 = vmatpush1.msra.mxu0 0.0
        %1052 = vmatprep.subr.mxu0 0.0
        %1053 = vmatpush1.msra.mxu0 0.0
        %1054 = vmatprep.subr.mxu0 0.0
        %1055 = vmatpush1.msra.mxu0 0.0
        %1056 = vmatprep.subr.mxu0 0.0
        %1057 = vmatpush1.msra.mxu0 0.0
        %1058 = vmatprep.subr.mxu0 0.0
        %1059 = vmatpush1.msra.mxu0 0.0
        %1060 = vmatprep.subr.mxu0 0.0
        %1061 = vmatpush1.msra.mxu0 0.0
        %1062 = vmatprep.subr.mxu0 0.0
        %1063 = vmatpush1.msra.mxu0 0.0
        %1064 = vmatprep.subr.mxu0 0.0
        %1065 = vmatpush1.msra.mxu0 0.0
        %1066 = vmatprep.subr.mxu0 0.0
        %1067 = vmatpush1.msra.mxu0 0.0
        %1068 = vmatprep.subr.mxu0 0.0
        %1069 = vmatpush1.msra.mxu0 0.0
        %1070 = vmatprep.subr.mxu0 0.0
        %1071 = vmatpush1.msra.mxu0 0.0
        %1072 = vmatprep.mubr.f32.mxu0 0.0
        %1073 = vmatmul.mubr.f32.gmra.mrb[0].mxu0 %v1006
        %v1074 = vpop.f32.mrb[0].mxu0
        %v1075 = vadd.f32 0.0, %v1074
        %v1076 = vpop.f32.mrb[0].mxu0
        %1077 = vdwg.mxu0
        %v1079 = vsel %vm960, %v1002, 0
        %1081 = vmatprep.subr.mxu0 0.0
        %1082 = vmatpush1.msra.mxu0 %v624
        %1083 = vmatprep.subr.mxu0 0.0
        %1084 = vmatpush1.msra.mxu0 %v626
        %1085 = vmatprep.subr.mxu0 0.0
        %1086 = vmatpush1.msra.mxu0 0.0
        %1087 = vmatprep.subr.mxu0 0.0
        %1088 = vmatpush1.msra.mxu0 0.0
        %1089 = vmatprep.subr.mxu0 0.0
        %1090 = vmatpush1.msra.mxu0 0.0
        %1091 = vmatprep.subr.mxu0 0.0
        %1092 = vmatpush1.msra.mxu0 0.0
        %1093 = vmatprep.subr.mxu0 0.0
        %1094 = vmatpush1.msra.mxu0 0.0
        %1095 = vmatprep.subr.mxu0 0.0
        %1096 = vmatpush1.msra.mxu0 0.0
        %1097 = vmatprep.subr.mxu0 0.0
        %1098 = vmatpush1.msra.mxu0 0.0
        %1099 = vmatprep.subr.mxu0 0.0
        %1100 = vmatpush1.msra.mxu0 0.0
        %1101 = vmatprep.subr.mxu0 0.0
        %1102 = vmatpush1.msra.mxu0 0.0
        %1103 = vmatprep.subr.mxu0 0.0
        %1104 = vmatpush1.msra.mxu0 0.0
        %1105 = vmatprep.subr.mxu0 0.0
        %1106 = vmatpush1.msra.mxu0 0.0
        %1107 = vmatprep.subr.mxu0 0.0
        %1108 = vmatpush1.msra.mxu0 0.0
        %1109 = vmatprep.subr.mxu0 0.0
        %1110 = vmatpush1.msra.mxu0 0.0
        %1111 = vmatprep.subr.mxu0 0.0
        %1112 = vmatpush1.msra.mxu0 0.0
        %1113 = vmatprep.subr.mxu0 0.0
        %1114 = vmatpush1.msra.mxu0 0.0
        %1115 = vmatprep.subr.mxu0 0.0
        %1116 = vmatpush1.msra.mxu0 0.0
        %1117 = vmatprep.subr.mxu0 0.0
        %1118 = vmatpush1.msra.mxu0 0.0
        %1119 = vmatprep.subr.mxu0 0.0
        %1120 = vmatpush1.msra.mxu0 0.0
        %1121 = vmatprep.subr.mxu0 0.0
        %1122 = vmatpush1.msra.mxu0 0.0
        %1123 = vmatprep.subr.mxu0 0.0
        %1124 = vmatpush1.msra.mxu0 0.0
        %1125 = vmatprep.subr.mxu0 0.0
        %1126 = vmatpush1.msra.mxu0 0.0
        %1127 = vmatprep.subr.mxu0 0.0
        %1128 = vmatpush1.msra.mxu0 0.0
        %1129 = vmatprep.subr.mxu0 0.0
        %1130 = vmatpush1.msra.mxu0 0.0
        %1131 = vmatprep.subr.mxu0 0.0
        %1132 = vmatpush1.msra.mxu0 0.0
        %1133 = vmatprep.subr.mxu0 0.0
        %1134 = vmatpush1.msra.mxu0 0.0
        %1135 = vmatprep.subr.mxu0 0.0
        %1136 = vmatpush1.msra.mxu0 0.0
        %1137 = vmatprep.subr.mxu0 0.0
        %1138 = vmatpush1.msra.mxu0 0.0
        %1139 = vmatprep.subr.mxu0 0.0
        %1140 = vmatpush1.msra.mxu0 0.0
        %1141 = vmatprep.subr.mxu0 0.0
        %1142 = vmatpush1.msra.mxu0 0.0
        %1143 = vmatprep.subr.mxu0 0.0
        %1144 = vmatpush1.msra.mxu0 0.0
        %1145 = vmatprep.mubr.f32.mxu0 0.0
        %1146 = vmatmul.mubr.f32.gmra.mrb[0].mxu0 %v1079
        %v1147 = vpop.f32.mrb[0].mxu0
        %v1148 = vadd.f32 0.0, %v1147
        %v1149 = vpop.f32.mrb[0].mxu0
        %1150 = vdwg.mxu0
        %v1152 = vsel %vm960, %v1003, 0
        %1154 = vmatprep.subr.mxu0 0.0
        %1155 = vmatpush1.msra.mxu0 %v630
        %1156 = vmatprep.subr.mxu0 0.0
        %1157 = vmatpush1.msra.mxu0 %v632
        %1158 = vmatprep.subr.mxu0 0.0
        %1159 = vmatpush1.msra.mxu0 0.0
        %1160 = vmatprep.subr.mxu0 0.0
        %1161 = vmatpush1.msra.mxu0 0.0
        %1162 = vmatprep.subr.mxu0 0.0
        %1163 = vmatpush1.msra.mxu0 0.0
        %1164 = vmatprep.subr.mxu0 0.0
        %1165 = vmatpush1.msra.mxu0 0.0
        %1166 = vmatprep.subr.mxu0 0.0
        %1167 = vmatpush1.msra.mxu0 0.0
        %1168 = vmatprep.subr.mxu0 0.0
        %1169 = vmatpush1.msra.mxu0 0.0
        %1170 = vmatprep.subr.mxu0 0.0
        %1171 = vmatpush1.msra.mxu0 0.0
        %1172 = vmatprep.subr.mxu0 0.0
        %1173 = vmatpush1.msra.mxu0 0.0
        %1174 = vmatprep.subr.mxu0 0.0
        %1175 = vmatpush1.msra.mxu0 0.0
        %1176 = vmatprep.subr.mxu0 0.0
        %1177 = vmatpush1.msra.mxu0 0.0
        %1178 = vmatprep.subr.mxu0 0.0
        %1179 = vmatpush1.msra.mxu0 0.0
        %1180 = vmatprep.subr.mxu0 0.0
        %1181 = vmatpush1.msra.mxu0 0.0
        %1182 = vmatprep.subr.mxu0 0.0
        %1183 = vmatpush1.msra.mxu0 0.0
        %1184 = vmatprep.subr.mxu0 0.0
        %1185 = vmatpush1.msra.mxu0 0.0
        %1186 = vmatprep.subr.mxu0 0.0
        %1187 = vmatpush1.msra.mxu0 0.0
        %1188 = vmatprep.subr.mxu0 0.0
        %1189 = vmatpush1.msra.mxu0 0.0
        %1190 = vmatprep.subr.mxu0 0.0
        %1191 = vmatpush1.msra.mxu0 0.0
        %1192 = vmatprep.subr.mxu0 0.0
        %1193 = vmatpush1.msra.mxu0 0.0
        %1194 = vmatprep.subr.mxu0 0.0
        %1195 = vmatpush1.msra.mxu0 0.0
        %1196 = vmatprep.subr.mxu0 0.0
        %1197 = vmatpush1.msra.mxu0 0.0
        %1198 = vmatprep.subr.mxu0 0.0
        %1199 = vmatpush1.msra.mxu0 0.0
        %1200 = vmatprep.subr.mxu0 0.0
        %1201 = vmatpush1.msra.mxu0 0.0
        %1202 = vmatprep.subr.mxu0 0.0
        %1203 = vmatpush1.msra.mxu0 0.0
        %1204 = vmatprep.subr.mxu0 0.0
        %1205 = vmatpush1.msra.mxu0 0.0
        %1206 = vmatprep.subr.mxu0 0.0
        %1207 = vmatpush1.msra.mxu0 0.0
        %1208 = vmatprep.subr.mxu0 0.0
        %1209 = vmatpush1.msra.mxu0 0.0
        %1210 = vmatprep.subr.mxu0 0.0
        %1211 = vmatpush1.msra.mxu0 0.0
        %1212 = vmatprep.subr.mxu0 0.0
        %1213 = vmatpush1.msra.mxu0 0.0
        %1214 = vmatprep.subr.mxu0 0.0
        %1215 = vmatpush1.msra.mxu0 0.0
        %1216 = vmatprep.subr.mxu0 0.0
        %1217 = vmatpush1.msra.mxu0 0.0
        %1218 = vmatprep.mubr.f32.mxu0 0.0
        %1219 = vmatmul.mubr.f32.gmra.mrb[0].mxu0 %v1152
        %v1220 = vpop.f32.mrb[0].mxu0
        %v1221 = vadd.f32 0.0, %v1220
        %v1222 = vpop.f32.mrb[0].mxu0
        %1223 = vdwg.mxu0
        %v1225 = vsel %vm960, %v1004, 0
        %1227 = vmatprep.subr.mxu0 0.0
        %1228 = vmatpush1.msra.mxu0 %v636
        %1229 = vmatprep.subr.mxu0 0.0
        %1230 = vmatpush1.msra.mxu0 %v638
        %1231 = vmatprep.subr.mxu0 0.0
        %1232 = vmatpush1.msra.mxu0 0.0
        %1233 = vmatprep.subr.mxu0 0.0
        %1234 = vmatpush1.msra.mxu0 0.0
        %1235 = vmatprep.subr.mxu0 0.0
        %1236 = vmatpush1.msra.mxu0 0.0
        %1237 = vmatprep.subr.mxu0 0.0
        %1238 = vmatpush1.msra.mxu0 0.0
        %1239 = vmatprep.subr.mxu0 0.0
        %1240 = vmatpush1.msra.mxu0 0.0
        %1241 = vmatprep.subr.mxu0 0.0
        %1242 = vmatpush1.msra.mxu0 0.0
        %1243 = vmatprep.subr.mxu0 0.0
        %1244 = vmatpush1.msra.mxu0 0.0
        %1245 = vmatprep.subr.mxu0 0.0
        %1246 = vmatpush1.msra.mxu0 0.0
        %1247 = vmatprep.subr.mxu0 0.0
        %1248 = vmatpush1.msra.mxu0 0.0
        %1249 = vmatprep.subr.mxu0 0.0
        %1250 = vmatpush1.msra.mxu0 0.0
        %1251 = vmatprep.subr.mxu0 0.0
        %1252 = vmatpush1.msra.mxu0 0.0
        %1253 = vmatprep.subr.mxu0 0.0
        %1254 = vmatpush1.msra.mxu0 0.0
        %1255 = vmatprep.subr.mxu0 0.0
        %1256 = vmatpush1.msra.mxu0 0.0
        %1257 = vmatprep.subr.mxu0 0.0
        %1258 = vmatpush1.msra.mxu0 0.0
        %1259 = vmatprep.subr.mxu0 0.0
        %1260 = vmatpush1.msra.mxu0 0.0
        %1261 = vmatprep.subr.mxu0 0.0
        %1262 = vmatpush1.msra.mxu0 0.0
        %1263 = vmatprep.subr.mxu0 0.0
        %1264 = vmatpush1.msra.mxu0 0.0
        %1265 = vmatprep.subr.mxu0 0.0
        %1266 = vmatpush1.msra.mxu0 0.0
        %1267 = vmatprep.subr.mxu0 0.0
        %1268 = vmatpush1.msra.mxu0 0.0
        %1269 = vmatprep.subr.mxu0 0.0
        %1270 = vmatpush1.msra.mxu0 0.0
        %1271 = vmatprep.subr.mxu0 0.0
        %1272 = vmatpush1.msra.mxu0 0.0
        %1273 = vmatprep.subr.mxu0 0.0
        %1274 = vmatpush1.msra.mxu0 0.0
        %1275 = vmatprep.subr.mxu0 0.0
        %1276 = vmatpush1.msra.mxu0 0.0
        %1277 = vmatprep.subr.mxu0 0.0
        %1278 = vmatpush1.msra.mxu0 0.0
        %1279 = vmatprep.subr.mxu0 0.0
        %1280 = vmatpush1.msra.mxu0 0.0
        %1281 = vmatprep.subr.mxu0 0.0
        %1282 = vmatpush1.msra.mxu0 0.0
        %1283 = vmatprep.subr.mxu0 0.0
        %1284 = vmatpush1.msra.mxu0 0.0
        %1285 = vmatprep.subr.mxu0 0.0
        %1286 = vmatpush1.msra.mxu0 0.0
        %1287 = vmatprep.subr.mxu0 0.0
        %1288 = vmatpush1.msra.mxu0 0.0
        %1289 = vmatprep.subr.mxu0 0.0
        %1290 = vmatpush1.msra.mxu0 0.0
        %1291 = vmatprep.mubr.f32.mxu0 0.0
        %1292 = vmatmul.mubr.f32.gmra.mrb[0].mxu0 %v1225
        %v1293 = vpop.f32.mrb[0].mxu0
        %v1294 = vadd.f32 0.0, %v1293
        %v1295 = vpop.f32.mrb[0].mxu0
        %1296 = vdwg.mxu0
        %v1298 = vsel %vm651, %v1075, 0
        %1300 = vmatprep.subr.mxu0 0.0
        %1301 = vmatpush1.msra.mxu0 %v641
        %1302 = vmatprep.subr.mxu0 0.0
        %1303 = vmatpush1.msra.mxu0 0.0
        %1304 = vmatprep.subr.mxu0 0.0
        %1305 = vmatpush1.msra.mxu0 0.0
        %1306 = vmatprep.subr.mxu0 0.0
        %1307 = vmatpush1.msra.mxu0 0.0
        %1308 = vmatprep.subr.mxu0 0.0
        %1309 = vmatpush1.msra.mxu0 0.0
        %1310 = vmatprep.subr.mxu0 0.0
        %1311 = vmatpush1.msra.mxu0 0.0
        %1312 = vmatprep.subr.mxu0 0.0
        %1313 = vmatpush1.msra.mxu0 0.0
        %1314 = vmatprep.subr.mxu0 0.0
        %1315 = vmatpush1.msra.mxu0 0.0
        %1316 = vmatprep.subr.mxu0 0.0
        %1317 = vmatpush1.msra.mxu0 0.0
        %1318 = vmatprep.subr.mxu0 0.0
        %1319 = vmatpush1.msra.mxu0 0.0
        %1320 = vmatprep.subr.mxu0 0.0
        %1321 = vmatpush1.msra.mxu0 0.0
        %1322 = vmatprep.subr.mxu0 0.0
        %1323 = vmatpush1.msra.mxu0 0.0
        %1324 = vmatprep.subr.mxu0 0.0
        %1325 = vmatpush1.msra.mxu0 0.0
        %1326 = vmatprep.subr.mxu0 0.0
        %1327 = vmatpush1.msra.mxu0 0.0
        %1328 = vmatprep.subr.mxu0 0.0
        %1329 = vmatpush1.msra.mxu0 0.0
        %1330 = vmatprep.subr.mxu0 0.0
        %1331 = vmatpush1.msra.mxu0 0.0
        %1332 = vmatprep.subr.mxu0 0.0
        %1333 = vmatpush1.msra.mxu0 0.0
        %1334 = vmatprep.subr.mxu0 0.0
        %1335 = vmatpush1.msra.mxu0 0.0
        %1336 = vmatprep.subr.mxu0 0.0
        %1337 = vmatpush1.msra.mxu0 0.0
        %1338 = vmatprep.subr.mxu0 0.0
        %1339 = vmatpush1.msra.mxu0 0.0
        %1340 = vmatprep.subr.mxu0 0.0
        %1341 = vmatpush1.msra.mxu0 0.0
        %1342 = vmatprep.subr.mxu0 0.0
        %1343 = vmatpush1.msra.mxu0 0.0
        %1344 = vmatprep.subr.mxu0 0.0
        %1345 = vmatpush1.msra.mxu0 0.0
        %1346 = vmatprep.subr.mxu0 0.0
        %1347 = vmatpush1.msra.mxu0 0.0
        %1348 = vmatprep.subr.mxu0 0.0
        %1349 = vmatpush1.msra.mxu0 0.0
        %1350 = vmatprep.subr.mxu0 0.0
        %1351 = vmatpush1.msra.mxu0 0.0
        %1352 = vmatprep.subr.mxu0 0.0
        %1353 = vmatpush1.msra.mxu0 0.0
        %1354 = vmatprep.subr.mxu0 0.0
        %1355 = vmatpush1.msra.mxu0 0.0
        %1356 = vmatprep.subr.mxu0 0.0
        %1357 = vmatpush1.msra.mxu0 0.0
        %1358 = vmatprep.subr.mxu0 0.0
        %1359 = vmatpush1.msra.mxu0 0.0
        %1360 = vmatprep.subr.mxu0 0.0
        %1361 = vmatpush1.msra.mxu0 0.0
        %1362 = vmatprep.subr.mxu0 0.0
        %1363 = vmatpush1.msra.mxu0 0.0
        %1364 = vmatprep.mubr.f32.mxu0 0.0
        %1365 = vmatmul.mubr.f32.gmra.mrb[0].mxu0 %v1298
        %v1366 = vpop.f32.mrb[0].mxu0
        %v1367 = vadd.f32 0.0, %v1366
        %v1368 = vpop.f32.mrb[0].mxu0
        %1369 = vdwg.mxu0
        %v1371 = vsel %vm651, %v1148, 0
        %1373 = vmatprep.subr.mxu0 0.0
        %1374 = vmatpush1.msra.mxu0 %v642
        %1375 = vmatprep.subr.mxu0 0.0
        %1376 = vmatpush1.msra.mxu0 0.0
        %1377 = vmatprep.subr.mxu0 0.0
        %1378 = vmatpush1.msra.mxu0 0.0
        %1379 = vmatprep.subr.mxu0 0.0
        %1380 = vmatpush1.msra.mxu0 0.0
        %1381 = vmatprep.subr.mxu0 0.0
        %1382 = vmatpush1.msra.mxu0 0.0
        %1383 = vmatprep.subr.mxu0 0.0
        %1384 = vmatpush1.msra.mxu0 0.0
        %1385 = vmatprep.subr.mxu0 0.0
        %1386 = vmatpush1.msra.mxu0 0.0
        %1387 = vmatprep.subr.mxu0 0.0
        %1388 = vmatpush1.msra.mxu0 0.0
        %1389 = vmatprep.subr.mxu0 0.0
        %1390 = vmatpush1.msra.mxu0 0.0
        %1391 = vmatprep.subr.mxu0 0.0
        %1392 = vmatpush1.msra.mxu0 0.0
        %1393 = vmatprep.subr.mxu0 0.0
        %1394 = vmatpush1.msra.mxu0 0.0
        %1395 = vmatprep.subr.mxu0 0.0
        %1396 = vmatpush1.msra.mxu0 0.0
        %1397 = vmatprep.subr.mxu0 0.0
        %1398 = vmatpush1.msra.mxu0 0.0
        %1399 = vmatprep.subr.mxu0 0.0
        %1400 = vmatpush1.msra.mxu0 0.0
        %1401 = vmatprep.subr.mxu0 0.0
        %1402 = vmatpush1.msra.mxu0 0.0
        %1403 = vmatprep.subr.mxu0 0.0
        %1404 = vmatpush1.msra.mxu0 0.0
        %1405 = vmatprep.subr.mxu0 0.0
        %1406 = vmatpush1.msra.mxu0 0.0
        %1407 = vmatprep.subr.mxu0 0.0
        %1408 = vmatpush1.msra.mxu0 0.0
        %1409 = vmatprep.subr.mxu0 0.0
        %1410 = vmatpush1.msra.mxu0 0.0
        %1411 = vmatprep.subr.mxu0 0.0
        %1412 = vmatpush1.msra.mxu0 0.0
        %1413 = vmatprep.subr.mxu0 0.0
        %1414 = vmatpush1.msra.mxu0 0.0
        %1415 = vmatprep.subr.mxu0 0.0
        %1416 = vmatpush1.msra.mxu0 0.0
        %1417 = vmatprep.subr.mxu0 0.0
        %1418 = vmatpush1.msra.mxu0 0.0
        %1419 = vmatprep.subr.mxu0 0.0
        %1420 = vmatpush1.msra.mxu0 0.0
        %1421 = vmatprep.subr.mxu0 0.0
        %1422 = vmatpush1.msra.mxu0 0.0
        %1423 = vmatprep.subr.mxu0 0.0
        %1424 = vmatpush1.msra.mxu0 0.0
        %1425 = vmatprep.subr.mxu0 0.0
        %1426 = vmatpush1.msra.mxu0 0.0
        %1427 = vmatprep.subr.mxu0 0.0
        %1428 = vmatpush1.msra.mxu0 0.0
        %1429 = vmatprep.subr.mxu0 0.0
        %1430 = vmatpush1.msra.mxu0 0.0
        %1431 = vmatprep.subr.mxu0 0.0
        %1432 = vmatpush1.msra.mxu0 0.0
        %1433 = vmatprep.subr.mxu0 0.0
        %1434 = vmatpush1.msra.mxu0 0.0
        %1435 = vmatprep.subr.mxu0 0.0
        %1436 = vmatpush1.msra.mxu0 0.0
        %1437 = vmatprep.mubr.f32.mxu0 0.0
        %1438 = vmatmul.mubr.f32.gmra.mrb[0].mxu0 %v1371
        %v1439 = vpop.f32.mrb[0].mxu0
        %v1440 = vadd.f32 0.0, %v1439
        %v1441 = vpop.f32.mrb[0].mxu0
        %1442 = vdwg.mxu0
        %v1444 = vsel %vm651, %v1221, 0
        %1446 = vmatprep.subr.mxu0 0.0
        %1447 = vmatpush1.msra.mxu0 %v643
        %1448 = vmatprep.subr.mxu0 0.0
        %1449 = vmatpush1.msra.mxu0 0.0
        %1450 = vmatprep.subr.mxu0 0.0
        %1451 = vmatpush1.msra.mxu0 0.0
        %1452 = vmatprep.subr.mxu0 0.0
        %1453 = vmatpush1.msra.mxu0 0.0
        %1454 = vmatprep.subr.mxu0 0.0
        %1455 = vmatpush1.msra.mxu0 0.0
        %1456 = vmatprep.subr.mxu0 0.0
        %1457 = vmatpush1.msra.mxu0 0.0
        %1458 = vmatprep.subr.mxu0 0.0
        %1459 = vmatpush1.msra.mxu0 0.0
        %1460 = vmatprep.subr.mxu0 0.0
        %1461 = vmatpush1.msra.mxu0 0.0
        %1462 = vmatprep.subr.mxu0 0.0
        %1463 = vmatpush1.msra.mxu0 0.0
        %1464 = vmatprep.subr.mxu0 0.0
        %1465 = vmatpush1.msra.mxu0 0.0
        %1466 = vmatprep.subr.mxu0 0.0
        %1467 = vmatpush1.msra.mxu0 0.0
        %1468 = vmatprep.subr.mxu0 0.0
        %1469 = vmatpush1.msra.mxu0 0.0
        %1470 = vmatprep.subr.mxu0 0.0
        %1471 = vmatpush1.msra.mxu0 0.0
        %1472 = vmatprep.subr.mxu0 0.0
        %1473 = vmatpush1.msra.mxu0 0.0
        %1474 = vmatprep.subr.mxu0 0.0
        %1475 = vmatpush1.msra.mxu0 0.0
        %1476 = vmatprep.subr.mxu0 0.0
        %1477 = vmatpush1.msra.mxu0 0.0
        %1478 = vmatprep.subr.mxu0 0.0
        %1479 = vmatpush1.msra.mxu0 0.0
        %1480 = vmatprep.subr.mxu0 0.0
        %1481 = vmatpush1.msra.mxu0 0.0
        %1482 = vmatprep.subr.mxu0 0.0
        %1483 = vmatpush1.msra.mxu0 0.0
        %1484 = vmatprep.subr.mxu0 0.0
        %1485 = vmatpush1.msra.mxu0 0.0
        %1486 = vmatprep.subr.mxu0 0.0
        %1487 = vmatpush1.msra.mxu0 0.0
        %1488 = vmatprep.subr.mxu0 0.0
        %1489 = vmatpush1.msra.mxu0 0.0
        %1490 = vmatprep.subr.mxu0 0.0
        %1491 = vmatpush1.msra.mxu0 0.0
        %1492 = vmatprep.subr.mxu0 0.0
        %1493 = vmatpush1.msra.mxu0 0.0
        %1494 = vmatprep.subr.mxu0 0.0
        %1495 = vmatpush1.msra.mxu0 0.0
        %1496 = vmatprep.subr.mxu0 0.0
        %1497 = vmatpush1.msra.mxu0 0.0
        %1498 = vmatprep.subr.mxu0 0.0
        %1499 = vmatpush1.msra.mxu0 0.0
        %1500 = vmatprep.subr.mxu0 0.0
        %1501 = vmatpush1.msra.mxu0 0.0
        %1502 = vmatprep.subr.mxu0 0.0
        %1503 = vmatpush1.msra.mxu0 0.0
        %1504 = vmatprep.subr.mxu0 0.0
        %1505 = vmatpush1.msra.mxu0 0.0
        %1506 = vmatprep.subr.mxu0 0.0
        %1507 = vmatpush1.msra.mxu0 0.0
        %1508 = vmatprep.subr.mxu0 0.0
        %1509 = vmatpush1.msra.mxu0 0.0
        %1510 = vmatprep.mubr.f32.mxu0 0.0
        %1511 = vmatmul.mubr.f32.gmra.mrb[0].mxu0 %v1444
        %v1512 = vpop.f32.mrb[0].mxu0
        %v1513 = vadd.f32 0.0, %v1512
        %v1514 = vpop.f32.mrb[0].mxu0
        %1515 = vdwg.mxu0
        %v1517 = vsel %vm651, %v1294, 0
        %1519 = vmatprep.subr.mxu0 0.0
        %1520 = vmatpush1.msra.mxu0 %v644
        %1521 = vmatprep.subr.mxu0 0.0
        %1522 = vmatpush1.msra.mxu0 0.0
        %1523 = vmatprep.subr.mxu0 0.0
        %1524 = vmatpush1.msra.mxu0 0.0
        %1525 = vmatprep.subr.mxu0 0.0
        %1526 = vmatpush1.msra.mxu0 0.0
        %1527 = vmatprep.subr.mxu0 0.0
        %1528 = vmatpush1.msra.mxu0 0.0
        %1529 = vmatprep.subr.mxu0 0.0
        %1530 = vmatpush1.msra.mxu0 0.0
        %1531 = vmatprep.subr.mxu0 0.0
        %1532 = vmatpush1.msra.mxu0 0.0
        %1533 = vmatprep.subr.mxu0 0.0
        %1534 = vmatpush1.msra.mxu0 0.0
        %1535 = vmatprep.subr.mxu0 0.0
        %1536 = vmatpush1.msra.mxu0 0.0
        %1537 = vmatprep.subr.mxu0 0.0
        %1538 = vmatpush1.msra.mxu0 0.0
        %1539 = vmatprep.subr.mxu0 0.0
        %1540 = vmatpush1.msra.mxu0 0.0
        %1541 = vmatprep.subr.mxu0 0.0
        %1542 = vmatpush1.msra.mxu0 0.0
        %1543 = vmatprep.subr.mxu0 0.0
        %1544 = vmatpush1.msra.mxu0 0.0
        %1545 = vmatprep.subr.mxu0 0.0
        %1546 = vmatpush1.msra.mxu0 0.0
        %1547 = vmatprep.subr.mxu0 0.0
        %1548 = vmatpush1.msra.mxu0 0.0
        %1549 = vmatprep.subr.mxu0 0.0
        %1550 = vmatpush1.msra.mxu0 0.0
        %1551 = vmatprep.subr.mxu0 0.0
        %1552 = vmatpush1.msra.mxu0 0.0
        %1553 = vmatprep.subr.mxu0 0.0
        %1554 = vmatpush1.msra.mxu0 0.0
        %1555 = vmatprep.subr.mxu0 0.0
        %1556 = vmatpush1.msra.mxu0 0.0
        %1557 = vmatprep.subr.mxu0 0.0
        %1558 = vmatpush1.msra.mxu0 0.0
        %1559 = vmatprep.subr.mxu0 0.0
        %1560 = vmatpush1.msra.mxu0 0.0
        %1561 = vmatprep.subr.mxu0 0.0
        %1562 = vmatpush1.msra.mxu0 0.0
        %1563 = vmatprep.subr.mxu0 0.0
        %1564 = vmatpush1.msra.mxu0 0.0
        %1565 = vmatprep.subr.mxu0 0.0
        %1566 = vmatpush1.msra.mxu0 0.0
        %1567 = vmatprep.subr.mxu0 0.0
        %1568 = vmatpush1.msra.mxu0 0.0
        %1569 = vmatprep.subr.mxu0 0.0
        %1570 = vmatpush1.msra.mxu0 0.0
        %1571 = vmatprep.subr.mxu0 0.0
        %1572 = vmatpush1.msra.mxu0 0.0
        %1573 = vmatprep.subr.mxu0 0.0
        %1574 = vmatpush1.msra.mxu0 0.0
        %1575 = vmatprep.subr.mxu0 0.0
        %1576 = vmatpush1.msra.mxu0 0.0
        %1577 = vmatprep.subr.mxu0 0.0
        %1578 = vmatpush1.msra.mxu0 0.0
        %1579 = vmatprep.subr.mxu0 0.0
        %1580 = vmatpush1.msra.mxu0 0.0
        %1581 = vmatprep.subr.mxu0 0.0
        %1582 = vmatpush1.msra.mxu0 0.0
        %1583 = vmatprep.mubr.f32.mxu0 0.0
        %1584 = vmatmul.mubr.f32.gmra.mrb[0].mxu0 %v1517
        %v1585 = vpop.f32.mrb[0].mxu0
        %v1586 = vadd.f32 0.0, %v1585
        %v1587 = vpop.f32.mrb[0].mxu0
        %1588 = vdwg.mxu0
        %v1589 = vsel %vm505, %v1367, 0.0
        %v1590 = vsel %vm505, %v1440, 0.0
        %v1591 = vadd.f32 %v1589, %v1590
        %v1592 = vsel %vm505, %v1513, 0.0
        %v1593 = vadd.f32 %v1591, %v1592
        %v1594 = vsel %vm505, %v1586, 0.0
        %v1595 = vadd.f32 %v1593, %v1594
        %v1597 = vlaneseq
        %v1598 = vshrl.u32 %v1597, 7
        %v1599 = vsub.s32 0, %v1598
        %v1600 = vrot.slane %v645, %v1599
        %v1602 = vadd.f32 %v1595, %v1600
        %v1603 = vadd.f32 %v492, %v1602
        %v1604 = vsel %vm505, %v1603, 0.0
        %1605 = vadd.xlane.f32.xlu0 %v1604
        %v1606 = vpop.xlane.xlu0 %1605
        %v1607 = vrcp.pop 32.0
        %v1608 = vmul.f32 %v1606, %v1607
        %v1609 = vsub.f32 %v1603, %v1608
        %v1610 = vmul.f32 %v1609, %v1609
        %v1611 = vsel %vm505, %v1610, 0.0
        %1612 = vadd.xlane.f32.xlu0 %v1611
        %v1613 = vpop.xlane.xlu0 %1612
        %v1614 = vmul.f32 %v1613, %v1607
        %v1615 = vadd.f32 %v1614, 1e-05
        %v1616 = vrsqrt.pop %v1615
        %v1617 = vmul.f32 %v1609, %v1616
        %v1619 = vlaneseq
        %v1620 = vshrl.u32 %v1619, 7
        %v1621 = vsub.s32 0, %v1620
        %v1622 = vrot.slane %v646, %v1621
        %v1624 = vmul.f32 %v1617, %v1622
        %v1626 = vlaneseq
        %v1627 = vshrl.u32 %v1626, 7
        %v1628 = vsub.s32 0, %v1627
        %v1629 = vrot.slane %v647, %v1628
        %v1631 = vadd.f32 %v1624, %v1629
        %v1632 = vld [vmem:[#allocation7] sm:$0xff]
        %v1633 = vld [vmem:[#allocation7 + $0x8] sm:$0xff]
        %v1634 = vld [vmem:[#allocation7 + $0x10] sm:$0xff]
        %v1635 = vld [vmem:[#allocation7 + $0x18] sm:$0xff]
        %v1636 = vld [vmem:[#allocation8] sm:$0x1]
        %v1638 = vlaneseq
        %v1639 = vshrl.u32 %v1638, 7
        %v1640 = vsub.s32 0, %v1639
        %v1641 = vrot.slane %v1636, %v1640
        %v1644 = vsel %vm505, %v1631, 0
        %1646 = vmatprep.subr.mxu0 0.0
        %1647 = vmatpush1.msra.mxu0 %v1632
        %1648 = vmatprep.subr.mxu0 0.0
        %1649 = vmatpush1.msra.mxu0 %v1633
        %1650 = vmatprep.subr.mxu0 0.0
        %1651 = vmatpush1.msra.mxu0 %v1634
        %1652 = vmatprep.subr.mxu0 0.0
        %1653 = vmatpush1.msra.mxu0 %v1635
        %1654 = vmatprep.subr.mxu0 0.0
        %1655 = vmatpush1.msra.mxu0 0.0
        %1656 = vmatprep.subr.mxu0 0.0
        %1657 = vmatpush1.msra.mxu0 0.0
        %1658 = vmatprep.subr.mxu0 0.0
        %1659 = vmatpush1.msra.mxu0 0.0
        %1660 = vmatprep.subr.mxu0 0.0
        %1661 = vmatpush1.msra.mxu0 0.0
        %1662 = vmatprep.subr.mxu0 0.0
        %1663 = vmatpush1.msra.mxu0 0.0
        %1664 = vmatprep.subr.mxu0 0.0
        %1665 = vmatpush1.msra.mxu0 0.0
        %1666 = vmatprep.subr.mxu0 0.0
        %1667 = vmatpush1.msra.mxu0 0.0
        %1668 = vmatprep.subr.mxu0 0.0
        %1669 = vmatpush1.msra.mxu0 0.0
        %1670 = vmatprep.subr.mxu0 0.0
        %1671 = vmatpush1.msra.mxu0 0.0
        %1672 = vmatprep.subr.mxu0 0.0
        %1673 = vmatpush1.msra.mxu0 0.0
        %1674 = vmatprep.subr.mxu0 0.0
        %1675 = vmatpush1.msra.mxu0 0.0
        %1676 = vmatprep.subr.mxu0 0.0
        %1677 = vmatpush1.msra.mxu0 0.0
        %1678 = vmatprep.subr.mxu0 0.0
        %1679 = vmatpush1.msra.mxu0 0.0
        %1680 = vmatprep.subr.mxu0 0.0
        %1681 = vmatpush1.msra.mxu0 0.0
        %1682 = vmatprep.subr.mxu0 0.0
        %1683 = vmatpush1.msra.mxu0 0.0
        %1684 = vmatprep.subr.mxu0 0.0
        %1685 = vmatpush1.msra.mxu0 0.0
        %1686 = vmatprep.subr.mxu0 0.0
        %1687 = vmatpush1.msra.mxu0 0.0
        %1688 = vmatprep.subr.mxu0 0.0
        %1689 = vmatpush1.msra.mxu0 0.0
        %1690 = vmatprep.subr.mxu0 0.0
        %1691 = vmatpush1.msra.mxu0 0.0
        %1692 = vmatprep.subr.mxu0 0.0
        %1693 = vmatpush1.msra.mxu0 0.0
        %1694 = vmatprep.subr.mxu0 0.0
        %1695 = vmatpush1.msra.mxu0 0.0
        %1696 = vmatprep.subr.mxu0 0.0
        %1697 = vmatpush1.msra.mxu0 0.0
        %1698 = vmatprep.subr.mxu0 0.0
        %1699 = vmatpush1.msra.mxu0 0.0
        %1700 = vmatprep.subr.mxu0 0.0
        %1701 = vmatpush1.msra.mxu0 0.0
        %1702 = vmatprep.subr.mxu0 0.0
        %1703 = vmatpush1.msra.mxu0 0.0
        %1704 = vmatprep.subr.mxu0 0.0
        %1705 = vmatpush1.msra.mxu0 0.0
        %1706 = vmatprep.subr.mxu0 0.0
        %1707 = vmatpush1.msra.mxu0 0.0
        %1708 = vmatprep.subr.mxu0 0.0
        %1709 = vmatpush1.msra.mxu0 0.0
        %1710 = vmatprep.mubr.f32.mxu0 0.0
        %1711 = vmatmul.mubr.f32.gmra.mrb[0].mxu0 %v1644
        %v1712 = vpop.f32.mrb[0].mxu0
        %v1713 = vadd.f32 %v1641, %v1712
        %v1714 = vpop.f32.mrb[0].mxu0
        %1715 = vdwg.mxu0
        %v1716 = vmax.f32 %v1713, 0.0
        %v1717 = vld [vmem:[%s9] sm:$0xff]
        %v1718 = vld [vmem:[%s9 + $0x8] sm:$0xff]
        %v1719 = vld [vmem:[%s9 + $0x10] sm:$0xff]
        %v1720 = vld [vmem:[%s9 + $0x18] sm:$0xff]
        %1725 = vrot.lane.b32.xlu0 %v1632, 96
        %v1726 = vpop.permute.xlu0 %1725
        %1727 = vrot.lane.b32.xlu0 %v1633, 96
        %v1728 = vpop.permute.xlu0 %1727
        %1729 = vrot.lane.b32.xlu0 %v1634, 96
        %v1730 = vpop.permute.xlu0 %1729
        %1731 = vrot.lane.b32.xlu0 %v1635, 96
        %v1732 = vpop.permute.xlu0 %1731
        %1737 = vrot.lane.b32.xlu0 %v1641, 96
        %v1738 = vpop.permute.xlu0 %1737
        %1740 = vmatprep.subr.mxu0 0.0
        %1741 = vmatpush1.msra.mxu0 %v1726
        %1742 = vmatprep.subr.mxu0 0.0
        %1743 = vmatpush1.msra.mxu0 %v1728
        %1744 = vmatprep.subr.mxu0 0.0
        %1745 = vmatpush1.msra.mxu0 %v1730
        %1746 = vmatprep.subr.mxu0 0.0
        %1747 = vmatpush1.msra.mxu0 %v1732
        %1748 = vmatprep.subr.mxu0 0.0
        %1749 = vmatpush1.msra.mxu0 0.0
        %1750 = vmatprep.subr.mxu0 0.0
        %1751 = vmatpush1.msra.mxu0 0.0
        %1752 = vmatprep.subr.mxu0 0.0
        %1753 = vmatpush1.msra.mxu0 0.0
        %1754 = vmatprep.subr.mxu0 0.0
        %1755 = vmatpush1.msra.mxu0 0.0
        %1756 = vmatprep.subr.mxu0 0.0
        %1757 = vmatpush1.msra.mxu0 0.0
        %1758 = vmatprep.subr.mxu0 0.0
        %1759 = vmatpush1.msra.mxu0 0.0
        %1760 = vmatprep.subr.mxu0 0.0
        %1761 = vmatpush1.msra.mxu0 0.0
        %1762 = vmatprep.subr.mxu0 0.0
        %1763 = vmatpush1.msra.mxu0 0.0
        %1764 = vmatprep.subr.mxu0 0.0
        %1765 = vmatpush1.msra.mxu0 0.0
        %1766 = vmatprep.subr.mxu0 0.0
        %1767 = vmatpush1.msra.mxu0 0.0
        %1768 = vmatprep.subr.mxu0 0.0
        %1769 = vmatpush1.msra.mxu0 0.0
        %1770 = vmatprep.subr.mxu0 0.0
        %1771 = vmatpush1.msra.mxu0 0.0
        %1772 = vmatprep.subr.mxu0 0.0
        %1773 = vmatpush1.msra.mxu0 0.0
        %1774 = vmatprep.subr.mxu0 0.0
        %1775 = vmatpush1.msra.mxu0 0.0
        %1776 = vmatprep.subr.mxu0 0.0
        %1777 = vmatpush1.msra.mxu0 0.0
        %1778 = vmatprep.subr.mxu0 0.0
        %1779 = vmatpush1.msra.mxu0 0.0
        %1780 = vmatprep.subr.mxu0 0.0
        %1781 = vmatpush1.msra.mxu0 0.0
        %1782 = vmatprep.subr.mxu0 0.0
        %1783 = vmatpush1.msra.mxu0 0.0
        %1784 = vmatprep.subr.mxu0 0.0
        %1785 = vmatpush1.msra.mxu0 0.0
        %1786 = vmatprep.subr.mxu0 0.0
        %1787 = vmatpush1.msra.mxu0 0.0
        %1788 = vmatprep.subr.mxu0 0.0
        %1789 = vmatpush1.msra.mxu0 0.0
        %1790 = vmatprep.subr.mxu0 0.0
        %1791 = vmatpush1.msra.mxu0 0.0
        %1792 = vmatprep.subr.mxu0 0.0
        %1793 = vmatpush1.msra.mxu0 0.0
        %1794 = vmatprep.subr.mxu0 0.0
        %1795 = vmatpush1.msra.mxu0 0.0
        %1796 = vmatprep.subr.mxu0 0.0
        %1797 = vmatpush1.msra.mxu0 0.0
        %1798 = vmatprep.subr.mxu0 0.0
        %1799 = vmatpush1.msra.mxu0 0.0
        %1800 = vmatprep.subr.mxu0 0.0
        %1801 = vmatpush1.msra.mxu0 0.0
        %1802 = vmatprep.subr.mxu0 0.0
        %1803 = vmatpush1.msra.mxu0 0.0
        %1804 = vmatprep.mubr.f32.mxu0 0.0
        %1805 = vmatmul.mubr.f32.gmra.mrb[0].mxu0 %v1644
        %v1806 = vpop.f32.mrb[0].mxu0
        %v1807 = vadd.f32 %v1738, %v1806
        %v1808 = vpop.f32.mrb[0].mxu0
        %1809 = vdwg.mxu0
        %v1810 = vmax.f32 %v1807, 0.0
        %v1811 = vld [vmem:[%s9 + $0x20] sm:$0xff]
        %v1812 = vld [vmem:[%s9 + $0x28] sm:$0xff]
        %v1813 = vld [vmem:[%s9 + $0x30] sm:$0xff]
        %v1814 = vld [vmem:[%s9 + $0x38] sm:$0xff]
        %v1816 = vsel %vm505, %v1810, 0
        %1818 = vmatprep.subr.mxu0 0.0
        %1819 = vmatpush1.msra.mxu0 %v1811
        %1820 = vmatprep.subr.mxu0 0.0
        %1821 = vmatpush1.msra.mxu0 %v1812
        %1822 = vmatprep.subr.mxu0 0.0
        %1823 = vmatpush1.msra.mxu0 %v1813
        %1824 = vmatprep.subr.mxu0 0.0
        %1825 = vmatpush1.msra.mxu0 %v1814
        %1826 = vmatprep.subr.mxu0 0.0
        %1827 = vmatpush1.msra.mxu0 0.0
        %1828 = vmatprep.subr.mxu0 0.0
        %1829 = vmatpush1.msra.mxu0 0.0
        %1830 = vmatprep.subr.mxu0 0.0
        %1831 = vmatpush1.msra.mxu0 0.0
        %1832 = vmatprep.subr.mxu0 0.0
        %1833 = vmatpush1.msra.mxu0 0.0
        %1834 = vmatprep.subr.mxu0 0.0
        %1835 = vmatpush1.msra.mxu0 0.0
        %1836 = vmatprep.subr.mxu0 0.0
        %1837 = vmatpush1.msra.mxu0 0.0
        %1838 = vmatprep.subr.mxu0 0.0
        %1839 = vmatpush1.msra.mxu0 0.0
        %1840 = vmatprep.subr.mxu0 0.0
        %1841 = vmatpush1.msra.mxu0 0.0
        %1842 = vmatprep.subr.mxu0 0.0
        %1843 = vmatpush1.msra.mxu0 0.0
        %1844 = vmatprep.subr.mxu0 0.0
        %1845 = vmatpush1.msra.mxu0 0.0
        %1846 = vmatprep.subr.mxu0 0.0
        %1847 = vmatpush1.msra.mxu0 0.0
        %1848 = vmatprep.subr.mxu0 0.0
        %1849 = vmatpush1.msra.mxu0 0.0
        %1850 = vmatprep.subr.mxu0 0.0
        %1851 = vmatpush1.msra.mxu0 0.0
        %1852 = vmatprep.subr.mxu0 0.0
        %1853 = vmatpush1.msra.mxu0 0.0
        %1854 = vmatprep.subr.mxu0 0.0
        %1855 = vmatpush1.msra.mxu0 0.0
        %1856 = vmatprep.subr.mxu0 0.0
        %1857 = vmatpush1.msra.mxu0 0.0
        %1858 = vmatprep.subr.mxu0 0.0
        %1859 = vmatpush1.msra.mxu0 0.0
        %1860 = vmatprep.subr.mxu0 0.0
        %1861 = vmatpush1.msra.mxu0 0.0
        %1862 = vmatprep.subr.mxu0 0.0
        %1863 = vmatpush1.msra.mxu0 0.0
        %1864 = vmatprep.subr.mxu0 0.0
        %1865 = vmatpush1.msra.mxu0 0.0
        %1866 = vmatprep.subr.mxu0 0.0
        %1867 = vmatpush1.msra.mxu0 0.0
        %1868 = vmatprep.subr.mxu0 0.0
        %1869 = vmatpush1.msra.mxu0 0.0
        %1870 = vmatprep.subr.mxu0 0.0
        %1871 = vmatpush1.msra.mxu0 0.0
        %1872 = vmatprep.subr.mxu0 0.0
        %1873 = vmatpush1.msra.mxu0 0.0
        %1874 = vmatprep.subr.mxu0 0.0
        %1875 = vmatpush1.msra.mxu0 0.0
        %1876 = vmatprep.subr.mxu0 0.0
        %1877 = vmatpush1.msra.mxu0 0.0
        %1878 = vmatprep.subr.mxu0 0.0
        %1879 = vmatpush1.msra.mxu0 0.0
        %1880 = vmatprep.subr.mxu0 0.0
        %1881 = vmatpush1.msra.mxu0 0.0
        %1882 = vmatprep.mubr.f32.mxu0 0.0
        %1883 = vmatmul.mubr.f32.gmra.mrb[0].mxu0 %v1816
        %v1884 = vpop.f32.mrb[0].mxu0
        %v1885 = vadd.f32 0.0, %v1884
        %v1886 = vpop.f32.mrb[0].mxu0
        %1887 = vdwg.mxu0
        %v1889 = vsel %vm505, %v1716, 0
        %1891 = vmatprep.subr.mxu0 0.0
        %1892 = vmatpush1.msra.mxu0 %v1717
        %1893 = vmatprep.subr.mxu0 0.0
        %1894 = vmatpush1.msra.mxu0 %v1718
        %1895 = vmatprep.subr.mxu0 0.0
        %1896 = vmatpush1.msra.mxu0 %v1719
        %1897 = vmatprep.subr.mxu0 0.0
        %1898 = vmatpush1.msra.mxu0 %v1720
        %1899 = vmatprep.subr.mxu0 0.0
        %1900 = vmatpush1.msra.mxu0 0.0
        %1901 = vmatprep.subr.mxu0 0.0
        %1902 = vmatpush1.msra.mxu0 0.0
        %1903 = vmatprep.subr.mxu0 0.0
        %1904 = vmatpush1.msra.mxu0 0.0
        %1905 = vmatprep.subr.mxu0 0.0
        %1906 = vmatpush1.msra.mxu0 0.0
        %1907 = vmatprep.subr.mxu0 0.0
        %1908 = vmatpush1.msra.mxu0 0.0
        %1909 = vmatprep.subr.mxu0 0.0
        %1910 = vmatpush1.msra.mxu0 0.0
        %1911 = vmatprep.subr.mxu0 0.0
        %1912 = vmatpush1.msra.mxu0 0.0
        %1913 = vmatprep.subr.mxu0 0.0
        %1914 = vmatpush1.msra.mxu0 0.0
        %1915 = vmatprep.subr.mxu0 0.0
        %1916 = vmatpush1.msra.mxu0 0.0
        %1917 = vmatprep.subr.mxu0 0.0
        %1918 = vmatpush1.msra.mxu0 0.0
        %1919 = vmatprep.subr.mxu0 0.0
        %1920 = vmatpush1.msra.mxu0 0.0
        %1921 = vmatprep.subr.mxu0 0.0
        %1922 = vmatpush1.msra.mxu0 0.0
        %1923 = vmatprep.subr.mxu0 0.0
        %1924 = vmatpush1.msra.mxu0 0.0
        %1925 = vmatprep.subr.mxu0 0.0
        %1926 = vmatpush1.msra.mxu0 0.0
        %1927 = vmatprep.subr.mxu0 0.0
        %1928 = vmatpush1.msra.mxu0 0.0
        %1929 = vmatprep.subr.mxu0 0.0
        %1930 = vmatpush1.msra.mxu0 0.0
        %1931 = vmatprep.subr.mxu0 0.0
        %1932 = vmatpush1.msra.mxu0 0.0
        %1933 = vmatprep.subr.mxu0 0.0
        %1934 = vmatpush1.msra.mxu0 0.0
        %1935 = vmatprep.subr.mxu0 0.0
        %1936 = vmatpush1.msra.mxu0 0.0
        %1937 = vmatprep.subr.mxu0 0.0
        %1938 = vmatpush1.msra.mxu0 0.0
        %1939 = vmatprep.subr.mxu0 0.0
        %1940 = vmatpush1.msra.mxu0 0.0
        %1941 = vmatprep.subr.mxu0 0.0
        %1942 = vmatpush1.msra.mxu0 0.0
        %1943 = vmatprep.subr.mxu0 0.0
        %1944 = vmatpush1.msra.mxu0 0.0
        %1945 = vmatprep.subr.mxu0 0.0
        %1946 = vmatpush1.msra.mxu0 0.0
        %1947 = vmatprep.subr.mxu0 0.0
        %1948 = vmatpush1.msra.mxu0 0.0
        %1949 = vmatprep.subr.mxu0 0.0
        %1950 = vmatpush1.msra.mxu0 0.0
        %1951 = vmatprep.subr.mxu0 0.0
        %1952 = vmatpush1.msra.mxu0 0.0
        %1953 = vmatprep.subr.mxu0 0.0
        %1954 = vmatpush1.msra.mxu0 0.0
        %1955 = vmatprep.mubr.f32.mxu0 0.0
        %1956 = vmatmul.mubr.f32.gmra.mrb[0].mxu0 %v1889
        %v1957 = vpop.f32.mrb[0].mxu0
        %v1958 = vadd.f32 %v1885, %v1957
        %v1959 = vpop.f32.mrb[0].mxu0
        %1960 = vdwg.mxu0
        %v1962 = vlaneseq
        %v1963 = vshrl.u32 %v1962, 7
        %v1964 = vsub.s32 0, %v1963
        %v1965 = vrot.slane %v650, %v1964
        %v1967 = vadd.f32 %v1958, %v1965
        %v1968 = vadd.f32 %v1631, %v1967
        %v1969 = vsel %vm505, %v1968, 0.0
        %1970 = vadd.xlane.f32.xlu0 %v1969
        %v1971 = vpop.xlane.xlu0 %1970
        %v1972 = vmul.f32 %v1971, %v1607
        %v1973 = vsub.f32 %v1968, %v1972
        %v1974 = vmul.f32 %v1973, %v1973
        %v1975 = vsel %vm505, %v1974, 0.0
        %1976 = vadd.xlane.f32.xlu0 %v1975
        %v1977 = vpop.xlane.xlu0 %1976
        %v1978 = vmul.f32 %v1977, %v1607
        %v1979 = vadd.f32 %v1978, 1e-05
        %v1980 = vrsqrt.pop %v1979
        %v1981 = vmul.f32 %v1973, %v1980
        %v1983 = vlaneseq
        %v1984 = vshrl.u32 %v1983, 7
        %v1985 = vsub.s32 0, %v1984
        %v1986 = vrot.slane %v648, %v1985
        %v1988 = vmul.f32 %v1981, %v1986
        %v1990 = vlaneseq
        %v1991 = vshrl.u32 %v1990, 7
        %v1992 = vsub.s32 0, %v1991
        %v1993 = vrot.slane %v649, %v1992
        %v1995 = vadd.f32 %v1988, %v1993
        %1996 = vst.msk [vmem:[%s486] sm:$0xff] %vm505, %v1995
        %v1997 = vsel %vm651, %v584, 0
        %1999 = vmatprep.subr.mxu0 0.0
        %2000 = vmatpush1.xpose.msra.mxu0 %v654
        %2001 = vmatprep.subr.mxu0 0.0
        %2002 = vmatpush1.xpose.msra.mxu0 %v656
        %2003 = vmatprep.subr.mxu0 0.0
        %2004 = vmatpush1.xpose.msra.mxu0 0.0
        %2005 = vmatprep.subr.mxu0 0.0
        %2006 = vmatpush1.xpose.msra.mxu0 0.0
        %2007 = vmatprep.subr.mxu0 0.0
        %2008 = vmatpush1.xpose.msra.mxu0 0.0
        %2009 = vmatprep.subr.mxu0 0.0
        %2010 = vmatpush1.xpose.msra.mxu0 0.0
        %2011 = vmatprep.subr.mxu0 0.0
        %2012 = vmatpush1.xpose.msra.mxu0 0.0
        %2013 = vmatprep.subr.mxu0 0.0
        %2014 = vmatpush1.xpose.msra.mxu0 0.0
        %2015 = vmatprep.subr.mxu0 0.0
        %2016 = vmatpush1.xpose.msra.mxu0 0.0
        %2017 = vmatprep.subr.mxu0 0.0
        %2018 = vmatpush1.xpose.msra.mxu0 0.0
        %2019 = vmatprep.subr.mxu0 0.0
        %2020 = vmatpush1.xpose.msra.mxu0 0.0
        %2021 = vmatprep.subr.mxu0 0.0
        %2022 = vmatpush1.xpose.msra.mxu0 0.0
        %2023 = vmatprep.subr.mxu0 0.0
        %2024 = vmatpush1.xpose.msra.mxu0 0.0
        %2025 = vmatprep.subr.mxu0 0.0
        %2026 = vmatpush1.xpose.msra.mxu0 0.0
        %2027 = vmatprep.subr.mxu0 0.0
        %2028 = vmatpush1.xpose.msra.mxu0 0.0
        %2029 = vmatprep.subr.mxu0 0.0
        %2030 = vmatpush1.xpose.msra.mxu0 0.0
        %2031 = vmatprep.subr.mxu0 0.0
        %2032 = vmatpush1.xpose.msra.mxu0 0.0
        %2033 = vmatprep.subr.mxu0 0.0
        %2034 = vmatpush1.xpose.msra.mxu0 0.0
        %2035 = vmatprep.subr.mxu0 0.0
        %2036 = vmatpush1.xpose.msra.mxu0 0.0
        %2037 = vmatprep.subr.mxu0 0.0
        %2038 = vmatpush1.xpose.msra.mxu0 0.0
        %2039 = vmatprep.subr.mxu0 0.0
        %2040 = vmatpush1.xpose.msra.mxu0 0.0
        %2041 = vmatprep.subr.mxu0 0.0
        %2042 = vmatpush1.xpose.msra.mxu0 0.0
        %2043 = vmatprep.subr.mxu0 0.0
        %2044 = vmatpush1.xpose.msra.mxu0 0.0
        %2045 = vmatprep.subr.mxu0 0.0
        %2046 = vmatpush1.xpose.msra.mxu0 0.0
        %2047 = vmatprep.subr.mxu0 0.0
        %2048 = vmatpush1.xpose.msra.mxu0 0.0
        %2049 = vmatprep.subr.mxu0 0.0
        %2050 = vmatpush1.xpose.msra.mxu0 0.0
        %2051 = vmatprep.subr.mxu0 0.0
        %2052 = vmatpush1.xpose.msra.mxu0 0.0
        %2053 = vmatprep.subr.mxu0 0.0
        %2054 = vmatpush1.xpose.msra.mxu0 0.0
        %2055 = vmatprep.subr.mxu0 0.0
        %2056 = vmatpush1.xpose.msra.mxu0 0.0
        %2057 = vmatprep.subr.mxu0 0.0
        %2058 = vmatpush1.xpose.msra.mxu0 0.0
        %2059 = vmatprep.subr.mxu0 0.0
        %2060 = vmatpush1.xpose.msra.mxu0 0.0
        %2061 = vmatprep.subr.mxu0 0.0
        %2062 = vmatpush1.xpose.msra.mxu0 0.0
        %2063 = vmatprep.mubr.f32.mxu0 0.0
        %2064 = vmatmul.mubr.f32.gmra.mrb[0].mxu0 %v1997
        %v2065 = vpop.f32.mrb[0].mxu0
        %v2066 = vadd.f32 0.0, %v2065
        %v2067 = vpop.f32.mrb[0].mxu0
        %2068 = vdwg.mxu0
        %v2069 = vsel %vm651, %v592, 0
        %2071 = vmatprep.subr.mxu0 0.0
        %2072 = vmatpush1.xpose.msra.mxu0 %v730
        %2073 = vmatprep.subr.mxu0 0.0
        %2074 = vmatpush1.xpose.msra.mxu0 %v732
        %2075 = vmatprep.subr.mxu0 0.0
        %2076 = vmatpush1.xpose.msra.mxu0 0.0
        %2077 = vmatprep.subr.mxu0 0.0
        %2078 = vmatpush1.xpose.msra.mxu0 0.0
        %2079 = vmatprep.subr.mxu0 0.0
        %2080 = vmatpush1.xpose.msra.mxu0 0.0
        %2081 = vmatprep.subr.mxu0 0.0
        %2082 = vmatpush1.xpose.msra.mxu0 0.0
        %2083 = vmatprep.subr.mxu0 0.0
        %2084 = vmatpush1.xpose.msra.mxu0 0.0
        %2085 = vmatprep.subr.mxu0 0.0
        %2086 = vmatpush1.xpose.msra.mxu0 0.0
        %2087 = vmatprep.subr.mxu0 0.0
        %2088 = vmatpush1.xpose.msra.mxu0 0.0
        %2089 = vmatprep.subr.mxu0 0.0
        %2090 = vmatpush1.xpose.msra.mxu0 0.0
        %2091 = vmatprep.subr.mxu0 0.0
        %2092 = vmatpush1.xpose.msra.mxu0 0.0
        %2093 = vmatprep.subr.mxu0 0.0
        %2094 = vmatpush1.xpose.msra.mxu0 0.0
        %2095 = vmatprep.subr.mxu0 0.0
        %2096 = vmatpush1.xpose.msra.mxu0 0.0
        %2097 = vmatprep.subr.mxu0 0.0
        %2098 = vmatpush1.xpose.msra.mxu0 0.0
        %2099 = vmatprep.subr.mxu0 0.0
        %2100 = vmatpush1.xpose.msra.mxu0 0.0
        %2101 = vmatprep.subr.mxu0 0.0
        %2102 = vmatpush1.xpose.msra.mxu0 0.0
        %2103 = vmatprep.subr.mxu0 0.0
        %2104 = vmatpush1.xpose.msra.mxu0 0.0
        %2105 = vmatprep.subr.mxu0 0.0
        %2106 = vmatpush1.xpose.msra.mxu0 0.0
        %2107 = vmatprep.subr.mxu0 0.0
        %2108 = vmatpush1.xpose.msra.mxu0 0.0
        %2109 = vmatprep.subr.mxu0 0.0
        %2110 = vmatpush1.xpose.msra.mxu0 0.0
        %2111 = vmatprep.subr.mxu0 0.0
        %2112 = vmatpush1.xpose.msra.mxu0 0.0
        %2113 = vmatprep.subr.mxu0 0.0
        %2114 = vmatpush1.xpose.msra.mxu0 0.0
        %2115 = vmatprep.subr.mxu0 0.0
        %2116 = vmatpush1.xpose.msra.mxu0 0.0
        %2117 = vmatprep.subr.mxu0 0.0
        %2118 = vmatpush1.xpose.msra.mxu0 0.0
        %2119 = vmatprep.subr.mxu0 0.0
        %2120 = vmatpush1.xpose.msra.mxu0 0.0
        %2121 = vmatprep.subr.mxu0 0.0
        %2122 = vmatpush1.xpose.msra.mxu0 0.0
        %2123 = vmatprep.subr.mxu0 0.0
        %2124 = vmatpush1.xpose.msra.mxu0 0.0
        %2125 = vmatprep.subr.mxu0 0.0
        %2126 = vmatpush1.xpose.msra.mxu0 0.0
        %2127 = vmatprep.subr.mxu0 0.0
        %2128 = vmatpush1.xpose.msra.mxu0 0.0
        %2129 = vmatprep.subr.mxu0 0.0
        %2130 = vmatpush1.xpose.msra.mxu0 0.0
        %2131 = vmatprep.subr.mxu0 0.0
        %2132 = vmatpush1.xpose.msra.mxu0 0.0
        %2133 = vmatprep.subr.mxu0 0.0
        %2134 = vmatpush1.xpose.msra.mxu0 0.0
        %2135 = vmatprep.mubr.f32.mxu0 0.0
        %2136 = vmatmul.mubr.f32.gmra.mrb[0].mxu0 %v2069
        %v2137 = vpop.f32.mrb[0].mxu0
        %v2138 = vadd.f32 0.0, %v2137
        %v2139 = vpop.f32.mrb[0].mxu0
        %2140 = vdwg.mxu0
        %v2141 = vsel %vm651, %v596, 0
        %2143 = vmatprep.subr.mxu0 0.0
        %2144 = vmatpush1.xpose.msra.mxu0 %v806
        %2145 = vmatprep.subr.mxu0 0.0
        %2146 = vmatpush1.xpose.msra.mxu0 %v808
        %2147 = vmatprep.subr.mxu0 0.0
        %2148 = vmatpush1.xpose.msra.mxu0 0.0
        %2149 = vmatprep.subr.mxu0 0.0
        %2150 = vmatpush1.xpose.msra.mxu0 0.0
        %2151 = vmatprep.subr.mxu0 0.0
        %2152 = vmatpush1.xpose.msra.mxu0 0.0
        %2153 = vmatprep.subr.mxu0 0.0
        %2154 = vmatpush1.xpose.msra.mxu0 0.0
        %2155 = vmatprep.subr.mxu0 0.0
        %2156 = vmatpush1.xpose.msra.mxu0 0.0
        %2157 = vmatprep.subr.mxu0 0.0
        %2158 = vmatpush1.xpose.msra.mxu0 0.0
        %2159 = vmatprep.subr.mxu0 0.0
        %2160 = vmatpush1.xpose.msra.mxu0 0.0
        %2161 = vmatprep.subr.mxu0 0.0
        %2162 = vmatpush1.xpose.msra.mxu0 0.0
        %2163 = vmatprep.subr.mxu0 0.0
        %2164 = vmatpush1.xpose.msra.mxu0 0.0
        %2165 = vmatprep.subr.mxu0 0.0
        %2166 = vmatpush1.xpose.msra.mxu0 0.0
        %2167 = vmatprep.subr.mxu0 0.0
        %2168 = vmatpush1.xpose.msra.mxu0 0.0
        %2169 = vmatprep.subr.mxu0 0.0
        %2170 = vmatpush1.xpose.msra.mxu0 0.0
        %2171 = vmatprep.subr.mxu0 0.0
        %2172 = vmatpush1.xpose.msra.mxu0 0.0
        %2173 = vmatprep.subr.mxu0 0.0
        %2174 = vmatpush1.xpose.msra.mxu0 0.0
        %2175 = vmatprep.subr.mxu0 0.0
        %2176 = vmatpush1.xpose.msra.mxu0 0.0
        %2177 = vmatprep.subr.mxu0 0.0
        %2178 = vmatpush1.xpose.msra.mxu0 0.0
        %2179 = vmatprep.subr.mxu0 0.0
        %2180 = vmatpush1.xpose.msra.mxu0 0.0
        %2181 = vmatprep.subr.mxu0 0.0
        %2182 = vmatpush1.xpose.msra.mxu0 0.0
        %2183 = vmatprep.subr.mxu0 0.0
        %2184 = vmatpush1.xpose.msra.mxu0 0.0
        %2185 = vmatprep.subr.mxu0 0.0
        %2186 = vmatpush1.xpose.msra.mxu0 0.0
        %2187 = vmatprep.subr.mxu0 0.0
        %2188 = vmatpush1.xpose.msra.mxu0 0.0
        %2189 = vmatprep.subr.mxu0 0.0
        %2190 = vmatpush1.xpose.msra.mxu0 0.0
        %2191 = vmatprep.subr.mxu0 0.0
        %2192 = vmatpush1.xpose.msra.mxu0 0.0
        %2193 = vmatprep.subr.mxu0 0.0
        %2194 = vmatpush1.xpose.msra.mxu0 0.0
        %2195 = vmatprep.subr.mxu0 0.0
        %2196 = vmatpush1.xpose.msra.mxu0 0.0
        %2197 = vmatprep.subr.mxu0 0.0
        %2198 = vmatpush1.xpose.msra.mxu0 0.0
        %2199 = vmatprep.subr.mxu0 0.0
        %2200 = vmatpush1.xpose.msra.mxu0 0.0
        %2201 = vmatprep.subr.mxu0 0.0
        %2202 = vmatpush1.xpose.msra.mxu0 0.0
        %2203 = vmatprep.subr.mxu0 0.0
        %2204 = vmatpush1.xpose.msra.mxu0 0.0
        %2205 = vmatprep.subr.mxu0 0.0
        %2206 = vmatpush1.xpose.msra.mxu0 0.0
        %2207 = vmatprep.mubr.f32.mxu0 0.0
        %2208 = vmatmul.mubr.f32.gmra.mrb[0].mxu0 %v2141
        %v2209 = vpop.f32.mrb[0].mxu0
        %v2210 = vadd.f32 0.0, %v2209
        %v2211 = vpop.f32.mrb[0].mxu0
        %2212 = vdwg.mxu0
        %v2213 = vsel %vm651, %v600, 0
        %2215 = vmatprep.subr.mxu0 0.0
        %2216 = vmatpush1.xpose.msra.mxu0 %v882
        %2217 = vmatprep.subr.mxu0 0.0
        %2218 = vmatpush1.xpose.msra.mxu0 %v884
        %2219 = vmatprep.subr.mxu0 0.0
        %2220 = vmatpush1.xpose.msra.mxu0 0.0
        %2221 = vmatprep.subr.mxu0 0.0
        %2222 = vmatpush1.xpose.msra.mxu0 0.0
        %2223 = vmatprep.subr.mxu0 0.0
        %2224 = vmatpush1.xpose.msra.mxu0 0.0
        %2225 = vmatprep.subr.mxu0 0.0
        %2226 = vmatpush1.xpose.msra.mxu0 0.0
        %2227 = vmatprep.subr.mxu0 0.0
        %2228 = vmatpush1.xpose.msra.mxu0 0.0
        %2229 = vmatprep.subr.mxu0 0.0
        %2230 = vmatpush1.xpose.msra.mxu0 0.0
        %2231 = vmatprep.subr.mxu0 0.0
        %2232 = vmatpush1.xpose.msra.mxu0 0.0
        %2233 = vmatprep.subr.mxu0 0.0
        %2234 = vmatpush1.xpose.msra.mxu0 0.0
        %2235 = vmatprep.subr.mxu0 0.0
        %2236 = vmatpush1.xpose.msra.mxu0 0.0
        %2237 = vmatprep.subr.mxu0 0.0
        %2238 = vmatpush1.xpose.msra.mxu0 0.0
        %2239 = vmatprep.subr.mxu0 0.0
        %2240 = vmatpush1.xpose.msra.mxu0 0.0
        %2241 = vmatprep.subr.mxu0 0.0
        %2242 = vmatpush1.xpose.msra.mxu0 0.0
        %2243 = vmatprep.subr.mxu0 0.0
        %2244 = vmatpush1.xpose.msra.mxu0 0.0
        %2245 = vmatprep.subr.mxu0 0.0
        %2246 = vmatpush1.xpose.msra.mxu0 0.0
        %2247 = vmatprep.subr.mxu0 0.0
        %2248 = vmatpush1.xpose.msra.mxu0 0.0
        %2249 = vmatprep.subr.mxu0 0.0
        %2250 = vmatpush1.xpose.msra.mxu0 0.0
        %2251 = vmatprep.subr.mxu0 0.0
        %2252 = vmatpush1.xpose.msra.mxu0 0.0
        %2253 = vmatprep.subr.mxu0 0.0
        %2254 = vmatpush1.xpose.msra.mxu0 0.0
        %2255 = vmatprep.subr.mxu0 0.0
        %2256 = vmatpush1.xpose.msra.mxu0 0.0
        %2257 = vmatprep.subr.mxu0 0.0
        %2258 = vmatpush1.xpose.msra.mxu0 0.0
        %2259 = vmatprep.subr.mxu0 0.0
        %2260 = vmatpush1.xpose.msra.mxu0 0.0
        %2261 = vmatprep.subr.mxu0 0.0
        %2262 = vmatpush1.xpose.msra.mxu0 0.0
        %2263 = vmatprep.subr.mxu0 0.0
        %2264 = vmatpush1.xpose.msra.mxu0 0.0
        %2265 = vmatprep.subr.mxu0 0.0
        %2266 = vmatpush1.xpose.msra.mxu0 0.0
        %2267 = vmatprep.subr.mxu0 0.0
        %2268 = vmatpush1.xpose.msra.mxu0 0.0
        %2269 = vmatprep.subr.mxu0 0.0
        %2270 = vmatpush1.xpose.msra.mxu0 0.0
        %2271 = vmatprep.subr.mxu0 0.0
        %2272 = vmatpush1.xpose.msra.mxu0 0.0
        %2273 = vmatprep.subr.mxu0 0.0
        %2274 = vmatpush1.xpose.msra.mxu0 0.0
        %2275 = vmatprep.subr.mxu0 0.0
        %2276 = vmatpush1.xpose.msra.mxu0 0.0
        %2277 = vmatprep.subr.mxu0 0.0
        %2278 = vmatpush1.xpose.msra.mxu0 0.0
        %2279 = vmatprep.mubr.f32.mxu0 0.0
        %2280 = vmatmul.mubr.f32.gmra.mrb[0].mxu0 %v2213
        %v2281 = vpop.f32.mrb[0].mxu0
        %v2282 = vadd.f32 0.0, %v2281
        %v2283 = vpop.f32.mrb[0].mxu0
        %2284 = vdwg.mxu0
        %v2285 = vmul.f32 %v2066, 0.35355338
        %v2286 = vmul.f32 %v2138, 0.35355338
        %v2287 = vmul.f32 %v2210, 0.35355338
        %v2288 = vmul.f32 %v2282, 0.35355338
        %v2289 = vsel %vm960, %v2285, -inf
        %2290 = vmax.xlane.f32.xlu0 %v2289
        %v2291 = vpop.xlane.xlu0 %2290
        %v2292 = vsel %vm960, %v2286, -inf
        %2293 = vmax.xlane.f32.xlu0 %v2292
        %v2294 = vpop.xlane.xlu0 %2293
        %v2295 = vsel %vm960, %v2287, -inf
        %2296 = vmax.xlane.f32.xlu0 %v2295
        %v2297 = vpop.xlane.xlu0 %2296
        %v2298 = vsel %vm960, %v2288, -inf
        %2299 = vmax.xlane.f32.xlu0 %v2298
        %v2300 = vpop.xlane.xlu0 %2299
        %v2301 = vsub.f32 %v2285, %v2291
        %v2302 = vsub.f32 %v2286, %v2294
        %v2303 = vsub.f32 %v2287, %v2297
        %v2304 = vsub.f32 %v2288, %v2300
        %v2305 = vmul.f32 %v2301, 1.442695
        %v2306 = vpow.pop %v2305
        %v2307 = vmul.f32 %v2302, 1.442695
        %v2308 = vpow.pop %v2307
        %v2309 = vmul.f32 %v2303, 1.442695
        %v2310 = vpow.pop %v2309
        %v2311 = vmul.f32 %v2304, 1.442695
        %v2312 = vpow.pop %v2311
        %v2313 = vsel %vm960, %v2306, 0.0
        %2314 = vadd.xlane.f32.xlu0 %v2313
        %v2315 = vpop.xlane.xlu0 %2314
        %v2316 = vsel %vm960, %v2308, 0.0
        %2317 = vadd.xlane.f32.xlu0 %v2316
        %v2318 = vpop.xlane.xlu0 %2317
        %v2319 = vsel %vm960, %v2310, 0.0
        %2320 = vadd.xlane.f32.xlu0 %v2319
        %v2321 = vpop.xlane.xlu0 %2320
        %v2322 = vsel %vm960, %v2312, 0.0
        %2323 = vadd.xlane.f32.xlu0 %v2322
        %v2324 = vpop.xlane.xlu0 %2323
        %v2325 = vrcp.pop %v2315
        %v2326 = vrcp.pop %v2318
        %v2327 = vrcp.pop %v2321
        %v2328 = vrcp.pop %v2324
        %v2329 = vmul.f32 %v2306, %v2325
        %v2330 = vmul.f32 %v2308, %v2326
        %v2331 = vmul.f32 %v2310, %v2327
        %v2332 = vmul.f32 %v2312, %v2328
        %v2334 = vsel %vm960, %v2329, 0
        %2336 = vmatprep.subr.mxu0 0.0
        %2337 = vmatpush1.msra.mxu0 %v618
        %2338 = vmatprep.subr.mxu0 0.0
        %2339 = vmatpush1.msra.mxu0 %v620
        %2340 = vmatprep.subr.mxu0 0.0
        %2341 = vmatpush1.msra.mxu0 0.0
        %2342 = vmatprep.subr.mxu0 0.0
        %2343 = vmatpush1.msra.mxu0 0.0
        %2344 = vmatprep.subr.mxu0 0.0
        %2345 = vmatpush1.msra.mxu0 0.0
        %2346 = vmatprep.subr.mxu0 0.0
        %2347 = vmatpush1.msra.mxu0 0.0
        %2348 = vmatprep.subr.mxu0 0.0
        %2349 = vmatpush1.msra.mxu0 0.0
        %2350 = vmatprep.subr.mxu0 0.0
        %2351 = vmatpush1.msra.mxu0 0.0
        %2352 = vmatprep.subr.mxu0 0.0
        %2353 = vmatpush1.msra.mxu0 0.0
        %2354 = vmatprep.subr.mxu0 0.0
        %2355 = vmatpush1.msra.mxu0 0.0
        %2356 = vmatprep.subr.mxu0 0.0
        %2357 = vmatpush1.msra.mxu0 0.0
        %2358 = vmatprep.subr.mxu0 0.0
        %2359 = vmatpush1.msra.mxu0 0.0
        %2360 = vmatprep.subr.mxu0 0.0
        %2361 = vmatpush1.msra.mxu0 0.0
        %2362 = vmatprep.subr.mxu0 0.0
        %2363 = vmatpush1.msra.mxu0 0.0
        %2364 = vmatprep.subr.mxu0 0.0
        %2365 = vmatpush1.msra.mxu0 0.0
        %2366 = vmatprep.subr.mxu0 0.0
        %2367 = vmatpush1.msra.mxu0 0.0
        %2368 = vmatprep.subr.mxu0 0.0
        %2369 = vmatpush1.msra.mxu0 0.0
        %2370 = vmatprep.subr.mxu0 0.0
        %2371 = vmatpush1.msra.mxu0 0.0
        %2372 = vmatprep.subr.mxu0 0.0
        %2373 = vmatpush1.msra.mxu0 0.0
        %2374 = vmatprep.subr.mxu0 0.0
        %2375 = vmatpush1.msra.mxu0 0.0
        %2376 = vmatprep.subr.mxu0 0.0
        %2377 = vmatpush1.msra.mxu0 0.0
        %2378 = vmatprep.subr.mxu0 0.0
        %2379 = vmatpush1.msra.mxu0 0.0
        %2380 = vmatprep.subr.mxu0 0.0
        %2381 = vmatpush1.msra.mxu0 0.0
        %2382 = vmatprep.subr.mxu0 0.0
        %2383 = vmatpush1.msra.mxu0 0.0
        %2384 = vmatprep.subr.mxu0 0.0
        %2385 = vmatpush1.msra.mxu0 0.0
        %2386 = vmatprep.subr.mxu0 0.0
        %2387 = vmatpush1.msra.mxu0 0.0
        %2388 = vmatprep.subr.mxu0 0.0
        %2389 = vmatpush1.msra.mxu0 0.0
        %2390 = vmatprep.subr.mxu0 0.0
        %2391 = vmatpush1.msra.mxu0 0.0
        %2392 = vmatprep.subr.mxu0 0.0
        %2393 = vmatpush1.msra.mxu0 0.0
        %2394 = vmatprep.subr.mxu0 0.0
        %2395 = vmatpush1.msra.mxu0 0.0
        %2396 = vmatprep.subr.mxu0 0.0
        %2397 = vmatpush1.msra.mxu0 0.0
        %2398 = vmatprep.subr.mxu0 0.0
        %2399 = vmatpush1.msra.mxu0 0.0
        %2400 = vmatprep.mubr.f32.mxu0 0.0
        %2401 = vmatmul.mubr.f32.gmra.mrb[0].mxu0 %v2334
        %v2402 = vpop.f32.mrb[0].mxu0
        %v2403 = vadd.f32 0.0, %v2402
        %v2404 = vpop.f32.mrb[0].mxu0
        %2405 = vdwg.mxu0
        %v2407 = vsel %vm960, %v2330, 0
        %2409 = vmatprep.subr.mxu0 0.0
        %2410 = vmatpush1.msra.mxu0 %v624
        %2411 = vmatprep.subr.mxu0 0.0
        %2412 = vmatpush1.msra.mxu0 %v626
        %2413 = vmatprep.subr.mxu0 0.0
        %2414 = vmatpush1.msra.mxu0 0.0
        %2415 = vmatprep.subr.mxu0 0.0
        %2416 = vmatpush1.msra.mxu0 0.0
        %2417 = vmatprep.subr.mxu0 0.0
        %2418 = vmatpush1.msra.mxu0 0.0
        %2419 = vmatprep.subr.mxu0 0.0
        %2420 = vmatpush1.msra.mxu0 0.0
        %2421 = vmatprep.subr.mxu0 0.0
        %2422 = vmatpush1.msra.mxu0 0.0
        %2423 = vmatprep.subr.mxu0 0.0
        %2424 = vmatpush1.msra.mxu0 0.0
        %2425 = vmatprep.subr.mxu0 0.0
        %2426 = vmatpush1.msra.mxu0 0.0
        %2427 = vmatprep.subr.mxu0 0.0
        %2428 = vmatpush1.msra.mxu0 0.0
        %2429 = vmatprep.subr.mxu0 0.0
        %2430 = vmatpush1.msra.mxu0 0.0
        %2431 = vmatprep.subr.mxu0 0.0
        %2432 = vmatpush1.msra.mxu0 0.0
        %2433 = vmatprep.subr.mxu0 0.0
        %2434 = vmatpush1.msra.mxu0 0.0
        %2435 = vmatprep.subr.mxu0 0.0
        %2436 = vmatpush1.msra.mxu0 0.0
        %2437 = vmatprep.subr.mxu0 0.0
        %2438 = vmatpush1.msra.mxu0 0.0
        %2439 = vmatprep.subr.mxu0 0.0
        %2440 = vmatpush1.msra.mxu0 0.0
        %2441 = vmatprep.subr.mxu0 0.0
        %2442 = vmatpush1.msra.mxu0 0.0
        %2443 = vmatprep.subr.mxu0 0.0
        %2444 = vmatpush1.msra.mxu0 0.0
        %2445 = vmatprep.subr.mxu0 0.0
        %2446 = vmatpush1.msra.mxu0 0.0
        %2447 = vmatprep.subr.mxu0 0.0
        %2448 = vmatpush1.msra.mxu0 0.0
        %2449 = vmatprep.subr.mxu0 0.0
        %2450 = vmatpush1.msra.mxu0 0.0
        %2451 = vmatprep.subr.mxu0 0.0
        %2452 = vmatpush1.msra.mxu0 0.0
        %2453 = vmatprep.subr.mxu0 0.0
        %2454 = vmatpush1.msra.mxu0 0.0
        %2455 = vmatprep.subr.mxu0 0.0
        %2456 = vmatpush1.msra.mxu0 0.0
        %2457 = vmatprep.subr.mxu0 0.0
        %2458 = vmatpush1.msra.mxu0 0.0
        %2459 = vmatprep.subr.mxu0 0.0
        %2460 = vmatpush1.msra.mxu0 0.0
        %2461 = vmatprep.subr.mxu0 0.0
        %2462 = vmatpush1.msra.mxu0 0.0
        %2463 = vmatprep.subr.mxu0 0.0
        %2464 = vmatpush1.msra.mxu0 0.0
        %2465 = vmatprep.subr.mxu0 0.0
        %2466 = vmatpush1.msra.mxu0 0.0
        %2467 = vmatprep.subr.mxu0 0.0
        %2468 = vmatpush1.msra.mxu0 0.0
        %2469 = vmatprep.subr.mxu0 0.0
        %2470 = vmatpush1.msra.mxu0 0.0
        %2471 = vmatprep.subr.mxu0 0.0
        %2472 = vmatpush1.msra.mxu0 0.0
        %2473 = vmatprep.mubr.f32.mxu0 0.0
        %2474 = vmatmul.mubr.f32.gmra.mrb[0].mxu0 %v2407
        %v2475 = vpop.f32.mrb[0].mxu0
        %v2476 = vadd.f32 0.0, %v2475
        %v2477 = vpop.f32.mrb[0].mxu0
        %2478 = vdwg.mxu0
        %v2480 = vsel %vm960, %v2331, 0
        %2482 = vmatprep.subr.mxu0 0.0
        %2483 = vmatpush1.msra.mxu0 %v630
        %2484 = vmatprep.subr.mxu0 0.0
        %2485 = vmatpush1.msra.mxu0 %v632
        %2486 = vmatprep.subr.mxu0 0.0
        %2487 = vmatpush1.msra.mxu0 0.0
        %2488 = vmatprep.subr.mxu0 0.0
        %2489 = vmatpush1.msra.mxu0 0.0
        %2490 = vmatprep.subr.mxu0 0.0
        %2491 = vmatpush1.msra.mxu0 0.0
        %2492 = vmatprep.subr.mxu0 0.0
        %2493 = vmatpush1.msra.mxu0 0.0
        %2494 = vmatprep.subr.mxu0 0.0
        %2495 = vmatpush1.msra.mxu0 0.0
        %2496 = vmatprep.subr.mxu0 0.0
        %2497 = vmatpush1.msra.mxu0 0.0
        %2498 = vmatprep.subr.mxu0 0.0
        %2499 = vmatpush1.msra.mxu0 0.0
        %2500 = vmatprep.subr.mxu0 0.0
        %2501 = vmatpush1.msra.mxu0 0.0
        %2502 = vmatprep.subr.mxu0 0.0
        %2503 = vmatpush1.msra.mxu0 0.0
        %2504 = vmatprep.subr.mxu0 0.0
        %2505 = vmatpush1.msra.mxu0 0.0
        %2506 = vmatprep.subr.mxu0 0.0
        %2507 = vmatpush1.msra.mxu0 0.0
        %2508 = vmatprep.subr.mxu0 0.0
        %2509 = vmatpush1.msra.mxu0 0.0
        %2510 = vmatprep.subr.mxu0 0.0
        %2511 = vmatpush1.msra.mxu0 0.0
        %2512 = vmatprep.subr.mxu0 0.0
        %2513 = vmatpush1.msra.mxu0 0.0
        %2514 = vmatprep.subr.mxu0 0.0
        %2515 = vmatpush1.msra.mxu0 0.0
        %2516 = vmatprep.subr.mxu0 0.0
        %2517 = vmatpush1.msra.mxu0 0.0
        %2518 = vmatprep.subr.mxu0 0.0
        %2519 = vmatpush1.msra.mxu0 0.0
        %2520 = vmatprep.subr.mxu0 0.0
        %2521 = vmatpush1.msra.mxu0 0.0
        %2522 = vmatprep.subr.mxu0 0.0
        %2523 = vmatpush1.msra.mxu0 0.0
        %2524 = vmatprep.subr.mxu0 0.0
        %2525 = vmatpush1.msra.mxu0 0.0
        %2526 = vmatprep.subr.mxu0 0.0
        %2527 = vmatpush1.msra.mxu0 0.0
        %2528 = vmatprep.subr.mxu0 0.0
        %2529 = vmatpush1.msra.mxu0 0.0
        %2530 = vmatprep.subr.mxu0 0.0
        %2531 = vmatpush1.msra.mxu0 0.0
        %2532 = vmatprep.subr.mxu0 0.0
        %2533 = vmatpush1.msra.mxu0 0.0
        %2534 = vmatprep.subr.mxu0 0.0
        %2535 = vmatpush1.msra.mxu0 0.0
        %2536 = vmatprep.subr.mxu0 0.0
        %2537 = vmatpush1.msra.mxu0 0.0
        %2538 = vmatprep.subr.mxu0 0.0
        %2539 = vmatpush1.msra.mxu0 0.0
        %2540 = vmatprep.subr.mxu0 0.0
        %2541 = vmatpush1.msra.mxu0 0.0
        %2542 = vmatprep.subr.mxu0 0.0
        %2543 = vmatpush1.msra.mxu0 0.0
        %2544 = vmatprep.subr.mxu0 0.0
        %2545 = vmatpush1.msra.mxu0 0.0
        %2546 = vmatprep.mubr.f32.mxu0 0.0
        %2547 = vmatmul.mubr.f32.gmra.mrb[0].mxu0 %v2480
        %v2548 = vpop.f32.mrb[0].mxu0
        %v2549 = vadd.f32 0.0, %v2548
        %v2550 = vpop.f32.mrb[0].mxu0
        %2551 = vdwg.mxu0
        %v2553 = vsel %vm960, %v2332, 0
        %2555 = vmatprep.subr.mxu0 0.0
        %2556 = vmatpush1.msra.mxu0 %v636
        %2557 = vmatprep.subr.mxu0 0.0
        %2558 = vmatpush1.msra.mxu0 %v638
        %2559 = vmatprep.subr.mxu0 0.0
        %2560 = vmatpush1.msra.mxu0 0.0
        %2561 = vmatprep.subr.mxu0 0.0
        %2562 = vmatpush1.msra.mxu0 0.0
        %2563 = vmatprep.subr.mxu0 0.0
        %2564 = vmatpush1.msra.mxu0 0.0
        %2565 = vmatprep.subr.mxu0 0.0
        %2566 = vmatpush1.msra.mxu0 0.0
        %2567 = vmatprep.subr.mxu0 0.0
        %2568 = vmatpush1.msra.mxu0 0.0
        %2569 = vmatprep.subr.mxu0 0.0
        %2570 = vmatpush1.msra.mxu0 0.0
        %2571 = vmatprep.subr.mxu0 0.0
        %2572 = vmatpush1.msra.mxu0 0.0
        %2573 = vmatprep.subr.mxu0 0.0
        %2574 = vmatpush1.msra.mxu0 0.0
        %2575 = vmatprep.subr.mxu0 0.0
        %2576 = vmatpush1.msra.mxu0 0.0
        %2577 = vmatprep.subr.mxu0 0.0
        %2578 = vmatpush1.msra.mxu0 0.0
        %2579 = vmatprep.subr.mxu0 0.0
        %2580 = vmatpush1.msra.mxu0 0.0
        %2581 = vmatprep.subr.mxu0 0.0
        %2582 = vmatpush1.msra.mxu0 0.0
        %2583 = vmatprep.subr.mxu0 0.0
        %2584 = vmatpush1.msra.mxu0 0.0
        %2585 = vmatprep.subr.mxu0 0.0
        %2586 = vmatpush1.msra.mxu0 0.0
        %2587 = vmatprep.subr.mxu0 0.0
        %2588 = vmatpush1.msra.mxu0 0.0
        %2589 = vmatprep.subr.mxu0 0.0
        %2590 = vmatpush1.msra.mxu0 0.0
        %2591 = vmatprep.subr.mxu0 0.0
        %2592 = vmatpush1.msra.mxu0 0.0
        %2593 = vmatprep.subr.mxu0 0.0
        %2594 = vmatpush1.msra.mxu0 0.0
        %2595 = vmatprep.subr.mxu0 0.0
        %2596 = vmatpush1.msra.mxu0 0.0
        %2597 = vmatprep.subr.mxu0 0.0
        %2598 = vmatpush1.msra.mxu0 0.0
        %2599 = vmatprep.subr.mxu0 0.0
        %2600 = vmatpush1.msra.mxu0 0.0
        %2601 = vmatprep.subr.mxu0 0.0
        %2602 = vmatpush1.msra.mxu0 0.0
        %2603 = vmatprep.subr.mxu0 0.0
        %2604 = vmatpush1.msra.mxu0 0.0
        %2605 = vmatprep.subr.mxu0 0.0
        %2606 = vmatpush1.msra.mxu0 0.0
        %2607 = vmatprep.subr.mxu0 0.0
        %2608 = vmatpush1.msra.mxu0 0.0
        %2609 = vmatprep.subr.mxu0 0.0
        %2610 = vmatpush1.msra.mxu0 0.0
        %2611 = vmatprep.subr.mxu0 0.0
        %2612 = vmatpush1.msra.mxu0 0.0
        %2613 = vmatprep.subr.mxu0 0.0
        %2614 = vmatpush1.msra.mxu0 0.0
        %2615 = vmatprep.subr.mxu0 0.0
        %2616 = vmatpush1.msra.mxu0 0.0
        %2617 = vmatprep.subr.mxu0 0.0
        %2618 = vmatpush1.msra.mxu0 0.0
        %2619 = vmatprep.mubr.f32.mxu0 0.0
        %2620 = vmatmul.mubr.f32.gmra.mrb[0].mxu0 %v2553
        %v2621 = vpop.f32.mrb[0].mxu0
        %v2622 = vadd.f32 0.0, %v2621
        %v2623 = vpop.f32.mrb[0].mxu0
        %2624 = vdwg.mxu0
        %v2626 = vsel %vm651, %v2403, 0
        %2628 = vmatprep.subr.mxu0 0.0
        %2629 = vmatpush1.msra.mxu0 %v641
        %2630 = vmatprep.subr.mxu0 0.0
        %2631 = vmatpush1.msra.mxu0 0.0
        %2632 = vmatprep.subr.mxu0 0.0
        %2633 = vmatpush1.msra.mxu0 0.0
        %2634 = vmatprep.subr.mxu0 0.0
        %2635 = vmatpush1.msra.mxu0 0.0
        %2636 = vmatprep.subr.mxu0 0.0
        %2637 = vmatpush1.msra.mxu0 0.0
        %2638 = vmatprep.subr.mxu0 0.0
        %2639 = vmatpush1.msra.mxu0 0.0
        %2640 = vmatprep.subr.mxu0 0.0
        %2641 = vmatpush1.msra.mxu0 0.0
        %2642 = vmatprep.subr.mxu0 0.0
        %2643 = vmatpush1.msra.mxu0 0.0
        %2644 = vmatprep.subr.mxu0 0.0
        %2645 = vmatpush1.msra.mxu0 0.0
        %2646 = vmatprep.subr.mxu0 0.0
        %2647 = vmatpush1.msra.mxu0 0.0
        %2648 = vmatprep.subr.mxu0 0.0
        %2649 = vmatpush1.msra.mxu0 0.0
        %2650 = vmatprep.subr.mxu0 0.0
        %2651 = vmatpush1.msra.mxu0 0.0
        %2652 = vmatprep.subr.mxu0 0.0
        %2653 = vmatpush1.msra.mxu0 0.0
        %2654 = vmatprep.subr.mxu0 0.0
        %2655 = vmatpush1.msra.mxu0 0.0
        %2656 = vmatprep.subr.mxu0 0.0
        %2657 = vmatpush1.msra.mxu0 0.0
        %2658 = vmatprep.subr.mxu0 0.0
        %2659 = vmatpush1.msra.mxu0 0.0
        %2660 = vmatprep.subr.mxu0 0.0
        %2661 = vmatpush1.msra.mxu0 0.0
        %2662 = vmatprep.subr.mxu0 0.0
        %2663 = vmatpush1.msra.mxu0 0.0
        %2664 = vmatprep.subr.mxu0 0.0
        %2665 = vmatpush1.msra.mxu0 0.0
        %2666 = vmatprep.subr.mxu0 0.0
        %2667 = vmatpush1.msra.mxu0 0.0
        %2668 = vmatprep.subr.mxu0 0.0
        %2669 = vmatpush1.msra.mxu0 0.0
        %2670 = vmatprep.subr.mxu0 0.0
        %2671 = vmatpush1.msra.mxu0 0.0
        %2672 = vmatprep.subr.mxu0 0.0
        %2673 = vmatpush1.msra.mxu0 0.0
        %2674 = vmatprep.subr.mxu0 0.0
        %2675 = vmatpush1.msra.mxu0 0.0
        %2676 = vmatprep.subr.mxu0 0.0
        %2677 = vmatpush1.msra.mxu0 0.0
        %2678 = vmatprep.subr.mxu0 0.0
        %2679 = vmatpush1.msra.mxu0 0.0
        %2680 = vmatprep.subr.mxu0 0.0
        %2681 = vmatpush1.msra.mxu0 0.0
        %2682 = vmatprep.subr.mxu0 0.0
        %2683 = vmatpush1.msra.mxu0 0.0
        %2684 = vmatprep.subr.mxu0 0.0
        %2685 = vmatpush1.msra.mxu0 0.0
        %2686 = vmatprep.subr.mxu0 0.0
        %2687 = vmatpush1.msra.mxu0 0.0
        %2688 = vmatprep.subr.mxu0 0.0
        %2689 = vmatpush1.msra.mxu0 0.0
        %2690 = vmatprep.subr.mxu0 0.0
        %2691 = vmatpush1.msra.mxu0 0.0
        %2692 = vmatprep.mubr.f32.mxu0 0.0
        %2693 = vmatmul.mubr.f32.gmra.mrb[0].mxu0 %v2626
        %v2694 = vpop.f32.mrb[0].mxu0
        %v2695 = vadd.f32 0.0, %v2694
        %v2696 = vpop.f32.mrb[0].mxu0
        %2697 = vdwg.mxu0
        %v2699 = vsel %vm651, %v2476, 0
        %2701 = vmatprep.subr.mxu0 0.0
        %2702 = vmatpush1.msra.mxu0 %v642
        %2703 = vmatprep.subr.mxu0 0.0
        %2704 = vmatpush1.msra.mxu0 0.0
        %2705 = vmatprep.subr.mxu0 0.0
        %2706 = vmatpush1.msra.mxu0 0.0
        %2707 = vmatprep.subr.mxu0 0.0
        %2708 = vmatpush1.msra.mxu0 0.0
        %2709 = vmatprep.subr.mxu0 0.0
        %2710 = vmatpush1.msra.mxu0 0.0
        %2711 = vmatprep.subr.mxu0 0.0
        %2712 = vmatpush1.msra.mxu0 0.0
        %2713 = vmatprep.subr.mxu0 0.0
        %2714 = vmatpush1.msra.mxu0 0.0
        %2715 = vmatprep.subr.mxu0 0.0
        %2716 = vmatpush1.msra.mxu0 0.0
        %2717 = vmatprep.subr.mxu0 0.0
        %2718 = vmatpush1.msra.mxu0 0.0
        %2719 = vmatprep.subr.mxu0 0.0
        %2720 = vmatpush1.msra.mxu0 0.0
        %2721 = vmatprep.subr.mxu0 0.0
        %2722 = vmatpush1.msra.mxu0 0.0
        %2723 = vmatprep.subr.mxu0 0.0
        %2724 = vmatpush1.msra.mxu0 0.0
        %2725 = vmatprep.subr.mxu0 0.0
        %2726 = vmatpush1.msra.mxu0 0.0
        %2727 = vmatprep.subr.mxu0 0.0
        %2728 = vmatpush1.msra.mxu0 0.0
        %2729 = vmatprep.subr.mxu0 0.0
        %2730 = vmatpush1.msra.mxu0 0.0
        %2731 = vmatprep.subr.mxu0 0.0
        %2732 = vmatpush1.msra.mxu0 0.0
        %2733 = vmatprep.subr.mxu0 0.0
        %2734 = vmatpush1.msra.mxu0 0.0
        %2735 = vmatprep.subr.mxu0 0.0
        %2736 = vmatpush1.msra.mxu0 0.0
        %2737 = vmatprep.subr.mxu0 0.0
        %2738 = vmatpush1.msra.mxu0 0.0
        %2739 = vmatprep.subr.mxu0 0.0
        %2740 = vmatpush1.msra.mxu0 0.0
        %2741 = vmatprep.subr.mxu0 0.0
        %2742 = vmatpush1.msra.mxu0 0.0
        %2743 = vmatprep.subr.mxu0 0.0
        %2744 = vmatpush1.msra.mxu0 0.0
        %2745 = vmatprep.subr.mxu0 0.0
        %2746 = vmatpush1.msra.mxu0 0.0
        %2747 = vmatprep.subr.mxu0 0.0
        %2748 = vmatpush1.msra.mxu0 0.0
        %2749 = vmatprep.subr.mxu0 0.0
        %2750 = vmatpush1.msra.mxu0 0.0
        %2751 = vmatprep.subr.mxu0 0.0
        %2752 = vmatpush1.msra.mxu0 0.0
        %2753 = vmatprep.subr.mxu0 0.0
        %2754 = vmatpush1.msra.mxu0 0.0
        %2755 = vmatprep.subr.mxu0 0.0
        %2756 = vmatpush1.msra.mxu0 0.0
        %2757 = vmatprep.subr.mxu0 0.0
        %2758 = vmatpush1.msra.mxu0 0.0
        %2759 = vmatprep.subr.mxu0 0.0
        %2760 = vmatpush1.msra.mxu0 0.0
        %2761 = vmatprep.subr.mxu0 0.0
        %2762 = vmatpush1.msra.mxu0 0.0
        %2763 = vmatprep.subr.mxu0 0.0
        %2764 = vmatpush1.msra.mxu0 0.0
        %2765 = vmatprep.mubr.f32.mxu0 0.0
        %2766 = vmatmul.mubr.f32.gmra.mrb[0].mxu0 %v2699
        %v2767 = vpop.f32.mrb[0].mxu0
        %v2768 = vadd.f32 0.0, %v2767
        %v2769 = vpop.f32.mrb[0].mxu0
        %2770 = vdwg.mxu0
        %v2772 = vsel %vm651, %v2549, 0
        %2774 = vmatprep.subr.mxu0 0.0
        %2775 = vmatpush1.msra.mxu0 %v643
        %2776 = vmatprep.subr.mxu0 0.0
        %2777 = vmatpush1.msra.mxu0 0.0
        %2778 = vmatprep.subr.mxu0 0.0
        %2779 = vmatpush1.msra.mxu0 0.0
        %2780 = vmatprep.subr.mxu0 0.0
        %2781 = vmatpush1.msra.mxu0 0.0
        %2782 = vmatprep.subr.mxu0 0.0
        %2783 = vmatpush1.msra.mxu0 0.0
        %2784 = vmatprep.subr.mxu0 0.0
        %2785 = vmatpush1.msra.mxu0 0.0
        %2786 = vmatprep.subr.mxu0 0.0
        %2787 = vmatpush1.msra.mxu0 0.0
        %2788 = vmatprep.subr.mxu0 0.0
        %2789 = vmatpush1.msra.mxu0 0.0
        %2790 = vmatprep.subr.mxu0 0.0
        %2791 = vmatpush1.msra.mxu0 0.0
        %2792 = vmatprep.subr.mxu0 0.0
        %2793 = vmatpush1.msra.mxu0 0.0
        %2794 = vmatprep.subr.mxu0 0.0
        %2795 = vmatpush1.msra.mxu0 0.0
        %2796 = vmatprep.subr.mxu0 0.0
        %2797 = vmatpush1.msra.mxu0 0.0
        %2798 = vmatprep.subr.mxu0 0.0
        %2799 = vmatpush1.msra.mxu0 0.0
        %2800 = vmatprep.subr.mxu0 0.0
        %2801 = vmatpush1.msra.mxu0 0.0
        %2802 = vmatprep.subr.mxu0 0.0
        %2803 = vmatpush1.msra.mxu0 0.0
        %2804 = vmatprep.subr.mxu0 0.0
        %2805 = vmatpush1.msra.mxu0 0.0
        %2806 = vmatprep.subr.mxu0 0.0
        %2807 = vmatpush1.msra.mxu0 0.0
        %2808 = vmatprep.subr.mxu0 0.0
        %2809 = vmatpush1.msra.mxu0 0.0
        %2810 = vmatprep.subr.mxu0 0.0
        %2811 = vmatpush1.msra.mxu0 0.0
        %2812 = vmatprep.subr.mxu0 0.0
        %2813 = vmatpush1.msra.mxu0 0.0
        %2814 = vmatprep.subr.mxu0 0.0
        %2815 = vmatpush1.msra.mxu0 0.0
        %2816 = vmatprep.subr.mxu0 0.0
        %2817 = vmatpush1.msra.mxu0 0.0
        %2818 = vmatprep.subr.mxu0 0.0
        %2819 = vmatpush1.msra.mxu0 0.0
        %2820 = vmatprep.subr.mxu0 0.0
        %2821 = vmatpush1.msra.mxu0 0.0
        %2822 = vmatprep.subr.mxu0 0.0
        %2823 = vmatpush1.msra.mxu0 0.0
        %2824 = vmatprep.subr.mxu0 0.0
        %2825 = vmatpush1.msra.mxu0 0.0
        %2826 = vmatprep.subr.mxu0 0.0
        %2827 = vmatpush1.msra.mxu0 0.0
        %2828 = vmatprep.subr.mxu0 0.0
        %2829 = vmatpush1.msra.mxu0 0.0
        %2830 = vmatprep.subr.mxu0 0.0
        %2831 = vmatpush1.msra.mxu0 0.0
        %2832 = vmatprep.subr.mxu0 0.0
        %2833 = vmatpush1.msra.mxu0 0.0
        %2834 = vmatprep.subr.mxu0 0.0
        %2835 = vmatpush1.msra.mxu0 0.0
        %2836 = vmatprep.subr.mxu0 0.0
        %2837 = vmatpush1.msra.mxu0 0.0
        %2838 = vmatprep.mubr.f32.mxu0 0.0
        %2839 = vmatmul.mubr.f32.gmra.mrb[0].mxu0 %v2772
        %v2840 = vpop.f32.mrb[0].mxu0
        %v2841 = vadd.f32 0.0, %v2840
        %v2842 = vpop.f32.mrb[0].mxu0
        %2843 = vdwg.mxu0
        %v2845 = vsel %vm651, %v2622, 0
        %2847 = vmatprep.subr.mxu0 0.0
        %2848 = vmatpush1.msra.mxu0 %v644
        %2849 = vmatprep.subr.mxu0 0.0
        %2850 = vmatpush1.msra.mxu0 0.0
        %2851 = vmatprep.subr.mxu0 0.0
        %2852 = vmatpush1.msra.mxu0 0.0
        %2853 = vmatprep.subr.mxu0 0.0
        %2854 = vmatpush1.msra.mxu0 0.0
        %2855 = vmatprep.subr.mxu0 0.0
        %2856 = vmatpush1.msra.mxu0 0.0
        %2857 = vmatprep.subr.mxu0 0.0
        %2858 = vmatpush1.msra.mxu0 0.0
        %2859 = vmatprep.subr.mxu0 0.0
        %2860 = vmatpush1.msra.mxu0 0.0
        %2861 = vmatprep.subr.mxu0 0.0
        %2862 = vmatpush1.msra.mxu0 0.0
        %2863 = vmatprep.subr.mxu0 0.0
        %2864 = vmatpush1.msra.mxu0 0.0
        %2865 = vmatprep.subr.mxu0 0.0
        %2866 = vmatpush1.msra.mxu0 0.0
        %2867 = vmatprep.subr.mxu0 0.0
        %2868 = vmatpush1.msra.mxu0 0.0
        %2869 = vmatprep.subr.mxu0 0.0
        %2870 = vmatpush1.msra.mxu0 0.0
        %2871 = vmatprep.subr.mxu0 0.0
        %2872 = vmatpush1.msra.mxu0 0.0
        %2873 = vmatprep.subr.mxu0 0.0
        %2874 = vmatpush1.msra.mxu0 0.0
        %2875 = vmatprep.subr.mxu0 0.0
        %2876 = vmatpush1.msra.mxu0 0.0
        %2877 = vmatprep.subr.mxu0 0.0
        %2878 = vmatpush1.msra.mxu0 0.0
        %2879 = vmatprep.subr.mxu0 0.0
        %2880 = vmatpush1.msra.mxu0 0.0
        %2881 = vmatprep.subr.mxu0 0.0
        %2882 = vmatpush1.msra.mxu0 0.0
        %2883 = vmatprep.subr.mxu0 0.0
        %2884 = vmatpush1.msra.mxu0 0.0
        %2885 = vmatprep.subr.mxu0 0.0
        %2886 = vmatpush1.msra.mxu0 0.0
        %2887 = vmatprep.subr.mxu0 0.0
        %2888 = vmatpush1.msra.mxu0 0.0
        %2889 = vmatprep.subr.mxu0 0.0
        %2890 = vmatpush1.msra.mxu0 0.0
        %2891 = vmatprep.subr.mxu0 0.0
        %2892 = vmatpush1.msra.mxu0 0.0
        %2893 = vmatprep.subr.mxu0 0.0
        %2894 = vmatpush1.msra.mxu0 0.0
        %2895 = vmatprep.subr.mxu0 0.0
        %2896 = vmatpush1.msra.mxu0 0.0
        %2897 = vmatprep.subr.mxu0 0.0
        %2898 = vmatpush1.msra.mxu0 0.0
        %2899 = vmatprep.subr.mxu0 0.0
        %2900 = vmatpush1.msra.mxu0 0.0
        %2901 = vmatprep.subr.mxu0 0.0
        %2902 = vmatpush1.msra.mxu0 0.0
        %2903 = vmatprep.subr.mxu0 0.0
        %2904 = vmatpush1.msra.mxu0 0.0
        %2905 = vmatprep.subr.mxu0 0.0
        %2906 = vmatpush1.msra.mxu0 0.0
        %2907 = vmatprep.subr.mxu0 0.0
        %2908 = vmatpush1.msra.mxu0 0.0
        %2909 = vmatprep.subr.mxu0 0.0
        %2910 = vmatpush1.msra.mxu0 0.0
        %2911 = vmatprep.mubr.f32.mxu0 0.0
        %2912 = vmatmul.mubr.f32.gmra.mrb[0].mxu0 %v2845
        %v2913 = vpop.f32.mrb[0].mxu0
        %v2914 = vadd.f32 0.0, %v2913
        %v2915 = vpop.f32.mrb[0].mxu0
        %2916 = vdwg.mxu0
        %v2917 = vsel %vm505, %v2695, 0.0
        %v2918 = vsel %vm505, %v2768, 0.0
        %v2919 = vadd.f32 %v2917, %v2918
        %v2920 = vsel %vm505, %v2841, 0.0
        %v2921 = vadd.f32 %v2919, %v2920
        %v2922 = vsel %vm505, %v2914, 0.0
        %v2923 = vadd.f32 %v2921, %v2922
        %v2924 = vadd.f32 %v2923, %v1600
        %v2925 = vadd.f32 %v493, %v2924
        %v2926 = vsel %vm505, %v2925, 0.0
        %2927 = vadd.xlane.f32.xlu0 %v2926
        %v2928 = vpop.xlane.xlu0 %2927
        %v2929 = vmul.f32 %v2928, %v1607
        %v2930 = vsub.f32 %v2925, %v2929
        %v2931 = vmul.f32 %v2930, %v2930
        %v2932 = vsel %vm505, %v2931, 0.0
        %2933 = vadd.xlane.f32.xlu0 %v2932
        %v2934 = vpop.xlane.xlu0 %2933
        %v2935 = vmul.f32 %v2934, %v1607
        %v2936 = vadd.f32 %v2935, 1e-05
        %v2937 = vrsqrt.pop %v2936
        %v2938 = vmul.f32 %v2930, %v2937
        %v2939 = vmul.f32 %v2938, %v1622
        %v2940 = vadd.f32 %v2939, %v1629
        %v2941 = vld [vmem:[#allocation7] sm:$0xff]
        %v2942 = vld [vmem:[#allocation7 + $0x8] sm:$0xff]
        %v2943 = vld [vmem:[#allocation7 + $0x10] sm:$0xff]
        %v2944 = vld [vmem:[#allocation7 + $0x18] sm:$0xff]
        %v2945 = vld [vmem:[#allocation8] sm:$0x1]
        %v2947 = vlaneseq
        %v2948 = vshrl.u32 %v2947, 7
        %v2949 = vsub.s32 0, %v2948
        %v2950 = vrot.slane %v2945, %v2949
        %v2953 = vsel %vm505, %v2940, 0
        %2955 = vmatprep.subr.mxu0 0.0
        %2956 = vmatpush1.msra.mxu0 %v2941
        %2957 = vmatprep.subr.mxu0 0.0
        %2958 = vmatpush1.msra.mxu0 %v2942
        %2959 = vmatprep.subr.mxu0 0.0
        %2960 = vmatpush1.msra.mxu0 %v2943
        %2961 = vmatprep.subr.mxu0 0.0
        %2962 = vmatpush1.msra.mxu0 %v2944
        %2963 = vmatprep.subr.mxu0 0.0
        %2964 = vmatpush1.msra.mxu0 0.0
        %2965 = vmatprep.subr.mxu0 0.0
        %2966 = vmatpush1.msra.mxu0 0.0
        %2967 = vmatprep.subr.mxu0 0.0
        %2968 = vmatpush1.msra.mxu0 0.0
        %2969 = vmatprep.subr.mxu0 0.0
        %2970 = vmatpush1.msra.mxu0 0.0
        %2971 = vmatprep.subr.mxu0 0.0
        %2972 = vmatpush1.msra.mxu0 0.0
        %2973 = vmatprep.subr.mxu0 0.0
        %2974 = vmatpush1.msra.mxu0 0.0
        %2975 = vmatprep.subr.mxu0 0.0
        %2976 = vmatpush1.msra.mxu0 0.0
        %2977 = vmatprep.subr.mxu0 0.0
        %2978 = vmatpush1.msra.mxu0 0.0
        %2979 = vmatprep.subr.mxu0 0.0
        %2980 = vmatpush1.msra.mxu0 0.0
        %2981 = vmatprep.subr.mxu0 0.0
        %2982 = vmatpush1.msra.mxu0 0.0
        %2983 = vmatprep.subr.mxu0 0.0
        %2984 = vmatpush1.msra.mxu0 0.0
        %2985 = vmatprep.subr.mxu0 0.0
        %2986 = vmatpush1.msra.mxu0 0.0
        %2987 = vmatprep.subr.mxu0 0.0
        %2988 = vmatpush1.msra.mxu0 0.0
        %2989 = vmatprep.subr.mxu0 0.0
        %2990 = vmatpush1.msra.mxu0 0.0
        %2991 = vmatprep.subr.mxu0 0.0
        %2992 = vmatpush1.msra.mxu0 0.0
        %2993 = vmatprep.subr.mxu0 0.0
        %2994 = vmatpush1.msra.mxu0 0.0
        %2995 = vmatprep.subr.mxu0 0.0
        %2996 = vmatpush1.msra.mxu0 0.0
        %2997 = vmatprep.subr.mxu0 0.0
        %2998 = vmatpush1.msra.mxu0 0.0
        %2999 = vmatprep.subr.mxu0 0.0
        %3000 = vmatpush1.msra.mxu0 0.0
        %3001 = vmatprep.subr.mxu0 0.0
        %3002 = vmatpush1.msra.mxu0 0.0
        %3003 = vmatprep.subr.mxu0 0.0
        %3004 = vmatpush1.msra.mxu0 0.0
        %3005 = vmatprep.subr.mxu0 0.0
        %3006 = vmatpush1.msra.mxu0 0.0
        %3007 = vmatprep.subr.mxu0 0.0
        %3008 = vmatpush1.msra.mxu0 0.0
        %3009 = vmatprep.subr.mxu0 0.0
        %3010 = vmatpush1.msra.mxu0 0.0
        %3011 = vmatprep.subr.mxu0 0.0
        %3012 = vmatpush1.msra.mxu0 0.0
        %3013 = vmatprep.subr.mxu0 0.0
        %3014 = vmatpush1.msra.mxu0 0.0
        %3015 = vmatprep.subr.mxu0 0.0
        %3016 = vmatpush1.msra.mxu0 0.0
        %3017 = vmatprep.subr.mxu0 0.0
        %3018 = vmatpush1.msra.mxu0 0.0
        %3019 = vmatprep.mubr.f32.mxu0 0.0
        %3020 = vmatmul.mubr.f32.gmra.mrb[0].mxu0 %v2953
        %v3021 = vpop.f32.mrb[0].mxu0
        %v3022 = vadd.f32 %v2950, %v3021
        %v3023 = vpop.f32.mrb[0].mxu0
        %3024 = vdwg.mxu0
        %v3025 = vmax.f32 %v3022, 0.0
        %v3026 = vld [vmem:[%s9] sm:$0xff]
        %v3027 = vld [vmem:[%s9 + $0x8] sm:$0xff]
        %v3028 = vld [vmem:[%s9 + $0x10] sm:$0xff]
        %v3029 = vld [vmem:[%s9 + $0x18] sm:$0xff]
        %3034 = vrot.lane.b32.xlu0 %v2941, 96
        %v3035 = vpop.permute.xlu0 %3034
        %3036 = vrot.lane.b32.xlu0 %v2942, 96
        %v3037 = vpop.permute.xlu0 %3036
        %3038 = vrot.lane.b32.xlu0 %v2943, 96
        %v3039 = vpop.permute.xlu0 %3038
        %3040 = vrot.lane.b32.xlu0 %v2944, 96
        %v3041 = vpop.permute.xlu0 %3040
        %3046 = vrot.lane.b32.xlu0 %v2950, 96
        %v3047 = vpop.permute.xlu0 %3046
        %3049 = vmatprep.subr.mxu0 0.0
        %3050 = vmatpush1.msra.mxu0 %v3035
        %3051 = vmatprep.subr.mxu0 0.0
        %3052 = vmatpush1.msra.mxu0 %v3037
        %3053 = vmatprep.subr.mxu0 0.0
        %3054 = vmatpush1.msra.mxu0 %v3039
        %3055 = vmatprep.subr.mxu0 0.0
        %3056 = vmatpush1.msra.mxu0 %v3041
        %3057 = vmatprep.subr.mxu0 0.0
        %3058 = vmatpush1.msra.mxu0 0.0
        %3059 = vmatprep.subr.mxu0 0.0
        %3060 = vmatpush1.msra.mxu0 0.0
        %3061 = vmatprep.subr.mxu0 0.0
        %3062 = vmatpush1.msra.mxu0 0.0
        %3063 = vmatprep.subr.mxu0 0.0
        %3064 = vmatpush1.msra.mxu0 0.0
        %3065 = vmatprep.subr.mxu0 0.0
        %3066 = vmatpush1.msra.mxu0 0.0
        %3067 = vmatprep.subr.mxu0 0.0
        %3068 = vmatpush1.msra.mxu0 0.0
        %3069 = vmatprep.subr.mxu0 0.0
        %3070 = vmatpush1.msra.mxu0 0.0
        %3071 = vmatprep.subr.mxu0 0.0
        %3072 = vmatpush1.msra.mxu0 0.0
        %3073 = vmatprep.subr.mxu0 0.0
        %3074 = vmatpush1.msra.mxu0 0.0
        %3075 = vmatprep.subr.mxu0 0.0
        %3076 = vmatpush1.msra.mxu0 0.0
        %3077 = vmatprep.subr.mxu0 0.0
        %3078 = vmatpush1.msra.mxu0 0.0
        %3079 = vmatprep.subr.mxu0 0.0
        %3080 = vmatpush1.msra.mxu0 0.0
        %3081 = vmatprep.subr.mxu0 0.0
        %3082 = vmatpush1.msra.mxu0 0.0
        %3083 = vmatprep.subr.mxu0 0.0
        %3084 = vmatpush1.msra.mxu0 0.0
        %3085 = vmatprep.subr.mxu0 0.0
        %3086 = vmatpush1.msra.mxu0 0.0
        %3087 = vmatprep.subr.mxu0 0.0
        %3088 = vmatpush1.msra.mxu0 0.0
        %3089 = vmatprep.subr.mxu0 0.0
        %3090 = vmatpush1.msra.mxu0 0.0
        %3091 = vmatprep.subr.mxu0 0.0
        %3092 = vmatpush1.msra.mxu0 0.0
        %3093 = vmatprep.subr.mxu0 0.0
        %3094 = vmatpush1.msra.mxu0 0.0
        %3095 = vmatprep.subr.mxu0 0.0
        %3096 = vmatpush1.msra.mxu0 0.0
        %3097 = vmatprep.subr.mxu0 0.0
        %3098 = vmatpush1.msra.mxu0 0.0
        %3099 = vmatprep.subr.mxu0 0.0
        %3100 = vmatpush1.msra.mxu0 0.0
        %3101 = vmatprep.subr.mxu0 0.0
        %3102 = vmatpush1.msra.mxu0 0.0
        %3103 = vmatprep.subr.mxu0 0.0
        %3104 = vmatpush1.msra.mxu0 0.0
        %3105 = vmatprep.subr.mxu0 0.0
        %3106 = vmatpush1.msra.mxu0 0.0
        %3107 = vmatprep.subr.mxu0 0.0
        %3108 = vmatpush1.msra.mxu0 0.0
        %3109 = vmatprep.subr.mxu0 0.0
        %3110 = vmatpush1.msra.mxu0 0.0
        %3111 = vmatprep.subr.mxu0 0.0
        %3112 = vmatpush1.msra.mxu0 0.0
        %3113 = vmatprep.mubr.f32.mxu0 0.0
        %3114 = vmatmul.mubr.f32.gmra.mrb[0].mxu0 %v2953
        %v3115 = vpop.f32.mrb[0].mxu0
        %v3116 = vadd.f32 %v3047, %v3115
        %v3117 = vpop.f32.mrb[0].mxu0
        %3118 = vdwg.mxu0
        %v3119 = vmax.f32 %v3116, 0.0
        %v3120 = vld [vmem:[%s9 + $0x20] sm:$0xff]
        %v3121 = vld [vmem:[%s9 + $0x28] sm:$0xff]
        %v3122 = vld [vmem:[%s9 + $0x30] sm:$0xff]
        %v3123 = vld [vmem:[%s9 + $0x38] sm:$0xff]
        %v3125 = vsel %vm505, %v3119, 0
        %3127 = vmatprep.subr.mxu0 0.0
        %3128 = vmatpush1.msra.mxu0 %v3120
        %3129 = vmatprep.subr.mxu0 0.0
        %3130 = vmatpush1.msra.mxu0 %v3121
        %3131 = vmatprep.subr.mxu0 0.0
        %3132 = vmatpush1.msra.mxu0 %v3122
        %3133 = vmatprep.subr.mxu0 0.0
        %3134 = vmatpush1.msra.mxu0 %v3123
        %3135 = vmatprep.subr.mxu0 0.0
        %3136 = vmatpush1.msra.mxu0 0.0
        %3137 = vmatprep.subr.mxu0 0.0
        %3138 = vmatpush1.msra.mxu0 0.0
        %3139 = vmatprep.subr.mxu0 0.0
        %3140 = vmatpush1.msra.mxu0 0.0
        %3141 = vmatprep.subr.mxu0 0.0
        %3142 = vmatpush1.msra.mxu0 0.0
        %3143 = vmatprep.subr.mxu0 0.0
        %3144 = vmatpush1.msra.mxu0 0.0
        %3145 = vmatprep.subr.mxu0 0.0
        %3146 = vmatpush1.msra.mxu0 0.0
        %3147 = vmatprep.subr.mxu0 0.0
        %3148 = vmatpush1.msra.mxu0 0.0
        %3149 = vmatprep.subr.mxu0 0.0
        %3150 = vmatpush1.msra.mxu0 0.0
        %3151 = vmatprep.subr.mxu0 0.0
        %3152 = vmatpush1.msra.mxu0 0.0
        %3153 = vmatprep.subr.mxu0 0.0
        %3154 = vmatpush1.msra.mxu0 0.0
        %3155 = vmatprep.subr.mxu0 0.0
        %3156 = vmatpush1.msra.mxu0 0.0
        %3157 = vmatprep.subr.mxu0 0.0
        %3158 = vmatpush1.msra.mxu0 0.0
        %3159 = vmatprep.subr.mxu0 0.0
        %3160 = vmatpush1.msra.mxu0 0.0
        %3161 = vmatprep.subr.mxu0 0.0
        %3162 = vmatpush1.msra.mxu0 0.0
        %3163 = vmatprep.subr.mxu0 0.0
        %3164 = vmatpush1.msra.mxu0 0.0
        %3165 = vmatprep.subr.mxu0 0.0
        %3166 = vmatpush1.msra.mxu0 0.0
        %3167 = vmatprep.subr.mxu0 0.0
        %3168 = vmatpush1.msra.mxu0 0.0
        %3169 = vmatprep.subr.mxu0 0.0
        %3170 = vmatpush1.msra.mxu0 0.0
        %3171 = vmatprep.subr.mxu0 0.0
        %3172 = vmatpush1.msra.mxu0 0.0
        %3173 = vmatprep.subr.mxu0 0.0
        %3174 = vmatpush1.msra.mxu0 0.0
        %3175 = vmatprep.subr.mxu0 0.0
        %3176 = vmatpush1.msra.mxu0 0.0
        %3177 = vmatprep.subr.mxu0 0.0
        %3178 = vmatpush1.msra.mxu0 0.0
        %3179 = vmatprep.subr.mxu0 0.0
        %3180 = vmatpush1.msra.mxu0 0.0
        %3181 = vmatprep.subr.mxu0 0.0
        %3182 = vmatpush1.msra.mxu0 0.0
        %3183 = vmatprep.subr.mxu0 0.0
        %3184 = vmatpush1.msra.mxu0 0.0
        %3185 = vmatprep.subr.mxu0 0.0
        %3186 = vmatpush1.msra.mxu0 0.0
        %3187 = vmatprep.subr.mxu0 0.0
        %3188 = vmatpush1.msra.mxu0 0.0
        %3189 = vmatprep.subr.mxu0 0.0
        %3190 = vmatpush1.msra.mxu0 0.0
        %3191 = vmatprep.mubr.f32.mxu0 0.0
        %3192 = vmatmul.mubr.f32.gmra.mrb[0].mxu0 %v3125
        %v3193 = vpop.f32.mrb[0].mxu0
        %v3194 = vadd.f32 0.0, %v3193
        %v3195 = vpop.f32.mrb[0].mxu0
        %3196 = vdwg.mxu0
        %v3198 = vsel %vm505, %v3025, 0
        %3200 = vmatprep.subr.mxu0 0.0
        %3201 = vmatpush1.msra.mxu0 %v3026
        %3202 = vmatprep.subr.mxu0 0.0
        %3203 = vmatpush1.msra.mxu0 %v3027
        %3204 = vmatprep.subr.mxu0 0.0
        %3205 = vmatpush1.msra.mxu0 %v3028
        %3206 = vmatprep.subr.mxu0 0.0
        %3207 = vmatpush1.msra.mxu0 %v3029
        %3208 = vmatprep.subr.mxu0 0.0
        %3209 = vmatpush1.msra.mxu0 0.0
        %3210 = vmatprep.subr.mxu0 0.0
        %3211 = vmatpush1.msra.mxu0 0.0
        %3212 = vmatprep.subr.mxu0 0.0
        %3213 = vmatpush1.msra.mxu0 0.0
        %3214 = vmatprep.subr.mxu0 0.0
        %3215 = vmatpush1.msra.mxu0 0.0
        %3216 = vmatprep.subr.mxu0 0.0
        %3217 = vmatpush1.msra.mxu0 0.0
        %3218 = vmatprep.subr.mxu0 0.0
        %3219 = vmatpush1.msra.mxu0 0.0
        %3220 = vmatprep.subr.mxu0 0.0
        %3221 = vmatpush1.msra.mxu0 0.0
        %3222 = vmatprep.subr.mxu0 0.0
        %3223 = vmatpush1.msra.mxu0 0.0
        %3224 = vmatprep.subr.mxu0 0.0
        %3225 = vmatpush1.msra.mxu0 0.0
        %3226 = vmatprep.subr.mxu0 0.0
        %3227 = vmatpush1.msra.mxu0 0.0
        %3228 = vmatprep.subr.mxu0 0.0
        %3229 = vmatpush1.msra.mxu0 0.0
        %3230 = vmatprep.subr.mxu0 0.0
        %3231 = vmatpush1.msra.mxu0 0.0
        %3232 = vmatprep.subr.mxu0 0.0
        %3233 = vmatpush1.msra.mxu0 0.0
        %3234 = vmatprep.subr.mxu0 0.0
        %3235 = vmatpush1.msra.mxu0 0.0
        %3236 = vmatprep.subr.mxu0 0.0
        %3237 = vmatpush1.msra.mxu0 0.0
        %3238 = vmatprep.subr.mxu0 0.0
        %3239 = vmatpush1.msra.mxu0 0.0
        %3240 = vmatprep.subr.mxu0 0.0
        %3241 = vmatpush1.msra.mxu0 0.0
        %3242 = vmatprep.subr.mxu0 0.0
        %3243 = vmatpush1.msra.mxu0 0.0
        %3244 = vmatprep.subr.mxu0 0.0
        %3245 = vmatpush1.msra.mxu0 0.0
        %3246 = vmatprep.subr.mxu0 0.0
        %3247 = vmatpush1.msra.mxu0 0.0
        %3248 = vmatprep.subr.mxu0 0.0
        %3249 = vmatpush1.msra.mxu0 0.0
        %3250 = vmatprep.subr.mxu0 0.0
        %3251 = vmatpush1.msra.mxu0 0.0
        %3252 = vmatprep.subr.mxu0 0.0
        %3253 = vmatpush1.msra.mxu0 0.0
        %3254 = vmatprep.subr.mxu0 0.0
        %3255 = vmatpush1.msra.mxu0 0.0
        %3256 = vmatprep.subr.mxu0 0.0
        %3257 = vmatpush1.msra.mxu0 0.0
        %3258 = vmatprep.subr.mxu0 0.0
        %3259 = vmatpush1.msra.mxu0 0.0
        %3260 = vmatprep.subr.mxu0 0.0
        %3261 = vmatpush1.msra.mxu0 0.0
        %3262 = vmatprep.subr.mxu0 0.0
        %3263 = vmatpush1.msra.mxu0 0.0
        %3264 = vmatprep.mubr.f32.mxu0 0.0
        %3265 = vmatmul.mubr.f32.gmra.mrb[0].mxu0 %v3198
        %v3266 = vpop.f32.mrb[0].mxu0
        %v3267 = vadd.f32 %v3194, %v3266
        %v3268 = vpop.f32.mrb[0].mxu0
        %3269 = vdwg.mxu0
        %v3270 = vadd.f32 %v3267, %v1965
        %v3271 = vadd.f32 %v2940, %v3270
        %v3272 = vsel %vm505, %v3271, 0.0
        %3273 = vadd.xlane.f32.xlu0 %v3272
        %v3274 = vpop.xlane.xlu0 %3273
        %v3275 = vmul.f32 %v3274, %v1607
        %v3276 = vsub.f32 %v3271, %v3275
        %v3277 = vmul.f32 %v3276, %v3276
        %v3278 = vsel %vm505, %v3277, 0.0
        %3279 = vadd.xlane.f32.xlu0 %v3278
        %v3280 = vpop.xlane.xlu0 %3279
        %v3281 = vmul.f32 %v3280, %v1607
        %v3282 = vadd.f32 %v3281, 1e-05
        %v3283 = vrsqrt.pop %v3282
        %v3284 = vmul.f32 %v3276, %v3283
        %v3285 = vmul.f32 %v3284, %v1986
        %v3286 = vadd.f32 %v3285, %v1993
        %3287 = vst.msk [vmem:[%s486 + $0x8] sm:$0xff] %vm505, %v3286
        %s3288 = sand.u32 %s316, 1
        %s3289 = scalar_lea.sflag [#allocation4], %s3288
        %s3290 = sand.u32 %s316, 1
        %s3291 = smul.addr %s3290, 16
        %s3292 = scalar_lea.vmem [#allocation10], %s3291
        // Predicated region
        $region89: #{tpu_custom_call.1} parent=71 // pred_check
          %p3293 = pneg %p326
        $region90: #{tpu_custom_call.1} parent=71 // pred_check_branch
          %3295 = sbr.rel (%p3293) target = $region92
        $region91: #{tpu_custom_call.1} parent=71 // pred_region
          %s3297 = ssub.s32 256, 256
          %3298 = vsyncadd %s3289, %s3297
          %s3299 = smul.addr %s30, 2
          %s3300 = smul.addr %s3299, 128
          %s3301 = scalar_lea.hbm %s13, %s3300
          %s3302 = sshll.u32 %s3292, 4
          %s3303 = int_to_ptr.vmem [resolvable:$true] %s3302
          %3308 = dma.vmem_to_hbm [thread:$0]  %s3303, 256, %s3301, %s3289, 128, 128, 8
        $region92: #{tpu_custom_call.1} parent=71 // pred_fallthru
          _
      $region72: #{tpu_custom_call.1} parent=5 // pred_fallthru
        _
      %p3309 = scmp.le.s32.totalorder 2, %s25
      // Predicated region
      $region93: #{tpu_custom_call.1} parent=5 // pred_check
        %p3310 = pneg %p3309
      $region94: #{tpu_custom_call.1} parent=5 // pred_check_branch
        %3312 = sbr.rel (%p3310) target = $region96
      $region95: #{tpu_custom_call.1} parent=5 // pred_region
        %s3313 = ssub.s32 %s25, 2
        // Predicated region
        $region97: #{tpu_custom_call.1} parent=95 // pred_check
          %p3314 = pneg %p332
        $region98: #{tpu_custom_call.1} parent=95 // pred_check_branch
          %3316 = sbr.rel (%p3314) target = $region100
        $region99: #{tpu_custom_call.1} parent=95 // pred_region
          %s3317 = sand.u32 %s317, 1
          %s3318 = scalar_lea.sflag [#allocation4], %s3317
          %s3319 = sand.u32 %s317, 1
          %s3320 = smul.addr %s3319, 16
          %s3321 = scalar_lea.vmem [#allocation10], %s3320
          %3322 = dma.done %s3318, 256
        $region100: #{tpu_custom_call.1} parent=95 // pred_fallthru
          _
      $region96: #{tpu_custom_call.1} parent=5 // pred_fallthru
        _
    $region6: #{tpu_custom_call.1} parent=1 // loop_footer
      %s29 = sadd.s32 1, %s25
    $region7: #{tpu_custom_call.1} parent=1 // loop_footer_branch
      %24 = sbr.rel target = $region3
    $region8: #{tpu_custom_call.1} parent=1 // loop_exit
      _
    %3323 = vsyncpa [#allocation3], 1
    %s3324 = scalar_lea.sflag [#allocation3], 1
    %3325 = vsyncpa %s3324, 1
    %3326 = vsyncpa [#allocation6], 1
    %3327 = vsyncpa [#allocation9], 1
    %3328 = vsyncpa [#allocation4], 1
    %s3329 = scalar_lea.sflag [#allocation4], 1
    %3330 = vsyncpa %s3329, 1

</llo_original>
